<compile_context>
chip_gen: v7x
topology: tpu7x:2x2x1
jax: 0.10.0
libtpu: 0.0.40
codegen_flags: <defaults>
</compile_context>

<pallas_src>
import functools
import math

import jax
import jax.numpy as jnp
from jax.experimental import pallas as pl
from jax.experimental.pallas import tpu as pltpu

NUM_CLASSES = 10      # small synthetic head (original repo uses a global NUM_CLASSES)
BN_EPS = 1e-5
LANE = 128
VMEM_LIMIT = 32 * 1024 * 1024   # fits scoped VMEM on v5e/v6e and v7x


# ---------------------------------------------------------------------------
# Small helpers
# ---------------------------------------------------------------------------

def pad_to(n, q=LANE):
    return ((n + q - 1) // q) * q


def pad_last(a, target):
    if a.shape[-1] == target:
        return a
    cfg = [(0, 0)] * (a.ndim - 1) + [(0, target - a.shape[-1])]
    return jnp.pad(a, cfg)


def _mxu_dim():
    """Native MXU tile edge: 128 on v5e, 256 on v6e/v7x."""
    try:
        kind = jax.devices()[0].device_kind.lower()
    except Exception:
        return 256
    return 128 if "v5" in kind else 256


def _pick_tile(dim, target, quantum):
    """Largest multiple of `quantum` that divides `dim` and is <= target, else `dim`."""
    if dim <= target:
        return dim
    best = None
    t = quantum
    while t <= target:
        if dim % t == 0:
            best = t
        t += quantum
    return best if best is not None else dim


# ---------------------------------------------------------------------------
# Generic fused conv matmul kernel
# ---------------------------------------------------------------------------

def _conv_mm_kernel(*refs, act, has_pre, has_res):
    """One (b_or_group, m, n, k) grid step of out[b] = epi((x[b]*pre[b]) @ w[b or 0]).

    epi = BN affine (scale, bias) + optional ReLU + optional residual add+ReLU.
    """
    x_ref, w_ref, s_ref, b_ref = refs[:4]
    i = 4
    pre_ref = None
    res_ref = None
    if has_pre:
        pre_ref = refs[i]
        i += 1
    if has_res:
        res_ref = refs[i]
        i += 1
    o_ref, acc_ref = refs[i], refs[i + 1]

    k = pl.program_id(3)

    @pl.when(k == 0)
    def _init():
        acc_ref[...] = jnp.zeros_like(acc_ref)

    x = x_ref[0]
    if has_pre:  # per-batch SE channel gate applied to the input tile
        x = (x.astype(jnp.float32) * pre_ref[0]).astype(jnp.bfloat16)
    acc_ref[...] += jnp.dot(x, w_ref[0], preferred_element_type=jnp.float32)

    @pl.when(k == pl.num_programs(3) - 1)
    def _finalize():
        y = acc_ref[...] * s_ref[0] + b_ref[0]
        if act == "relu":
            y = jnp.maximum(y, 0.0)
        if has_res:  # fused residual add + ReLU epilogue
            y = jnp.maximum(y + res_ref[0], 0.0)
        o_ref[0] = y.astype(o_ref.dtype)


def conv_matmul(x, w, scale, bias, *, pre=None, res=None, act="relu"):
    """Fused batched/grouped matmul.

    x: (B, M, K) bf16; w: (Bw, K, N) bf16 with Bw in {1, B}; scale/bias: (Bs, 1, N) f32;
    pre: (B, 1, K) f32 or None; res: (B, M, N) f32 or None.  Returns (B, M, N) f32.
    The leading axis is either a batch axis (weight shared, Bw == 1) or a group
    axis for grouped convs (block-diagonal weight, Bw == B).
    """
    B, M, K = x.shape
    Bw, _, N = w.shape
    Bs = scale.shape[0]

    mxu = _mxu_dim()                       # 128 on v5e, 256 on v6e/v7x
    tm = _pick_tile(M, mxu, 8)
    tn = _pick_tile(N, mxu, 128)
    tk = _pick_tile(K, 2 * mxu, 128)
    grid = (B, M // tm, N // tn, K // tk)

    def xmap(g, mi, ni, ki):
        return (g, mi, ki)

    def wmap(g, mi, ni, ki):
        return (g if Bw > 1 else 0, ki, ni)

    def smap(g, mi, ni, ki):
        return (g if Bs > 1 else 0, 0, ni)

    def omap(g, mi, ni, ki):
        return (g, mi, ni)

    in_specs = [
        pl.BlockSpec((1, tm, tk), xmap),
        pl.BlockSpec((1, tk, tn), wmap),
        pl.BlockSpec((1, 1, tn), smap),
        pl.BlockSpec((1, 1, tn), smap),
    ]
    args = [x, w, scale, bias]
    if pre is not None:
        in_specs.append(pl.BlockSpec((1, 1, tk), lambda g, mi, ni, ki: (g, 0, ki)))
        args.append(pre)
    if res is not None:
        in_specs.append(pl.BlockSpec((1, tm, tn), omap))
        args.append(res)

    kernel = functools.partial(_conv_mm_kernel, act=act,
                               has_pre=pre is not None, has_res=res is not None)
    return pl.pallas_call(
        kernel,
        out_shape=jax.ShapeDtypeStruct((B, M, N), jnp.float32),
        grid=grid,
        in_specs=in_specs,
        out_specs=pl.BlockSpec((1, tm, tn), omap),
        scratch_shapes=[pltpu.VMEM((tm, tn), jnp.float32)],
        compiler_params=pltpu.CompilerParams(
            dimension_semantics=("parallel", "parallel", "parallel", "arbitrary"),
            vmem_limit_bytes=VMEM_LIMIT),
    )(*args)


# ---------------------------------------------------------------------------
# Fused SE-gate kernel (GAP + FC + ReLU + FC + sigmoid) and head kernel (GAP + FC)
# ---------------------------------------------------------------------------

def _se_gate_kernel(x_ref, w1_ref, b1_ref, w2_ref, b2_ref, o_ref):
    pooled = jnp.mean(x_ref[...], axis=1)                                # (N, C) f32
    h = jnp.dot(pooled.astype(jnp.bfloat16), w1_ref[...],
                preferred_element_type=jnp.float32) + b1_ref[...]
    h = jnp.maximum(h, 0.0)
    s = jnp.dot(h.astype(jnp.bfloat16), w2_ref[...],
                preferred_element_type=jnp.float32) + b2_ref[...]
    # sigmoid via EUP exp + approx reciprocal (keeps the VALU slot free)
    o_ref[...] = pl.reciprocal(1.0 + jnp.exp(-s), approx=True)


def se_gate(x, w1, b1, w2, b2):
    """x: (N, H, W, Cpad) f32 -> per-(batch, channel) sigmoid gate (N, Cpad) f32."""
    N, H, W, C = x.shape
    se_pad = w1.shape[-1]
    return pl.pallas_call(
        _se_gate_kernel,
        out_shape=jax.ShapeDtypeStruct((N, C), jnp.float32),
        grid=(1,),
        in_specs=[
            pl.BlockSpec((N, H * W, C), lambda i: (0, 0, 0)),
            pl.BlockSpec((C, se_pad), lambda i: (0, 0)),
            pl.BlockSpec((1, se_pad), lambda i: (0, 0)),
            pl.BlockSpec((se_pad, C), lambda i: (0, 0)),
            pl.BlockSpec((1, C), lambda i: (0, 0)),
        ],
        out_specs=pl.BlockSpec((N, C), lambda i: (0, 0)),
        compiler_params=pltpu.CompilerParams(
            dimension_semantics=("arbitrary",), vmem_limit_bytes=VMEM_LIMIT),
    )(x.reshape(N, H * W, C), w1, b1, w2, b2)


def _head_kernel(x_ref, w_ref, b_ref, o_ref):
    pooled = jnp.mean(x_ref[...], axis=1)                                # (N, C)
    o_ref[...] = jnp.dot(pooled.astype(jnp.bfloat16), w_ref[...],
                         preferred_element_type=jnp.float32) + b_ref[...]


def head_fwd(x, fc_w, fc_b):
    """x: (N, H, W, Cpad) -> logits (N, NUM_CLASSES).  GAP + FC fused in one kernel."""
    N, H, W, C = x.shape
    cls_pad = fc_w.shape[-1]
    out = pl.pallas_call(
        _head_kernel,
        out_shape=jax.ShapeDtypeStruct((N, cls_pad), jnp.float32),
        grid=(1,),
        in_specs=[
            pl.BlockSpec((N, H * W, C), lambda i: (0, 0, 0)),
            pl.BlockSpec((C, cls_pad), lambda i: (0, 0)),
            pl.BlockSpec((1, cls_pad), lambda i: (0, 0)),
        ],
        out_specs=pl.BlockSpec((N, cls_pad), lambda i: (0, 0)),
        compiler_params=pltpu.CompilerParams(
            dimension_semantics=("arbitrary",), vmem_limit_bytes=VMEM_LIMIT),
    )(x.reshape(N, H * W, C), fc_w, fc_b)
    return out[:, :NUM_CLASSES]


# ---------------------------------------------------------------------------
# JAX glue: im2col + conv wrappers
# ---------------------------------------------------------------------------

def im2col(x, kh, kw, stride, padding):
    """x: (N, H, W, C) -> patches (N*Ho*Wo, kh*kw*C); inner layout (i, j, c)."""
    # TODO(synk): fuse the shifted-window extraction into the matmul kernel's DMA.
    N, H, W, C = x.shape
    if padding:
        x = jnp.pad(x, ((0, 0), (padding, padding), (padding, padding), (0, 0)))
    Hp, Wp = H + 2 * padding, W + 2 * padding
    Ho = (Hp - kh) // stride + 1
    Wo = (Wp - kw) // stride + 1
    cols = []
    for i in range(kh):
        for j in range(kw):
            cols.append(x[:, i:i + stride * Ho:stride, j:j + stride * Wo:stride, :])
    patches = jnp.concatenate(cols, axis=-1)
    return patches.reshape(N * Ho * Wo, kh * kw * C), (N, Ho, Wo)


def run_conv1x1(x, wmat, scale, bias, *, act="relu", stride=1, pre=None, res=None):
    """1x1 conv + BN affine + act, optional per-batch SE input gate and fused
    residual add+ReLU.  x: (N, H, W, Cpad) f32; wmat: (1, Cpad_in, Cpad_out) bf16."""
    if stride > 1:
        x = x[:, ::stride, ::stride, :]
    N, H, W, C = x.shape
    Cout = wmat.shape[-1]
    if pre is None and res is None:
        xb = x.reshape(1, N * H * W, C).astype(jnp.bfloat16)
        y = conv_matmul(xb, wmat, scale, bias, act=act)
    else:
        xb = x.reshape(N, H * W, C).astype(jnp.bfloat16)
        pre3 = None if pre is None else pre.reshape(N, 1, C)
        res3 = None if res is None else res.reshape(N, H * W, Cout)
        y = conv_matmul(xb, wmat, scale, bias, act=act, pre=pre3, res=res3)
    return y.reshape(N, H, W, Cout)


def run_conv_kxk(x, wmat, scale, bias, *, kh, kw, stride, padding, act="relu"):
    """Dense kxk conv via im2col + fused matmul.  wmat: (1, kh*kw*Cin, Cout_pad) bf16."""
    patches, (n, ho, wo) = im2col(x, kh, kw, stride, padding)
    M, K = patches.shape
    y = conv_matmul(patches.reshape(1, M, K).astype(jnp.bfloat16), wmat, scale, bias, act=act)
    return y.reshape(n, ho, wo, wmat.shape[-1])


def run_conv_grouped3x3(x, wg, sg, bg, *, cin_real, groups, stride, act="relu"):
    """Grouped 3x3 conv as a block-diagonal matmul: the group index is a grid axis
    selecting the (9*cin_g, cout_g) weight block and the matching patch slice.
    x: (N, H, W, Cpad) with `cin_real` real channels; wg: (G, 9*cin_g, cout_g) bf16."""
    cin_g = cin_real // groups
    cout_g = wg.shape[-1]
    xr = x[..., :cin_real]                                      # drop lane padding
    patches, (n, ho, wo) = im2col(xr, 3, 3, stride, 1)          # (M, 9*cin_real)
    M = patches.shape[0]
    pg = patches.reshape(M, 9, groups, cin_g)
    pg = jnp.transpose(pg, (2, 0, 1, 3)).reshape(groups, M, 9 * cin_g)
    y = conv_matmul(pg.astype(jnp.bfloat16), wg, sg, bg, act=act)    # (G, M, cout_g)
    y = jnp.transpose(y, (1, 0, 2)).reshape(M, groups * cout_g)
    cout_pad = pad_to(groups * cout_g)
    return pad_last(y, cout_pad).reshape(n, ho, wo, cout_pad)


# ---------------------------------------------------------------------------
# Network building blocks (Stem / XBlock / Stage / Head)
# ---------------------------------------------------------------------------

def xblock_fwd(x, p, c):
    stride, groups, inter = c["stride"], c["groups"], c["inter"]
    # 1x1 reduce + BN + ReLU
    x1 = run_conv1x1(x, p["w1"], p["s1"], p["b1"], act="relu")
    # 3x3 grouped conv (block-diagonal) + BN + ReLU
    x1 = run_conv_grouped3x3(x1, p["w2"], p["s2"], p["b2"],
                             cin_real=inter, groups=groups, stride=stride, act="relu")
    # SE gate fused into one kernel; applied inside conv3 as an input pre-scale
    gate = None
    if "w_se1" in p:
        gate = se_gate(x1, p["w_se1"], p["b_se1"], p["w_se2"], p["b_se2"])
    # shortcut: projection (1x1 conv + BN) or identity
    if "w_sc" in p:
        x2 = run_conv1x1(x, p["w_sc"], p["s_sc"], p["b_sc"], act="none", stride=stride)
    else:
        x2 = x
    # 1x1 expand + BN with fused SE pre-scale and residual add+ReLU epilogue
    return run_conv1x1(x1, p["w3"], p["s3"], p["b3"], act="none", pre=gate, res=x2)


def anynetx_forward(params, x_nchw, cfg):
    # PyTorch NCHW input -> NHWC (channels on the lane dim).
    x = jnp.transpose(x_nchw, (0, 2, 3, 1)).astype(jnp.float32)
    st = params["stem"]
    x = run_conv_kxk(x, st["w"], st["s"], st["b"], kh=3, kw=3, stride=2, padding=1, act="relu")
    for stage_p, stage_c in zip(params["stages"], cfg):
        for blk_p, blk_c in zip(stage_p["blocks"], stage_c):
            x = xblock_fwd(x, blk_p, blk_c)
    return head_fwd(x, params["head"]["w"], params["head"]["b"])


# ---------------------------------------------------------------------------
# Deterministic parameter init (mirrors AnyNetX.initialize_weight shapes/stds)
# ---------------------------------------------------------------------------

def init_params(key, ls_num_blocks, ls_block_width, ls_bottleneck_ratio,
                ls_group_width, stride, se_ratio):
    for bw, br, gw in zip(ls_block_width, ls_bottleneck_ratio, ls_group_width):
        assert bw % (br * gw) == 0
    keys = iter(jax.random.split(key, 1024))

    def conv_w(cout, cin, kh, kw):
        std = math.sqrt(2.0 / (kh * kw * cout))     # fan_out init from initialize_weight()
        return std * jax.random.normal(next(keys), (cout, cin, kh, kw), jnp.float32)

    def bn_fold(c):
        # BN: gamma=1, beta=0, running_mean=0, running_var=1 (eval-mode fold).
        scale = jnp.full((c,), 1.0 / math.sqrt(1.0 + BN_EPS), jnp.float32)
        bias = jnp.zeros((c,), jnp.float32)
        return scale, bias

    params = {}
    prev = 32
    w = conv_w(prev, 3, 3, 3)
    s, b = bn_fold(prev)
    params["stem"] = {"w": w, "s": s, "b": b}

    stages = []
    for nb, bw, br, gw in zip(ls_num_blocks, ls_block_width, ls_bottleneck_ratio, ls_group_width):
        blocks = []
        for j in range(nb):
            blk_in = prev if j == 0 else bw
            blk_stride = stride if j == 0 else 1
            inter = bw // br
            groups = inter // gw
            p = {"stride": blk_stride, "groups": groups}
            p["w1"] = conv_w(inter, blk_in, 1, 1); p["s1"], p["b1"] = bn_fold(inter)
            p["w2"] = conv_w(inter, inter // groups, 3, 3); p["s2"], p["b2"] = bn_fold(inter)
            if se_ratio is not None:
                se_c = blk_in // se_ratio
                p["w_se1"] = conv_w(se_c, inter, 1, 1)
                p["b_se1"] = jnp.zeros((se_c,), jnp.float32)
                p["w_se2"] = conv_w(inter, se_c, 1, 1)
                p["b_se2"] = jnp.zeros((inter,), jnp.float32)
            p["w3"] = conv_w(bw, inter, 1, 1); p["s3"], p["b3"] = bn_fold(bw)
            if blk_stride != 1 or blk_in != bw:
                p["w_sc"] = conv_w(bw, blk_in, 1, 1); p["s_sc"], p["b_sc"] = bn_fold(bw)
            blocks.append(p)
        stages.append({"blocks": blocks})
        prev = bw
    params["stages"] = stages

    params["head"] = {
        "w": 0.01 * jax.random.normal(next(keys), (NUM_CLASSES, prev), jnp.float32),
        "b": jnp.zeros((NUM_CLASSES,), jnp.float32),
    }
    return params


# ---------------------------------------------------------------------------
# Parameter prep: pad channels to 128 lanes, fold to matmul layout, cast to bf16
# ---------------------------------------------------------------------------

def _prep_1x1(w, scale, bias):
    cout, cin = w.shape[0], w.shape[1]
    wmat = w.reshape(cout, cin).T
    wmat = jnp.pad(wmat, ((0, pad_to(cin) - cin), (0, pad_to(cout) - cout)))
    return (wmat[None].astype(jnp.bfloat16),
            pad_last(scale.reshape(1, 1, -1), pad_to(cout)),
            pad_last(bias.reshape(1, 1, -1), pad_to(cout)))


def _prep_grouped3x3(w, scale, bias, groups):
    cout, cin_g, kh, kw = w.shape
    cout_g = cout // groups
    wg = w.reshape(groups, cout_g, cin_g, kh, kw)
    wg = jnp.transpose(wg, (0, 3, 4, 2, 1)).reshape(groups, kh * kw * cin_g, cout_g)
    return (wg.astype(jnp.bfloat16),
            scale.reshape(groups, 1, cout_g),
            bias.reshape(groups, 1, cout_g))


def _prep_se(w1, b1, w2, b2):
    se_c, c = w1.shape[0], w1.shape[1]
    w1m = jnp.pad(w1.reshape(se_c, c).T, ((0, pad_to(c) - c), (0, pad_to(se_c) - se_c)))
    w2m = jnp.pad(w2.reshape(c, se_c).T, ((0, pad_to(se_c) - se_c), (0, pad_to(c) - c)))
    return (w1m.astype(jnp.bfloat16), pad_last(b1.reshape(1, -1), pad_to(se_c)),
            w2m.astype(jnp.bfloat16), pad_last(b2.reshape(1, -1), pad_to(c)))


def prepare_params(raw):
    prep = {}
    sw = raw["stem"]["w"]
    cout, cin, kh, kw = sw.shape
    wmat = jnp.transpose(sw, (2, 3, 1, 0)).reshape(kh * kw * cin, cout)
    prep["stem"] = {
        "w": jnp.pad(wmat, ((0, 0), (0, pad_to(cout) - cout)))[None].astype(jnp.bfloat16),
        "s": pad_last(raw["stem"]["s"].reshape(1, 1, -1), pad_to(cout)),
        "b": pad_last(raw["stem"]["b"].reshape(1, 1, -1), pad_to(cout)),
    }
    stages, cfg = [], []
    for stage in raw["stages"]:
        blocks, blk_cfgs = [], []
        for p in stage["blocks"]:
            inter = p["w1"].shape[0]
            q = {}
            q["w1"], q["s1"], q["b1"] = _prep_1x1(p["w1"], p["s1"], p["b1"])
            q["w2"], q["s2"], q["b2"] = _prep_grouped3x3(p["w2"], p["s2"], p["b2"], p["groups"])
            if "w_se1" in p:
                q["w_se1"], q["b_se1"], q["w_se2"], q["b_se2"] = _prep_se(
                    p["w_se1"], p["b_se1"], p["w_se2"], p["b_se2"])
            q["w3"], q["s3"], q["b3"] = _prep_1x1(p["w3"], p["s3"], p["b3"])
            if "w_sc" in p:
                q["w_sc"], q["s_sc"], q["b_sc"] = _prep_1x1(p["w_sc"], p["s_sc"], p["b_sc"])
            blocks.append(q)
            blk_cfgs.append({"stride": p["stride"], "groups": p["groups"], "inter": inter})
        stages.append({"blocks": blocks})
        cfg.append(blk_cfgs)
    prep["stages"] = stages
    hcls, hc = raw["head"]["w"].shape
    hw = jnp.pad(raw["head"]["w"].T, ((0, pad_to(hc) - hc), (0, pad_to(hcls) - hcls)))
    prep["head"] = {"w": hw.astype(jnp.bfloat16),
                    "b": pad_last(raw["head"]["b"].reshape(1, -1), pad_to(hcls))}
    return prep, cfg


# ---------------------------------------------------------------------------
# Main
# ---------------------------------------------------------------------------

if __name__ == "__main__":
    key = jax.random.PRNGKey(0)
    kp, kx = jax.random.split(key)

    # Small AnyNetX config (satisfies block_width % (bottleneck_ratio*group_width) == 0).
    ls_num_blocks = [1, 1]
    ls_block_width = [32, 64]
    ls_bottleneck_ratio = [1, 1]
    ls_group_width = [8, 8]
    stride = 2
    se_ratio = 4

    raw = init_params(kp, ls_num_blocks, ls_block_width, ls_bottleneck_ratio,
                      ls_group_width, stride, se_ratio)
    params, cfg = prepare_params(raw)

    # PyTorch-style NCHW input: batch=2, RGB, 32x32.
    x = jax.random.normal(kx, (2, 3, 32, 32), jnp.float32)

    fwd = jax.jit(functools.partial(anynetx_forward, cfg=cfg))
    out = jax.block_until_ready(fwd(params, x))
    assert out.shape == (2, NUM_CLASSES), out.shape
    assert bool(jnp.all(jnp.isfinite(out)))
    print("KERNEL_OK")
</pallas_src>

<mosaic_0001>
module attributes {stable_mosaic.version = 11 : i64} {
  func.func @_conv_mm_kernel(%arg0: i32, %arg1: i32, %arg2: i32, %arg3: i32, %arg4: memref<1x256x27xbf16, #tpu.memory_space<vmem>>, %arg5: memref<1x27x128xbf16, #tpu.memory_space<vmem>>, %arg6: memref<1x1x128xf32, #tpu.memory_space<vmem>>, %arg7: memref<1x1x128xf32, #tpu.memory_space<vmem>>, %arg8: memref<1x256x128xf32, #tpu.memory_space<vmem>>, %arg9: memref<256x128xf32, #tpu.memory_space<vmem>>) attributes {dimension_semantics = [#tpu.dimension_semantics<parallel>, #tpu.dimension_semantics<parallel>, #tpu.dimension_semantics<parallel>, #tpu.dimension_semantics<arbitrary>], iteration_bounds = array<i64: 1, 2, 1, 1>, scalar_prefetch = 0 : i64, scratch_operands = 1 : i64, tpu.core_type = #tpu.core_type<tc>, window_params = [{transform_indices = @transform_0, window_bounds = array<i64: 1, 256, 27>}, {transform_indices = @transform_1, window_bounds = array<i64: 1, 27, 128>}, {transform_indices = @transform_2, window_bounds = array<i64: 1, 1, 128>}, {transform_indices = @transform_3, window_bounds = array<i64: 1, 1, 128>}, {transform_indices = @transform_4, window_bounds = array<i64: 1, 256, 128>}]} {
    %c0_i32 = arith.constant 0 : i32
    %0 = arith.cmpi eq, %arg3, %c0_i32 : i32
    %1 = arith.extui %0 : i1 to i32
    %c0_i32_0 = arith.constant 0 : i32
    %2 = arith.cmpi ne, %1, %c0_i32_0 : i32
    scf.if %2 {
      %cst_12 = arith.constant 0.000000e+00 : f32
      %14 = vector.broadcast %cst_12 : f32 to vector<256x128xf32>
      %c0_13 = arith.constant 0 : index
      %c0_14 = arith.constant 0 : index
      %15 = vector.load %arg9[%c0_13, %c0_14] : memref<256x128xf32, #tpu.memory_space<vmem>>, vector<256x128xf32>
      tpu.vector_store %arg9[%c0_13, %c0_14], %14 {strides = array<i32>} : memref<256x128xf32, #tpu.memory_space<vmem>>, vector<256x128xf32>,
    } else {
    }
    %c0 = arith.constant 0 : index
    %c0_1 = arith.constant 0 : index
    %c0_2 = arith.constant 0 : index
    %3 = vector.load %arg4[%c0, %c0_1, %c0_2] : memref<1x256x27xbf16, #tpu.memory_space<vmem>>, vector<1x256x27xbf16>
    %4 = vector.shape_cast %3 : vector<1x256x27xbf16> to vector<256x27xbf16>
    %c0_3 = arith.constant 0 : index
    %c0_4 = arith.constant 0 : index
    %5 = vector.load %arg9[%c0_3, %c0_4] : memref<256x128xf32, #tpu.memory_space<vmem>>, vector<256x128xf32>
    %c0_5 = arith.constant 0 : index
    %c0_6 = arith.constant 0 : index
    %c0_7 = arith.constant 0 : index
    %6 = vector.load %arg5[%c0_5, %c0_6, %c0_7] : memref<1x27x128xbf16, #tpu.memory_space<vmem>>, vector<1x27x128xbf16>
    %7 = vector.shape_cast %6 : vector<1x27x128xbf16> to vector<27x128xbf16>
    %cst = arith.constant dense<0.000000e+00> : vector<256x128xf32>
    %8 = tpu.matmul %4, %7, %cst {dimension_numbers = #tpu.dot_dimension_numbers<[1], [0], [0], [1], [0, 0, 1, 1], [], []>} : vector<256x27xbf16>, vector<27x128xbf16>, vector<256x128xf32> -> vector<256x128xf32>
    %9 = arith.addf %5, %8 : vector<256x128xf32>
    %c0_8 = arith.constant 0 : index
    %c0_9 = arith.constant 0 : index
    %10 = vector.load %arg9[%c0_8, %c0_9] : memref<256x128xf32, #tpu.memory_space<vmem>>, vector<256x128xf32>
    tpu.vector_store %arg9[%c0_8, %c0_9], %9 {strides = array<i32>} : memref<256x128xf32, #tpu.memory_space<vmem>>, vector<256x128xf32>,
    %c0_i32_10 = arith.constant 0 : i32
    %11 = arith.cmpi eq, %arg3, %c0_i32_10 : i32
    %12 = arith.extui %11 : i1 to i32
    %c0_i32_11 = arith.constant 0 : i32
    %13 = arith.cmpi ne, %12, %c0_i32_11 : i32
    scf.if %13 {
      %c0_12 = arith.constant 0 : index
      %c0_13 = arith.constant 0 : index
      %14 = vector.load %arg9[%c0_12, %c0_13] : memref<256x128xf32, #tpu.memory_space<vmem>>, vector<256x128xf32>
      %c0_14 = arith.constant 0 : index
      %c0_15 = arith.constant 0 : index
      %c0_16 = arith.constant 0 : index
      %15 = vector.load %arg6[%c0_14, %c0_15, %c0_16] : memref<1x1x128xf32, #tpu.memory_space<vmem>>, vector<1x1x128xf32>
      %16 = vector.shape_cast %15 : vector<1x1x128xf32> to vector<1x128xf32>
      %17 = vector.broadcast %16 : vector<1x128xf32> to vector<256x128xf32>
      %18 = arith.mulf %14, %17 : vector<256x128xf32>
      %c0_17 = arith.constant 0 : index
      %c0_18 = arith.constant 0 : index
      %c0_19 = arith.constant 0 : index
      %19 = vector.load %arg7[%c0_17, %c0_18, %c0_19] : memref<1x1x128xf32, #tpu.memory_space<vmem>>, vector<1x1x128xf32>
      %20 = vector.shape_cast %19 : vector<1x1x128xf32> to vector<1x128xf32>
      %21 = vector.broadcast %20 : vector<1x128xf32> to vector<256x128xf32>
      %22 = arith.addf %18, %21 : vector<256x128xf32>
      %cst_20 = arith.constant 0.000000e+00 : f32
      %23 = vector.broadcast %cst_20 : f32 to vector<256x128xf32>
      %24 = arith.maximumf %22, %23 : vector<256x128xf32>
      %c0_21 = arith.constant 0 : index
      %c0_22 = arith.constant 0 : index
      %c0_23 = arith.constant 0 : index
      %25 = vector.load %arg8[%c0_21, %c0_22, %c0_23] : memref<1x256x128xf32, #tpu.memory_space<vmem>>, vector<1x256x128xf32>
      %26 = vector.shape_cast %25 : vector<1x256x128xf32> to vector<256x128xf32>
      %27 = vector.shape_cast %24 : vector<256x128xf32> to vector<1x256x128xf32>
      tpu.vector_store %arg8[%c0_21, %c0_22, %c0_23], %27 {strides = array<i32>} : memref<1x256x128xf32, #tpu.memory_space<vmem>>, vector<1x256x128xf32>,
    } else {
    }
    return
  }
  func.func @transform_0(%arg0: i32, %arg1: i32, %arg2: i32, %arg3: i32) -> (i32, i32, i32) {
    %c0_i32 = arith.constant 0 : i32
    return %arg0, %arg1, %arg3 : i32, i32, i32
  }
  func.func @transform_1(%arg0: i32, %arg1: i32, %arg2: i32, %arg3: i32) -> (i32, i32, i32) {
    %c0_i32 = arith.constant 0 : i32
    %c0_i32_0 = arith.constant 0 : i32
    return %c0_i32, %arg3, %arg2 : i32, i32, i32
  }
  func.func @transform_2(%arg0: i32, %arg1: i32, %arg2: i32, %arg3: i32) -> (i32, i32, i32) {
    %c0_i32 = arith.constant 0 : i32
    %c0_i32_0 = arith.constant 0 : i32
    %c0_i32_1 = arith.constant 0 : i32
    return %c0_i32, %c0_i32_0, %arg2 : i32, i32, i32
  }
  func.func @transform_3(%arg0: i32, %arg1: i32, %arg2: i32, %arg3: i32) -> (i32, i32, i32) {
    %c0_i32 = arith.constant 0 : i32
    %c0_i32_0 = arith.constant 0 : i32
    %c0_i32_1 = arith.constant 0 : i32
    return %c0_i32, %c0_i32_0, %arg2 : i32, i32, i32
  }
  func.func @transform_4(%arg0: i32, %arg1: i32, %arg2: i32, %arg3: i32) -> (i32, i32, i32) {
    %c0_i32 = arith.constant 0 : i32
    return %arg0, %arg1, %arg2 : i32, i32, i32
  }
}

module attributes {stable_mosaic.version = 11 : i64} {
  func.func @_conv_mm_kernel(%arg0: i32, %arg1: i32, %arg2: i32, %arg3: i32, %arg4: memref<1x256x128xbf16, #tpu.memory_space<vmem>>, %arg5: memref<1x128x128xbf16, #tpu.memory_space<vmem>>, %arg6: memref<1x1x128xf32, #tpu.memory_space<vmem>>, %arg7: memref<1x1x128xf32, #tpu.memory_space<vmem>>, %arg8: memref<1x256x128xf32, #tpu.memory_space<vmem>>, %arg9: memref<256x128xf32, #tpu.memory_space<vmem>>) attributes {dimension_semantics = [#tpu.dimension_semantics<parallel>, #tpu.dimension_semantics<parallel>, #tpu.dimension_semantics<parallel>, #tpu.dimension_semantics<arbitrary>], iteration_bounds = array<i64: 1, 2, 1, 1>, scalar_prefetch = 0 : i64, scratch_operands = 1 : i64, tpu.core_type = #tpu.core_type<tc>, window_params = [{transform_indices = @transform_0, window_bounds = array<i64: 1, 256, 128>}, {transform_indices = @transform_1, window_bounds = array<i64: 1, 128, 128>}, {transform_indices = @transform_2, window_bounds = array<i64: 1, 1, 128>}, {transform_indices = @transform_3, window_bounds = array<i64: 1, 1, 128>}, {transform_indices = @transform_4, window_bounds = array<i64: 1, 256, 128>}]} {
    %c0_i32 = arith.constant 0 : i32
    %0 = arith.cmpi eq, %arg3, %c0_i32 : i32
    %1 = arith.extui %0 : i1 to i32
    %c0_i32_0 = arith.constant 0 : i32
    %2 = arith.cmpi ne, %1, %c0_i32_0 : i32
    scf.if %2 {
      %cst_12 = arith.constant 0.000000e+00 : f32
      %14 = vector.broadcast %cst_12 : f32 to vector<256x128xf32>
      %c0_13 = arith.constant 0 : index
      %c0_14 = arith.constant 0 : index
      %15 = vector.load %arg9[%c0_13, %c0_14] : memref<256x128xf32, #tpu.memory_space<vmem>>, vector<256x128xf32>
      tpu.vector_store %arg9[%c0_13, %c0_14], %14 {strides = array<i32>} : memref<256x128xf32, #tpu.memory_space<vmem>>, vector<256x128xf32>,
    } else {
    }
    %c0 = arith.constant 0 : index
    %c0_1 = arith.constant 0 : index
    %c0_2 = arith.constant 0 : index
    %3 = vector.load %arg4[%c0, %c0_1, %c0_2] : memref<1x256x128xbf16, #tpu.memory_space<vmem>>, vector<1x256x128xbf16>
    %4 = vector.shape_cast %3 : vector<1x256x128xbf16> to vector<256x128xbf16>
    %c0_3 = arith.constant 0 : index
    %c0_4 = arith.constant 0 : index
    %5 = vector.load %arg9[%c0_3, %c0_4] : memref<256x128xf32, #tpu.memory_space<vmem>>, vector<256x128xf32>
    %c0_5 = arith.constant 0 : index
    %c0_6 = arith.constant 0 : index
    %c0_7 = arith.constant 0 : index
    %6 = vector.load %arg5[%c0_5, %c0_6, %c0_7] : memref<1x128x128xbf16, #tpu.memory_space<vmem>>, vector<1x128x128xbf16>
    %7 = vector.shape_cast %6 : vector<1x128x128xbf16> to vector<128x128xbf16>
    %cst = arith.constant dense<0.000000e+00> : vector<256x128xf32>
    %8 = tpu.matmul %4, %7, %cst {dimension_numbers = #tpu.dot_dimension_numbers<[1], [0], [0], [1], [0, 0, 1, 1], [], []>} : vector<256x128xbf16>, vector<128x128xbf16>, vector<256x128xf32> -> vector<256x128xf32>
    %9 = arith.addf %5, %8 : vector<256x128xf32>
    %c0_8 = arith.constant 0 : index
    %c0_9 = arith.constant 0 : index
    %10 = vector.load %arg9[%c0_8, %c0_9] : memref<256x128xf32, #tpu.memory_space<vmem>>, vector<256x128xf32>
    tpu.vector_store %arg9[%c0_8, %c0_9], %9 {strides = array<i32>} : memref<256x128xf32, #tpu.memory_space<vmem>>, vector<256x128xf32>,
    %c0_i32_10 = arith.constant 0 : i32
    %11 = arith.cmpi eq, %arg3, %c0_i32_10 : i32
    %12 = arith.extui %11 : i1 to i32
    %c0_i32_11 = arith.constant 0 : i32
    %13 = arith.cmpi ne, %12, %c0_i32_11 : i32
    scf.if %13 {
      %c0_12 = arith.constant 0 : index
      %c0_13 = arith.constant 0 : index
      %14 = vector.load %arg9[%c0_12, %c0_13] : memref<256x128xf32, #tpu.memory_space<vmem>>, vector<256x128xf32>
      %c0_14 = arith.constant 0 : index
      %c0_15 = arith.constant 0 : index
      %c0_16 = arith.constant 0 : index
      %15 = vector.load %arg6[%c0_14, %c0_15, %c0_16] : memref<1x1x128xf32, #tpu.memory_space<vmem>>, vector<1x1x128xf32>
      %16 = vector.shape_cast %15 : vector<1x1x128xf32> to vector<1x128xf32>
      %17 = vector.broadcast %16 : vector<1x128xf32> to vector<256x128xf32>
      %18 = arith.mulf %14, %17 : vector<256x128xf32>
      %c0_17 = arith.constant 0 : index
      %c0_18 = arith.constant 0 : index
      %c0_19 = arith.constant 0 : index
      %19 = vector.load %arg7[%c0_17, %c0_18, %c0_19] : memref<1x1x128xf32, #tpu.memory_space<vmem>>, vector<1x1x128xf32>
      %20 = vector.shape_cast %19 : vector<1x1x128xf32> to vector<1x128xf32>
      %21 = vector.broadcast %20 : vector<1x128xf32> to vector<256x128xf32>
      %22 = arith.addf %18, %21 : vector<256x128xf32>
      %cst_20 = arith.constant 0.000000e+00 : f32
      %23 = vector.broadcast %cst_20 : f32 to vector<256x128xf32>
      %24 = arith.maximumf %22, %23 : vector<256x128xf32>
      %c0_21 = arith.constant 0 : index
      %c0_22 = arith.constant 0 : index
      %c0_23 = arith.constant 0 : index
      %25 = vector.load %arg8[%c0_21, %c0_22, %c0_23] : memref<1x256x128xf32, #tpu.memory_space<vmem>>, vector<1x256x128xf32>
      %26 = vector.shape_cast %25 : vector<1x256x128xf32> to vector<256x128xf32>
      %27 = vector.shape_cast %24 : vector<256x128xf32> to vector<1x256x128xf32>
      tpu.vector_store %arg8[%c0_21, %c0_22, %c0_23], %27 {strides = array<i32>} : memref<1x256x128xf32, #tpu.memory_space<vmem>>, vector<1x256x128xf32>,
    } else {
    }
    return
  }
  func.func @transform_0(%arg0: i32, %arg1: i32, %arg2: i32, %arg3: i32) -> (i32, i32, i32) {
    %c0_i32 = arith.constant 0 : i32
    return %arg0, %arg1, %arg3 : i32, i32, i32
  }
  func.func @transform_1(%arg0: i32, %arg1: i32, %arg2: i32, %arg3: i32) -> (i32, i32, i32) {
    %c0_i32 = arith.constant 0 : i32
    %c0_i32_0 = arith.constant 0 : i32
    return %c0_i32, %arg3, %arg2 : i32, i32, i32
  }
  func.func @transform_2(%arg0: i32, %arg1: i32, %arg2: i32, %arg3: i32) -> (i32, i32, i32) {
    %c0_i32 = arith.constant 0 : i32
    %c0_i32_0 = arith.constant 0 : i32
    %c0_i32_1 = arith.constant 0 : i32
    return %c0_i32, %c0_i32_0, %arg2 : i32, i32, i32
  }
  func.func @transform_3(%arg0: i32, %arg1: i32, %arg2: i32, %arg3: i32) -> (i32, i32, i32) {
    %c0_i32 = arith.constant 0 : i32
    %c0_i32_0 = arith.constant 0 : i32
    %c0_i32_1 = arith.constant 0 : i32
    return %c0_i32, %c0_i32_0, %arg2 : i32, i32, i32
  }
  func.func @transform_4(%arg0: i32, %arg1: i32, %arg2: i32, %arg3: i32) -> (i32, i32, i32) {
    %c0_i32 = arith.constant 0 : i32
    return %arg0, %arg1, %arg2 : i32, i32, i32
  }
}

module attributes {stable_mosaic.version = 11 : i64} {
  func.func @_conv_mm_kernel(%arg0: i32, %arg1: i32, %arg2: i32, %arg3: i32, %arg4: memref<1x128x72xbf16, #tpu.memory_space<vmem>>, %arg5: memref<1x72x8xbf16, #tpu.memory_space<vmem>>, %arg6: memref<1x1x8xf32, #tpu.memory_space<vmem>>, %arg7: memref<1x1x8xf32, #tpu.memory_space<vmem>>, %arg8: memref<1x128x8xf32, #tpu.memory_space<vmem>>, %arg9: memref<128x8xf32, #tpu.memory_space<vmem>>) attributes {dimension_semantics = [#tpu.dimension_semantics<parallel>, #tpu.dimension_semantics<parallel>, #tpu.dimension_semantics<parallel>, #tpu.dimension_semantics<arbitrary>], iteration_bounds = array<i64: 4, 1, 1, 1>, scalar_prefetch = 0 : i64, scratch_operands = 1 : i64, tpu.core_type = #tpu.core_type<tc>, window_params = [{transform_indices = @transform_0, window_bounds = array<i64: 1, 128, 72>}, {transform_indices = @transform_1, window_bounds = array<i64: 1, 72, 8>}, {transform_indices = @transform_2, window_bounds = array<i64: 1, 1, 8>}, {transform_indices = @transform_3, window_bounds = array<i64: 1, 1, 8>}, {transform_indices = @transform_4, window_bounds = array<i64: 1, 128, 8>}]} {
    %c0_i32 = arith.constant 0 : i32
    %0 = arith.cmpi eq, %arg3, %c0_i32 : i32
    %1 = arith.extui %0 : i1 to i32
    %c0_i32_0 = arith.constant 0 : i32
    %2 = arith.cmpi ne, %1, %c0_i32_0 : i32
    scf.if %2 {
      %cst_12 = arith.constant 0.000000e+00 : f32
      %14 = vector.broadcast %cst_12 : f32 to vector<128x8xf32>
      %c0_13 = arith.constant 0 : index
      %c0_14 = arith.constant 0 : index
      %15 = vector.load %arg9[%c0_13, %c0_14] : memref<128x8xf32, #tpu.memory_space<vmem>>, vector<128x8xf32>
      tpu.vector_store %arg9[%c0_13, %c0_14], %14 {strides = array<i32>} : memref<128x8xf32, #tpu.memory_space<vmem>>, vector<128x8xf32>,
    } else {
    }
    %c0 = arith.constant 0 : index
    %c0_1 = arith.constant 0 : index
    %c0_2 = arith.constant 0 : index
    %3 = vector.load %arg4[%c0, %c0_1, %c0_2] : memref<1x128x72xbf16, #tpu.memory_space<vmem>>, vector<1x128x72xbf16>
    %4 = vector.shape_cast %3 : vector<1x128x72xbf16> to vector<128x72xbf16>
    %c0_3 = arith.constant 0 : index
    %c0_4 = arith.constant 0 : index
    %5 = vector.load %arg9[%c0_3, %c0_4] : memref<128x8xf32, #tpu.memory_space<vmem>>, vector<128x8xf32>
    %c0_5 = arith.constant 0 : index
    %c0_6 = arith.constant 0 : index
    %c0_7 = arith.constant 0 : index
    %6 = vector.load %arg5[%c0_5, %c0_6, %c0_7] : memref<1x72x8xbf16, #tpu.memory_space<vmem>>, vector<1x72x8xbf16>
    %7 = vector.shape_cast %6 : vector<1x72x8xbf16> to vector<72x8xbf16>
    %cst = arith.constant dense<0.000000e+00> : vector<128x8xf32>
    %8 = tpu.matmul %4, %7, %cst {dimension_numbers = #tpu.dot_dimension_numbers<[1], [0], [0], [1], [0, 0, 1, 1], [], []>} : vector<128x72xbf16>, vector<72x8xbf16>, vector<128x8xf32> -> vector<128x8xf32>
    %9 = arith.addf %5, %8 : vector<128x8xf32>
    %c0_8 = arith.constant 0 : index
    %c0_9 = arith.constant 0 : index
    %10 = vector.load %arg9[%c0_8, %c0_9] : memref<128x8xf32, #tpu.memory_space<vmem>>, vector<128x8xf32>
    tpu.vector_store %arg9[%c0_8, %c0_9], %9 {strides = array<i32>} : memref<128x8xf32, #tpu.memory_space<vmem>>, vector<128x8xf32>,
    %c0_i32_10 = arith.constant 0 : i32
    %11 = arith.cmpi eq, %arg3, %c0_i32_10 : i32
    %12 = arith.extui %11 : i1 to i32
    %c0_i32_11 = arith.constant 0 : i32
    %13 = arith.cmpi ne, %12, %c0_i32_11 : i32
    scf.if %13 {
      %c0_12 = arith.constant 0 : index
      %c0_13 = arith.constant 0 : index
      %14 = vector.load %arg9[%c0_12, %c0_13] : memref<128x8xf32, #tpu.memory_space<vmem>>, vector<128x8xf32>
      %c0_14 = arith.constant 0 : index
      %c0_15 = arith.constant 0 : index
      %c0_16 = arith.constant 0 : index
      %15 = vector.load %arg6[%c0_14, %c0_15, %c0_16] : memref<1x1x8xf32, #tpu.memory_space<vmem>>, vector<1x1x8xf32>
      %16 = vector.shape_cast %15 : vector<1x1x8xf32> to vector<1x8xf32>
      %17 = vector.broadcast %16 : vector<1x8xf32> to vector<128x8xf32>
      %18 = arith.mulf %14, %17 : vector<128x8xf32>
      %c0_17 = arith.constant 0 : index
      %c0_18 = arith.constant 0 : index
      %c0_19 = arith.constant 0 : index
      %19 = vector.load %arg7[%c0_17, %c0_18, %c0_19] : memref<1x1x8xf32, #tpu.memory_space<vmem>>, vector<1x1x8xf32>
      %20 = vector.shape_cast %19 : vector<1x1x8xf32> to vector<1x8xf32>
      %21 = vector.broadcast %20 : vector<1x8xf32> to vector<128x8xf32>
      %22 = arith.addf %18, %21 : vector<128x8xf32>
      %cst_20 = arith.constant 0.000000e+00 : f32
      %23 = vector.broadcast %cst_20 : f32 to vector<128x8xf32>
      %24 = arith.maximumf %22, %23 : vector<128x8xf32>
      %c0_21 = arith.constant 0 : index
      %c0_22 = arith.constant 0 : index
      %c0_23 = arith.constant 0 : index
      %25 = vector.load %arg8[%c0_21, %c0_22, %c0_23] : memref<1x128x8xf32, #tpu.memory_space<vmem>>, vector<1x128x8xf32>
      %26 = vector.shape_cast %25 : vector<1x128x8xf32> to vector<128x8xf32>
      %27 = vector.shape_cast %24 : vector<128x8xf32> to vector<1x128x8xf32>
      tpu.vector_store %arg8[%c0_21, %c0_22, %c0_23], %27 {strides = array<i32>} : memref<1x128x8xf32, #tpu.memory_space<vmem>>, vector<1x128x8xf32>,
    } else {
    }
    return
  }
  func.func @transform_0(%arg0: i32, %arg1: i32, %arg2: i32, %arg3: i32) -> (i32, i32, i32) {
    %c0_i32 = arith.constant 0 : i32
    return %arg0, %arg1, %arg3 : i32, i32, i32
  }
  func.func @transform_1(%arg0: i32, %arg1: i32, %arg2: i32, %arg3: i32) -> (i32, i32, i32) {
    %c0_i32 = arith.constant 0 : i32
    return %arg0, %arg3, %arg2 : i32, i32, i32
  }
  func.func @transform_2(%arg0: i32, %arg1: i32, %arg2: i32, %arg3: i32) -> (i32, i32, i32) {
    %c0_i32 = arith.constant 0 : i32
    %c0_i32_0 = arith.constant 0 : i32
    return %arg0, %c0_i32, %arg2 : i32, i32, i32
  }
  func.func @transform_3(%arg0: i32, %arg1: i32, %arg2: i32, %arg3: i32) -> (i32, i32, i32) {
    %c0_i32 = arith.constant 0 : i32
    %c0_i32_0 = arith.constant 0 : i32
    return %arg0, %c0_i32, %arg2 : i32, i32, i32
  }
  func.func @transform_4(%arg0: i32, %arg1: i32, %arg2: i32, %arg3: i32) -> (i32, i32, i32) {
    %c0_i32 = arith.constant 0 : i32
    return %arg0, %arg1, %arg2 : i32, i32, i32
  }
}

module attributes {stable_mosaic.version = 11 : i64} {
  func.func @_se_gate_kernel(%arg0: i32, %arg1: memref<2x64x128xf32, #tpu.memory_space<vmem>>, %arg2: memref<128x128xbf16, #tpu.memory_space<vmem>>, %arg3: memref<1x128xf32, #tpu.memory_space<vmem>>, %arg4: memref<128x128xbf16, #tpu.memory_space<vmem>>, %arg5: memref<1x128xf32, #tpu.memory_space<vmem>>, %arg6: memref<2x128xf32, #tpu.memory_space<vmem>>) attributes {dimension_semantics = [#tpu.dimension_semantics<arbitrary>], iteration_bounds = array<i64: 1>, scalar_prefetch = 0 : i64, scratch_operands = 0 : i64, tpu.core_type = #tpu.core_type<tc>, window_params = [{pipeline_mode = #tpu.pipeline_mode<synchronous>, transform_indices = @transform_0, window_bounds = array<i64: 2, 64, 128>}, {pipeline_mode = #tpu.pipeline_mode<synchronous>, transform_indices = @transform_1, window_bounds = array<i64: 128, 128>}, {pipeline_mode = #tpu.pipeline_mode<synchronous>, transform_indices = @transform_2, window_bounds = array<i64: 1, 128>}, {pipeline_mode = #tpu.pipeline_mode<synchronous>, transform_indices = @transform_3, window_bounds = array<i64: 128, 128>}, {pipeline_mode = #tpu.pipeline_mode<synchronous>, transform_indices = @transform_4, window_bounds = array<i64: 1, 128>}, {pipeline_mode = #tpu.pipeline_mode<synchronous>, transform_indices = @transform_5, window_bounds = array<i64: 2, 128>}]} {
    %c0 = arith.constant 0 : index
    %c0_0 = arith.constant 0 : index
    %c0_1 = arith.constant 0 : index
    %0 = vector.load %arg1[%c0, %c0_0, %c0_1] : memref<2x64x128xf32, #tpu.memory_space<vmem>>, vector<2x64x128xf32>
    %cst = arith.constant dense<0.000000e+00> : vector<2x128xf32>
    %1 = vector.multi_reduction <add>, %0, %cst [1] : vector<2x64x128xf32> to vector<2x128xf32>
    %cst_2 = arith.constant 6.400000e+01 : f32
    %2 = vector.broadcast %cst_2 : f32 to vector<2x128xf32>
    %3 = arith.divf %1, %2 : vector<2x128xf32>
    %4 = arith.truncf %3 : vector<2x128xf32> to vector<2x128xbf16>
    %c0_3 = arith.constant 0 : index
    %c0_4 = arith.constant 0 : index
    %5 = vector.load %arg2[%c0_3, %c0_4] : memref<128x128xbf16, #tpu.memory_space<vmem>>, vector<128x128xbf16>
    %cst_5 = arith.constant dense<0.000000e+00> : vector<2x128xf32>
    %6 = tpu.matmul %4, %5, %cst_5 {dimension_numbers = #tpu.dot_dimension_numbers<[1], [0], [0], [1], [0, 0, 1, 1], [], []>} : vector<2x128xbf16>, vector<128x128xbf16>, vector<2x128xf32> -> vector<2x128xf32>
    %c0_6 = arith.constant 0 : index
    %c0_7 = arith.constant 0 : index
    %7 = vector.load %arg3[%c0_6, %c0_7] : memref<1x128xf32, #tpu.memory_space<vmem>>, vector<1x128xf32>
    %8 = vector.broadcast %7 : vector<1x128xf32> to vector<2x128xf32>
    %9 = arith.addf %6, %8 : vector<2x128xf32>
    %cst_8 = arith.constant 0.000000e+00 : f32
    %10 = vector.broadcast %cst_8 : f32 to vector<2x128xf32>
    %11 = arith.maximumf %9, %10 : vector<2x128xf32>
    %12 = arith.truncf %11 : vector<2x128xf32> to vector<2x128xbf16>
    %c0_9 = arith.constant 0 : index
    %c0_10 = arith.constant 0 : index
    %13 = vector.load %arg4[%c0_9, %c0_10] : memref<128x128xbf16, #tpu.memory_space<vmem>>, vector<128x128xbf16>
    %cst_11 = arith.constant dense<0.000000e+00> : vector<2x128xf32>
    %14 = tpu.matmul %12, %13, %cst_11 {dimension_numbers = #tpu.dot_dimension_numbers<[1], [0], [0], [1], [0, 0, 1, 1], [], []>} : vector<2x128xbf16>, vector<128x128xbf16>, vector<2x128xf32> -> vector<2x128xf32>
    %c0_12 = arith.constant 0 : index
    %c0_13 = arith.constant 0 : index
    %15 = vector.load %arg5[%c0_12, %c0_13] : memref<1x128xf32, #tpu.memory_space<vmem>>, vector<1x128xf32>
    %16 = vector.broadcast %15 : vector<1x128xf32> to vector<2x128xf32>
    %17 = arith.addf %14, %16 : vector<2x128xf32>
    %cst_14 = arith.constant 0.000000e+00 : f32
    %18 = vector.broadcast %cst_14 : f32 to vector<2x128xf32>
    %19 = arith.subf %18, %17 : vector<2x128xf32>
    %20 = math.exp %19 : vector<2x128xf32>
    %cst_15 = arith.constant 1.000000e+00 : f32
    %21 = vector.broadcast %cst_15 : f32 to vector<2x128xf32>
    %22 = arith.addf %21, %20 : vector<2x128xf32>
    %23 = tpu.reciprocal %22 {approx = true} : vector<2x128xf32> -> vector<2x128xf32>
    %c0_16 = arith.constant 0 : index
    %c0_17 = arith.constant 0 : index
    %24 = vector.load %arg6[%c0_16, %c0_17] : memref<2x128xf32, #tpu.memory_space<vmem>>, vector<2x128xf32>
    tpu.vector_store %arg6[%c0_16, %c0_17], %23 {strides = array<i32>} : memref<2x128xf32, #tpu.memory_space<vmem>>, vector<2x128xf32>,
    return
  }
  func.func @transform_0(%arg0: i32) -> (i32, i32, i32) {
    %c0_i32 = arith.constant 0 : i32
    %c0_i32_0 = arith.constant 0 : i32
    %c0_i32_1 = arith.constant 0 : i32
    %c0_i32_2 = arith.constant 0 : i32
    return %c0_i32, %c0_i32_0, %c0_i32_1 : i32, i32, i32
  }
  func.func @transform_1(%arg0: i32) -> (i32, i32) {
    %c0_i32 = arith.constant 0 : i32
    %c0_i32_0 = arith.constant 0 : i32
    %c0_i32_1 = arith.constant 0 : i32
    return %c0_i32, %c0_i32_0 : i32, i32
  }
  func.func @transform_2(%arg0: i32) -> (i32, i32) {
    %c0_i32 = arith.constant 0 : i32
    %c0_i32_0 = arith.constant 0 : i32
    %c0_i32_1 = arith.constant 0 : i32
    return %c0_i32, %c0_i32_0 : i32, i32
  }
  func.func @transform_3(%arg0: i32) -> (i32, i32) {
    %c0_i32 = arith.constant 0 : i32
    %c0_i32_0 = arith.constant 0 : i32
    %c0_i32_1 = arith.constant 0 : i32
    return %c0_i32, %c0_i32_0 : i32, i32
  }
  func.func @transform_4(%arg0: i32) -> (i32, i32) {
    %c0_i32 = arith.constant 0 : i32
    %c0_i32_0 = arith.constant 0 : i32
    %c0_i32_1 = arith.constant 0 : i32
    return %c0_i32, %c0_i32_0 : i32, i32
  }
  func.func @transform_5(%arg0: i32) -> (i32, i32) {
    %c0_i32 = arith.constant 0 : i32
    %c0_i32_0 = arith.constant 0 : i32
    %c0_i32_1 = arith.constant 0 : i32
    return %c0_i32, %c0_i32_0 : i32, i32
  }
}

module attributes {stable_mosaic.version = 11 : i64} {
  func.func @_conv_mm_kernel(%arg0: i32, %arg1: i32, %arg2: i32, %arg3: i32, %arg4: memref<1x128x128xbf16, #tpu.memory_space<vmem>>, %arg5: memref<1x128x128xbf16, #tpu.memory_space<vmem>>, %arg6: memref<1x1x128xf32, #tpu.memory_space<vmem>>, %arg7: memref<1x1x128xf32, #tpu.memory_space<vmem>>, %arg8: memref<1x128x128xf32, #tpu.memory_space<vmem>>, %arg9: memref<128x128xf32, #tpu.memory_space<vmem>>) attributes {dimension_semantics = [#tpu.dimension_semantics<parallel>, #tpu.dimension_semantics<parallel>, #tpu.dimension_semantics<parallel>, #tpu.dimension_semantics<arbitrary>], iteration_bounds = array<i64: 1, 1, 1, 1>, scalar_prefetch = 0 : i64, scratch_operands = 1 : i64, tpu.core_type = #tpu.core_type<tc>, window_params = [{transform_indices = @transform_0, window_bounds = array<i64: 1, 128, 128>}, {transform_indices = @transform_1, window_bounds = array<i64: 1, 128, 128>}, {transform_indices = @transform_2, window_bounds = array<i64: 1, 1, 128>}, {transform_indices = @transform_3, window_bounds = array<i64: 1, 1, 128>}, {transform_indices = @transform_4, window_bounds = array<i64: 1, 128, 128>}]} {
    %c0_i32 = arith.constant 0 : i32
    %0 = arith.cmpi eq, %arg3, %c0_i32 : i32
    %1 = arith.extui %0 : i1 to i32
    %c0_i32_0 = arith.constant 0 : i32
    %2 = arith.cmpi ne, %1, %c0_i32_0 : i32
    scf.if %2 {
      %cst_12 = arith.constant 0.000000e+00 : f32
      %14 = vector.broadcast %cst_12 : f32 to vector<128x128xf32>
      %c0_13 = arith.constant 0 : index
      %c0_14 = arith.constant 0 : index
      %15 = vector.load %arg9[%c0_13, %c0_14] : memref<128x128xf32, #tpu.memory_space<vmem>>, vector<128x128xf32>
      tpu.vector_store %arg9[%c0_13, %c0_14], %14 {strides = array<i32>} : memref<128x128xf32, #tpu.memory_space<vmem>>, vector<128x128xf32>,
    } else {
    }
    %c0 = arith.constant 0 : index
    %c0_1 = arith.constant 0 : index
    %c0_2 = arith.constant 0 : index
    %3 = vector.load %arg4[%c0, %c0_1, %c0_2] : memref<1x128x128xbf16, #tpu.memory_space<vmem>>, vector<1x128x128xbf16>
    %4 = vector.shape_cast %3 : vector<1x128x128xbf16> to vector<128x128xbf16>
    %c0_3 = arith.constant 0 : index
    %c0_4 = arith.constant 0 : index
    %5 = vector.load %arg9[%c0_3, %c0_4] : memref<128x128xf32, #tpu.memory_space<vmem>>, vector<128x128xf32>
    %c0_5 = arith.constant 0 : index
    %c0_6 = arith.constant 0 : index
    %c0_7 = arith.constant 0 : index
    %6 = vector.load %arg5[%c0_5, %c0_6, %c0_7] : memref<1x128x128xbf16, #tpu.memory_space<vmem>>, vector<1x128x128xbf16>
    %7 = vector.shape_cast %6 : vector<1x128x128xbf16> to vector<128x128xbf16>
    %cst = arith.constant dense<0.000000e+00> : vector<128x128xf32>
    %8 = tpu.matmul %4, %7, %cst {dimension_numbers = #tpu.dot_dimension_numbers<[1], [0], [0], [1], [0, 0, 1, 1], [], []>} : vector<128x128xbf16>, vector<128x128xbf16>, vector<128x128xf32> -> vector<128x128xf32>
    %9 = arith.addf %5, %8 : vector<128x128xf32>
    %c0_8 = arith.constant 0 : index
    %c0_9 = arith.constant 0 : index
    %10 = vector.load %arg9[%c0_8, %c0_9] : memref<128x128xf32, #tpu.memory_space<vmem>>, vector<128x128xf32>
    tpu.vector_store %arg9[%c0_8, %c0_9], %9 {strides = array<i32>} : memref<128x128xf32, #tpu.memory_space<vmem>>, vector<128x128xf32>,
    %c0_i32_10 = arith.constant 0 : i32
    %11 = arith.cmpi eq, %arg3, %c0_i32_10 : i32
    %12 = arith.extui %11 : i1 to i32
    %c0_i32_11 = arith.constant 0 : i32
    %13 = arith.cmpi ne, %12, %c0_i32_11 : i32
    scf.if %13 {
      %c0_12 = arith.constant 0 : index
      %c0_13 = arith.constant 0 : index
      %14 = vector.load %arg9[%c0_12, %c0_13] : memref<128x128xf32, #tpu.memory_space<vmem>>, vector<128x128xf32>
      %c0_14 = arith.constant 0 : index
      %c0_15 = arith.constant 0 : index
      %c0_16 = arith.constant 0 : index
      %15 = vector.load %arg6[%c0_14, %c0_15, %c0_16] : memref<1x1x128xf32, #tpu.memory_space<vmem>>, vector<1x1x128xf32>
      %16 = vector.shape_cast %15 : vector<1x1x128xf32> to vector<1x128xf32>
      %17 = vector.broadcast %16 : vector<1x128xf32> to vector<128x128xf32>
      %18 = arith.mulf %14, %17 : vector<128x128xf32>
      %c0_17 = arith.constant 0 : index
      %c0_18 = arith.constant 0 : index
      %c0_19 = arith.constant 0 : index
      %19 = vector.load %arg7[%c0_17, %c0_18, %c0_19] : memref<1x1x128xf32, #tpu.memory_space<vmem>>, vector<1x1x128xf32>
      %20 = vector.shape_cast %19 : vector<1x1x128xf32> to vector<1x128xf32>
      %21 = vector.broadcast %20 : vector<1x128xf32> to vector<128x128xf32>
      %22 = arith.addf %18, %21 : vector<128x128xf32>
      %c0_20 = arith.constant 0 : index
      %c0_21 = arith.constant 0 : index
      %c0_22 = arith.constant 0 : index
      %23 = vector.load %arg8[%c0_20, %c0_21, %c0_22] : memref<1x128x128xf32, #tpu.memory_space<vmem>>, vector<1x128x128xf32>
      %24 = vector.shape_cast %23 : vector<1x128x128xf32> to vector<128x128xf32>
      %25 = vector.shape_cast %22 : vector<128x128xf32> to vector<1x128x128xf32>
      tpu.vector_store %arg8[%c0_20, %c0_21, %c0_22], %25 {strides = array<i32>} : memref<1x128x128xf32, #tpu.memory_space<vmem>>, vector<1x128x128xf32>,
    } else {
    }
    return
  }
  func.func @transform_0(%arg0: i32, %arg1: i32, %arg2: i32, %arg3: i32) -> (i32, i32, i32) {
    %c0_i32 = arith.constant 0 : i32
    return %arg0, %arg1, %arg3 : i32, i32, i32
  }
  func.func @transform_1(%arg0: i32, %arg1: i32, %arg2: i32, %arg3: i32) -> (i32, i32, i32) {
    %c0_i32 = arith.constant 0 : i32
    %c0_i32_0 = arith.constant 0 : i32
    return %c0_i32, %arg3, %arg2 : i32, i32, i32
  }
  func.func @transform_2(%arg0: i32, %arg1: i32, %arg2: i32, %arg3: i32) -> (i32, i32, i32) {
    %c0_i32 = arith.constant 0 : i32
    %c0_i32_0 = arith.constant 0 : i32
    %c0_i32_1 = arith.constant 0 : i32
    return %c0_i32, %c0_i32_0, %arg2 : i32, i32, i32
  }
  func.func @transform_3(%arg0: i32, %arg1: i32, %arg2: i32, %arg3: i32) -> (i32, i32, i32) {
    %c0_i32 = arith.constant 0 : i32
    %c0_i32_0 = arith.constant 0 : i32
    %c0_i32_1 = arith.constant 0 : i32
    return %c0_i32, %c0_i32_0, %arg2 : i32, i32, i32
  }
  func.func @transform_4(%arg0: i32, %arg1: i32, %arg2: i32, %arg3: i32) -> (i32, i32, i32) {
    %c0_i32 = arith.constant 0 : i32
    return %arg0, %arg1, %arg2 : i32, i32, i32
  }
}

module attributes {stable_mosaic.version = 11 : i64} {
  func.func @_conv_mm_kernel(%arg0: i32, %arg1: i32, %arg2: i32, %arg3: i32, %arg4: memref<1x64x128xbf16, #tpu.memory_space<vmem>>, %arg5: memref<1x128x128xbf16, #tpu.memory_space<vmem>>, %arg6: memref<1x1x128xf32, #tpu.memory_space<vmem>>, %arg7: memref<1x1x128xf32, #tpu.memory_space<vmem>>, %arg8: memref<1x1x128xf32, #tpu.memory_space<vmem>>, %arg9: memref<1x64x128xf32, #tpu.memory_space<vmem>>, %arg10: memref<1x64x128xf32, #tpu.memory_space<vmem>>, %arg11: memref<64x128xf32, #tpu.memory_space<vmem>>) attributes {dimension_semantics = [#tpu.dimension_semantics<parallel>, #tpu.dimension_semantics<parallel>, #tpu.dimension_semantics<parallel>, #tpu.dimension_semantics<arbitrary>], iteration_bounds = array<i64: 2, 1, 1, 1>, scalar_prefetch = 0 : i64, scratch_operands = 1 : i64, tpu.core_type = #tpu.core_type<tc>, window_params = [{transform_indices = @transform_0, window_bounds = array<i64: 1, 64, 128>}, {transform_indices = @transform_1, window_bounds = array<i64: 1, 128, 128>}, {transform_indices = @transform_2, window_bounds = array<i64: 1, 1, 128>}, {transform_indices = @transform_3, window_bounds = array<i64: 1, 1, 128>}, {transform_indices = @transform_4, window_bounds = array<i64: 1, 1, 128>}, {transform_indices = @transform_5, window_bounds = array<i64: 1, 64, 128>}, {transform_indices = @transform_6, window_bounds = array<i64: 1, 64, 128>}]} {
    %c0_i32 = arith.constant 0 : i32
    %0 = arith.cmpi eq, %arg3, %c0_i32 : i32
    %1 = arith.extui %0 : i1 to i32
    %c0_i32_0 = arith.constant 0 : i32
    %2 = arith.cmpi ne, %1, %c0_i32_0 : i32
    scf.if %2 {
      %cst_15 = arith.constant 0.000000e+00 : f32
      %20 = vector.broadcast %cst_15 : f32 to vector<64x128xf32>
      %c0_16 = arith.constant 0 : index
      %c0_17 = arith.constant 0 : index
      %21 = vector.load %arg11[%c0_16, %c0_17] : memref<64x128xf32, #tpu.memory_space<vmem>>, vector<64x128xf32>
      tpu.vector_store %arg11[%c0_16, %c0_17], %20 {strides = array<i32>} : memref<64x128xf32, #tpu.memory_space<vmem>>, vector<64x128xf32>,
    } else {
    }
    %c0 = arith.constant 0 : index
    %c0_1 = arith.constant 0 : index
    %c0_2 = arith.constant 0 : index
    %3 = vector.load %arg4[%c0, %c0_1, %c0_2] : memref<1x64x128xbf16, #tpu.memory_space<vmem>>, vector<1x64x128xbf16>
    %4 = vector.shape_cast %3 : vector<1x64x128xbf16> to vector<64x128xbf16>
    %5 = arith.extf %4 : vector<64x128xbf16> to vector<64x128xf32>
    %c0_3 = arith.constant 0 : index
    %c0_4 = arith.constant 0 : index
    %c0_5 = arith.constant 0 : index
    %6 = vector.load %arg8[%c0_3, %c0_4, %c0_5] : memref<1x1x128xf32, #tpu.memory_space<vmem>>, vector<1x1x128xf32>
    %7 = vector.shape_cast %6 : vector<1x1x128xf32> to vector<1x128xf32>
    %8 = vector.broadcast %7 : vector<1x128xf32> to vector<64x128xf32>
    %9 = arith.mulf %5, %8 : vector<64x128xf32>
    %10 = arith.truncf %9 : vector<64x128xf32> to vector<64x128xbf16>
    %c0_6 = arith.constant 0 : index
    %c0_7 = arith.constant 0 : index
    %11 = vector.load %arg11[%c0_6, %c0_7] : memref<64x128xf32, #tpu.memory_space<vmem>>, vector<64x128xf32>
    %c0_8 = arith.constant 0 : index
    %c0_9 = arith.constant 0 : index
    %c0_10 = arith.constant 0 : index
    %12 = vector.load %arg5[%c0_8, %c0_9, %c0_10] : memref<1x128x128xbf16, #tpu.memory_space<vmem>>, vector<1x128x128xbf16>
    %13 = vector.shape_cast %12 : vector<1x128x128xbf16> to vector<128x128xbf16>
    %cst = arith.constant dense<0.000000e+00> : vector<64x128xf32>
    %14 = tpu.matmul %10, %13, %cst {dimension_numbers = #tpu.dot_dimension_numbers<[1], [0], [0], [1], [0, 0, 1, 1], [], []>} : vector<64x128xbf16>, vector<128x128xbf16>, vector<64x128xf32> -> vector<64x128xf32>
    %15 = arith.addf %11, %14 : vector<64x128xf32>
    %c0_11 = arith.constant 0 : index
    %c0_12 = arith.constant 0 : index
    %16 = vector.load %arg11[%c0_11, %c0_12] : memref<64x128xf32, #tpu.memory_space<vmem>>, vector<64x128xf32>
    tpu.vector_store %arg11[%c0_11, %c0_12], %15 {strides = array<i32>} : memref<64x128xf32, #tpu.memory_space<vmem>>, vector<64x128xf32>,
    %c0_i32_13 = arith.constant 0 : i32
    %17 = arith.cmpi eq, %arg3, %c0_i32_13 : i32
    %18 = arith.extui %17 : i1 to i32
    %c0_i32_14 = arith.constant 0 : i32
    %19 = arith.cmpi ne, %18, %c0_i32_14 : i32
    scf.if %19 {
      %c0_15 = arith.constant 0 : index
      %c0_16 = arith.constant 0 : index
      %20 = vector.load %arg11[%c0_15, %c0_16] : memref<64x128xf32, #tpu.memory_space<vmem>>, vector<64x128xf32>
      %c0_17 = arith.constant 0 : index
      %c0_18 = arith.constant 0 : index
      %c0_19 = arith.constant 0 : index
      %21 = vector.load %arg6[%c0_17, %c0_18, %c0_19] : memref<1x1x128xf32, #tpu.memory_space<vmem>>, vector<1x1x128xf32>
      %22 = vector.shape_cast %21 : vector<1x1x128xf32> to vector<1x128xf32>
      %23 = vector.broadcast %22 : vector<1x128xf32> to vector<64x128xf32>
      %24 = arith.mulf %20, %23 : vector<64x128xf32>
      %c0_20 = arith.constant 0 : index
      %c0_21 = arith.constant 0 : index
      %c0_22 = arith.constant 0 : index
      %25 = vector.load %arg7[%c0_20, %c0_21, %c0_22] : memref<1x1x128xf32, #tpu.memory_space<vmem>>, vector<1x1x128xf32>
      %26 = vector.shape_cast %25 : vector<1x1x128xf32> to vector<1x128xf32>
      %27 = vector.broadcast %26 : vector<1x128xf32> to vector<64x128xf32>
      %28 = arith.addf %24, %27 : vector<64x128xf32>
      %c0_23 = arith.constant 0 : index
      %c0_24 = arith.constant 0 : index
      %c0_25 = arith.constant 0 : index
      %29 = vector.load %arg9[%c0_23, %c0_24, %c0_25] : memref<1x64x128xf32, #tpu.memory_space<vmem>>, vector<1x64x128xf32>
      %30 = vector.shape_cast %29 : vector<1x64x128xf32> to vector<64x128xf32>
      %31 = arith.addf %28, %30 : vector<64x128xf32>
      %cst_26 = arith.constant 0.000000e+00 : f32
      %32 = vector.broadcast %cst_26 : f32 to vector<64x128xf32>
      %33 = arith.maximumf %31, %32 : vector<64x128xf32>
      %c0_27 = arith.constant 0 : index
      %c0_28 = arith.constant 0 : index
      %c0_29 = arith.constant 0 : index
      %34 = vector.load %arg10[%c0_27, %c0_28, %c0_29] : memref<1x64x128xf32, #tpu.memory_space<vmem>>, vector<1x64x128xf32>
      %35 = vector.shape_cast %34 : vector<1x64x128xf32> to vector<64x128xf32>
      %36 = vector.shape_cast %33 : vector<64x128xf32> to vector<1x64x128xf32>
      tpu.vector_store %arg10[%c0_27, %c0_28, %c0_29], %36 {strides = array<i32>} : memref<1x64x128xf32, #tpu.memory_space<vmem>>, vector<1x64x128xf32>,
    } else {
    }
    return
  }
  func.func @transform_0(%arg0: i32, %arg1: i32, %arg2: i32, %arg3: i32) -> (i32, i32, i32) {
    %c0_i32 = arith.constant 0 : i32
    return %arg0, %arg1, %arg3 : i32, i32, i32
  }
  func.func @transform_1(%arg0: i32, %arg1: i32, %arg2: i32, %arg3: i32) -> (i32, i32, i32) {
    %c0_i32 = arith.constant 0 : i32
    %c0_i32_0 = arith.constant 0 : i32
    return %c0_i32, %arg3, %arg2 : i32, i32, i32
  }
  func.func @transform_2(%arg0: i32, %arg1: i32, %arg2: i32, %arg3: i32) -> (i32, i32, i32) {
    %c0_i32 = arith.constant 0 : i32
    %c0_i32_0 = arith.constant 0 : i32
    %c0_i32_1 = arith.constant 0 : i32
    return %c0_i32, %c0_i32_0, %arg2 : i32, i32, i32
  }
  func.func @transform_3(%arg0: i32, %arg1: i32, %arg2: i32, %arg3: i32) -> (i32, i32, i32) {
    %c0_i32 = arith.constant 0 : i32
    %c0_i32_0 = arith.constant 0 : i32
    %c0_i32_1 = arith.constant 0 : i32
    return %c0_i32, %c0_i32_0, %arg2 : i32, i32, i32
  }
  func.func @transform_4(%arg0: i32, %arg1: i32, %arg2: i32, %arg3: i32) -> (i32, i32, i32) {
    %c0_i32 = arith.constant 0 : i32
    %c0_i32_0 = arith.constant 0 : i32
    return %arg0, %c0_i32, %arg3 : i32, i32, i32
  }
  func.func @transform_5(%arg0: i32, %arg1: i32, %arg2: i32, %arg3: i32) -> (i32, i32, i32) {
    %c0_i32 = arith.constant 0 : i32
    return %arg0, %arg1, %arg2 : i32, i32, i32
  }
  func.func @transform_6(%arg0: i32, %arg1: i32, %arg2: i32, %arg3: i32) -> (i32, i32, i32) {
    %c0_i32 = arith.constant 0 : i32
    return %arg0, %arg1, %arg2 : i32, i32, i32
  }
}

module attributes {stable_mosaic.version = 11 : i64} {
  func.func @_conv_mm_kernel(%arg0: i32, %arg1: i32, %arg2: i32, %arg3: i32, %arg4: memref<1x128x128xbf16, #tpu.memory_space<vmem>>, %arg5: memref<1x128x128xbf16, #tpu.memory_space<vmem>>, %arg6: memref<1x1x128xf32, #tpu.memory_space<vmem>>, %arg7: memref<1x1x128xf32, #tpu.memory_space<vmem>>, %arg8: memref<1x128x128xf32, #tpu.memory_space<vmem>>, %arg9: memref<128x128xf32, #tpu.memory_space<vmem>>) attributes {dimension_semantics = [#tpu.dimension_semantics<parallel>, #tpu.dimension_semantics<parallel>, #tpu.dimension_semantics<parallel>, #tpu.dimension_semantics<arbitrary>], iteration_bounds = array<i64: 1, 1, 1, 1>, scalar_prefetch = 0 : i64, scratch_operands = 1 : i64, tpu.core_type = #tpu.core_type<tc>, window_params = [{transform_indices = @transform_0, window_bounds = array<i64: 1, 128, 128>}, {transform_indices = @transform_1, window_bounds = array<i64: 1, 128, 128>}, {transform_indices = @transform_2, window_bounds = array<i64: 1, 1, 128>}, {transform_indices = @transform_3, window_bounds = array<i64: 1, 1, 128>}, {transform_indices = @transform_4, window_bounds = array<i64: 1, 128, 128>}]} {
    %c0_i32 = arith.constant 0 : i32
    %0 = arith.cmpi eq, %arg3, %c0_i32 : i32
    %1 = arith.extui %0 : i1 to i32
    %c0_i32_0 = arith.constant 0 : i32
    %2 = arith.cmpi ne, %1, %c0_i32_0 : i32
    scf.if %2 {
      %cst_12 = arith.constant 0.000000e+00 : f32
      %14 = vector.broadcast %cst_12 : f32 to vector<128x128xf32>
      %c0_13 = arith.constant 0 : index
      %c0_14 = arith.constant 0 : index
      %15 = vector.load %arg9[%c0_13, %c0_14] : memref<128x128xf32, #tpu.memory_space<vmem>>, vector<128x128xf32>
      tpu.vector_store %arg9[%c0_13, %c0_14], %14 {strides = array<i32>} : memref<128x128xf32, #tpu.memory_space<vmem>>, vector<128x128xf32>,
    } else {
    }
    %c0 = arith.constant 0 : index
    %c0_1 = arith.constant 0 : index
    %c0_2 = arith.constant 0 : index
    %3 = vector.load %arg4[%c0, %c0_1, %c0_2] : memref<1x128x128xbf16, #tpu.memory_space<vmem>>, vector<1x128x128xbf16>
    %4 = vector.shape_cast %3 : vector<1x128x128xbf16> to vector<128x128xbf16>
    %c0_3 = arith.constant 0 : index
    %c0_4 = arith.constant 0 : index
    %5 = vector.load %arg9[%c0_3, %c0_4] : memref<128x128xf32, #tpu.memory_space<vmem>>, vector<128x128xf32>
    %c0_5 = arith.constant 0 : index
    %c0_6 = arith.constant 0 : index
    %c0_7 = arith.constant 0 : index
    %6 = vector.load %arg5[%c0_5, %c0_6, %c0_7] : memref<1x128x128xbf16, #tpu.memory_space<vmem>>, vector<1x128x128xbf16>
    %7 = vector.shape_cast %6 : vector<1x128x128xbf16> to vector<128x128xbf16>
    %cst = arith.constant dense<0.000000e+00> : vector<128x128xf32>
    %8 = tpu.matmul %4, %7, %cst {dimension_numbers = #tpu.dot_dimension_numbers<[1], [0], [0], [1], [0, 0, 1, 1], [], []>} : vector<128x128xbf16>, vector<128x128xbf16>, vector<128x128xf32> -> vector<128x128xf32>
    %9 = arith.addf %5, %8 : vector<128x128xf32>
    %c0_8 = arith.constant 0 : index
    %c0_9 = arith.constant 0 : index
    %10 = vector.load %arg9[%c0_8, %c0_9] : memref<128x128xf32, #tpu.memory_space<vmem>>, vector<128x128xf32>
    tpu.vector_store %arg9[%c0_8, %c0_9], %9 {strides = array<i32>} : memref<128x128xf32, #tpu.memory_space<vmem>>, vector<128x128xf32>,
    %c0_i32_10 = arith.constant 0 : i32
    %11 = arith.cmpi eq, %arg3, %c0_i32_10 : i32
    %12 = arith.extui %11 : i1 to i32
    %c0_i32_11 = arith.constant 0 : i32
    %13 = arith.cmpi ne, %12, %c0_i32_11 : i32
    scf.if %13 {
      %c0_12 = arith.constant 0 : index
      %c0_13 = arith.constant 0 : index
      %14 = vector.load %arg9[%c0_12, %c0_13] : memref<128x128xf32, #tpu.memory_space<vmem>>, vector<128x128xf32>
      %c0_14 = arith.constant 0 : index
      %c0_15 = arith.constant 0 : index
      %c0_16 = arith.constant 0 : index
      %15 = vector.load %arg6[%c0_14, %c0_15, %c0_16] : memref<1x1x128xf32, #tpu.memory_space<vmem>>, vector<1x1x128xf32>
      %16 = vector.shape_cast %15 : vector<1x1x128xf32> to vector<1x128xf32>
      %17 = vector.broadcast %16 : vector<1x128xf32> to vector<128x128xf32>
      %18 = arith.mulf %14, %17 : vector<128x128xf32>
      %c0_17 = arith.constant 0 : index
      %c0_18 = arith.constant 0 : index
      %c0_19 = arith.constant 0 : index
      %19 = vector.load %arg7[%c0_17, %c0_18, %c0_19] : memref<1x1x128xf32, #tpu.memory_space<vmem>>, vector<1x1x128xf32>
      %20 = vector.shape_cast %19 : vector<1x1x128xf32> to vector<1x128xf32>
      %21 = vector.broadcast %20 : vector<1x128xf32> to vector<128x128xf32>
      %22 = arith.addf %18, %21 : vector<128x128xf32>
      %cst_20 = arith.constant 0.000000e+00 : f32
      %23 = vector.broadcast %cst_20 : f32 to vector<128x128xf32>
      %24 = arith.maximumf %22, %23 : vector<128x128xf32>
      %c0_21 = arith.constant 0 : index
      %c0_22 = arith.constant 0 : index
      %c0_23 = arith.constant 0 : index
      %25 = vector.load %arg8[%c0_21, %c0_22, %c0_23] : memref<1x128x128xf32, #tpu.memory_space<vmem>>, vector<1x128x128xf32>
      %26 = vector.shape_cast %25 : vector<1x128x128xf32> to vector<128x128xf32>
      %27 = vector.shape_cast %24 : vector<128x128xf32> to vector<1x128x128xf32>
      tpu.vector_store %arg8[%c0_21, %c0_22, %c0_23], %27 {strides = array<i32>} : memref<1x128x128xf32, #tpu.memory_space<vmem>>, vector<1x128x128xf32>,
    } else {
    }
    return
  }
  func.func @transform_0(%arg0: i32, %arg1: i32, %arg2: i32, %arg3: i32) -> (i32, i32, i32) {
    %c0_i32 = arith.constant 0 : i32
    return %arg0, %arg1, %arg3 : i32, i32, i32
  }
  func.func @transform_1(%arg0: i32, %arg1: i32, %arg2: i32, %arg3: i32) -> (i32, i32, i32) {
    %c0_i32 = arith.constant 0 : i32
    %c0_i32_0 = arith.constant 0 : i32
    return %c0_i32, %arg3, %arg2 : i32, i32, i32
  }
  func.func @transform_2(%arg0: i32, %arg1: i32, %arg2: i32, %arg3: i32) -> (i32, i32, i32) {
    %c0_i32 = arith.constant 0 : i32
    %c0_i32_0 = arith.constant 0 : i32
    %c0_i32_1 = arith.constant 0 : i32
    return %c0_i32, %c0_i32_0, %arg2 : i32, i32, i32
  }
  func.func @transform_3(%arg0: i32, %arg1: i32, %arg2: i32, %arg3: i32) -> (i32, i32, i32) {
    %c0_i32 = arith.constant 0 : i32
    %c0_i32_0 = arith.constant 0 : i32
    %c0_i32_1 = arith.constant 0 : i32
    return %c0_i32, %c0_i32_0, %arg2 : i32, i32, i32
  }
  func.func @transform_4(%arg0: i32, %arg1: i32, %arg2: i32, %arg3: i32) -> (i32, i32, i32) {
    %c0_i32 = arith.constant 0 : i32
    return %arg0, %arg1, %arg2 : i32, i32, i32
  }
}

module attributes {stable_mosaic.version = 11 : i64} {
  func.func @_conv_mm_kernel(%arg0: i32, %arg1: i32, %arg2: i32, %arg3: i32, %arg4: memref<1x32x72xbf16, #tpu.memory_space<vmem>>, %arg5: memref<1x72x8xbf16, #tpu.memory_space<vmem>>, %arg6: memref<1x1x8xf32, #tpu.memory_space<vmem>>, %arg7: memref<1x1x8xf32, #tpu.memory_space<vmem>>, %arg8: memref<1x32x8xf32, #tpu.memory_space<vmem>>, %arg9: memref<32x8xf32, #tpu.memory_space<vmem>>) attributes {dimension_semantics = [#tpu.dimension_semantics<parallel>, #tpu.dimension_semantics<parallel>, #tpu.dimension_semantics<parallel>, #tpu.dimension_semantics<arbitrary>], iteration_bounds = array<i64: 8, 1, 1, 1>, scalar_prefetch = 0 : i64, scratch_operands = 1 : i64, tpu.core_type = #tpu.core_type<tc>, window_params = [{transform_indices = @transform_0, window_bounds = array<i64: 1, 32, 72>}, {transform_indices = @transform_1, window_bounds = array<i64: 1, 72, 8>}, {transform_indices = @transform_2, window_bounds = array<i64: 1, 1, 8>}, {transform_indices = @transform_3, window_bounds = array<i64: 1, 1, 8>}, {transform_indices = @transform_4, window_bounds = array<i64: 1, 32, 8>}]} {
    %c0_i32 = arith.constant 0 : i32
    %0 = arith.cmpi eq, %arg3, %c0_i32 : i32
    %1 = arith.extui %0 : i1 to i32
    %c0_i32_0 = arith.constant 0 : i32
    %2 = arith.cmpi ne, %1, %c0_i32_0 : i32
    scf.if %2 {
      %cst_12 = arith.constant 0.000000e+00 : f32
      %14 = vector.broadcast %cst_12 : f32 to vector<32x8xf32>
      %c0_13 = arith.constant 0 : index
      %c0_14 = arith.constant 0 : index
      %15 = vector.load %arg9[%c0_13, %c0_14] : memref<32x8xf32, #tpu.memory_space<vmem>>, vector<32x8xf32>
      tpu.vector_store %arg9[%c0_13, %c0_14], %14 {strides = array<i32>} : memref<32x8xf32, #tpu.memory_space<vmem>>, vector<32x8xf32>,
    } else {
    }
    %c0 = arith.constant 0 : index
    %c0_1 = arith.constant 0 : index
    %c0_2 = arith.constant 0 : index
    %3 = vector.load %arg4[%c0, %c0_1, %c0_2] : memref<1x32x72xbf16, #tpu.memory_space<vmem>>, vector<1x32x72xbf16>
    %4 = vector.shape_cast %3 : vector<1x32x72xbf16> to vector<32x72xbf16>
    %c0_3 = arith.constant 0 : index
    %c0_4 = arith.constant 0 : index
    %5 = vector.load %arg9[%c0_3, %c0_4] : memref<32x8xf32, #tpu.memory_space<vmem>>, vector<32x8xf32>
    %c0_5 = arith.constant 0 : index
    %c0_6 = arith.constant 0 : index
    %c0_7 = arith.constant 0 : index
    %6 = vector.load %arg5[%c0_5, %c0_6, %c0_7] : memref<1x72x8xbf16, #tpu.memory_space<vmem>>, vector<1x72x8xbf16>
    %7 = vector.shape_cast %6 : vector<1x72x8xbf16> to vector<72x8xbf16>
    %cst = arith.constant dense<0.000000e+00> : vector<32x8xf32>
    %8 = tpu.matmul %4, %7, %cst {dimension_numbers = #tpu.dot_dimension_numbers<[1], [0], [0], [1], [0, 0, 1, 1], [], []>} : vector<32x72xbf16>, vector<72x8xbf16>, vector<32x8xf32> -> vector<32x8xf32>
    %9 = arith.addf %5, %8 : vector<32x8xf32>
    %c0_8 = arith.constant 0 : index
    %c0_9 = arith.constant 0 : index
    %10 = vector.load %arg9[%c0_8, %c0_9] : memref<32x8xf32, #tpu.memory_space<vmem>>, vector<32x8xf32>
    tpu.vector_store %arg9[%c0_8, %c0_9], %9 {strides = array<i32>} : memref<32x8xf32, #tpu.memory_space<vmem>>, vector<32x8xf32>,
    %c0_i32_10 = arith.constant 0 : i32
    %11 = arith.cmpi eq, %arg3, %c0_i32_10 : i32
    %12 = arith.extui %11 : i1 to i32
    %c0_i32_11 = arith.constant 0 : i32
    %13 = arith.cmpi ne, %12, %c0_i32_11 : i32
    scf.if %13 {
      %c0_12 = arith.constant 0 : index
      %c0_13 = arith.constant 0 : index
      %14 = vector.load %arg9[%c0_12, %c0_13] : memref<32x8xf32, #tpu.memory_space<vmem>>, vector<32x8xf32>
      %c0_14 = arith.constant 0 : index
      %c0_15 = arith.constant 0 : index
      %c0_16 = arith.constant 0 : index
      %15 = vector.load %arg6[%c0_14, %c0_15, %c0_16] : memref<1x1x8xf32, #tpu.memory_space<vmem>>, vector<1x1x8xf32>
      %16 = vector.shape_cast %15 : vector<1x1x8xf32> to vector<1x8xf32>
      %17 = vector.broadcast %16 : vector<1x8xf32> to vector<32x8xf32>
      %18 = arith.mulf %14, %17 : vector<32x8xf32>
      %c0_17 = arith.constant 0 : index
      %c0_18 = arith.constant 0 : index
      %c0_19 = arith.constant 0 : index
      %19 = vector.load %arg7[%c0_17, %c0_18, %c0_19] : memref<1x1x8xf32, #tpu.memory_space<vmem>>, vector<1x1x8xf32>
      %20 = vector.shape_cast %19 : vector<1x1x8xf32> to vector<1x8xf32>
      %21 = vector.broadcast %20 : vector<1x8xf32> to vector<32x8xf32>
      %22 = arith.addf %18, %21 : vector<32x8xf32>
      %cst_20 = arith.constant 0.000000e+00 : f32
      %23 = vector.broadcast %cst_20 : f32 to vector<32x8xf32>
      %24 = arith.maximumf %22, %23 : vector<32x8xf32>
      %c0_21 = arith.constant 0 : index
      %c0_22 = arith.constant 0 : index
      %c0_23 = arith.constant 0 : index
      %25 = vector.load %arg8[%c0_21, %c0_22, %c0_23] : memref<1x32x8xf32, #tpu.memory_space<vmem>>, vector<1x32x8xf32>
      %26 = vector.shape_cast %25 : vector<1x32x8xf32> to vector<32x8xf32>
      %27 = vector.shape_cast %24 : vector<32x8xf32> to vector<1x32x8xf32>
      tpu.vector_store %arg8[%c0_21, %c0_22, %c0_23], %27 {strides = array<i32>} : memref<1x32x8xf32, #tpu.memory_space<vmem>>, vector<1x32x8xf32>,
    } else {
    }
    return
  }
  func.func @transform_0(%arg0: i32, %arg1: i32, %arg2: i32, %arg3: i32) -> (i32, i32, i32) {
    %c0_i32 = arith.constant 0 : i32
    return %arg0, %arg1, %arg3 : i32, i32, i32
  }
  func.func @transform_1(%arg0: i32, %arg1: i32, %arg2: i32, %arg3: i32) -> (i32, i32, i32) {
    %c0_i32 = arith.constant 0 : i32
    return %arg0, %arg3, %arg2 : i32, i32, i32
  }
  func.func @transform_2(%arg0: i32, %arg1: i32, %arg2: i32, %arg3: i32) -> (i32, i32, i32) {
    %c0_i32 = arith.constant 0 : i32
    %c0_i32_0 = arith.constant 0 : i32
    return %arg0, %c0_i32, %arg2 : i32, i32, i32
  }
  func.func @transform_3(%arg0: i32, %arg1: i32, %arg2: i32, %arg3: i32) -> (i32, i32, i32) {
    %c0_i32 = arith.constant 0 : i32
    %c0_i32_0 = arith.constant 0 : i32
    return %arg0, %c0_i32, %arg2 : i32, i32, i32
  }
  func.func @transform_4(%arg0: i32, %arg1: i32, %arg2: i32, %arg3: i32) -> (i32, i32, i32) {
    %c0_i32 = arith.constant 0 : i32
    return %arg0, %arg1, %arg2 : i32, i32, i32
  }
}

module attributes {stable_mosaic.version = 11 : i64} {
  func.func @_se_gate_kernel(%arg0: i32, %arg1: memref<2x16x128xf32, #tpu.memory_space<vmem>>, %arg2: memref<128x128xbf16, #tpu.memory_space<vmem>>, %arg3: memref<1x128xf32, #tpu.memory_space<vmem>>, %arg4: memref<128x128xbf16, #tpu.memory_space<vmem>>, %arg5: memref<1x128xf32, #tpu.memory_space<vmem>>, %arg6: memref<2x128xf32, #tpu.memory_space<vmem>>) attributes {dimension_semantics = [#tpu.dimension_semantics<arbitrary>], iteration_bounds = array<i64: 1>, scalar_prefetch = 0 : i64, scratch_operands = 0 : i64, tpu.core_type = #tpu.core_type<tc>, window_params = [{pipeline_mode = #tpu.pipeline_mode<synchronous>, transform_indices = @transform_0, window_bounds = array<i64: 2, 16, 128>}, {pipeline_mode = #tpu.pipeline_mode<synchronous>, transform_indices = @transform_1, window_bounds = array<i64: 128, 128>}, {pipeline_mode = #tpu.pipeline_mode<synchronous>, transform_indices = @transform_2, window_bounds = array<i64: 1, 128>}, {pipeline_mode = #tpu.pipeline_mode<synchronous>, transform_indices = @transform_3, window_bounds = array<i64: 128, 128>}, {pipeline_mode = #tpu.pipeline_mode<synchronous>, transform_indices = @transform_4, window_bounds = array<i64: 1, 128>}, {pipeline_mode = #tpu.pipeline_mode<synchronous>, transform_indices = @transform_5, window_bounds = array<i64: 2, 128>}]} {
    %c0 = arith.constant 0 : index
    %c0_0 = arith.constant 0 : index
    %c0_1 = arith.constant 0 : index
    %0 = vector.load %arg1[%c0, %c0_0, %c0_1] : memref<2x16x128xf32, #tpu.memory_space<vmem>>, vector<2x16x128xf32>
    %cst = arith.constant dense<0.000000e+00> : vector<2x128xf32>
    %1 = vector.multi_reduction <add>, %0, %cst [1] : vector<2x16x128xf32> to vector<2x128xf32>
    %cst_2 = arith.constant 1.600000e+01 : f32
    %2 = vector.broadcast %cst_2 : f32 to vector<2x128xf32>
    %3 = arith.divf %1, %2 : vector<2x128xf32>
    %4 = arith.truncf %3 : vector<2x128xf32> to vector<2x128xbf16>
    %c0_3 = arith.constant 0 : index
    %c0_4 = arith.constant 0 : index
    %5 = vector.load %arg2[%c0_3, %c0_4] : memref<128x128xbf16, #tpu.memory_space<vmem>>, vector<128x128xbf16>
    %cst_5 = arith.constant dense<0.000000e+00> : vector<2x128xf32>
    %6 = tpu.matmul %4, %5, %cst_5 {dimension_numbers = #tpu.dot_dimension_numbers<[1], [0], [0], [1], [0, 0, 1, 1], [], []>} : vector<2x128xbf16>, vector<128x128xbf16>, vector<2x128xf32> -> vector<2x128xf32>
    %c0_6 = arith.constant 0 : index
    %c0_7 = arith.constant 0 : index
    %7 = vector.load %arg3[%c0_6, %c0_7] : memref<1x128xf32, #tpu.memory_space<vmem>>, vector<1x128xf32>
    %8 = vector.broadcast %7 : vector<1x128xf32> to vector<2x128xf32>
    %9 = arith.addf %6, %8 : vector<2x128xf32>
    %cst_8 = arith.constant 0.000000e+00 : f32
    %10 = vector.broadcast %cst_8 : f32 to vector<2x128xf32>
    %11 = arith.maximumf %9, %10 : vector<2x128xf32>
    %12 = arith.truncf %11 : vector<2x128xf32> to vector<2x128xbf16>
    %c0_9 = arith.constant 0 : index
    %c0_10 = arith.constant 0 : index
    %13 = vector.load %arg4[%c0_9, %c0_10] : memref<128x128xbf16, #tpu.memory_space<vmem>>, vector<128x128xbf16>
    %cst_11 = arith.constant dense<0.000000e+00> : vector<2x128xf32>
    %14 = tpu.matmul %12, %13, %cst_11 {dimension_numbers = #tpu.dot_dimension_numbers<[1], [0], [0], [1], [0, 0, 1, 1], [], []>} : vector<2x128xbf16>, vector<128x128xbf16>, vector<2x128xf32> -> vector<2x128xf32>
    %c0_12 = arith.constant 0 : index
    %c0_13 = arith.constant 0 : index
    %15 = vector.load %arg5[%c0_12, %c0_13] : memref<1x128xf32, #tpu.memory_space<vmem>>, vector<1x128xf32>
    %16 = vector.broadcast %15 : vector<1x128xf32> to vector<2x128xf32>
    %17 = arith.addf %14, %16 : vector<2x128xf32>
    %cst_14 = arith.constant 0.000000e+00 : f32
    %18 = vector.broadcast %cst_14 : f32 to vector<2x128xf32>
    %19 = arith.subf %18, %17 : vector<2x128xf32>
    %20 = math.exp %19 : vector<2x128xf32>
    %cst_15 = arith.constant 1.000000e+00 : f32
    %21 = vector.broadcast %cst_15 : f32 to vector<2x128xf32>
    %22 = arith.addf %21, %20 : vector<2x128xf32>
    %23 = tpu.reciprocal %22 {approx = true} : vector<2x128xf32> -> vector<2x128xf32>
    %c0_16 = arith.constant 0 : index
    %c0_17 = arith.constant 0 : index
    %24 = vector.load %arg6[%c0_16, %c0_17] : memref<2x128xf32, #tpu.memory_space<vmem>>, vector<2x128xf32>
    tpu.vector_store %arg6[%c0_16, %c0_17], %23 {strides = array<i32>} : memref<2x128xf32, #tpu.memory_space<vmem>>, vector<2x128xf32>,
    return
  }
  func.func @transform_0(%arg0: i32) -> (i32, i32, i32) {
    %c0_i32 = arith.constant 0 : i32
    %c0_i32_0 = arith.constant 0 : i32
    %c0_i32_1 = arith.constant 0 : i32
    %c0_i32_2 = arith.constant 0 : i32
    return %c0_i32, %c0_i32_0, %c0_i32_1 : i32, i32, i32
  }
  func.func @transform_1(%arg0: i32) -> (i32, i32) {
    %c0_i32 = arith.constant 0 : i32
    %c0_i32_0 = arith.constant 0 : i32
    %c0_i32_1 = arith.constant 0 : i32
    return %c0_i32, %c0_i32_0 : i32, i32
  }
  func.func @transform_2(%arg0: i32) -> (i32, i32) {
    %c0_i32 = arith.constant 0 : i32
    %c0_i32_0 = arith.constant 0 : i32
    %c0_i32_1 = arith.constant 0 : i32
    return %c0_i32, %c0_i32_0 : i32, i32
  }
  func.func @transform_3(%arg0: i32) -> (i32, i32) {
    %c0_i32 = arith.constant 0 : i32
    %c0_i32_0 = arith.constant 0 : i32
    %c0_i32_1 = arith.constant 0 : i32
    return %c0_i32, %c0_i32_0 : i32, i32
  }
  func.func @transform_4(%arg0: i32) -> (i32, i32) {
    %c0_i32 = arith.constant 0 : i32
    %c0_i32_0 = arith.constant 0 : i32
    %c0_i32_1 = arith.constant 0 : i32
    return %c0_i32, %c0_i32_0 : i32, i32
  }
  func.func @transform_5(%arg0: i32) -> (i32, i32) {
    %c0_i32 = arith.constant 0 : i32
    %c0_i32_0 = arith.constant 0 : i32
    %c0_i32_1 = arith.constant 0 : i32
    return %c0_i32, %c0_i32_0 : i32, i32
  }
}

module attributes {stable_mosaic.version = 11 : i64} {
  func.func @_conv_mm_kernel(%arg0: i32, %arg1: i32, %arg2: i32, %arg3: i32, %arg4: memref<1x32x128xbf16, #tpu.memory_space<vmem>>, %arg5: memref<1x128x128xbf16, #tpu.memory_space<vmem>>, %arg6: memref<1x1x128xf32, #tpu.memory_space<vmem>>, %arg7: memref<1x1x128xf32, #tpu.memory_space<vmem>>, %arg8: memref<1x32x128xf32, #tpu.memory_space<vmem>>, %arg9: memref<32x128xf32, #tpu.memory_space<vmem>>) attributes {dimension_semantics = [#tpu.dimension_semantics<parallel>, #tpu.dimension_semantics<parallel>, #tpu.dimension_semantics<parallel>, #tpu.dimension_semantics<arbitrary>], iteration_bounds = array<i64: 1, 1, 1, 1>, scalar_prefetch = 0 : i64, scratch_operands = 1 : i64, tpu.core_type = #tpu.core_type<tc>, window_params = [{transform_indices = @transform_0, window_bounds = array<i64: 1, 32, 128>}, {transform_indices = @transform_1, window_bounds = array<i64: 1, 128, 128>}, {transform_indices = @transform_2, window_bounds = array<i64: 1, 1, 128>}, {transform_indices = @transform_3, window_bounds = array<i64: 1, 1, 128>}, {transform_indices = @transform_4, window_bounds = array<i64: 1, 32, 128>}]} {
    %c0_i32 = arith.constant 0 : i32
    %0 = arith.cmpi eq, %arg3, %c0_i32 : i32
    %1 = arith.extui %0 : i1 to i32
    %c0_i32_0 = arith.constant 0 : i32
    %2 = arith.cmpi ne, %1, %c0_i32_0 : i32
    scf.if %2 {
      %cst_12 = arith.constant 0.000000e+00 : f32
      %14 = vector.broadcast %cst_12 : f32 to vector<32x128xf32>
      %c0_13 = arith.constant 0 : index
      %c0_14 = arith.constant 0 : index
      %15 = vector.load %arg9[%c0_13, %c0_14] : memref<32x128xf32, #tpu.memory_space<vmem>>, vector<32x128xf32>
      tpu.vector_store %arg9[%c0_13, %c0_14], %14 {strides = array<i32>} : memref<32x128xf32, #tpu.memory_space<vmem>>, vector<32x128xf32>,
    } else {
    }
    %c0 = arith.constant 0 : index
    %c0_1 = arith.constant 0 : index
    %c0_2 = arith.constant 0 : index
    %3 = vector.load %arg4[%c0, %c0_1, %c0_2] : memref<1x32x128xbf16, #tpu.memory_space<vmem>>, vector<1x32x128xbf16>
    %4 = vector.shape_cast %3 : vector<1x32x128xbf16> to vector<32x128xbf16>
    %c0_3 = arith.constant 0 : index
    %c0_4 = arith.constant 0 : index
    %5 = vector.load %arg9[%c0_3, %c0_4] : memref<32x128xf32, #tpu.memory_space<vmem>>, vector<32x128xf32>
    %c0_5 = arith.constant 0 : index
    %c0_6 = arith.constant 0 : index
    %c0_7 = arith.constant 0 : index
    %6 = vector.load %arg5[%c0_5, %c0_6, %c0_7] : memref<1x128x128xbf16, #tpu.memory_space<vmem>>, vector<1x128x128xbf16>
    %7 = vector.shape_cast %6 : vector<1x128x128xbf16> to vector<128x128xbf16>
    %cst = arith.constant dense<0.000000e+00> : vector<32x128xf32>
    %8 = tpu.matmul %4, %7, %cst {dimension_numbers = #tpu.dot_dimension_numbers<[1], [0], [0], [1], [0, 0, 1, 1], [], []>} : vector<32x128xbf16>, vector<128x128xbf16>, vector<32x128xf32> -> vector<32x128xf32>
    %9 = arith.addf %5, %8 : vector<32x128xf32>
    %c0_8 = arith.constant 0 : index
    %c0_9 = arith.constant 0 : index
    %10 = vector.load %arg9[%c0_8, %c0_9] : memref<32x128xf32, #tpu.memory_space<vmem>>, vector<32x128xf32>
    tpu.vector_store %arg9[%c0_8, %c0_9], %9 {strides = array<i32>} : memref<32x128xf32, #tpu.memory_space<vmem>>, vector<32x128xf32>,
    %c0_i32_10 = arith.constant 0 : i32
    %11 = arith.cmpi eq, %arg3, %c0_i32_10 : i32
    %12 = arith.extui %11 : i1 to i32
    %c0_i32_11 = arith.constant 0 : i32
    %13 = arith.cmpi ne, %12, %c0_i32_11 : i32
    scf.if %13 {
      %c0_12 = arith.constant 0 : index
      %c0_13 = arith.constant 0 : index
      %14 = vector.load %arg9[%c0_12, %c0_13] : memref<32x128xf32, #tpu.memory_space<vmem>>, vector<32x128xf32>
      %c0_14 = arith.constant 0 : index
      %c0_15 = arith.constant 0 : index
      %c0_16 = arith.constant 0 : index
      %15 = vector.load %arg6[%c0_14, %c0_15, %c0_16] : memref<1x1x128xf32, #tpu.memory_space<vmem>>, vector<1x1x128xf32>
      %16 = vector.shape_cast %15 : vector<1x1x128xf32> to vector<1x128xf32>
      %17 = vector.broadcast %16 : vector<1x128xf32> to vector<32x128xf32>
      %18 = arith.mulf %14, %17 : vector<32x128xf32>
      %c0_17 = arith.constant 0 : index
      %c0_18 = arith.constant 0 : index
      %c0_19 = arith.constant 0 : index
      %19 = vector.load %arg7[%c0_17, %c0_18, %c0_19] : memref<1x1x128xf32, #tpu.memory_space<vmem>>, vector<1x1x128xf32>
      %20 = vector.shape_cast %19 : vector<1x1x128xf32> to vector<1x128xf32>
      %21 = vector.broadcast %20 : vector<1x128xf32> to vector<32x128xf32>
      %22 = arith.addf %18, %21 : vector<32x128xf32>
      %c0_20 = arith.constant 0 : index
      %c0_21 = arith.constant 0 : index
      %c0_22 = arith.constant 0 : index
      %23 = vector.load %arg8[%c0_20, %c0_21, %c0_22] : memref<1x32x128xf32, #tpu.memory_space<vmem>>, vector<1x32x128xf32>
      %24 = vector.shape_cast %23 : vector<1x32x128xf32> to vector<32x128xf32>
      %25 = vector.shape_cast %22 : vector<32x128xf32> to vector<1x32x128xf32>
      tpu.vector_store %arg8[%c0_20, %c0_21, %c0_22], %25 {strides = array<i32>} : memref<1x32x128xf32, #tpu.memory_space<vmem>>, vector<1x32x128xf32>,
    } else {
    }
    return
  }
  func.func @transform_0(%arg0: i32, %arg1: i32, %arg2: i32, %arg3: i32) -> (i32, i32, i32) {
    %c0_i32 = arith.constant 0 : i32
    return %arg0, %arg1, %arg3 : i32, i32, i32
  }
  func.func @transform_1(%arg0: i32, %arg1: i32, %arg2: i32, %arg3: i32) -> (i32, i32, i32) {
    %c0_i32 = arith.constant 0 : i32
    %c0_i32_0 = arith.constant 0 : i32
    return %c0_i32, %arg3, %arg2 : i32, i32, i32
  }
  func.func @transform_2(%arg0: i32, %arg1: i32, %arg2: i32, %arg3: i32) -> (i32, i32, i32) {
    %c0_i32 = arith.constant 0 : i32
    %c0_i32_0 = arith.constant 0 : i32
    %c0_i32_1 = arith.constant 0 : i32
    return %c0_i32, %c0_i32_0, %arg2 : i32, i32, i32
  }
  func.func @transform_3(%arg0: i32, %arg1: i32, %arg2: i32, %arg3: i32) -> (i32, i32, i32) {
    %c0_i32 = arith.constant 0 : i32
    %c0_i32_0 = arith.constant 0 : i32
    %c0_i32_1 = arith.constant 0 : i32
    return %c0_i32, %c0_i32_0, %arg2 : i32, i32, i32
  }
  func.func @transform_4(%arg0: i32, %arg1: i32, %arg2: i32, %arg3: i32) -> (i32, i32, i32) {
    %c0_i32 = arith.constant 0 : i32
    return %arg0, %arg1, %arg2 : i32, i32, i32
  }
}

module attributes {stable_mosaic.version = 11 : i64} {
  func.func @_conv_mm_kernel(%arg0: i32, %arg1: i32, %arg2: i32, %arg3: i32, %arg4: memref<1x16x128xbf16, #tpu.memory_space<vmem>>, %arg5: memref<1x128x128xbf16, #tpu.memory_space<vmem>>, %arg6: memref<1x1x128xf32, #tpu.memory_space<vmem>>, %arg7: memref<1x1x128xf32, #tpu.memory_space<vmem>>, %arg8: memref<1x1x128xf32, #tpu.memory_space<vmem>>, %arg9: memref<1x16x128xf32, #tpu.memory_space<vmem>>, %arg10: memref<1x16x128xf32, #tpu.memory_space<vmem>>, %arg11: memref<16x128xf32, #tpu.memory_space<vmem>>) attributes {dimension_semantics = [#tpu.dimension_semantics<parallel>, #tpu.dimension_semantics<parallel>, #tpu.dimension_semantics<parallel>, #tpu.dimension_semantics<arbitrary>], iteration_bounds = array<i64: 2, 1, 1, 1>, scalar_prefetch = 0 : i64, scratch_operands = 1 : i64, tpu.core_type = #tpu.core_type<tc>, window_params = [{transform_indices = @transform_0, window_bounds = array<i64: 1, 16, 128>}, {transform_indices = @transform_1, window_bounds = array<i64: 1, 128, 128>}, {transform_indices = @transform_2, window_bounds = array<i64: 1, 1, 128>}, {transform_indices = @transform_3, window_bounds = array<i64: 1, 1, 128>}, {transform_indices = @transform_4, window_bounds = array<i64: 1, 1, 128>}, {transform_indices = @transform_5, window_bounds = array<i64: 1, 16, 128>}, {transform_indices = @transform_6, window_bounds = array<i64: 1, 16, 128>}]} {
    %c0_i32 = arith.constant 0 : i32
    %0 = arith.cmpi eq, %arg3, %c0_i32 : i32
    %1 = arith.extui %0 : i1 to i32
    %c0_i32_0 = arith.constant 0 : i32
    %2 = arith.cmpi ne, %1, %c0_i32_0 : i32
    scf.if %2 {
      %cst_15 = arith.constant 0.000000e+00 : f32
      %20 = vector.broadcast %cst_15 : f32 to vector<16x128xf32>
      %c0_16 = arith.constant 0 : index
      %c0_17 = arith.constant 0 : index
      %21 = vector.load %arg11[%c0_16, %c0_17] : memref<16x128xf32, #tpu.memory_space<vmem>>, vector<16x128xf32>
      tpu.vector_store %arg11[%c0_16, %c0_17], %20 {strides = array<i32>} : memref<16x128xf32, #tpu.memory_space<vmem>>, vector<16x128xf32>,
    } else {
    }
    %c0 = arith.constant 0 : index
    %c0_1 = arith.constant 0 : index
    %c0_2 = arith.constant 0 : index
    %3 = vector.load %arg4[%c0, %c0_1, %c0_2] : memref<1x16x128xbf16, #tpu.memory_space<vmem>>, vector<1x16x128xbf16>
    %4 = vector.shape_cast %3 : vector<1x16x128xbf16> to vector<16x128xbf16>
    %5 = arith.extf %4 : vector<16x128xbf16> to vector<16x128xf32>
    %c0_3 = arith.constant 0 : index
    %c0_4 = arith.constant 0 : index
    %c0_5 = arith.constant 0 : index
    %6 = vector.load %arg8[%c0_3, %c0_4, %c0_5] : memref<1x1x128xf32, #tpu.memory_space<vmem>>, vector<1x1x128xf32>
    %7 = vector.shape_cast %6 : vector<1x1x128xf32> to vector<1x128xf32>
    %8 = vector.broadcast %7 : vector<1x128xf32> to vector<16x128xf32>
    %9 = arith.mulf %5, %8 : vector<16x128xf32>
    %10 = arith.truncf %9 : vector<16x128xf32> to vector<16x128xbf16>
    %c0_6 = arith.constant 0 : index
    %c0_7 = arith.constant 0 : index
    %11 = vector.load %arg11[%c0_6, %c0_7] : memref<16x128xf32, #tpu.memory_space<vmem>>, vector<16x128xf32>
    %c0_8 = arith.constant 0 : index
    %c0_9 = arith.constant 0 : index
    %c0_10 = arith.constant 0 : index
    %12 = vector.load %arg5[%c0_8, %c0_9, %c0_10] : memref<1x128x128xbf16, #tpu.memory_space<vmem>>, vector<1x128x128xbf16>
    %13 = vector.shape_cast %12 : vector<1x128x128xbf16> to vector<128x128xbf16>
    %cst = arith.constant dense<0.000000e+00> : vector<16x128xf32>
    %14 = tpu.matmul %10, %13, %cst {dimension_numbers = #tpu.dot_dimension_numbers<[1], [0], [0], [1], [0, 0, 1, 1], [], []>} : vector<16x128xbf16>, vector<128x128xbf16>, vector<16x128xf32> -> vector<16x128xf32>
    %15 = arith.addf %11, %14 : vector<16x128xf32>
    %c0_11 = arith.constant 0 : index
    %c0_12 = arith.constant 0 : index
    %16 = vector.load %arg11[%c0_11, %c0_12] : memref<16x128xf32, #tpu.memory_space<vmem>>, vector<16x128xf32>
    tpu.vector_store %arg11[%c0_11, %c0_12], %15 {strides = array<i32>} : memref<16x128xf32, #tpu.memory_space<vmem>>, vector<16x128xf32>,
    %c0_i32_13 = arith.constant 0 : i32
    %17 = arith.cmpi eq, %arg3, %c0_i32_13 : i32
    %18 = arith.extui %17 : i1 to i32
    %c0_i32_14 = arith.constant 0 : i32
    %19 = arith.cmpi ne, %18, %c0_i32_14 : i32
    scf.if %19 {
      %c0_15 = arith.constant 0 : index
      %c0_16 = arith.constant 0 : index
      %20 = vector.load %arg11[%c0_15, %c0_16] : memref<16x128xf32, #tpu.memory_space<vmem>>, vector<16x128xf32>
      %c0_17 = arith.constant 0 : index
      %c0_18 = arith.constant 0 : index
      %c0_19 = arith.constant 0 : index
      %21 = vector.load %arg6[%c0_17, %c0_18, %c0_19] : memref<1x1x128xf32, #tpu.memory_space<vmem>>, vector<1x1x128xf32>
      %22 = vector.shape_cast %21 : vector<1x1x128xf32> to vector<1x128xf32>
      %23 = vector.broadcast %22 : vector<1x128xf32> to vector<16x128xf32>
      %24 = arith.mulf %20, %23 : vector<16x128xf32>
      %c0_20 = arith.constant 0 : index
      %c0_21 = arith.constant 0 : index
      %c0_22 = arith.constant 0 : index
      %25 = vector.load %arg7[%c0_20, %c0_21, %c0_22] : memref<1x1x128xf32, #tpu.memory_space<vmem>>, vector<1x1x128xf32>
      %26 = vector.shape_cast %25 : vector<1x1x128xf32> to vector<1x128xf32>
      %27 = vector.broadcast %26 : vector<1x128xf32> to vector<16x128xf32>
      %28 = arith.addf %24, %27 : vector<16x128xf32>
      %c0_23 = arith.constant 0 : index
      %c0_24 = arith.constant 0 : index
      %c0_25 = arith.constant 0 : index
      %29 = vector.load %arg9[%c0_23, %c0_24, %c0_25] : memref<1x16x128xf32, #tpu.memory_space<vmem>>, vector<1x16x128xf32>
      %30 = vector.shape_cast %29 : vector<1x16x128xf32> to vector<16x128xf32>
      %31 = arith.addf %28, %30 : vector<16x128xf32>
      %cst_26 = arith.constant 0.000000e+00 : f32
      %32 = vector.broadcast %cst_26 : f32 to vector<16x128xf32>
      %33 = arith.maximumf %31, %32 : vector<16x128xf32>
      %c0_27 = arith.constant 0 : index
      %c0_28 = arith.constant 0 : index
      %c0_29 = arith.constant 0 : index
      %34 = vector.load %arg10[%c0_27, %c0_28, %c0_29] : memref<1x16x128xf32, #tpu.memory_space<vmem>>, vector<1x16x128xf32>
      %35 = vector.shape_cast %34 : vector<1x16x128xf32> to vector<16x128xf32>
      %36 = vector.shape_cast %33 : vector<16x128xf32> to vector<1x16x128xf32>
      tpu.vector_store %arg10[%c0_27, %c0_28, %c0_29], %36 {strides = array<i32>} : memref<1x16x128xf32, #tpu.memory_space<vmem>>, vector<1x16x128xf32>,
    } else {
    }
    return
  }
  func.func @transform_0(%arg0: i32, %arg1: i32, %arg2: i32, %arg3: i32) -> (i32, i32, i32) {
    %c0_i32 = arith.constant 0 : i32
    return %arg0, %arg1, %arg3 : i32, i32, i32
  }
  func.func @transform_1(%arg0: i32, %arg1: i32, %arg2: i32, %arg3: i32) -> (i32, i32, i32) {
    %c0_i32 = arith.constant 0 : i32
    %c0_i32_0 = arith.constant 0 : i32
    return %c0_i32, %arg3, %arg2 : i32, i32, i32
  }
  func.func @transform_2(%arg0: i32, %arg1: i32, %arg2: i32, %arg3: i32) -> (i32, i32, i32) {
    %c0_i32 = arith.constant 0 : i32
    %c0_i32_0 = arith.constant 0 : i32
    %c0_i32_1 = arith.constant 0 : i32
    return %c0_i32, %c0_i32_0, %arg2 : i32, i32, i32
  }
  func.func @transform_3(%arg0: i32, %arg1: i32, %arg2: i32, %arg3: i32) -> (i32, i32, i32) {
    %c0_i32 = arith.constant 0 : i32
    %c0_i32_0 = arith.constant 0 : i32
    %c0_i32_1 = arith.constant 0 : i32
    return %c0_i32, %c0_i32_0, %arg2 : i32, i32, i32
  }
  func.func @transform_4(%arg0: i32, %arg1: i32, %arg2: i32, %arg3: i32) -> (i32, i32, i32) {
    %c0_i32 = arith.constant 0 : i32
    %c0_i32_0 = arith.constant 0 : i32
    return %arg0, %c0_i32, %arg3 : i32, i32, i32
  }
  func.func @transform_5(%arg0: i32, %arg1: i32, %arg2: i32, %arg3: i32) -> (i32, i32, i32) {
    %c0_i32 = arith.constant 0 : i32
    return %arg0, %arg1, %arg2 : i32, i32, i32
  }
  func.func @transform_6(%arg0: i32, %arg1: i32, %arg2: i32, %arg3: i32) -> (i32, i32, i32) {
    %c0_i32 = arith.constant 0 : i32
    return %arg0, %arg1, %arg2 : i32, i32, i32
  }
}

module attributes {stable_mosaic.version = 11 : i64} {
  func.func @_head_kernel(%arg0: i32, %arg1: memref<2x16x128xf32, #tpu.memory_space<vmem>>, %arg2: memref<128x128xbf16, #tpu.memory_space<vmem>>, %arg3: memref<1x128xf32, #tpu.memory_space<vmem>>, %arg4: memref<2x128xf32, #tpu.memory_space<vmem>>) attributes {dimension_semantics = [#tpu.dimension_semantics<arbitrary>], iteration_bounds = array<i64: 1>, scalar_prefetch = 0 : i64, scratch_operands = 0 : i64, tpu.core_type = #tpu.core_type<tc>, window_params = [{pipeline_mode = #tpu.pipeline_mode<synchronous>, transform_indices = @transform_0, window_bounds = array<i64: 2, 16, 128>}, {pipeline_mode = #tpu.pipeline_mode<synchronous>, transform_indices = @transform_1, window_bounds = array<i64: 128, 128>}, {pipeline_mode = #tpu.pipeline_mode<synchronous>, transform_indices = @transform_2, window_bounds = array<i64: 1, 128>}, {pipeline_mode = #tpu.pipeline_mode<synchronous>, transform_indices = @transform_3, window_bounds = array<i64: 2, 128>}]} {
    %c0 = arith.constant 0 : index
    %c0_0 = arith.constant 0 : index
    %c0_1 = arith.constant 0 : index
    %0 = vector.load %arg1[%c0, %c0_0, %c0_1] : memref<2x16x128xf32, #tpu.memory_space<vmem>>, vector<2x16x128xf32>
    %cst = arith.constant dense<0.000000e+00> : vector<2x128xf32>
    %1 = vector.multi_reduction <add>, %0, %cst [1] : vector<2x16x128xf32> to vector<2x128xf32>
    %cst_2 = arith.constant 1.600000e+01 : f32
    %2 = vector.broadcast %cst_2 : f32 to vector<2x128xf32>
    %3 = arith.divf %1, %2 : vector<2x128xf32>
    %4 = arith.truncf %3 : vector<2x128xf32> to vector<2x128xbf16>
    %c0_3 = arith.constant 0 : index
    %c0_4 = arith.constant 0 : index
    %5 = vector.load %arg2[%c0_3, %c0_4] : memref<128x128xbf16, #tpu.memory_space<vmem>>, vector<128x128xbf16>
    %cst_5 = arith.constant dense<0.000000e+00> : vector<2x128xf32>
    %6 = tpu.matmul %4, %5, %cst_5 {dimension_numbers = #tpu.dot_dimension_numbers<[1], [0], [0], [1], [0, 0, 1, 1], [], []>} : vector<2x128xbf16>, vector<128x128xbf16>, vector<2x128xf32> -> vector<2x128xf32>
    %c0_6 = arith.constant 0 : index
    %c0_7 = arith.constant 0 : index
    %7 = vector.load %arg3[%c0_6, %c0_7] : memref<1x128xf32, #tpu.memory_space<vmem>>, vector<1x128xf32>
    %8 = vector.broadcast %7 : vector<1x128xf32> to vector<2x128xf32>
    %9 = arith.addf %6, %8 : vector<2x128xf32>
    %c0_8 = arith.constant 0 : index
    %c0_9 = arith.constant 0 : index
    %10 = vector.load %arg4[%c0_8, %c0_9] : memref<2x128xf32, #tpu.memory_space<vmem>>, vector<2x128xf32>
    tpu.vector_store %arg4[%c0_8, %c0_9], %9 {strides = array<i32>} : memref<2x128xf32, #tpu.memory_space<vmem>>, vector<2x128xf32>,
    return
  }
  func.func @transform_0(%arg0: i32) -> (i32, i32, i32) {
    %c0_i32 = arith.constant 0 : i32
    %c0_i32_0 = arith.constant 0 : i32
    %c0_i32_1 = arith.constant 0 : i32
    %c0_i32_2 = arith.constant 0 : i32
    return %c0_i32, %c0_i32_0, %c0_i32_1 : i32, i32, i32
  }
  func.func @transform_1(%arg0: i32) -> (i32, i32) {
    %c0_i32 = arith.constant 0 : i32
    %c0_i32_0 = arith.constant 0 : i32
    %c0_i32_1 = arith.constant 0 : i32
    return %c0_i32, %c0_i32_0 : i32, i32
  }
  func.func @transform_2(%arg0: i32) -> (i32, i32) {
    %c0_i32 = arith.constant 0 : i32
    %c0_i32_0 = arith.constant 0 : i32
    %c0_i32_1 = arith.constant 0 : i32
    return %c0_i32, %c0_i32_0 : i32, i32
  }
  func.func @transform_3(%arg0: i32) -> (i32, i32) {
    %c0_i32 = arith.constant 0 : i32
    %c0_i32_0 = arith.constant 0 : i32
    %c0_i32_1 = arith.constant 0 : i32
    return %c0_i32, %c0_i32_0 : i32, i32
  }
}

</mosaic_0001>

<llo_original>
// kernel: anynetx_forward.13
$region0: #{anynetx_forward.13}
  #allocation0 [shape = 'u32[]', space=smem, size = 0x4, offset = 0x4, fixed_abs, tag = 'smem constant byte address 0x4 - core index']
  #allocation1 [shape = 'u32[144,128]{1,0:T(1,128)}', space=vmem, size = 0x12000, scoped, tag = 'internal scratch']
  #allocation2 [shape = 'f32[256,128]{1,0:T(8,128)}', space=vmem, size = 0x20000, scoped, tag = 'scratch operand']
  %s0 = inlined_call_operand.vmem [shape: bf16[1,512,128], index: 0, kind: input, shape index: {}]
  %s1 = inlined_call_operand.vmem [shape: bf16[1,128,128], index: 1, kind: input, shape index: {}]
  %s2 = inlined_call_operand.vmem [shape: f32[1,1,128], index: 2, kind: input, shape index: {}]
  %s3 = inlined_call_operand.vmem [shape: f32[1,1,128], index: 3, kind: input, shape index: {}]
  %s4 = inlined_call_operand.vmem [shape: f32[1,512,128], index: 4, kind: output, shape index: {}]
  %s5 = sld [smem:[#allocation0]]
  $region57: #{anynetx_forward.13} parent=0
    _
  %s7 = ssub.s32 1, %s5
  %s8 = scalar_select 0, %s7, %s5
  loop: start=0, step=1, limit=4
  $region2: #{anynetx_forward.13} parent=0 // loop_pre_header
    _
  $region3: #{anynetx_forward.13} parent=0 // loop_header
    %s10 = sphi 0, %s14
    %p11 = scmp.ge.s32.totalorder %s10, 4
    %s17 = sphi 0, %s43
    %s18 = sphi 0, %s39
    %s19 = sphi 0, %s35
    %s20 = sphi 0, %s31
    %s21 = sphi 0, %s17
    %s22 = sphi 0, %s18
    %s23 = sphi 0, %s19
    %s24 = sphi 0, %s20
    %s25 = sphi 0, %s21
    %s26 = sphi 0, %s22
    %s27 = sphi 0, %s23
    %s28 = sphi 0, %s24
    %s50 = sphi 0, %s52
    %s53 = sphi 0, %s50
    %s54 = sphi 0, %s53
    %s70 = sphi 0, %s54
    %s78 = sphi 0, %s80
    %s81 = sphi 0, %s78
    %s82 = sphi 0, %s81
    %s98 = sphi 0, %s82
    %s104 = sphi 0, %s106
    %s107 = sphi 0, %s104
    %s108 = sphi 0, %s107
    %s124 = sphi 0, %s108
    %s130 = sphi 0, %s132
    %s133 = sphi 0, %s130
    %s134 = sphi 0, %s133
    %s150 = sphi 0, %s134
    %s160 = sphi 0, %s162
    %s163 = sphi 0, %s160
    %s164 = sphi 0, %s163
    %s180 = sphi 0, %s164
  $region4: #{anynetx_forward.13} parent=0 // loop_header_branch
    %13 = sbr.rel (%p11) target = $region8
  $region5: #{anynetx_forward.13} parent=0 // loop_body
    %s15 = ssub.s32 %s10, 1
    %s16 = ssub.s32 %s10, 2
    %s29 = sadd.s32 1, %s20
    %p30 = scmp.ge.s32.totalorder %s29, 1
    %s31 = scalar_select %p30, 0, %s29
    %s32 = sadd.s32 1, %s19
    %s33 = scalar_select %p30, %s32, %s19
    %p34 = scmp.ge.s32.totalorder %s33, 1
    %s35 = scalar_select %p34, 0, %s33
    %s36 = sadd.s32 1, %s18
    %s37 = scalar_select %p34, %s36, %s18
    %p38 = scmp.ge.s32.totalorder %s37, 2
    %s39 = scalar_select %p38, 0, %s37
    %s40 = sadd.s32 1, %s17
    %s41 = scalar_select %p38, %s40, %s17
    %p42 = scmp.ge.s32.totalorder %s41, 1
    %s43 = scalar_select %p42, 0, %s41
    %s44 = ssub.s32 %s17, %s43
    %s45 = ssub.s32 %s18, %s39
    %s46 = sor.u32 %s44, %s45
    %s47 = ssub.s32 %s20, %s31
    %s48 = sor.u32 %s46, %s47
    %p49 = scmp.eq.s32.totalorder %s48, 0
    %s51 = sadd.s32 %s50, 1
    %s52 = scalar_select %p49, %s50, %s51
    %p55 = pneg %p49
    %p56 = scmp.eq.s32.totalorder %s10, 1
    %p57 = por %p55, %p56
    %p58 = scmp.ne.s32.totalorder %s50, %s53
    %p59 = scmp.eq.s32.totalorder %s10, 0
    %p60 = por %p58, %p59
    %p61 = scmp.ne.s32.totalorder %s50, %s53
    %p62 = scmp.eq.s32.totalorder %s15, 1
    %p63 = por %p61, %p62
    %p64 = scmp.ne.s32.totalorder %s53, %s54
    %p65 = scmp.eq.s32.totalorder %s15, 0
    %p66 = por %p64, %p65
    %p67 = scmp.ne.s32.totalorder %s53, %s54
    %p68 = scmp.eq.s32.totalorder %s16, 1
    %p69 = por %p67, %p68
    %p71 = scmp.ne.s32.totalorder %s54, %s70
    %p72 = scmp.eq.s32.totalorder %s16, 0
    %p73 = por %p71, %p72
    %s74 = ssub.s32 %s20, %s31
    %s75 = ssub.s32 %s19, %s35
    %s76 = sor.u32 %s74, %s75
    %p77 = scmp.eq.s32.totalorder %s76, 0
    %s79 = sadd.s32 %s78, 1
    %s80 = scalar_select %p77, %s78, %s79
    %p83 = pneg %p77
    %p84 = scmp.eq.s32.totalorder %s10, 1
    %p85 = por %p83, %p84
    %p86 = scmp.ne.s32.totalorder %s78, %s81
    %p87 = scmp.eq.s32.totalorder %s10, 0
    %p88 = por %p86, %p87
    %p89 = scmp.ne.s32.totalorder %s78, %s81
    %p90 = scmp.eq.s32.totalorder %s15, 1
    %p91 = por %p89, %p90
    %p92 = scmp.ne.s32.totalorder %s81, %s82
    %p93 = scmp.eq.s32.totalorder %s15, 0
    %p94 = por %p92, %p93
    %p95 = scmp.ne.s32.totalorder %s81, %s82
    %p96 = scmp.eq.s32.totalorder %s16, 1
    %p97 = por %p95, %p96
    %p99 = scmp.ne.s32.totalorder %s82, %s98
    %p100 = scmp.eq.s32.totalorder %s16, 0
    %p101 = por %p99, %p100
    %s102 = ssub.s32 %s19, %s35
    %p103 = scmp.eq.s32.totalorder %s102, 0
    %s105 = sadd.s32 %s104, 1
    %s106 = scalar_select %p103, %s104, %s105
    %p109 = pneg %p103
    %p110 = scmp.eq.s32.totalorder %s10, 1
    %p111 = por %p109, %p110
    %p112 = scmp.ne.s32.totalorder %s104, %s107
    %p113 = scmp.eq.s32.totalorder %s10, 0
    %p114 = por %p112, %p113
    %p115 = scmp.ne.s32.totalorder %s104, %s107
    %p116 = scmp.eq.s32.totalorder %s15, 1
    %p117 = por %p115, %p116
    %p118 = scmp.ne.s32.totalorder %s107, %s108
    %p119 = scmp.eq.s32.totalorder %s15, 0
    %p120 = por %p118, %p119
    %p121 = scmp.ne.s32.totalorder %s107, %s108
    %p122 = scmp.eq.s32.totalorder %s16, 1
    %p123 = por %p121, %p122
    %p125 = scmp.ne.s32.totalorder %s108, %s124
    %p126 = scmp.eq.s32.totalorder %s16, 0
    %p127 = por %p125, %p126
    %s128 = ssub.s32 %s19, %s35
    %p129 = scmp.eq.s32.totalorder %s128, 0
    %s131 = sadd.s32 %s130, 1
    %s132 = scalar_select %p129, %s130, %s131
    %p135 = pneg %p129
    %p136 = scmp.eq.s32.totalorder %s10, 1
    %p137 = por %p135, %p136
    %p138 = scmp.ne.s32.totalorder %s130, %s133
    %p139 = scmp.eq.s32.totalorder %s10, 0
    %p140 = por %p138, %p139
    %p141 = scmp.ne.s32.totalorder %s130, %s133
    %p142 = scmp.eq.s32.totalorder %s15, 1
    %p143 = por %p141, %p142
    %p144 = scmp.ne.s32.totalorder %s133, %s134
    %p145 = scmp.eq.s32.totalorder %s15, 0
    %p146 = por %p144, %p145
    %p147 = scmp.ne.s32.totalorder %s133, %s134
    %p148 = scmp.eq.s32.totalorder %s16, 1
    %p149 = por %p147, %p148
    %p151 = scmp.ne.s32.totalorder %s134, %s150
    %p152 = scmp.eq.s32.totalorder %s16, 0
    %p153 = por %p151, %p152
    %s154 = ssub.s32 %s17, %s43
    %s155 = ssub.s32 %s18, %s39
    %s156 = sor.u32 %s154, %s155
    %s157 = ssub.s32 %s19, %s35
    %s158 = sor.u32 %s156, %s157
    %p159 = scmp.eq.s32.totalorder %s158, 0
    %s161 = sadd.s32 %s160, 1
    %s162 = scalar_select %p159, %s160, %s161
    %p165 = pneg %p159
    %p166 = scmp.eq.s32.totalorder %s10, 1
    %p167 = por %p165, %p166
    %p168 = scmp.ne.s32.totalorder %s160, %s163
    %p169 = scmp.eq.s32.totalorder %s10, 0
    %p170 = por %p168, %p169
    %p171 = scmp.ne.s32.totalorder %s160, %s163
    %p172 = scmp.eq.s32.totalorder %s15, 1
    %p173 = por %p171, %p172
    %p174 = scmp.ne.s32.totalorder %s163, %s164
    %p175 = scmp.eq.s32.totalorder %s15, 0
    %p176 = por %p174, %p175
    %p177 = scmp.ne.s32.totalorder %s163, %s164
    %p178 = scmp.eq.s32.totalorder %s16, 1
    %p179 = por %p177, %p178
    %p181 = scmp.ne.s32.totalorder %s164, %s180
    %p182 = scmp.eq.s32.totalorder %s16, 0
    %p183 = por %p181, %p182
    %p184 = scmp.le.s32.totalorder 1, %s10
    %p185 = scmp.lt.s32.totalorder %s10, 3
    %p186 = pnand %p184, %p185
    %p187 = pneg %p186
    // Predicated region
    $region9: #{anynetx_forward.13} parent=5 // pred_check
      _
    $region10: #{anynetx_forward.13} parent=5 // pred_check_branch
      %189 = sbr.rel (%p186) target = $region12
    $region11: #{anynetx_forward.13} parent=5 // pred_region
      %s190 = ssub.s32 %s10, 1
      // Predicated region
      $region13: #{anynetx_forward.13} parent=11 // pred_check
        %p191 = pneg %p94
      $region14: #{anynetx_forward.13} parent=11 // pred_check_branch
        %193 = sbr.rel (%p191) target = $region16
      $region15: #{anynetx_forward.13} parent=11 // pred_region
        %s194 = smul.u32 16, %s24
        %p195 = scmp.lt.s32.totalorder %s194, 15
        %s196 = scalar_select %p195, %s194, 15
        %p197 = scmp.lt.s32.totalorder %s23, 0
        %s198 = scalar_select %p197, %s23, 0
        %s199 = sadd.s32 %s198, %s196
        %s200 = smul.addr %s199, 4
        %s201 = scalar_lea.vmem %s1, %s200
        %s202 = smul.u32 16, %s24
      $region16: #{anynetx_forward.13} parent=11 // pred_fallthru
        _
      // Predicated region
      $region17: #{anynetx_forward.13} parent=11 // pred_check
        %p203 = pneg %p120
      $region18: #{anynetx_forward.13} parent=11 // pred_check_branch
        %205 = sbr.rel (%p203) target = $region20
      $region19: #{anynetx_forward.13} parent=11 // pred_region
        %p206 = scmp.lt.s32.totalorder %s23, 0
        %s207 = scalar_select %p206, %s23, 0
        %s208 = scalar_lea.vmem %s2, %s207
      $region20: #{anynetx_forward.13} parent=11 // pred_fallthru
        _
      // Predicated region
      $region21: #{anynetx_forward.13} parent=11 // pred_check
        %p209 = pneg %p146
      $region22: #{anynetx_forward.13} parent=11 // pred_check_branch
        %211 = sbr.rel (%p209) target = $region24
      $region23: #{anynetx_forward.13} parent=11 // pred_region
        %p212 = scmp.lt.s32.totalorder %s23, 0
        %s213 = scalar_select %p212, %s23, 0
        %s214 = scalar_lea.vmem %s3, %s213
      $region24: #{anynetx_forward.13} parent=11 // pred_fallthru
        _
    $region12: #{anynetx_forward.13} parent=5 // pred_fallthru
      _
    %p215 = scmp.lt.s32.totalorder %s10, 2
    // Predicated region
    $region25: #{anynetx_forward.13} parent=5 // pred_check
      %p216 = pneg %p215
    $region26: #{anynetx_forward.13} parent=5 // pred_check_branch
      %218 = sbr.rel (%p216) target = $region28
    $region27: #{anynetx_forward.13} parent=5 // pred_region
      // Predicated region
      $region29: #{anynetx_forward.13} parent=27 // pred_check
        %p219 = pneg %p60
      $region30: #{anynetx_forward.13} parent=27 // pred_check_branch
        %221 = sbr.rel (%p219) target = $region32
      $region31: #{anynetx_forward.13} parent=27 // pred_region
        %s222 = smul.u32 32, %s18
        %p223 = scmp.lt.s32.totalorder %s17, 0
        %s224 = scalar_select %p223, %s17, 0
        %p225 = scmp.lt.s32.totalorder %s222, 63
        %s226 = scalar_select %p225, %s222, 63
        %p227 = scmp.lt.s32.totalorder %s20, 0
        %s228 = scalar_select %p227, %s20, 0
        %s229 = sadd.s32 %s228, %s226
        %s230 = smul.addr %s224, 64
        %s231 = sadd.s32 %s229, %s230
        %s232 = smul.addr %s231, 4
        %s233 = scalar_lea.vmem %s0, %s232
        %s234 = smul.u32 32, %s18
      $region32: #{anynetx_forward.13} parent=27 // pred_fallthru
        _
    $region28: #{anynetx_forward.13} parent=5 // pred_fallthru
      _
    %p235 = scmp.le.s32.totalorder 1, %s10
    %p236 = scmp.lt.s32.totalorder %s10, 3
    %p237 = pnand %p235, %p236
    %p238 = pneg %p237
    // Predicated region
    $region33: #{anynetx_forward.13} parent=5 // pred_check
      _
    $region34: #{anynetx_forward.13} parent=5 // pred_check_branch
      %240 = sbr.rel (%p237) target = $region36
    $region35: #{anynetx_forward.13} parent=5 // pred_region
      %s241 = ssub.s32 %s10, 1
      %s242 = smul.u32 32, %s22
      %p243 = scmp.lt.s32.totalorder %s21, 0
      %s244 = scalar_select %p243, %s21, 0
      %p245 = scmp.lt.s32.totalorder %s242, 63
      %s246 = scalar_select %p245, %s242, 63
      %p247 = scmp.lt.s32.totalorder %s24, 0
      %s248 = scalar_select %p247, %s24, 0
      %s249 = sadd.s32 %s248, %s246
      %s250 = smul.addr %s244, 64
      %s251 = sadd.s32 %s249, %s250
      %s252 = smul.addr %s251, 4
      %s253 = scalar_lea.vmem %s0, %s252
      %p254 = pneg %p66
      %p255 = pneg %p63
      %s256 = smul.u32 16, %s24
      %p257 = scmp.lt.s32.totalorder %s256, 15
      %s258 = scalar_select %p257, %s256, 15
      %p259 = scmp.lt.s32.totalorder %s23, 0
      %s260 = scalar_select %p259, %s23, 0
      %s261 = sadd.s32 %s260, %s258
      %s262 = smul.addr %s261, 4
      %s263 = scalar_lea.vmem %s1, %s262
      %p264 = pneg %p94
      %p265 = pneg %p91
      %p266 = scmp.lt.s32.totalorder %s23, 0
      %s267 = scalar_select %p266, %s23, 0
      %s268 = scalar_lea.vmem %s2, %s267
      %p269 = pneg %p120
      %p270 = pneg %p117
      %p271 = scmp.lt.s32.totalorder %s23, 0
      %s272 = scalar_select %p271, %s23, 0
      %s273 = scalar_lea.vmem %s3, %s272
      %p274 = pneg %p146
      %p275 = pneg %p143
      %p276 = pneg %p176
      %p277 = pneg %p173
      %s278 = smul.u32 32, %s22
      %p279 = scmp.lt.s32.totalorder %s21, 0
      %s280 = scalar_select %p279, %s21, 0
      %p281 = scmp.lt.s32.totalorder %s278, 63
      %s282 = scalar_select %p281, %s278, 63
      %p283 = scmp.lt.s32.totalorder %s23, 0
      %s284 = scalar_select %p283, %s23, 0
      %s285 = sadd.s32 %s284, %s282
      %s286 = smul.addr %s280, 64
      %s287 = sadd.s32 %s285, %s286
      %s288 = smul.addr %s287, 8
      %s289 = scalar_lea.vmem %s4, %s288
      %s290 = smul.u32 32, %s22
      %p291 = scmp.lt.s32.totalorder %s21, 0
      %s292 = scalar_select %p291, %s21, 0
      %p293 = scmp.lt.s32.totalorder %s290, 63
      %s294 = scalar_select %p293, %s290, 63
      %p295 = scmp.lt.s32.totalorder %s24, 0
      %s296 = scalar_select %p295, %s24, 0
      %s297 = sadd.s32 %s296, %s294
      %s298 = smul.addr %s292, 64
      %s299 = sadd.s32 %s297, %s298
      %s300 = smul.addr %s299, 4
      %s301 = scalar_lea.vmem %s0, %s300
      %s302 = smul.u32 32, %s22
      %s303 = smul.u32 16, %s24
      %p304 = scmp.lt.s32.totalorder %s303, 15
      %s305 = scalar_select %p304, %s303, 15
      %p306 = scmp.lt.s32.totalorder %s23, 0
      %s307 = scalar_select %p306, %s23, 0
      %s308 = sadd.s32 %s307, %s305
      %s309 = smul.addr %s308, 4
      %s310 = scalar_lea.vmem %s1, %s309
      %s311 = smul.u32 16, %s24
      %p312 = scmp.lt.s32.totalorder %s23, 0
      %s313 = scalar_select %p312, %s23, 0
      %s314 = scalar_lea.vmem %s2, %s313
      %p315 = scmp.lt.s32.totalorder %s23, 0
      %s316 = scalar_select %p315, %s23, 0
      %s317 = scalar_lea.vmem %s3, %s316
      %s318 = smul.u32 32, %s22
      %p319 = scmp.lt.s32.totalorder %s21, 0
      %s320 = scalar_select %p319, %s21, 0
      %p321 = scmp.lt.s32.totalorder %s318, 63
      %s322 = scalar_select %p321, %s318, 63
      %p323 = scmp.lt.s32.totalorder %s23, 0
      %s324 = scalar_select %p323, %s23, 0
      %s325 = sadd.s32 %s324, %s322
      %s326 = smul.addr %s320, 64
      %s327 = sadd.s32 %s325, %s326
      %s328 = smul.addr %s327, 8
      %s329 = scalar_lea.vmem %s4, %s328
      %s330 = smul.u32 32, %s22
      %p332 = scmp.eq.s32.totalorder %s24, 0
      // Predicated region
      $region37: #{anynetx_forward.13} parent=35 // pred_check
        %p333 = pneg %p332
      $region38: #{anynetx_forward.13} parent=35 // pred_check_branch
        %335 = sbr.rel (%p333) target = $region40
      $region39: #{anynetx_forward.13} parent=35 // pred_region
        %336 = vst [vmem:[#allocation2] sm:$0xff] 0.0
        %337 = vst [vmem:[#allocation2 + $0x8] sm:$0xff] 0.0
        %338 = vst [vmem:[#allocation2 + $0x10] sm:$0xff] 0.0
        %339 = vst [vmem:[#allocation2 + $0x18] sm:$0xff] 0.0
        %340 = vst [vmem:[#allocation2 + $0x20] sm:$0xff] 0.0
        %341 = vst [vmem:[#allocation2 + $0x28] sm:$0xff] 0.0
        %342 = vst [vmem:[#allocation2 + $0x30] sm:$0xff] 0.0
        %343 = vst [vmem:[#allocation2 + $0x38] sm:$0xff] 0.0
        %344 = vst [vmem:[#allocation2 + $0x40] sm:$0xff] 0.0
        %345 = vst [vmem:[#allocation2 + $0x48] sm:$0xff] 0.0
        %346 = vst [vmem:[#allocation2 + $0x50] sm:$0xff] 0.0
        %347 = vst [vmem:[#allocation2 + $0x58] sm:$0xff] 0.0
        %348 = vst [vmem:[#allocation2 + $0x60] sm:$0xff] 0.0
        %349 = vst [vmem:[#allocation2 + $0x68] sm:$0xff] 0.0
        %350 = vst [vmem:[#allocation2 + $0x70] sm:$0xff] 0.0
        %351 = vst [vmem:[#allocation2 + $0x78] sm:$0xff] 0.0
        %352 = vst [vmem:[#allocation2 + $0x80] sm:$0xff] 0.0
        %353 = vst [vmem:[#allocation2 + $0x88] sm:$0xff] 0.0
        %354 = vst [vmem:[#allocation2 + $0x90] sm:$0xff] 0.0
        %355 = vst [vmem:[#allocation2 + $0x98] sm:$0xff] 0.0
        %356 = vst [vmem:[#allocation2 + $0xa0] sm:$0xff] 0.0
        %357 = vst [vmem:[#allocation2 + $0xa8] sm:$0xff] 0.0
        %358 = vst [vmem:[#allocation2 + $0xb0] sm:$0xff] 0.0
        %359 = vst [vmem:[#allocation2 + $0xb8] sm:$0xff] 0.0
        %360 = vst [vmem:[#allocation2 + $0xc0] sm:$0xff] 0.0
        %361 = vst [vmem:[#allocation2 + $0xc8] sm:$0xff] 0.0
        %362 = vst [vmem:[#allocation2 + $0xd0] sm:$0xff] 0.0
        %363 = vst [vmem:[#allocation2 + $0xd8] sm:$0xff] 0.0
        %364 = vst [vmem:[#allocation2 + $0xe0] sm:$0xff] 0.0
        %365 = vst [vmem:[#allocation2 + $0xe8] sm:$0xff] 0.0
        %366 = vst [vmem:[#allocation2 + $0xf0] sm:$0xff] 0.0
        %367 = vst [vmem:[#allocation2 + $0xf8] sm:$0xff] 0.0
      $region40: #{anynetx_forward.13} parent=35 // pred_fallthru
        _
      %v368 = vld [vmem:[%s301] sm:$0xf]
      %v369 = vld [vmem:[%s301 + $0x4] sm:$0xf]
      %v370 = vld [vmem:[%s301 + $0x8] sm:$0xf]
      %v371 = vld [vmem:[%s301 + $0xc] sm:$0xf]
      %v372 = vld [vmem:[%s301 + $0x10] sm:$0xf]
      %v373 = vld [vmem:[%s301 + $0x14] sm:$0xf]
      %v374 = vld [vmem:[%s301 + $0x18] sm:$0xf]
      %v375 = vld [vmem:[%s301 + $0x1c] sm:$0xf]
      %v376 = vld [vmem:[%s301 + $0x20] sm:$0xf]
      %v377 = vld [vmem:[%s301 + $0x24] sm:$0xf]
      %v378 = vld [vmem:[%s301 + $0x28] sm:$0xf]
      %v379 = vld [vmem:[%s301 + $0x2c] sm:$0xf]
      %v380 = vld [vmem:[%s301 + $0x30] sm:$0xf]
      %v381 = vld [vmem:[%s301 + $0x34] sm:$0xf]
      %v382 = vld [vmem:[%s301 + $0x38] sm:$0xf]
      %v383 = vld [vmem:[%s301 + $0x3c] sm:$0xf]
      %v384 = vld [vmem:[%s301 + $0x40] sm:$0xf]
      %v385 = vld [vmem:[%s301 + $0x44] sm:$0xf]
      %v386 = vld [vmem:[%s301 + $0x48] sm:$0xf]
      %v387 = vld [vmem:[%s301 + $0x4c] sm:$0xf]
      %v388 = vld [vmem:[%s301 + $0x50] sm:$0xf]
      %v389 = vld [vmem:[%s301 + $0x54] sm:$0xf]
      %v390 = vld [vmem:[%s301 + $0x58] sm:$0xf]
      %v391 = vld [vmem:[%s301 + $0x5c] sm:$0xf]
      %v392 = vld [vmem:[%s301 + $0x60] sm:$0xf]
      %v393 = vld [vmem:[%s301 + $0x64] sm:$0xf]
      %v394 = vld [vmem:[%s301 + $0x68] sm:$0xf]
      %v395 = vld [vmem:[%s301 + $0x6c] sm:$0xf]
      %v396 = vld [vmem:[%s301 + $0x70] sm:$0xf]
      %v397 = vld [vmem:[%s301 + $0x74] sm:$0xf]
      %v398 = vld [vmem:[%s301 + $0x78] sm:$0xf]
      %v399 = vld [vmem:[%s301 + $0x7c] sm:$0xf]
      %v400 = vld [vmem:[#allocation2] sm:$0xff]
      %v401 = vld [vmem:[#allocation2 + $0x8] sm:$0xff]
      %v402 = vld [vmem:[#allocation2 + $0x10] sm:$0xff]
      %v403 = vld [vmem:[#allocation2 + $0x18] sm:$0xff]
      %v404 = vld [vmem:[#allocation2 + $0x20] sm:$0xff]
      %v405 = vld [vmem:[#allocation2 + $0x28] sm:$0xff]
      %v406 = vld [vmem:[#allocation2 + $0x30] sm:$0xff]
      %v407 = vld [vmem:[#allocation2 + $0x38] sm:$0xff]
      %v408 = vld [vmem:[#allocation2 + $0x40] sm:$0xff]
      %v409 = vld [vmem:[#allocation2 + $0x48] sm:$0xff]
      %v410 = vld [vmem:[#allocation2 + $0x50] sm:$0xff]
      %v411 = vld [vmem:[#allocation2 + $0x58] sm:$0xff]
      %v412 = vld [vmem:[#allocation2 + $0x60] sm:$0xff]
      %v413 = vld [vmem:[#allocation2 + $0x68] sm:$0xff]
      %v414 = vld [vmem:[#allocation2 + $0x70] sm:$0xff]
      %v415 = vld [vmem:[#allocation2 + $0x78] sm:$0xff]
      %v416 = vld [vmem:[#allocation2 + $0x80] sm:$0xff]
      %v417 = vld [vmem:[#allocation2 + $0x88] sm:$0xff]
      %v418 = vld [vmem:[#allocation2 + $0x90] sm:$0xff]
      %v419 = vld [vmem:[#allocation2 + $0x98] sm:$0xff]
      %v420 = vld [vmem:[#allocation2 + $0xa0] sm:$0xff]
      %v421 = vld [vmem:[#allocation2 + $0xa8] sm:$0xff]
      %v422 = vld [vmem:[#allocation2 + $0xb0] sm:$0xff]
      %v423 = vld [vmem:[#allocation2 + $0xb8] sm:$0xff]
      %v424 = vld [vmem:[#allocation2 + $0xc0] sm:$0xff]
      %v425 = vld [vmem:[#allocation2 + $0xc8] sm:$0xff]
      %v426 = vld [vmem:[#allocation2 + $0xd0] sm:$0xff]
      %v427 = vld [vmem:[#allocation2 + $0xd8] sm:$0xff]
      %v428 = vld [vmem:[#allocation2 + $0xe0] sm:$0xff]
      %v429 = vld [vmem:[#allocation2 + $0xe8] sm:$0xff]
      %v430 = vld [vmem:[#allocation2 + $0xf0] sm:$0xff]
      %v431 = vld [vmem:[#allocation2 + $0xf8] sm:$0xff]
      %v432 = vld [vmem:[%s310] sm:$0xf]
      %v433 = vld [vmem:[%s310 + $0x4] sm:$0xf]
      %v434 = vld [vmem:[%s310 + $0x8] sm:$0xf]
      %v435 = vld [vmem:[%s310 + $0xc] sm:$0xf]
      %v436 = vld [vmem:[%s310 + $0x10] sm:$0xf]
      %v437 = vld [vmem:[%s310 + $0x14] sm:$0xf]
      %v438 = vld [vmem:[%s310 + $0x18] sm:$0xf]
      %v439 = vld [vmem:[%s310 + $0x1c] sm:$0xf]
      %v440 = vld [vmem:[%s310 + $0x20] sm:$0xf]
      %v441 = vld [vmem:[%s310 + $0x24] sm:$0xf]
      %v442 = vld [vmem:[%s310 + $0x28] sm:$0xf]
      %v443 = vld [vmem:[%s310 + $0x2c] sm:$0xf]
      %v444 = vld [vmem:[%s310 + $0x30] sm:$0xf]
      %v445 = vld [vmem:[%s310 + $0x34] sm:$0xf]
      %v446 = vld [vmem:[%s310 + $0x38] sm:$0xf]
      %v447 = vld [vmem:[%s310 + $0x3c] sm:$0xf]
      %v480 = vunpack.c.l.b16 %v368
      %v481 = vunpack.c.l.b16 %v369
      %v482 = vunpack.c.l.b16 %v370
      %v483 = vunpack.c.l.b16 %v371
      %v484 = vunpack.c.l.b16 %v372
      %v485 = vunpack.c.l.b16 %v373
      %v486 = vunpack.c.l.b16 %v374
      %v487 = vunpack.c.l.b16 %v375
      %v488 = vunpack.c.l.b16 %v376
      %v489 = vunpack.c.l.b16 %v377
      %v490 = vunpack.c.l.b16 %v378
      %v491 = vunpack.c.l.b16 %v379
      %v492 = vunpack.c.l.b16 %v380
      %v493 = vunpack.c.l.b16 %v381
      %v494 = vunpack.c.l.b16 %v382
      %v495 = vunpack.c.l.b16 %v383
      %v496 = vunpack.c.l.b16 %v384
      %v497 = vunpack.c.l.b16 %v385
      %v498 = vunpack.c.l.b16 %v386
      %v499 = vunpack.c.l.b16 %v387
      %v500 = vunpack.c.l.b16 %v388
      %v501 = vunpack.c.l.b16 %v389
      %v502 = vunpack.c.l.b16 %v390
      %v503 = vunpack.c.l.b16 %v391
      %v504 = vunpack.c.l.b16 %v392
      %v505 = vunpack.c.l.b16 %v393
      %v506 = vunpack.c.l.b16 %v394
      %v507 = vunpack.c.l.b16 %v395
      %v508 = vunpack.c.l.b16 %v396
      %v509 = vunpack.c.l.b16 %v397
      %v510 = vunpack.c.l.b16 %v398
      %v511 = vunpack.c.l.b16 %v399
      %v512 = vpack.c.b16 %v481, %v480
      %v513 = vpack.c.b16 %v483, %v482
      %v514 = vpack.c.b16 %v485, %v484
      %v515 = vpack.c.b16 %v487, %v486
      %v516 = vpack.c.b16 %v489, %v488
      %v517 = vpack.c.b16 %v491, %v490
      %v518 = vpack.c.b16 %v493, %v492
      %v519 = vpack.c.b16 %v495, %v494
      %v520 = vpack.c.b16 %v497, %v496
      %v521 = vpack.c.b16 %v499, %v498
      %v522 = vpack.c.b16 %v501, %v500
      %v523 = vpack.c.b16 %v503, %v502
      %v524 = vpack.c.b16 %v505, %v504
      %v525 = vpack.c.b16 %v507, %v506
      %v526 = vpack.c.b16 %v509, %v508
      %v527 = vpack.c.b16 %v511, %v510
      %v560 = vunpack.c.l.b16 %v432
      %v561 = vunpack.c.l.b16 %v433
      %v562 = vunpack.c.l.b16 %v434
      %v563 = vunpack.c.l.b16 %v435
      %v564 = vunpack.c.l.b16 %v436
      %v565 = vunpack.c.l.b16 %v437
      %v566 = vunpack.c.l.b16 %v438
      %v567 = vunpack.c.l.b16 %v439
      %v568 = vunpack.c.l.b16 %v440
      %v569 = vunpack.c.l.b16 %v441
      %v570 = vunpack.c.l.b16 %v442
      %v571 = vunpack.c.l.b16 %v443
      %v572 = vunpack.c.l.b16 %v444
      %v573 = vunpack.c.l.b16 %v445
      %v574 = vunpack.c.l.b16 %v446
      %v575 = vunpack.c.l.b16 %v447
      %v576 = vpack.c.b16 %v561, %v560
      %v577 = vpack.c.b16 %v563, %v562
      %v578 = vpack.c.b16 %v565, %v564
      %v579 = vpack.c.b16 %v567, %v566
      %v580 = vpack.c.b16 %v569, %v568
      %v581 = vpack.c.b16 %v571, %v570
      %v582 = vpack.c.b16 %v573, %v572
      %v583 = vpack.c.b16 %v575, %v574
      %592 = vmatprep.subr.bf16.mxu0 0
      %593 = vmatpush1.bf16.msra.mxu0 %v576
      %594 = vmatprep.subr.bf16.mxu0 0
      %595 = vmatpush1.bf16.msra.mxu0 %v577
      %596 = vmatprep.subr.bf16.mxu0 0
      %597 = vmatpush1.bf16.msra.mxu0 %v578
      %598 = vmatprep.subr.bf16.mxu0 0
      %599 = vmatpush1.bf16.msra.mxu0 %v579
      %600 = vmatprep.subr.bf16.mxu0 0
      %601 = vmatpush1.bf16.msra.mxu0 %v580
      %602 = vmatprep.subr.bf16.mxu0 0
      %603 = vmatpush1.bf16.msra.mxu0 %v581
      %604 = vmatprep.subr.bf16.mxu0 0
      %605 = vmatpush1.bf16.msra.mxu0 %v582
      %606 = vmatprep.subr.bf16.mxu0 0
      %607 = vmatpush1.bf16.msra.mxu0 %v583
      %608 = vmatprep.subr.bf16.mxu0 0
      %609 = vmatpush1.bf16.msra.mxu0 0
      %610 = vmatprep.subr.bf16.mxu0 0
      %611 = vmatpush1.bf16.msra.mxu0 0
      %612 = vmatprep.subr.bf16.mxu0 0
      %613 = vmatpush1.bf16.msra.mxu0 0
      %614 = vmatprep.subr.bf16.mxu0 0
      %615 = vmatpush1.bf16.msra.mxu0 0
      %616 = vmatprep.subr.bf16.mxu0 0
      %617 = vmatpush1.bf16.msra.mxu0 0
      %618 = vmatprep.subr.bf16.mxu0 0
      %619 = vmatpush1.bf16.msra.mxu0 0
      %620 = vmatprep.subr.bf16.mxu0 0
      %621 = vmatpush1.bf16.msra.mxu0 0
      %622 = vmatprep.subr.bf16.mxu0 0
      %623 = vmatpush1.bf16.msra.mxu0 0
      %624 = vmatprep.mubr.bf16.mxu0 0
      %625 = vmatmul.mubr.bf16.gmra.mrb[0].mxu0 %v512
      %v626 = vpop.f32.mrb[0].mxu0
      %v627 = vadd.f32 0.0, %v626
      %v628 = vpop.f32.mrb[0].mxu0
      %v629 = vpop.f32.mrb[0].mxu0
      %v630 = vadd.f32 0.0, %v629
      %v631 = vpop.f32.mrb[0].mxu0
      %632 = vmatprep.mubr.bf16.mxu0 0
      %633 = vmatmul.mubr.bf16.gmra.mrb[0].mxu0 %v513
      %v634 = vpop.f32.mrb[0].mxu0
      %v635 = vadd.f32 0.0, %v634
      %v636 = vpop.f32.mrb[0].mxu0
      %v637 = vpop.f32.mrb[0].mxu0
      %v638 = vadd.f32 0.0, %v637
      %v639 = vpop.f32.mrb[0].mxu0
      %640 = vmatprep.mubr.bf16.mxu0 0
      %641 = vmatmul.mubr.bf16.gmra.mrb[0].mxu0 %v514
      %v642 = vpop.f32.mrb[0].mxu0
      %v643 = vadd.f32 0.0, %v642
      %v644 = vpop.f32.mrb[0].mxu0
      %v645 = vpop.f32.mrb[0].mxu0
      %v646 = vadd.f32 0.0, %v645
      %v647 = vpop.f32.mrb[0].mxu0
      %648 = vmatprep.mubr.bf16.mxu0 0
      %649 = vmatmul.mubr.bf16.gmra.mrb[0].mxu0 %v515
      %v650 = vpop.f32.mrb[0].mxu0
      %v651 = vadd.f32 0.0, %v650
      %v652 = vpop.f32.mrb[0].mxu0
      %v653 = vpop.f32.mrb[0].mxu0
      %v654 = vadd.f32 0.0, %v653
      %v655 = vpop.f32.mrb[0].mxu0
      %656 = vmatprep.mubr.bf16.mxu0 0
      %657 = vmatmul.mubr.bf16.gmra.mrb[0].mxu0 %v516
      %v658 = vpop.f32.mrb[0].mxu0
      %v659 = vadd.f32 0.0, %v658
      %v660 = vpop.f32.mrb[0].mxu0
      %v661 = vpop.f32.mrb[0].mxu0
      %v662 = vadd.f32 0.0, %v661
      %v663 = vpop.f32.mrb[0].mxu0
      %664 = vmatprep.mubr.bf16.mxu0 0
      %665 = vmatmul.mubr.bf16.gmra.mrb[0].mxu0 %v517
      %v666 = vpop.f32.mrb[0].mxu0
      %v667 = vadd.f32 0.0, %v666
      %v668 = vpop.f32.mrb[0].mxu0
      %v669 = vpop.f32.mrb[0].mxu0
      %v670 = vadd.f32 0.0, %v669
      %v671 = vpop.f32.mrb[0].mxu0
      %672 = vmatprep.mubr.bf16.mxu0 0
      %673 = vmatmul.mubr.bf16.gmra.mrb[0].mxu0 %v518
      %v674 = vpop.f32.mrb[0].mxu0
      %v675 = vadd.f32 0.0, %v674
      %v676 = vpop.f32.mrb[0].mxu0
      %v677 = vpop.f32.mrb[0].mxu0
      %v678 = vadd.f32 0.0, %v677
      %v679 = vpop.f32.mrb[0].mxu0
      %680 = vmatprep.mubr.bf16.mxu0 0
      %681 = vmatmul.mubr.bf16.gmra.mrb[0].mxu0 %v519
      %v682 = vpop.f32.mrb[0].mxu0
      %v683 = vadd.f32 0.0, %v682
      %v684 = vpop.f32.mrb[0].mxu0
      %v685 = vpop.f32.mrb[0].mxu0
      %v686 = vadd.f32 0.0, %v685
      %v687 = vpop.f32.mrb[0].mxu0
      %688 = vmatprep.mubr.bf16.mxu0 0
      %689 = vmatmul.mubr.bf16.gmra.mrb[0].mxu0 %v520
      %v690 = vpop.f32.mrb[0].mxu0
      %v691 = vadd.f32 0.0, %v690
      %v692 = vpop.f32.mrb[0].mxu0
      %v693 = vpop.f32.mrb[0].mxu0
      %v694 = vadd.f32 0.0, %v693
      %v695 = vpop.f32.mrb[0].mxu0
      %696 = vmatprep.mubr.bf16.mxu0 0
      %697 = vmatmul.mubr.bf16.gmra.mrb[0].mxu0 %v521
      %v698 = vpop.f32.mrb[0].mxu0
      %v699 = vadd.f32 0.0, %v698
      %v700 = vpop.f32.mrb[0].mxu0
      %v701 = vpop.f32.mrb[0].mxu0
      %v702 = vadd.f32 0.0, %v701
      %v703 = vpop.f32.mrb[0].mxu0
      %704 = vmatprep.mubr.bf16.mxu0 0
      %705 = vmatmul.mubr.bf16.gmra.mrb[0].mxu0 %v522
      %v706 = vpop.f32.mrb[0].mxu0
      %v707 = vadd.f32 0.0, %v706
      %v708 = vpop.f32.mrb[0].mxu0
      %v709 = vpop.f32.mrb[0].mxu0
      %v710 = vadd.f32 0.0, %v709
      %v711 = vpop.f32.mrb[0].mxu0
      %712 = vmatprep.mubr.bf16.mxu0 0
      %713 = vmatmul.mubr.bf16.gmra.mrb[0].mxu0 %v523
      %v714 = vpop.f32.mrb[0].mxu0
      %v715 = vadd.f32 0.0, %v714
      %v716 = vpop.f32.mrb[0].mxu0
      %v717 = vpop.f32.mrb[0].mxu0
      %v718 = vadd.f32 0.0, %v717
      %v719 = vpop.f32.mrb[0].mxu0
      %720 = vmatprep.mubr.bf16.mxu0 0
      %721 = vmatmul.mubr.bf16.gmra.mrb[0].mxu0 %v524
      %v722 = vpop.f32.mrb[0].mxu0
      %v723 = vadd.f32 0.0, %v722
      %v724 = vpop.f32.mrb[0].mxu0
      %v725 = vpop.f32.mrb[0].mxu0
      %v726 = vadd.f32 0.0, %v725
      %v727 = vpop.f32.mrb[0].mxu0
      %728 = vmatprep.mubr.bf16.mxu0 0
      %729 = vmatmul.mubr.bf16.gmra.mrb[0].mxu0 %v525
      %v730 = vpop.f32.mrb[0].mxu0
      %v731 = vadd.f32 0.0, %v730
      %v732 = vpop.f32.mrb[0].mxu0
      %v733 = vpop.f32.mrb[0].mxu0
      %v734 = vadd.f32 0.0, %v733
      %v735 = vpop.f32.mrb[0].mxu0
      %736 = vmatprep.mubr.bf16.mxu0 0
      %737 = vmatmul.mubr.bf16.gmra.mrb[0].mxu0 %v526
      %v738 = vpop.f32.mrb[0].mxu0
      %v739 = vadd.f32 0.0, %v738
      %v740 = vpop.f32.mrb[0].mxu0
      %v741 = vpop.f32.mrb[0].mxu0
      %v742 = vadd.f32 0.0, %v741
      %v743 = vpop.f32.mrb[0].mxu0
      %744 = vmatprep.mubr.bf16.mxu0 0
      %745 = vmatmul.mubr.bf16.gmra.mrb[0].mxu0 %v527
      %v746 = vpop.f32.mrb[0].mxu0
      %v747 = vadd.f32 0.0, %v746
      %v748 = vpop.f32.mrb[0].mxu0
      %v749 = vpop.f32.mrb[0].mxu0
      %v750 = vadd.f32 0.0, %v749
      %v751 = vpop.f32.mrb[0].mxu0
      %752 = vdwg.mxu0
      %v753 = vadd.f32 %v400, %v627
      %v754 = vadd.f32 %v401, %v630
      %v755 = vadd.f32 %v402, %v635
      %v756 = vadd.f32 %v403, %v638
      %v757 = vadd.f32 %v404, %v643
      %v758 = vadd.f32 %v405, %v646
      %v759 = vadd.f32 %v406, %v651
      %v760 = vadd.f32 %v407, %v654
      %v761 = vadd.f32 %v408, %v659
      %v762 = vadd.f32 %v409, %v662
      %v763 = vadd.f32 %v410, %v667
      %v764 = vadd.f32 %v411, %v670
      %v765 = vadd.f32 %v412, %v675
      %v766 = vadd.f32 %v413, %v678
      %v767 = vadd.f32 %v414, %v683
      %v768 = vadd.f32 %v415, %v686
      %v769 = vadd.f32 %v416, %v691
      %v770 = vadd.f32 %v417, %v694
      %v771 = vadd.f32 %v418, %v699
      %v772 = vadd.f32 %v419, %v702
      %v773 = vadd.f32 %v420, %v707
      %v774 = vadd.f32 %v421, %v710
      %v775 = vadd.f32 %v422, %v715
      %v776 = vadd.f32 %v423, %v718
      %v777 = vadd.f32 %v424, %v723
      %v778 = vadd.f32 %v425, %v726
      %v779 = vadd.f32 %v426, %v731
      %v780 = vadd.f32 %v427, %v734
      %v781 = vadd.f32 %v428, %v739
      %v782 = vadd.f32 %v429, %v742
      %v783 = vadd.f32 %v430, %v747
      %v784 = vadd.f32 %v431, %v750
      %785 = vst [vmem:[#allocation2] sm:$0xff] %v753
      %786 = vst [vmem:[#allocation2 + $0x8] sm:$0xff] %v754
      %787 = vst [vmem:[#allocation2 + $0x10] sm:$0xff] %v755
      %788 = vst [vmem:[#allocation2 + $0x18] sm:$0xff] %v756
      %789 = vst [vmem:[#allocation2 + $0x20] sm:$0xff] %v757
      %790 = vst [vmem:[#allocation2 + $0x28] sm:$0xff] %v758
      %791 = vst [vmem:[#allocation2 + $0x30] sm:$0xff] %v759
      %792 = vst [vmem:[#allocation2 + $0x38] sm:$0xff] %v760
      %793 = vst [vmem:[#allocation2 + $0x40] sm:$0xff] %v761
      %794 = vst [vmem:[#allocation2 + $0x48] sm:$0xff] %v762
      %795 = vst [vmem:[#allocation2 + $0x50] sm:$0xff] %v763
      %796 = vst [vmem:[#allocation2 + $0x58] sm:$0xff] %v764
      %797 = vst [vmem:[#allocation2 + $0x60] sm:$0xff] %v765
      %798 = vst [vmem:[#allocation2 + $0x68] sm:$0xff] %v766
      %799 = vst [vmem:[#allocation2 + $0x70] sm:$0xff] %v767
      %800 = vst [vmem:[#allocation2 + $0x78] sm:$0xff] %v768
      %801 = vst [vmem:[#allocation2 + $0x80] sm:$0xff] %v769
      %802 = vst [vmem:[#allocation2 + $0x88] sm:$0xff] %v770
      %803 = vst [vmem:[#allocation2 + $0x90] sm:$0xff] %v771
      %804 = vst [vmem:[#allocation2 + $0x98] sm:$0xff] %v772
      %805 = vst [vmem:[#allocation2 + $0xa0] sm:$0xff] %v773
      %806 = vst [vmem:[#allocation2 + $0xa8] sm:$0xff] %v774
      %807 = vst [vmem:[#allocation2 + $0xb0] sm:$0xff] %v775
      %808 = vst [vmem:[#allocation2 + $0xb8] sm:$0xff] %v776
      %809 = vst [vmem:[#allocation2 + $0xc0] sm:$0xff] %v777
      %810 = vst [vmem:[#allocation2 + $0xc8] sm:$0xff] %v778
      %811 = vst [vmem:[#allocation2 + $0xd0] sm:$0xff] %v779
      %812 = vst [vmem:[#allocation2 + $0xd8] sm:$0xff] %v780
      %813 = vst [vmem:[#allocation2 + $0xe0] sm:$0xff] %v781
      %814 = vst [vmem:[#allocation2 + $0xe8] sm:$0xff] %v782
      %815 = vst [vmem:[#allocation2 + $0xf0] sm:$0xff] %v783
      %816 = vst [vmem:[#allocation2 + $0xf8] sm:$0xff] %v784
      // Predicated region
      $region41: #{anynetx_forward.13} parent=35 // pred_check
        %p817 = pneg %p332
      $region42: #{anynetx_forward.13} parent=35 // pred_check_branch
        %819 = sbr.rel (%p817) target = $region44
      $region43: #{anynetx_forward.13} parent=35 // pred_region
        %v820 = vld [vmem:[#allocation2] sm:$0xff]
        %v821 = vld [vmem:[#allocation2 + $0x8] sm:$0xff]
        %v822 = vld [vmem:[#allocation2 + $0x10] sm:$0xff]
        %v823 = vld [vmem:[#allocation2 + $0x18] sm:$0xff]
        %v824 = vld [vmem:[#allocation2 + $0x20] sm:$0xff]
        %v825 = vld [vmem:[#allocation2 + $0x28] sm:$0xff]
        %v826 = vld [vmem:[#allocation2 + $0x30] sm:$0xff]
        %v827 = vld [vmem:[#allocation2 + $0x38] sm:$0xff]
        %v828 = vld [vmem:[#allocation2 + $0x40] sm:$0xff]
        %v829 = vld [vmem:[#allocation2 + $0x48] sm:$0xff]
        %v830 = vld [vmem:[#allocation2 + $0x50] sm:$0xff]
        %v831 = vld [vmem:[#allocation2 + $0x58] sm:$0xff]
        %v832 = vld [vmem:[#allocation2 + $0x60] sm:$0xff]
        %v833 = vld [vmem:[#allocation2 + $0x68] sm:$0xff]
        %v834 = vld [vmem:[#allocation2 + $0x70] sm:$0xff]
        %v835 = vld [vmem:[#allocation2 + $0x78] sm:$0xff]
        %v836 = vld [vmem:[#allocation2 + $0x80] sm:$0xff]
        %v837 = vld [vmem:[#allocation2 + $0x88] sm:$0xff]
        %v838 = vld [vmem:[#allocation2 + $0x90] sm:$0xff]
        %v839 = vld [vmem:[#allocation2 + $0x98] sm:$0xff]
        %v840 = vld [vmem:[#allocation2 + $0xa0] sm:$0xff]
        %v841 = vld [vmem:[#allocation2 + $0xa8] sm:$0xff]
        %v842 = vld [vmem:[#allocation2 + $0xb0] sm:$0xff]
        %v843 = vld [vmem:[#allocation2 + $0xb8] sm:$0xff]
        %v844 = vld [vmem:[#allocation2 + $0xc0] sm:$0xff]
        %v845 = vld [vmem:[#allocation2 + $0xc8] sm:$0xff]
        %v846 = vld [vmem:[#allocation2 + $0xd0] sm:$0xff]
        %v847 = vld [vmem:[#allocation2 + $0xd8] sm:$0xff]
        %v848 = vld [vmem:[#allocation2 + $0xe0] sm:$0xff]
        %v849 = vld [vmem:[#allocation2 + $0xe8] sm:$0xff]
        %v850 = vld [vmem:[#allocation2 + $0xf0] sm:$0xff]
        %v851 = vld [vmem:[#allocation2 + $0xf8] sm:$0xff]
        %v852 = vld [vmem:[%s314] sm:$0x1]
        %v854 = vlaneseq
        %v855 = vshrl.u32 %v854, 7
        %v856 = vsub.s32 0, %v855
        %v857 = vrot.slane %v852, %v856
        %v859 = vmul.f32 %v820, %v857
        %v860 = vmul.f32 %v821, %v857
        %v861 = vmul.f32 %v822, %v857
        %v862 = vmul.f32 %v823, %v857
        %v863 = vmul.f32 %v824, %v857
        %v864 = vmul.f32 %v825, %v857
        %v865 = vmul.f32 %v826, %v857
        %v866 = vmul.f32 %v827, %v857
        %v867 = vmul.f32 %v828, %v857
        %v868 = vmul.f32 %v829, %v857
        %v869 = vmul.f32 %v830, %v857
        %v870 = vmul.f32 %v831, %v857
        %v871 = vmul.f32 %v832, %v857
        %v872 = vmul.f32 %v833, %v857
        %v873 = vmul.f32 %v834, %v857
        %v874 = vmul.f32 %v835, %v857
        %v875 = vmul.f32 %v836, %v857
        %v876 = vmul.f32 %v837, %v857
        %v877 = vmul.f32 %v838, %v857
        %v878 = vmul.f32 %v839, %v857
        %v879 = vmul.f32 %v840, %v857
        %v880 = vmul.f32 %v841, %v857
        %v881 = vmul.f32 %v842, %v857
        %v882 = vmul.f32 %v843, %v857
        %v883 = vmul.f32 %v844, %v857
        %v884 = vmul.f32 %v845, %v857
        %v885 = vmul.f32 %v846, %v857
        %v886 = vmul.f32 %v847, %v857
        %v887 = vmul.f32 %v848, %v857
        %v888 = vmul.f32 %v849, %v857
        %v889 = vmul.f32 %v850, %v857
        %v890 = vmul.f32 %v851, %v857
        %v891 = vld [vmem:[%s317] sm:$0x1]
        %v893 = vlaneseq
        %v894 = vshrl.u32 %v893, 7
        %v895 = vsub.s32 0, %v894
        %v896 = vrot.slane %v891, %v895
        %v898 = vadd.f32 %v859, %v896
        %v899 = vadd.f32 %v860, %v896
        %v900 = vadd.f32 %v861, %v896
        %v901 = vadd.f32 %v862, %v896
        %v902 = vadd.f32 %v863, %v896
        %v903 = vadd.f32 %v864, %v896
        %v904 = vadd.f32 %v865, %v896
        %v905 = vadd.f32 %v866, %v896
        %v906 = vadd.f32 %v867, %v896
        %v907 = vadd.f32 %v868, %v896
        %v908 = vadd.f32 %v869, %v896
        %v909 = vadd.f32 %v870, %v896
        %v910 = vadd.f32 %v871, %v896
        %v911 = vadd.f32 %v872, %v896
        %v912 = vadd.f32 %v873, %v896
        %v913 = vadd.f32 %v874, %v896
        %v914 = vadd.f32 %v875, %v896
        %v915 = vadd.f32 %v876, %v896
        %v916 = vadd.f32 %v877, %v896
        %v917 = vadd.f32 %v878, %v896
        %v918 = vadd.f32 %v879, %v896
        %v919 = vadd.f32 %v880, %v896
        %v920 = vadd.f32 %v881, %v896
        %v921 = vadd.f32 %v882, %v896
        %v922 = vadd.f32 %v883, %v896
        %v923 = vadd.f32 %v884, %v896
        %v924 = vadd.f32 %v885, %v896
        %v925 = vadd.f32 %v886, %v896
        %v926 = vadd.f32 %v887, %v896
        %v927 = vadd.f32 %v888, %v896
        %v928 = vadd.f32 %v889, %v896
        %v929 = vadd.f32 %v890, %v896
        %v930 = vmax.f32 %v898, 0.0
        %v931 = vmax.f32 %v899, 0.0
        %v932 = vmax.f32 %v900, 0.0
        %v933 = vmax.f32 %v901, 0.0
        %v934 = vmax.f32 %v902, 0.0
        %v935 = vmax.f32 %v903, 0.0
        %v936 = vmax.f32 %v904, 0.0
        %v937 = vmax.f32 %v905, 0.0
        %v938 = vmax.f32 %v906, 0.0
        %v939 = vmax.f32 %v907, 0.0
        %v940 = vmax.f32 %v908, 0.0
        %v941 = vmax.f32 %v909, 0.0
        %v942 = vmax.f32 %v910, 0.0
        %v943 = vmax.f32 %v911, 0.0
        %v944 = vmax.f32 %v912, 0.0
        %v945 = vmax.f32 %v913, 0.0
        %v946 = vmax.f32 %v914, 0.0
        %v947 = vmax.f32 %v915, 0.0
        %v948 = vmax.f32 %v916, 0.0
        %v949 = vmax.f32 %v917, 0.0
        %v950 = vmax.f32 %v918, 0.0
        %v951 = vmax.f32 %v919, 0.0
        %v952 = vmax.f32 %v920, 0.0
        %v953 = vmax.f32 %v921, 0.0
        %v954 = vmax.f32 %v922, 0.0
        %v955 = vmax.f32 %v923, 0.0
        %v956 = vmax.f32 %v924, 0.0
        %v957 = vmax.f32 %v925, 0.0
        %v958 = vmax.f32 %v926, 0.0
        %v959 = vmax.f32 %v927, 0.0
        %v960 = vmax.f32 %v928, 0.0
        %v961 = vmax.f32 %v929, 0.0
        %962 = vst [vmem:[%s329] sm:$0xff] %v930
        %963 = vst [vmem:[%s329 + $0x8] sm:$0xff] %v931
        %964 = vst [vmem:[%s329 + $0x10] sm:$0xff] %v932
        %965 = vst [vmem:[%s329 + $0x18] sm:$0xff] %v933
        %966 = vst [vmem:[%s329 + $0x20] sm:$0xff] %v934
        %967 = vst [vmem:[%s329 + $0x28] sm:$0xff] %v935
        %968 = vst [vmem:[%s329 + $0x30] sm:$0xff] %v936
        %969 = vst [vmem:[%s329 + $0x38] sm:$0xff] %v937
        %970 = vst [vmem:[%s329 + $0x40] sm:$0xff] %v938
        %971 = vst [vmem:[%s329 + $0x48] sm:$0xff] %v939
        %972 = vst [vmem:[%s329 + $0x50] sm:$0xff] %v940
        %973 = vst [vmem:[%s329 + $0x58] sm:$0xff] %v941
        %974 = vst [vmem:[%s329 + $0x60] sm:$0xff] %v942
        %975 = vst [vmem:[%s329 + $0x68] sm:$0xff] %v943
        %976 = vst [vmem:[%s329 + $0x70] sm:$0xff] %v944
        %977 = vst [vmem:[%s329 + $0x78] sm:$0xff] %v945
        %978 = vst [vmem:[%s329 + $0x80] sm:$0xff] %v946
        %979 = vst [vmem:[%s329 + $0x88] sm:$0xff] %v947
        %980 = vst [vmem:[%s329 + $0x90] sm:$0xff] %v948
        %981 = vst [vmem:[%s329 + $0x98] sm:$0xff] %v949
        %982 = vst [vmem:[%s329 + $0xa0] sm:$0xff] %v950
        %983 = vst [vmem:[%s329 + $0xa8] sm:$0xff] %v951
        %984 = vst [vmem:[%s329 + $0xb0] sm:$0xff] %v952
        %985 = vst [vmem:[%s329 + $0xb8] sm:$0xff] %v953
        %986 = vst [vmem:[%s329 + $0xc0] sm:$0xff] %v954
        %987 = vst [vmem:[%s329 + $0xc8] sm:$0xff] %v955
        %988 = vst [vmem:[%s329 + $0xd0] sm:$0xff] %v956
        %989 = vst [vmem:[%s329 + $0xd8] sm:$0xff] %v957
        %990 = vst [vmem:[%s329 + $0xe0] sm:$0xff] %v958
        %991 = vst [vmem:[%s329 + $0xe8] sm:$0xff] %v959
        %992 = vst [vmem:[%s329 + $0xf0] sm:$0xff] %v960
        %993 = vst [vmem:[%s329 + $0xf8] sm:$0xff] %v961
      $region44: #{anynetx_forward.13} parent=35 // pred_fallthru
        _
      %s994 = smul.u32 32, %s22
      %p995 = scmp.lt.s32.totalorder %s21, 0
      %s996 = scalar_select %p995, %s21, 0
      %p997 = scmp.lt.s32.totalorder %s994, 63
      %s998 = scalar_select %p997, %s994, 63
      %p999 = scmp.lt.s32.totalorder %s23, 0
      %s1000 = scalar_select %p999, %s23, 0
      %s1001 = sadd.s32 %s1000, %s998
      %s1002 = smul.addr %s996, 64
      %s1003 = sadd.s32 %s1001, %s1002
      %s1004 = smul.addr %s1003, 8
      %s1005 = scalar_lea.vmem %s4, %s1004
      // Predicated region
      $region45: #{anynetx_forward.13} parent=35 // pred_check
        %p1006 = pneg %p173
      $region46: #{anynetx_forward.13} parent=35 // pred_check_branch
        %1008 = sbr.rel (%p1006) target = $region48
      $region47: #{anynetx_forward.13} parent=35 // pred_region
        %s1009 = smul.u32 32, %s22
      $region48: #{anynetx_forward.13} parent=35 // pred_fallthru
        _
    $region36: #{anynetx_forward.13} parent=5 // pred_fallthru
      _
    %p1010 = scmp.le.s32.totalorder 2, %s10
    // Predicated region
    $region49: #{anynetx_forward.13} parent=5 // pred_check
      %p1011 = pneg %p1010
    $region50: #{anynetx_forward.13} parent=5 // pred_check_branch
      %1013 = sbr.rel (%p1011) target = $region52
    $region51: #{anynetx_forward.13} parent=5 // pred_region
      %s1014 = ssub.s32 %s10, 2
      // Predicated region
      $region53: #{anynetx_forward.13} parent=51 // pred_check
        %p1015 = pneg %p179
      $region54: #{anynetx_forward.13} parent=51 // pred_check_branch
        %1017 = sbr.rel (%p1015) target = $region56
      $region55: #{anynetx_forward.13} parent=51 // pred_region
        %s1018 = smul.u32 32, %s26
        %p1019 = scmp.lt.s32.totalorder %s25, 0
        %s1020 = scalar_select %p1019, %s25, 0
        %p1021 = scmp.lt.s32.totalorder %s1018, 63
        %s1022 = scalar_select %p1021, %s1018, 63
        %p1023 = scmp.lt.s32.totalorder %s27, 0
        %s1024 = scalar_select %p1023, %s27, 0
        %s1025 = sadd.s32 %s1024, %s1022
        %s1026 = smul.addr %s1020, 64
        %s1027 = sadd.s32 %s1025, %s1026
        %s1028 = smul.addr %s1027, 8
        %s1029 = scalar_lea.vmem %s4, %s1028
      $region56: #{anynetx_forward.13} parent=51 // pred_fallthru
        _
    $region52: #{anynetx_forward.13} parent=5 // pred_fallthru
      _
  $region6: #{anynetx_forward.13} parent=0 // loop_footer
    %s14 = sadd.s32 1, %s10
  $region7: #{anynetx_forward.13} parent=0 // loop_footer_branch
    %9 = sbr.rel target = $region3
  $region8: #{anynetx_forward.13} parent=0 // loop_exit
    _

// kernel: anynetx_forward.12
$region0: #{anynetx_forward.12}
  #allocation0 [shape = 'u32[]', space=smem, size = 0x4, offset = 0x4, fixed_abs, tag = 'smem constant byte address 0x4 - core index']
  #allocation1 [shape = 'u32[144,128]{1,0:T(1,128)}', space=vmem, size = 0x12000, scoped, tag = 'internal scratch']
  #allocation2 [shape = 'f32[256,128]{1,0:T(8,128)}', space=vmem, size = 0x20000, scoped, tag = 'scratch operand']
  %s0 = inlined_call_operand.vmem [shape: bf16[1,512,27], index: 0, kind: input, shape index: {}]
  %s1 = inlined_call_operand.vmem [shape: bf16[1,27,128], index: 1, kind: input, shape index: {}]
  %s2 = inlined_call_operand.vmem [shape: f32[1,1,128], index: 2, kind: input, shape index: {}]
  %s3 = inlined_call_operand.vmem [shape: f32[1,1,128], index: 3, kind: input, shape index: {}]
  %s4 = inlined_call_operand.vmem [shape: f32[1,512,128], index: 4, kind: output, shape index: {}]
  %s5 = sld [smem:[#allocation0]]
  $region57: #{anynetx_forward.12} parent=0
    _
  %s7 = ssub.s32 1, %s5
  %s8 = scalar_select 0, %s7, %s5
  loop: start=0, step=1, limit=4
  $region2: #{anynetx_forward.12} parent=0 // loop_pre_header
    _
  $region3: #{anynetx_forward.12} parent=0 // loop_header
    %s10 = sphi 0, %s14
    %p11 = scmp.ge.s32.totalorder %s10, 4
    %s17 = sphi 0, %s43
    %s18 = sphi 0, %s39
    %s19 = sphi 0, %s35
    %s20 = sphi 0, %s31
    %s21 = sphi 0, %s17
    %s22 = sphi 0, %s18
    %s23 = sphi 0, %s19
    %s24 = sphi 0, %s20
    %s25 = sphi 0, %s21
    %s26 = sphi 0, %s22
    %s27 = sphi 0, %s23
    %s28 = sphi 0, %s24
    %s50 = sphi 0, %s52
    %s53 = sphi 0, %s50
    %s54 = sphi 0, %s53
    %s70 = sphi 0, %s54
    %s78 = sphi 0, %s80
    %s81 = sphi 0, %s78
    %s82 = sphi 0, %s81
    %s98 = sphi 0, %s82
    %s104 = sphi 0, %s106
    %s107 = sphi 0, %s104
    %s108 = sphi 0, %s107
    %s124 = sphi 0, %s108
    %s130 = sphi 0, %s132
    %s133 = sphi 0, %s130
    %s134 = sphi 0, %s133
    %s150 = sphi 0, %s134
    %s160 = sphi 0, %s162
    %s163 = sphi 0, %s160
    %s164 = sphi 0, %s163
    %s180 = sphi 0, %s164
  $region4: #{anynetx_forward.12} parent=0 // loop_header_branch
    %13 = sbr.rel (%p11) target = $region8
  $region5: #{anynetx_forward.12} parent=0 // loop_body
    %s15 = ssub.s32 %s10, 1
    %s16 = ssub.s32 %s10, 2
    %s29 = sadd.s32 1, %s20
    %p30 = scmp.ge.s32.totalorder %s29, 1
    %s31 = scalar_select %p30, 0, %s29
    %s32 = sadd.s32 1, %s19
    %s33 = scalar_select %p30, %s32, %s19
    %p34 = scmp.ge.s32.totalorder %s33, 1
    %s35 = scalar_select %p34, 0, %s33
    %s36 = sadd.s32 1, %s18
    %s37 = scalar_select %p34, %s36, %s18
    %p38 = scmp.ge.s32.totalorder %s37, 2
    %s39 = scalar_select %p38, 0, %s37
    %s40 = sadd.s32 1, %s17
    %s41 = scalar_select %p38, %s40, %s17
    %p42 = scmp.ge.s32.totalorder %s41, 1
    %s43 = scalar_select %p42, 0, %s41
    %s44 = ssub.s32 %s17, %s43
    %s45 = ssub.s32 %s18, %s39
    %s46 = sor.u32 %s44, %s45
    %s47 = ssub.s32 %s20, %s31
    %s48 = sor.u32 %s46, %s47
    %p49 = scmp.eq.s32.totalorder %s48, 0
    %s51 = sadd.s32 %s50, 1
    %s52 = scalar_select %p49, %s50, %s51
    %p55 = pneg %p49
    %p56 = scmp.eq.s32.totalorder %s10, 1
    %p57 = por %p55, %p56
    %p58 = scmp.ne.s32.totalorder %s50, %s53
    %p59 = scmp.eq.s32.totalorder %s10, 0
    %p60 = por %p58, %p59
    %p61 = scmp.ne.s32.totalorder %s50, %s53
    %p62 = scmp.eq.s32.totalorder %s15, 1
    %p63 = por %p61, %p62
    %p64 = scmp.ne.s32.totalorder %s53, %s54
    %p65 = scmp.eq.s32.totalorder %s15, 0
    %p66 = por %p64, %p65
    %p67 = scmp.ne.s32.totalorder %s53, %s54
    %p68 = scmp.eq.s32.totalorder %s16, 1
    %p69 = por %p67, %p68
    %p71 = scmp.ne.s32.totalorder %s54, %s70
    %p72 = scmp.eq.s32.totalorder %s16, 0
    %p73 = por %p71, %p72
    %s74 = ssub.s32 %s20, %s31
    %s75 = ssub.s32 %s19, %s35
    %s76 = sor.u32 %s74, %s75
    %p77 = scmp.eq.s32.totalorder %s76, 0
    %s79 = sadd.s32 %s78, 1
    %s80 = scalar_select %p77, %s78, %s79
    %p83 = pneg %p77
    %p84 = scmp.eq.s32.totalorder %s10, 1
    %p85 = por %p83, %p84
    %p86 = scmp.ne.s32.totalorder %s78, %s81
    %p87 = scmp.eq.s32.totalorder %s10, 0
    %p88 = por %p86, %p87
    %p89 = scmp.ne.s32.totalorder %s78, %s81
    %p90 = scmp.eq.s32.totalorder %s15, 1
    %p91 = por %p89, %p90
    %p92 = scmp.ne.s32.totalorder %s81, %s82
    %p93 = scmp.eq.s32.totalorder %s15, 0
    %p94 = por %p92, %p93
    %p95 = scmp.ne.s32.totalorder %s81, %s82
    %p96 = scmp.eq.s32.totalorder %s16, 1
    %p97 = por %p95, %p96
    %p99 = scmp.ne.s32.totalorder %s82, %s98
    %p100 = scmp.eq.s32.totalorder %s16, 0
    %p101 = por %p99, %p100
    %s102 = ssub.s32 %s19, %s35
    %p103 = scmp.eq.s32.totalorder %s102, 0
    %s105 = sadd.s32 %s104, 1
    %s106 = scalar_select %p103, %s104, %s105
    %p109 = pneg %p103
    %p110 = scmp.eq.s32.totalorder %s10, 1
    %p111 = por %p109, %p110
    %p112 = scmp.ne.s32.totalorder %s104, %s107
    %p113 = scmp.eq.s32.totalorder %s10, 0
    %p114 = por %p112, %p113
    %p115 = scmp.ne.s32.totalorder %s104, %s107
    %p116 = scmp.eq.s32.totalorder %s15, 1
    %p117 = por %p115, %p116
    %p118 = scmp.ne.s32.totalorder %s107, %s108
    %p119 = scmp.eq.s32.totalorder %s15, 0
    %p120 = por %p118, %p119
    %p121 = scmp.ne.s32.totalorder %s107, %s108
    %p122 = scmp.eq.s32.totalorder %s16, 1
    %p123 = por %p121, %p122
    %p125 = scmp.ne.s32.totalorder %s108, %s124
    %p126 = scmp.eq.s32.totalorder %s16, 0
    %p127 = por %p125, %p126
    %s128 = ssub.s32 %s19, %s35
    %p129 = scmp.eq.s32.totalorder %s128, 0
    %s131 = sadd.s32 %s130, 1
    %s132 = scalar_select %p129, %s130, %s131
    %p135 = pneg %p129
    %p136 = scmp.eq.s32.totalorder %s10, 1
    %p137 = por %p135, %p136
    %p138 = scmp.ne.s32.totalorder %s130, %s133
    %p139 = scmp.eq.s32.totalorder %s10, 0
    %p140 = por %p138, %p139
    %p141 = scmp.ne.s32.totalorder %s130, %s133
    %p142 = scmp.eq.s32.totalorder %s15, 1
    %p143 = por %p141, %p142
    %p144 = scmp.ne.s32.totalorder %s133, %s134
    %p145 = scmp.eq.s32.totalorder %s15, 0
    %p146 = por %p144, %p145
    %p147 = scmp.ne.s32.totalorder %s133, %s134
    %p148 = scmp.eq.s32.totalorder %s16, 1
    %p149 = por %p147, %p148
    %p151 = scmp.ne.s32.totalorder %s134, %s150
    %p152 = scmp.eq.s32.totalorder %s16, 0
    %p153 = por %p151, %p152
    %s154 = ssub.s32 %s17, %s43
    %s155 = ssub.s32 %s18, %s39
    %s156 = sor.u32 %s154, %s155
    %s157 = ssub.s32 %s19, %s35
    %s158 = sor.u32 %s156, %s157
    %p159 = scmp.eq.s32.totalorder %s158, 0
    %s161 = sadd.s32 %s160, 1
    %s162 = scalar_select %p159, %s160, %s161
    %p165 = pneg %p159
    %p166 = scmp.eq.s32.totalorder %s10, 1
    %p167 = por %p165, %p166
    %p168 = scmp.ne.s32.totalorder %s160, %s163
    %p169 = scmp.eq.s32.totalorder %s10, 0
    %p170 = por %p168, %p169
    %p171 = scmp.ne.s32.totalorder %s160, %s163
    %p172 = scmp.eq.s32.totalorder %s15, 1
    %p173 = por %p171, %p172
    %p174 = scmp.ne.s32.totalorder %s163, %s164
    %p175 = scmp.eq.s32.totalorder %s15, 0
    %p176 = por %p174, %p175
    %p177 = scmp.ne.s32.totalorder %s163, %s164
    %p178 = scmp.eq.s32.totalorder %s16, 1
    %p179 = por %p177, %p178
    %p181 = scmp.ne.s32.totalorder %s164, %s180
    %p182 = scmp.eq.s32.totalorder %s16, 0
    %p183 = por %p181, %p182
    %p184 = scmp.le.s32.totalorder 1, %s10
    %p185 = scmp.lt.s32.totalorder %s10, 3
    %p186 = pnand %p184, %p185
    %p187 = pneg %p186
    // Predicated region
    $region9: #{anynetx_forward.12} parent=5 // pred_check
      _
    $region10: #{anynetx_forward.12} parent=5 // pred_check_branch
      %189 = sbr.rel (%p186) target = $region12
    $region11: #{anynetx_forward.12} parent=5 // pred_region
      %s190 = ssub.s32 %s10, 1
      // Predicated region
      $region13: #{anynetx_forward.12} parent=11 // pred_check
        %p191 = pneg %p94
      $region14: #{anynetx_forward.12} parent=11 // pred_check_branch
        %193 = sbr.rel (%p191) target = $region16
      $region15: #{anynetx_forward.12} parent=11 // pred_region
        %s194 = smul.u32 4, %s24
        %p195 = scmp.lt.s32.totalorder %s194, 3
        %s196 = scalar_select %p195, %s194, 3
        %p197 = scmp.lt.s32.totalorder %s23, 0
        %s198 = scalar_select %p197, %s23, 0
        %s199 = sadd.s32 %s198, %s196
        %s200 = smul.addr %s199, 4
        %s201 = scalar_lea.vmem %s1, %s200
        %s202 = smul.u32 4, %s24
      $region16: #{anynetx_forward.12} parent=11 // pred_fallthru
        _
      // Predicated region
      $region17: #{anynetx_forward.12} parent=11 // pred_check
        %p203 = pneg %p120
      $region18: #{anynetx_forward.12} parent=11 // pred_check_branch
        %205 = sbr.rel (%p203) target = $region20
      $region19: #{anynetx_forward.12} parent=11 // pred_region
        %p206 = scmp.lt.s32.totalorder %s23, 0
        %s207 = scalar_select %p206, %s23, 0
        %s208 = scalar_lea.vmem %s2, %s207
      $region20: #{anynetx_forward.12} parent=11 // pred_fallthru
        _
      // Predicated region
      $region21: #{anynetx_forward.12} parent=11 // pred_check
        %p209 = pneg %p146
      $region22: #{anynetx_forward.12} parent=11 // pred_check_branch
        %211 = sbr.rel (%p209) target = $region24
      $region23: #{anynetx_forward.12} parent=11 // pred_region
        %p212 = scmp.lt.s32.totalorder %s23, 0
        %s213 = scalar_select %p212, %s23, 0
        %s214 = scalar_lea.vmem %s3, %s213
      $region24: #{anynetx_forward.12} parent=11 // pred_fallthru
        _
    $region12: #{anynetx_forward.12} parent=5 // pred_fallthru
      _
    %p215 = scmp.lt.s32.totalorder %s10, 2
    // Predicated region
    $region25: #{anynetx_forward.12} parent=5 // pred_check
      %p216 = pneg %p215
    $region26: #{anynetx_forward.12} parent=5 // pred_check_branch
      %218 = sbr.rel (%p216) target = $region28
    $region27: #{anynetx_forward.12} parent=5 // pred_region
      // Predicated region
      $region29: #{anynetx_forward.12} parent=27 // pred_check
        %p219 = pneg %p60
      $region30: #{anynetx_forward.12} parent=27 // pred_check_branch
        %221 = sbr.rel (%p219) target = $region32
      $region31: #{anynetx_forward.12} parent=27 // pred_region
        %s222 = smul.u32 32, %s18
        %p223 = scmp.lt.s32.totalorder %s17, 0
        %s224 = scalar_select %p223, %s17, 0
        %p225 = scmp.lt.s32.totalorder %s222, 63
        %s226 = scalar_select %p225, %s222, 63
        %p227 = scmp.lt.s32.totalorder %s20, 0
        %s228 = scalar_select %p227, %s20, 0
        %s229 = sadd.s32 %s228, %s226
        %s230 = smul.addr %s224, 64
        %s231 = sadd.s32 %s229, %s230
        %s232 = smul.addr %s231, 4
        %s233 = scalar_lea.vmem %s0, %s232
        %s234 = smul.u32 32, %s18
      $region32: #{anynetx_forward.12} parent=27 // pred_fallthru
        _
    $region28: #{anynetx_forward.12} parent=5 // pred_fallthru
      _
    %p235 = scmp.le.s32.totalorder 1, %s10
    %p236 = scmp.lt.s32.totalorder %s10, 3
    %p237 = pnand %p235, %p236
    %p238 = pneg %p237
    // Predicated region
    $region33: #{anynetx_forward.12} parent=5 // pred_check
      _
    $region34: #{anynetx_forward.12} parent=5 // pred_check_branch
      %240 = sbr.rel (%p237) target = $region36
    $region35: #{anynetx_forward.12} parent=5 // pred_region
      %s241 = ssub.s32 %s10, 1
      %s242 = smul.u32 32, %s22
      %p243 = scmp.lt.s32.totalorder %s21, 0
      %s244 = scalar_select %p243, %s21, 0
      %p245 = scmp.lt.s32.totalorder %s242, 63
      %s246 = scalar_select %p245, %s242, 63
      %p247 = scmp.lt.s32.totalorder %s24, 0
      %s248 = scalar_select %p247, %s24, 0
      %s249 = sadd.s32 %s248, %s246
      %s250 = smul.addr %s244, 64
      %s251 = sadd.s32 %s249, %s250
      %s252 = smul.addr %s251, 4
      %s253 = scalar_lea.vmem %s0, %s252
      %p254 = pneg %p66
      %p255 = pneg %p63
      %s256 = smul.u32 4, %s24
      %p257 = scmp.lt.s32.totalorder %s256, 3
      %s258 = scalar_select %p257, %s256, 3
      %p259 = scmp.lt.s32.totalorder %s23, 0
      %s260 = scalar_select %p259, %s23, 0
      %s261 = sadd.s32 %s260, %s258
      %s262 = smul.addr %s261, 4
      %s263 = scalar_lea.vmem %s1, %s262
      %p264 = pneg %p94
      %p265 = pneg %p91
      %p266 = scmp.lt.s32.totalorder %s23, 0
      %s267 = scalar_select %p266, %s23, 0
      %s268 = scalar_lea.vmem %s2, %s267
      %p269 = pneg %p120
      %p270 = pneg %p117
      %p271 = scmp.lt.s32.totalorder %s23, 0
      %s272 = scalar_select %p271, %s23, 0
      %s273 = scalar_lea.vmem %s3, %s272
      %p274 = pneg %p146
      %p275 = pneg %p143
      %p276 = pneg %p176
      %p277 = pneg %p173
      %s278 = smul.u32 32, %s22
      %p279 = scmp.lt.s32.totalorder %s21, 0
      %s280 = scalar_select %p279, %s21, 0
      %p281 = scmp.lt.s32.totalorder %s278, 63
      %s282 = scalar_select %p281, %s278, 63
      %p283 = scmp.lt.s32.totalorder %s23, 0
      %s284 = scalar_select %p283, %s23, 0
      %s285 = sadd.s32 %s284, %s282
      %s286 = smul.addr %s280, 64
      %s287 = sadd.s32 %s285, %s286
      %s288 = smul.addr %s287, 8
      %s289 = scalar_lea.vmem %s4, %s288
      %s290 = smul.u32 32, %s22
      %p291 = scmp.lt.s32.totalorder %s21, 0
      %s292 = scalar_select %p291, %s21, 0
      %p293 = scmp.lt.s32.totalorder %s290, 63
      %s294 = scalar_select %p293, %s290, 63
      %p295 = scmp.lt.s32.totalorder %s24, 0
      %s296 = scalar_select %p295, %s24, 0
      %s297 = sadd.s32 %s296, %s294
      %s298 = smul.addr %s292, 64
      %s299 = sadd.s32 %s297, %s298
      %s300 = smul.addr %s299, 4
      %s301 = scalar_lea.vmem %s0, %s300
      %s302 = smul.u32 32, %s22
      %s303 = smul.u32 4, %s24
      %p304 = scmp.lt.s32.totalorder %s303, 3
      %s305 = scalar_select %p304, %s303, 3
      %p306 = scmp.lt.s32.totalorder %s23, 0
      %s307 = scalar_select %p306, %s23, 0
      %s308 = sadd.s32 %s307, %s305
      %s309 = smul.addr %s308, 4
      %s310 = scalar_lea.vmem %s1, %s309
      %s311 = smul.u32 4, %s24
      %p312 = scmp.lt.s32.totalorder %s23, 0
      %s313 = scalar_select %p312, %s23, 0
      %s314 = scalar_lea.vmem %s2, %s313
      %p315 = scmp.lt.s32.totalorder %s23, 0
      %s316 = scalar_select %p315, %s23, 0
      %s317 = scalar_lea.vmem %s3, %s316
      %s318 = smul.u32 32, %s22
      %p319 = scmp.lt.s32.totalorder %s21, 0
      %s320 = scalar_select %p319, %s21, 0
      %p321 = scmp.lt.s32.totalorder %s318, 63
      %s322 = scalar_select %p321, %s318, 63
      %p323 = scmp.lt.s32.totalorder %s23, 0
      %s324 = scalar_select %p323, %s23, 0
      %s325 = sadd.s32 %s324, %s322
      %s326 = smul.addr %s320, 64
      %s327 = sadd.s32 %s325, %s326
      %s328 = smul.addr %s327, 8
      %s329 = scalar_lea.vmem %s4, %s328
      %s330 = smul.u32 32, %s22
      %p332 = scmp.eq.s32.totalorder %s24, 0
      // Predicated region
      $region37: #{anynetx_forward.12} parent=35 // pred_check
        %p333 = pneg %p332
      $region38: #{anynetx_forward.12} parent=35 // pred_check_branch
        %335 = sbr.rel (%p333) target = $region40
      $region39: #{anynetx_forward.12} parent=35 // pred_region
        %336 = vst [vmem:[#allocation2] sm:$0xff] 0.0
        %337 = vst [vmem:[#allocation2 + $0x8] sm:$0xff] 0.0
        %338 = vst [vmem:[#allocation2 + $0x10] sm:$0xff] 0.0
        %339 = vst [vmem:[#allocation2 + $0x18] sm:$0xff] 0.0
        %340 = vst [vmem:[#allocation2 + $0x20] sm:$0xff] 0.0
        %341 = vst [vmem:[#allocation2 + $0x28] sm:$0xff] 0.0
        %342 = vst [vmem:[#allocation2 + $0x30] sm:$0xff] 0.0
        %343 = vst [vmem:[#allocation2 + $0x38] sm:$0xff] 0.0
        %344 = vst [vmem:[#allocation2 + $0x40] sm:$0xff] 0.0
        %345 = vst [vmem:[#allocation2 + $0x48] sm:$0xff] 0.0
        %346 = vst [vmem:[#allocation2 + $0x50] sm:$0xff] 0.0
        %347 = vst [vmem:[#allocation2 + $0x58] sm:$0xff] 0.0
        %348 = vst [vmem:[#allocation2 + $0x60] sm:$0xff] 0.0
        %349 = vst [vmem:[#allocation2 + $0x68] sm:$0xff] 0.0
        %350 = vst [vmem:[#allocation2 + $0x70] sm:$0xff] 0.0
        %351 = vst [vmem:[#allocation2 + $0x78] sm:$0xff] 0.0
        %352 = vst [vmem:[#allocation2 + $0x80] sm:$0xff] 0.0
        %353 = vst [vmem:[#allocation2 + $0x88] sm:$0xff] 0.0
        %354 = vst [vmem:[#allocation2 + $0x90] sm:$0xff] 0.0
        %355 = vst [vmem:[#allocation2 + $0x98] sm:$0xff] 0.0
        %356 = vst [vmem:[#allocation2 + $0xa0] sm:$0xff] 0.0
        %357 = vst [vmem:[#allocation2 + $0xa8] sm:$0xff] 0.0
        %358 = vst [vmem:[#allocation2 + $0xb0] sm:$0xff] 0.0
        %359 = vst [vmem:[#allocation2 + $0xb8] sm:$0xff] 0.0
        %360 = vst [vmem:[#allocation2 + $0xc0] sm:$0xff] 0.0
        %361 = vst [vmem:[#allocation2 + $0xc8] sm:$0xff] 0.0
        %362 = vst [vmem:[#allocation2 + $0xd0] sm:$0xff] 0.0
        %363 = vst [vmem:[#allocation2 + $0xd8] sm:$0xff] 0.0
        %364 = vst [vmem:[#allocation2 + $0xe0] sm:$0xff] 0.0
        %365 = vst [vmem:[#allocation2 + $0xe8] sm:$0xff] 0.0
        %366 = vst [vmem:[#allocation2 + $0xf0] sm:$0xff] 0.0
        %367 = vst [vmem:[#allocation2 + $0xf8] sm:$0xff] 0.0
      $region40: #{anynetx_forward.12} parent=35 // pred_fallthru
        _
      %v368 = vld [vmem:[%s301] sm:$0xf]
      %v369 = vld [vmem:[%s301 + $0x4] sm:$0xf]
      %v370 = vld [vmem:[%s301 + $0x8] sm:$0xf]
      %v371 = vld [vmem:[%s301 + $0xc] sm:$0xf]
      %v372 = vld [vmem:[%s301 + $0x10] sm:$0xf]
      %v373 = vld [vmem:[%s301 + $0x14] sm:$0xf]
      %v374 = vld [vmem:[%s301 + $0x18] sm:$0xf]
      %v375 = vld [vmem:[%s301 + $0x1c] sm:$0xf]
      %v376 = vld [vmem:[%s301 + $0x20] sm:$0xf]
      %v377 = vld [vmem:[%s301 + $0x24] sm:$0xf]
      %v378 = vld [vmem:[%s301 + $0x28] sm:$0xf]
      %v379 = vld [vmem:[%s301 + $0x2c] sm:$0xf]
      %v380 = vld [vmem:[%s301 + $0x30] sm:$0xf]
      %v381 = vld [vmem:[%s301 + $0x34] sm:$0xf]
      %v382 = vld [vmem:[%s301 + $0x38] sm:$0xf]
      %v383 = vld [vmem:[%s301 + $0x3c] sm:$0xf]
      %v384 = vld [vmem:[%s301 + $0x40] sm:$0xf]
      %v385 = vld [vmem:[%s301 + $0x44] sm:$0xf]
      %v386 = vld [vmem:[%s301 + $0x48] sm:$0xf]
      %v387 = vld [vmem:[%s301 + $0x4c] sm:$0xf]
      %v388 = vld [vmem:[%s301 + $0x50] sm:$0xf]
      %v389 = vld [vmem:[%s301 + $0x54] sm:$0xf]
      %v390 = vld [vmem:[%s301 + $0x58] sm:$0xf]
      %v391 = vld [vmem:[%s301 + $0x5c] sm:$0xf]
      %v392 = vld [vmem:[%s301 + $0x60] sm:$0xf]
      %v393 = vld [vmem:[%s301 + $0x64] sm:$0xf]
      %v394 = vld [vmem:[%s301 + $0x68] sm:$0xf]
      %v395 = vld [vmem:[%s301 + $0x6c] sm:$0xf]
      %v396 = vld [vmem:[%s301 + $0x70] sm:$0xf]
      %v397 = vld [vmem:[%s301 + $0x74] sm:$0xf]
      %v398 = vld [vmem:[%s301 + $0x78] sm:$0xf]
      %v399 = vld [vmem:[%s301 + $0x7c] sm:$0xf]
      %v400 = vld [vmem:[#allocation2] sm:$0xff]
      %v401 = vld [vmem:[#allocation2 + $0x8] sm:$0xff]
      %v402 = vld [vmem:[#allocation2 + $0x10] sm:$0xff]
      %v403 = vld [vmem:[#allocation2 + $0x18] sm:$0xff]
      %v404 = vld [vmem:[#allocation2 + $0x20] sm:$0xff]
      %v405 = vld [vmem:[#allocation2 + $0x28] sm:$0xff]
      %v406 = vld [vmem:[#allocation2 + $0x30] sm:$0xff]
      %v407 = vld [vmem:[#allocation2 + $0x38] sm:$0xff]
      %v408 = vld [vmem:[#allocation2 + $0x40] sm:$0xff]
      %v409 = vld [vmem:[#allocation2 + $0x48] sm:$0xff]
      %v410 = vld [vmem:[#allocation2 + $0x50] sm:$0xff]
      %v411 = vld [vmem:[#allocation2 + $0x58] sm:$0xff]
      %v412 = vld [vmem:[#allocation2 + $0x60] sm:$0xff]
      %v413 = vld [vmem:[#allocation2 + $0x68] sm:$0xff]
      %v414 = vld [vmem:[#allocation2 + $0x70] sm:$0xff]
      %v415 = vld [vmem:[#allocation2 + $0x78] sm:$0xff]
      %v416 = vld [vmem:[#allocation2 + $0x80] sm:$0xff]
      %v417 = vld [vmem:[#allocation2 + $0x88] sm:$0xff]
      %v418 = vld [vmem:[#allocation2 + $0x90] sm:$0xff]
      %v419 = vld [vmem:[#allocation2 + $0x98] sm:$0xff]
      %v420 = vld [vmem:[#allocation2 + $0xa0] sm:$0xff]
      %v421 = vld [vmem:[#allocation2 + $0xa8] sm:$0xff]
      %v422 = vld [vmem:[#allocation2 + $0xb0] sm:$0xff]
      %v423 = vld [vmem:[#allocation2 + $0xb8] sm:$0xff]
      %v424 = vld [vmem:[#allocation2 + $0xc0] sm:$0xff]
      %v425 = vld [vmem:[#allocation2 + $0xc8] sm:$0xff]
      %v426 = vld [vmem:[#allocation2 + $0xd0] sm:$0xff]
      %v427 = vld [vmem:[#allocation2 + $0xd8] sm:$0xff]
      %v428 = vld [vmem:[#allocation2 + $0xe0] sm:$0xff]
      %v429 = vld [vmem:[#allocation2 + $0xe8] sm:$0xff]
      %v430 = vld [vmem:[#allocation2 + $0xf0] sm:$0xff]
      %v431 = vld [vmem:[#allocation2 + $0xf8] sm:$0xff]
      %v432 = vld [vmem:[%s310] sm:$0xf]
      %v433 = vld [vmem:[%s310 + $0x4] sm:$0xf]
      %v434 = vld [vmem:[%s310 + $0x8] sm:$0xf]
      %v435 = vld [vmem:[%s310 + $0xc] sm:$0x3]
      %v468 = vunpack.c.l.b16 %v368
      %v469 = vunpack.c.l.b16 %v369
      %v470 = vunpack.c.l.b16 %v370
      %v471 = vunpack.c.l.b16 %v371
      %v472 = vunpack.c.l.b16 %v372
      %v473 = vunpack.c.l.b16 %v373
      %v474 = vunpack.c.l.b16 %v374
      %v475 = vunpack.c.l.b16 %v375
      %v476 = vunpack.c.l.b16 %v376
      %v477 = vunpack.c.l.b16 %v377
      %v478 = vunpack.c.l.b16 %v378
      %v479 = vunpack.c.l.b16 %v379
      %v480 = vunpack.c.l.b16 %v380
      %v481 = vunpack.c.l.b16 %v381
      %v482 = vunpack.c.l.b16 %v382
      %v483 = vunpack.c.l.b16 %v383
      %v484 = vunpack.c.l.b16 %v384
      %v485 = vunpack.c.l.b16 %v385
      %v486 = vunpack.c.l.b16 %v386
      %v487 = vunpack.c.l.b16 %v387
      %v488 = vunpack.c.l.b16 %v388
      %v489 = vunpack.c.l.b16 %v389
      %v490 = vunpack.c.l.b16 %v390
      %v491 = vunpack.c.l.b16 %v391
      %v492 = vunpack.c.l.b16 %v392
      %v493 = vunpack.c.l.b16 %v393
      %v494 = vunpack.c.l.b16 %v394
      %v495 = vunpack.c.l.b16 %v395
      %v496 = vunpack.c.l.b16 %v396
      %v497 = vunpack.c.l.b16 %v397
      %v498 = vunpack.c.l.b16 %v398
      %v499 = vunpack.c.l.b16 %v399
      %v500 = vpack.c.b16 %v469, %v468
      %v501 = vpack.c.b16 %v471, %v470
      %v502 = vpack.c.b16 %v473, %v472
      %v503 = vpack.c.b16 %v475, %v474
      %v504 = vpack.c.b16 %v477, %v476
      %v505 = vpack.c.b16 %v479, %v478
      %v506 = vpack.c.b16 %v481, %v480
      %v507 = vpack.c.b16 %v483, %v482
      %v508 = vpack.c.b16 %v485, %v484
      %v509 = vpack.c.b16 %v487, %v486
      %v510 = vpack.c.b16 %v489, %v488
      %v511 = vpack.c.b16 %v491, %v490
      %v512 = vpack.c.b16 %v493, %v492
      %v513 = vpack.c.b16 %v495, %v494
      %v514 = vpack.c.b16 %v497, %v496
      %v515 = vpack.c.b16 %v499, %v498
      %v520 = vunpack.c.l.b16 %v432
      %v521 = vunpack.c.l.b16 %v433
      %v522 = vunpack.c.l.b16 %v434
      %v523 = vunpack.c.l.b16 %v435
      %v524 = vpack.c.b16 %v521, %v520
      %v525 = vpack.c.b16 %v523, %v522
      %vm527 = vcmask 220160
      %v529 = vsel %vm527, %v500, 0
      %v532 = vsel %vm527, %v501, 0
      %v535 = vsel %vm527, %v502, 0
      %v538 = vsel %vm527, %v503, 0
      %v541 = vsel %vm527, %v504, 0
      %v544 = vsel %vm527, %v505, 0
      %v547 = vsel %vm527, %v506, 0
      %v550 = vsel %vm527, %v507, 0
      %v553 = vsel %vm527, %v508, 0
      %v556 = vsel %vm527, %v509, 0
      %v559 = vsel %vm527, %v510, 0
      %v562 = vsel %vm527, %v511, 0
      %v565 = vsel %vm527, %v512, 0
      %v568 = vsel %vm527, %v513, 0
      %v571 = vsel %vm527, %v514, 0
      %v574 = vsel %vm527, %v515, 0
      %vm576 = vcmask 1044480
      %vm577 = vcmask 1045504
      %v578 = vsel %vm576, 4294967295, 65535
      %v579 = vsel %vm577, %v578, 0
      %v581 = vand.u32 %v525, %v579
      %583 = vmatprep.subr.bf16.mxu0 0
      %584 = vmatpush1.bf16.msra.mxu0 %v524
      %585 = vmatprep.subr.bf16.mxu0 0
      %586 = vmatpush1.bf16.msra.mxu0 %v581
      %587 = vmatprep.subr.bf16.mxu0 0
      %588 = vmatpush1.bf16.msra.mxu0 0
      %589 = vmatprep.subr.bf16.mxu0 0
      %590 = vmatpush1.bf16.msra.mxu0 0
      %591 = vmatprep.subr.bf16.mxu0 0
      %592 = vmatpush1.bf16.msra.mxu0 0
      %593 = vmatprep.subr.bf16.mxu0 0
      %594 = vmatpush1.bf16.msra.mxu0 0
      %595 = vmatprep.subr.bf16.mxu0 0
      %596 = vmatpush1.bf16.msra.mxu0 0
      %597 = vmatprep.subr.bf16.mxu0 0
      %598 = vmatpush1.bf16.msra.mxu0 0
      %599 = vmatprep.subr.bf16.mxu0 0
      %600 = vmatpush1.bf16.msra.mxu0 0
      %601 = vmatprep.subr.bf16.mxu0 0
      %602 = vmatpush1.bf16.msra.mxu0 0
      %603 = vmatprep.subr.bf16.mxu0 0
      %604 = vmatpush1.bf16.msra.mxu0 0
      %605 = vmatprep.subr.bf16.mxu0 0
      %606 = vmatpush1.bf16.msra.mxu0 0
      %607 = vmatprep.subr.bf16.mxu0 0
      %608 = vmatpush1.bf16.msra.mxu0 0
      %609 = vmatprep.subr.bf16.mxu0 0
      %610 = vmatpush1.bf16.msra.mxu0 0
      %611 = vmatprep.subr.bf16.mxu0 0
      %612 = vmatpush1.bf16.msra.mxu0 0
      %613 = vmatprep.subr.bf16.mxu0 0
      %614 = vmatpush1.bf16.msra.mxu0 0
      %615 = vmatprep.mubr.bf16.mxu0 0
      %616 = vmatmul.mubr.bf16.gmra.mrb[0].mxu0 %v529
      %v617 = vpop.f32.mrb[0].mxu0
      %v618 = vadd.f32 0.0, %v617
      %v619 = vpop.f32.mrb[0].mxu0
      %v620 = vpop.f32.mrb[0].mxu0
      %v621 = vadd.f32 0.0, %v620
      %v622 = vpop.f32.mrb[0].mxu0
      %623 = vmatprep.mubr.bf16.mxu0 0
      %624 = vmatmul.mubr.bf16.gmra.mrb[0].mxu0 %v532
      %v625 = vpop.f32.mrb[0].mxu0
      %v626 = vadd.f32 0.0, %v625
      %v627 = vpop.f32.mrb[0].mxu0
      %v628 = vpop.f32.mrb[0].mxu0
      %v629 = vadd.f32 0.0, %v628
      %v630 = vpop.f32.mrb[0].mxu0
      %631 = vmatprep.mubr.bf16.mxu0 0
      %632 = vmatmul.mubr.bf16.gmra.mrb[0].mxu0 %v535
      %v633 = vpop.f32.mrb[0].mxu0
      %v634 = vadd.f32 0.0, %v633
      %v635 = vpop.f32.mrb[0].mxu0
      %v636 = vpop.f32.mrb[0].mxu0
      %v637 = vadd.f32 0.0, %v636
      %v638 = vpop.f32.mrb[0].mxu0
      %639 = vmatprep.mubr.bf16.mxu0 0
      %640 = vmatmul.mubr.bf16.gmra.mrb[0].mxu0 %v538
      %v641 = vpop.f32.mrb[0].mxu0
      %v642 = vadd.f32 0.0, %v641
      %v643 = vpop.f32.mrb[0].mxu0
      %v644 = vpop.f32.mrb[0].mxu0
      %v645 = vadd.f32 0.0, %v644
      %v646 = vpop.f32.mrb[0].mxu0
      %647 = vmatprep.mubr.bf16.mxu0 0
      %648 = vmatmul.mubr.bf16.gmra.mrb[0].mxu0 %v541
      %v649 = vpop.f32.mrb[0].mxu0
      %v650 = vadd.f32 0.0, %v649
      %v651 = vpop.f32.mrb[0].mxu0
      %v652 = vpop.f32.mrb[0].mxu0
      %v653 = vadd.f32 0.0, %v652
      %v654 = vpop.f32.mrb[0].mxu0
      %655 = vmatprep.mubr.bf16.mxu0 0
      %656 = vmatmul.mubr.bf16.gmra.mrb[0].mxu0 %v544
      %v657 = vpop.f32.mrb[0].mxu0
      %v658 = vadd.f32 0.0, %v657
      %v659 = vpop.f32.mrb[0].mxu0
      %v660 = vpop.f32.mrb[0].mxu0
      %v661 = vadd.f32 0.0, %v660
      %v662 = vpop.f32.mrb[0].mxu0
      %663 = vmatprep.mubr.bf16.mxu0 0
      %664 = vmatmul.mubr.bf16.gmra.mrb[0].mxu0 %v547
      %v665 = vpop.f32.mrb[0].mxu0
      %v666 = vadd.f32 0.0, %v665
      %v667 = vpop.f32.mrb[0].mxu0
      %v668 = vpop.f32.mrb[0].mxu0
      %v669 = vadd.f32 0.0, %v668
      %v670 = vpop.f32.mrb[0].mxu0
      %671 = vmatprep.mubr.bf16.mxu0 0
      %672 = vmatmul.mubr.bf16.gmra.mrb[0].mxu0 %v550
      %v673 = vpop.f32.mrb[0].mxu0
      %v674 = vadd.f32 0.0, %v673
      %v675 = vpop.f32.mrb[0].mxu0
      %v676 = vpop.f32.mrb[0].mxu0
      %v677 = vadd.f32 0.0, %v676
      %v678 = vpop.f32.mrb[0].mxu0
      %679 = vmatprep.mubr.bf16.mxu0 0
      %680 = vmatmul.mubr.bf16.gmra.mrb[0].mxu0 %v553
      %v681 = vpop.f32.mrb[0].mxu0
      %v682 = vadd.f32 0.0, %v681
      %v683 = vpop.f32.mrb[0].mxu0
      %v684 = vpop.f32.mrb[0].mxu0
      %v685 = vadd.f32 0.0, %v684
      %v686 = vpop.f32.mrb[0].mxu0
      %687 = vmatprep.mubr.bf16.mxu0 0
      %688 = vmatmul.mubr.bf16.gmra.mrb[0].mxu0 %v556
      %v689 = vpop.f32.mrb[0].mxu0
      %v690 = vadd.f32 0.0, %v689
      %v691 = vpop.f32.mrb[0].mxu0
      %v692 = vpop.f32.mrb[0].mxu0
      %v693 = vadd.f32 0.0, %v692
      %v694 = vpop.f32.mrb[0].mxu0
      %695 = vmatprep.mubr.bf16.mxu0 0
      %696 = vmatmul.mubr.bf16.gmra.mrb[0].mxu0 %v559
      %v697 = vpop.f32.mrb[0].mxu0
      %v698 = vadd.f32 0.0, %v697
      %v699 = vpop.f32.mrb[0].mxu0
      %v700 = vpop.f32.mrb[0].mxu0
      %v701 = vadd.f32 0.0, %v700
      %v702 = vpop.f32.mrb[0].mxu0
      %703 = vmatprep.mubr.bf16.mxu0 0
      %704 = vmatmul.mubr.bf16.gmra.mrb[0].mxu0 %v562
      %v705 = vpop.f32.mrb[0].mxu0
      %v706 = vadd.f32 0.0, %v705
      %v707 = vpop.f32.mrb[0].mxu0
      %v708 = vpop.f32.mrb[0].mxu0
      %v709 = vadd.f32 0.0, %v708
      %v710 = vpop.f32.mrb[0].mxu0
      %711 = vmatprep.mubr.bf16.mxu0 0
      %712 = vmatmul.mubr.bf16.gmra.mrb[0].mxu0 %v565
      %v713 = vpop.f32.mrb[0].mxu0
      %v714 = vadd.f32 0.0, %v713
      %v715 = vpop.f32.mrb[0].mxu0
      %v716 = vpop.f32.mrb[0].mxu0
      %v717 = vadd.f32 0.0, %v716
      %v718 = vpop.f32.mrb[0].mxu0
      %719 = vmatprep.mubr.bf16.mxu0 0
      %720 = vmatmul.mubr.bf16.gmra.mrb[0].mxu0 %v568
      %v721 = vpop.f32.mrb[0].mxu0
      %v722 = vadd.f32 0.0, %v721
      %v723 = vpop.f32.mrb[0].mxu0
      %v724 = vpop.f32.mrb[0].mxu0
      %v725 = vadd.f32 0.0, %v724
      %v726 = vpop.f32.mrb[0].mxu0
      %727 = vmatprep.mubr.bf16.mxu0 0
      %728 = vmatmul.mubr.bf16.gmra.mrb[0].mxu0 %v571
      %v729 = vpop.f32.mrb[0].mxu0
      %v730 = vadd.f32 0.0, %v729
      %v731 = vpop.f32.mrb[0].mxu0
      %v732 = vpop.f32.mrb[0].mxu0
      %v733 = vadd.f32 0.0, %v732
      %v734 = vpop.f32.mrb[0].mxu0
      %735 = vmatprep.mubr.bf16.mxu0 0
      %736 = vmatmul.mubr.bf16.gmra.mrb[0].mxu0 %v574
      %v737 = vpop.f32.mrb[0].mxu0
      %v738 = vadd.f32 0.0, %v737
      %v739 = vpop.f32.mrb[0].mxu0
      %v740 = vpop.f32.mrb[0].mxu0
      %v741 = vadd.f32 0.0, %v740
      %v742 = vpop.f32.mrb[0].mxu0
      %743 = vdwg.mxu0
      %v744 = vadd.f32 %v400, %v618
      %v745 = vadd.f32 %v401, %v621
      %v746 = vadd.f32 %v402, %v626
      %v747 = vadd.f32 %v403, %v629
      %v748 = vadd.f32 %v404, %v634
      %v749 = vadd.f32 %v405, %v637
      %v750 = vadd.f32 %v406, %v642
      %v751 = vadd.f32 %v407, %v645
      %v752 = vadd.f32 %v408, %v650
      %v753 = vadd.f32 %v409, %v653
      %v754 = vadd.f32 %v410, %v658
      %v755 = vadd.f32 %v411, %v661
      %v756 = vadd.f32 %v412, %v666
      %v757 = vadd.f32 %v413, %v669
      %v758 = vadd.f32 %v414, %v674
      %v759 = vadd.f32 %v415, %v677
      %v760 = vadd.f32 %v416, %v682
      %v761 = vadd.f32 %v417, %v685
      %v762 = vadd.f32 %v418, %v690
      %v763 = vadd.f32 %v419, %v693
      %v764 = vadd.f32 %v420, %v698
      %v765 = vadd.f32 %v421, %v701
      %v766 = vadd.f32 %v422, %v706
      %v767 = vadd.f32 %v423, %v709
      %v768 = vadd.f32 %v424, %v714
      %v769 = vadd.f32 %v425, %v717
      %v770 = vadd.f32 %v426, %v722
      %v771 = vadd.f32 %v427, %v725
      %v772 = vadd.f32 %v428, %v730
      %v773 = vadd.f32 %v429, %v733
      %v774 = vadd.f32 %v430, %v738
      %v775 = vadd.f32 %v431, %v741
      %776 = vst [vmem:[#allocation2] sm:$0xff] %v744
      %777 = vst [vmem:[#allocation2 + $0x8] sm:$0xff] %v745
      %778 = vst [vmem:[#allocation2 + $0x10] sm:$0xff] %v746
      %779 = vst [vmem:[#allocation2 + $0x18] sm:$0xff] %v747
      %780 = vst [vmem:[#allocation2 + $0x20] sm:$0xff] %v748
      %781 = vst [vmem:[#allocation2 + $0x28] sm:$0xff] %v749
      %782 = vst [vmem:[#allocation2 + $0x30] sm:$0xff] %v750
      %783 = vst [vmem:[#allocation2 + $0x38] sm:$0xff] %v751
      %784 = vst [vmem:[#allocation2 + $0x40] sm:$0xff] %v752
      %785 = vst [vmem:[#allocation2 + $0x48] sm:$0xff] %v753
      %786 = vst [vmem:[#allocation2 + $0x50] sm:$0xff] %v754
      %787 = vst [vmem:[#allocation2 + $0x58] sm:$0xff] %v755
      %788 = vst [vmem:[#allocation2 + $0x60] sm:$0xff] %v756
      %789 = vst [vmem:[#allocation2 + $0x68] sm:$0xff] %v757
      %790 = vst [vmem:[#allocation2 + $0x70] sm:$0xff] %v758
      %791 = vst [vmem:[#allocation2 + $0x78] sm:$0xff] %v759
      %792 = vst [vmem:[#allocation2 + $0x80] sm:$0xff] %v760
      %793 = vst [vmem:[#allocation2 + $0x88] sm:$0xff] %v761
      %794 = vst [vmem:[#allocation2 + $0x90] sm:$0xff] %v762
      %795 = vst [vmem:[#allocation2 + $0x98] sm:$0xff] %v763
      %796 = vst [vmem:[#allocation2 + $0xa0] sm:$0xff] %v764
      %797 = vst [vmem:[#allocation2 + $0xa8] sm:$0xff] %v765
      %798 = vst [vmem:[#allocation2 + $0xb0] sm:$0xff] %v766
      %799 = vst [vmem:[#allocation2 + $0xb8] sm:$0xff] %v767
      %800 = vst [vmem:[#allocation2 + $0xc0] sm:$0xff] %v768
      %801 = vst [vmem:[#allocation2 + $0xc8] sm:$0xff] %v769
      %802 = vst [vmem:[#allocation2 + $0xd0] sm:$0xff] %v770
      %803 = vst [vmem:[#allocation2 + $0xd8] sm:$0xff] %v771
      %804 = vst [vmem:[#allocation2 + $0xe0] sm:$0xff] %v772
      %805 = vst [vmem:[#allocation2 + $0xe8] sm:$0xff] %v773
      %806 = vst [vmem:[#allocation2 + $0xf0] sm:$0xff] %v774
      %807 = vst [vmem:[#allocation2 + $0xf8] sm:$0xff] %v775
      // Predicated region
      $region41: #{anynetx_forward.12} parent=35 // pred_check
        %p808 = pneg %p332
      $region42: #{anynetx_forward.12} parent=35 // pred_check_branch
        %810 = sbr.rel (%p808) target = $region44
      $region43: #{anynetx_forward.12} parent=35 // pred_region
        %v811 = vld [vmem:[#allocation2] sm:$0xff]
        %v812 = vld [vmem:[#allocation2 + $0x8] sm:$0xff]
        %v813 = vld [vmem:[#allocation2 + $0x10] sm:$0xff]
        %v814 = vld [vmem:[#allocation2 + $0x18] sm:$0xff]
        %v815 = vld [vmem:[#allocation2 + $0x20] sm:$0xff]
        %v816 = vld [vmem:[#allocation2 + $0x28] sm:$0xff]
        %v817 = vld [vmem:[#allocation2 + $0x30] sm:$0xff]
        %v818 = vld [vmem:[#allocation2 + $0x38] sm:$0xff]
        %v819 = vld [vmem:[#allocation2 + $0x40] sm:$0xff]
        %v820 = vld [vmem:[#allocation2 + $0x48] sm:$0xff]
        %v821 = vld [vmem:[#allocation2 + $0x50] sm:$0xff]
        %v822 = vld [vmem:[#allocation2 + $0x58] sm:$0xff]
        %v823 = vld [vmem:[#allocation2 + $0x60] sm:$0xff]
        %v824 = vld [vmem:[#allocation2 + $0x68] sm:$0xff]
        %v825 = vld [vmem:[#allocation2 + $0x70] sm:$0xff]
        %v826 = vld [vmem:[#allocation2 + $0x78] sm:$0xff]
        %v827 = vld [vmem:[#allocation2 + $0x80] sm:$0xff]
        %v828 = vld [vmem:[#allocation2 + $0x88] sm:$0xff]
        %v829 = vld [vmem:[#allocation2 + $0x90] sm:$0xff]
        %v830 = vld [vmem:[#allocation2 + $0x98] sm:$0xff]
        %v831 = vld [vmem:[#allocation2 + $0xa0] sm:$0xff]
        %v832 = vld [vmem:[#allocation2 + $0xa8] sm:$0xff]
        %v833 = vld [vmem:[#allocation2 + $0xb0] sm:$0xff]
        %v834 = vld [vmem:[#allocation2 + $0xb8] sm:$0xff]
        %v835 = vld [vmem:[#allocation2 + $0xc0] sm:$0xff]
        %v836 = vld [vmem:[#allocation2 + $0xc8] sm:$0xff]
        %v837 = vld [vmem:[#allocation2 + $0xd0] sm:$0xff]
        %v838 = vld [vmem:[#allocation2 + $0xd8] sm:$0xff]
        %v839 = vld [vmem:[#allocation2 + $0xe0] sm:$0xff]
        %v840 = vld [vmem:[#allocation2 + $0xe8] sm:$0xff]
        %v841 = vld [vmem:[#allocation2 + $0xf0] sm:$0xff]
        %v842 = vld [vmem:[#allocation2 + $0xf8] sm:$0xff]
        %v843 = vld [vmem:[%s314] sm:$0x1]
        %v845 = vlaneseq
        %v846 = vshrl.u32 %v845, 7
        %v847 = vsub.s32 0, %v846
        %v848 = vrot.slane %v843, %v847
        %v850 = vmul.f32 %v811, %v848
        %v851 = vmul.f32 %v812, %v848
        %v852 = vmul.f32 %v813, %v848
        %v853 = vmul.f32 %v814, %v848
        %v854 = vmul.f32 %v815, %v848
        %v855 = vmul.f32 %v816, %v848
        %v856 = vmul.f32 %v817, %v848
        %v857 = vmul.f32 %v818, %v848
        %v858 = vmul.f32 %v819, %v848
        %v859 = vmul.f32 %v820, %v848
        %v860 = vmul.f32 %v821, %v848
        %v861 = vmul.f32 %v822, %v848
        %v862 = vmul.f32 %v823, %v848
        %v863 = vmul.f32 %v824, %v848
        %v864 = vmul.f32 %v825, %v848
        %v865 = vmul.f32 %v826, %v848
        %v866 = vmul.f32 %v827, %v848
        %v867 = vmul.f32 %v828, %v848
        %v868 = vmul.f32 %v829, %v848
        %v869 = vmul.f32 %v830, %v848
        %v870 = vmul.f32 %v831, %v848
        %v871 = vmul.f32 %v832, %v848
        %v872 = vmul.f32 %v833, %v848
        %v873 = vmul.f32 %v834, %v848
        %v874 = vmul.f32 %v835, %v848
        %v875 = vmul.f32 %v836, %v848
        %v876 = vmul.f32 %v837, %v848
        %v877 = vmul.f32 %v838, %v848
        %v878 = vmul.f32 %v839, %v848
        %v879 = vmul.f32 %v840, %v848
        %v880 = vmul.f32 %v841, %v848
        %v881 = vmul.f32 %v842, %v848
        %v882 = vld [vmem:[%s317] sm:$0x1]
        %v884 = vlaneseq
        %v885 = vshrl.u32 %v884, 7
        %v886 = vsub.s32 0, %v885
        %v887 = vrot.slane %v882, %v886
        %v889 = vadd.f32 %v850, %v887
        %v890 = vadd.f32 %v851, %v887
        %v891 = vadd.f32 %v852, %v887
        %v892 = vadd.f32 %v853, %v887
        %v893 = vadd.f32 %v854, %v887
        %v894 = vadd.f32 %v855, %v887
        %v895 = vadd.f32 %v856, %v887
        %v896 = vadd.f32 %v857, %v887
        %v897 = vadd.f32 %v858, %v887
        %v898 = vadd.f32 %v859, %v887
        %v899 = vadd.f32 %v860, %v887
        %v900 = vadd.f32 %v861, %v887
        %v901 = vadd.f32 %v862, %v887
        %v902 = vadd.f32 %v863, %v887
        %v903 = vadd.f32 %v864, %v887
        %v904 = vadd.f32 %v865, %v887
        %v905 = vadd.f32 %v866, %v887
        %v906 = vadd.f32 %v867, %v887
        %v907 = vadd.f32 %v868, %v887
        %v908 = vadd.f32 %v869, %v887
        %v909 = vadd.f32 %v870, %v887
        %v910 = vadd.f32 %v871, %v887
        %v911 = vadd.f32 %v872, %v887
        %v912 = vadd.f32 %v873, %v887
        %v913 = vadd.f32 %v874, %v887
        %v914 = vadd.f32 %v875, %v887
        %v915 = vadd.f32 %v876, %v887
        %v916 = vadd.f32 %v877, %v887
        %v917 = vadd.f32 %v878, %v887
        %v918 = vadd.f32 %v879, %v887
        %v919 = vadd.f32 %v880, %v887
        %v920 = vadd.f32 %v881, %v887
        %v921 = vmax.f32 %v889, 0.0
        %v922 = vmax.f32 %v890, 0.0
        %v923 = vmax.f32 %v891, 0.0
        %v924 = vmax.f32 %v892, 0.0
        %v925 = vmax.f32 %v893, 0.0
        %v926 = vmax.f32 %v894, 0.0
        %v927 = vmax.f32 %v895, 0.0
        %v928 = vmax.f32 %v896, 0.0
        %v929 = vmax.f32 %v897, 0.0
        %v930 = vmax.f32 %v898, 0.0
        %v931 = vmax.f32 %v899, 0.0
        %v932 = vmax.f32 %v900, 0.0
        %v933 = vmax.f32 %v901, 0.0
        %v934 = vmax.f32 %v902, 0.0
        %v935 = vmax.f32 %v903, 0.0
        %v936 = vmax.f32 %v904, 0.0
        %v937 = vmax.f32 %v905, 0.0
        %v938 = vmax.f32 %v906, 0.0
        %v939 = vmax.f32 %v907, 0.0
        %v940 = vmax.f32 %v908, 0.0
        %v941 = vmax.f32 %v909, 0.0
        %v942 = vmax.f32 %v910, 0.0
        %v943 = vmax.f32 %v911, 0.0
        %v944 = vmax.f32 %v912, 0.0
        %v945 = vmax.f32 %v913, 0.0
        %v946 = vmax.f32 %v914, 0.0
        %v947 = vmax.f32 %v915, 0.0
        %v948 = vmax.f32 %v916, 0.0
        %v949 = vmax.f32 %v917, 0.0
        %v950 = vmax.f32 %v918, 0.0
        %v951 = vmax.f32 %v919, 0.0
        %v952 = vmax.f32 %v920, 0.0
        %953 = vst [vmem:[%s329] sm:$0xff] %v921
        %954 = vst [vmem:[%s329 + $0x8] sm:$0xff] %v922
        %955 = vst [vmem:[%s329 + $0x10] sm:$0xff] %v923
        %956 = vst [vmem:[%s329 + $0x18] sm:$0xff] %v924
        %957 = vst [vmem:[%s329 + $0x20] sm:$0xff] %v925
        %958 = vst [vmem:[%s329 + $0x28] sm:$0xff] %v926
        %959 = vst [vmem:[%s329 + $0x30] sm:$0xff] %v927
        %960 = vst [vmem:[%s329 + $0x38] sm:$0xff] %v928
        %961 = vst [vmem:[%s329 + $0x40] sm:$0xff] %v929
        %962 = vst [vmem:[%s329 + $0x48] sm:$0xff] %v930
        %963 = vst [vmem:[%s329 + $0x50] sm:$0xff] %v931
        %964 = vst [vmem:[%s329 + $0x58] sm:$0xff] %v932
        %965 = vst [vmem:[%s329 + $0x60] sm:$0xff] %v933
        %966 = vst [vmem:[%s329 + $0x68] sm:$0xff] %v934
        %967 = vst [vmem:[%s329 + $0x70] sm:$0xff] %v935
        %968 = vst [vmem:[%s329 + $0x78] sm:$0xff] %v936
        %969 = vst [vmem:[%s329 + $0x80] sm:$0xff] %v937
        %970 = vst [vmem:[%s329 + $0x88] sm:$0xff] %v938
        %971 = vst [vmem:[%s329 + $0x90] sm:$0xff] %v939
        %972 = vst [vmem:[%s329 + $0x98] sm:$0xff] %v940
        %973 = vst [vmem:[%s329 + $0xa0] sm:$0xff] %v941
        %974 = vst [vmem:[%s329 + $0xa8] sm:$0xff] %v942
        %975 = vst [vmem:[%s329 + $0xb0] sm:$0xff] %v943
        %976 = vst [vmem:[%s329 + $0xb8] sm:$0xff] %v944
        %977 = vst [vmem:[%s329 + $0xc0] sm:$0xff] %v945
        %978 = vst [vmem:[%s329 + $0xc8] sm:$0xff] %v946
        %979 = vst [vmem:[%s329 + $0xd0] sm:$0xff] %v947
        %980 = vst [vmem:[%s329 + $0xd8] sm:$0xff] %v948
        %981 = vst [vmem:[%s329 + $0xe0] sm:$0xff] %v949
        %982 = vst [vmem:[%s329 + $0xe8] sm:$0xff] %v950
        %983 = vst [vmem:[%s329 + $0xf0] sm:$0xff] %v951
        %984 = vst [vmem:[%s329 + $0xf8] sm:$0xff] %v952
      $region44: #{anynetx_forward.12} parent=35 // pred_fallthru
        _
      %s985 = smul.u32 32, %s22
      %p986 = scmp.lt.s32.totalorder %s21, 0
      %s987 = scalar_select %p986, %s21, 0
      %p988 = scmp.lt.s32.totalorder %s985, 63
      %s989 = scalar_select %p988, %s985, 63
      %p990 = scmp.lt.s32.totalorder %s23, 0
      %s991 = scalar_select %p990, %s23, 0
      %s992 = sadd.s32 %s991, %s989
      %s993 = smul.addr %s987, 64
      %s994 = sadd.s32 %s992, %s993
      %s995 = smul.addr %s994, 8
      %s996 = scalar_lea.vmem %s4, %s995
      // Predicated region
      $region45: #{anynetx_forward.12} parent=35 // pred_check
        %p997 = pneg %p173
      $region46: #{anynetx_forward.12} parent=35 // pred_check_branch
        %999 = sbr.rel (%p997) target = $region48
      $region47: #{anynetx_forward.12} parent=35 // pred_region
        %s1000 = smul.u32 32, %s22
      $region48: #{anynetx_forward.12} parent=35 // pred_fallthru
        _
    $region36: #{anynetx_forward.12} parent=5 // pred_fallthru
      _
    %p1001 = scmp.le.s32.totalorder 2, %s10
    // Predicated region
    $region49: #{anynetx_forward.12} parent=5 // pred_check
      %p1002 = pneg %p1001
    $region50: #{anynetx_forward.12} parent=5 // pred_check_branch
      %1004 = sbr.rel (%p1002) target = $region52
    $region51: #{anynetx_forward.12} parent=5 // pred_region
      %s1005 = ssub.s32 %s10, 2
      // Predicated region
      $region53: #{anynetx_forward.12} parent=51 // pred_check
        %p1006 = pneg %p179
      $region54: #{anynetx_forward.12} parent=51 // pred_check_branch
        %1008 = sbr.rel (%p1006) target = $region56
      $region55: #{anynetx_forward.12} parent=51 // pred_region
        %s1009 = smul.u32 32, %s26
        %p1010 = scmp.lt.s32.totalorder %s25, 0
        %s1011 = scalar_select %p1010, %s25, 0
        %p1012 = scmp.lt.s32.totalorder %s1009, 63
        %s1013 = scalar_select %p1012, %s1009, 63
        %p1014 = scmp.lt.s32.totalorder %s27, 0
        %s1015 = scalar_select %p1014, %s27, 0
        %s1016 = sadd.s32 %s1015, %s1013
        %s1017 = smul.addr %s1011, 64
        %s1018 = sadd.s32 %s1016, %s1017
        %s1019 = smul.addr %s1018, 8
        %s1020 = scalar_lea.vmem %s4, %s1019
      $region56: #{anynetx_forward.12} parent=51 // pred_fallthru
        _
    $region52: #{anynetx_forward.12} parent=5 // pred_fallthru
      _
  $region6: #{anynetx_forward.12} parent=0 // loop_footer
    %s14 = sadd.s32 1, %s10
  $region7: #{anynetx_forward.12} parent=0 // loop_footer_branch
    %9 = sbr.rel target = $region3
  $region8: #{anynetx_forward.12} parent=0 // loop_exit
    _

// kernel: anynetx_forward.14
$region0: #{anynetx_forward.14}
  #allocation0 [shape = 'u32[]', space=smem, size = 0x4, offset = 0x4, fixed_abs, tag = 'smem constant byte address 0x4 - core index']
  #allocation1 [shape = 'u32[144,128]{1,0:T(1,128)}', space=vmem, size = 0x12000, scoped, tag = 'internal scratch']
  #allocation2 [shape = 'f32[128,8]{1,0:T(8,128)}', space=vmem, size = 0x10000, scoped, tag = 'scratch operand']
  %s0 = inlined_call_operand.vmem [shape: bf16[4,128,72], index: 0, kind: input, shape index: {}]
  %s1 = inlined_call_operand.vmem [shape: bf16[4,72,8], index: 1, kind: input, shape index: {}]
  %s2 = inlined_call_operand.vmem [shape: f32[4,1,8], index: 2, kind: input, shape index: {}]
  %s3 = inlined_call_operand.vmem [shape: f32[4,1,8], index: 3, kind: input, shape index: {}]
  %s4 = inlined_call_operand.vmem [shape: f32[4,128,8], index: 4, kind: output, shape index: {}]
  %s5 = sld [smem:[#allocation0]]
  $region57: #{anynetx_forward.14} parent=0
    _
  %s7 = ssub.s32 1, %s5
  %s8 = scalar_select 0, %s7, %s5
  loop: start=0, step=1, limit=6
  $region2: #{anynetx_forward.14} parent=0 // loop_pre_header
    _
  $region3: #{anynetx_forward.14} parent=0 // loop_header
    %s10 = sphi 0, %s14
    %p11 = scmp.ge.s32.totalorder %s10, 6
    %s17 = sphi 0, %s43
    %s18 = sphi 0, %s39
    %s19 = sphi 0, %s35
    %s20 = sphi 0, %s31
    %s21 = sphi 0, %s17
    %s22 = sphi 0, %s18
    %s23 = sphi 0, %s19
    %s24 = sphi 0, %s20
    %s25 = sphi 0, %s21
    %s26 = sphi 0, %s22
    %s27 = sphi 0, %s23
    %s28 = sphi 0, %s24
    %s50 = sphi 0, %s52
    %s53 = sphi 0, %s50
    %s54 = sphi 0, %s53
    %s70 = sphi 0, %s54
    %s80 = sphi 0, %s82
    %s83 = sphi 0, %s80
    %s84 = sphi 0, %s83
    %s100 = sphi 0, %s84
    %s108 = sphi 0, %s110
    %s111 = sphi 0, %s108
    %s112 = sphi 0, %s111
    %s128 = sphi 0, %s112
    %s136 = sphi 0, %s138
    %s139 = sphi 0, %s136
    %s140 = sphi 0, %s139
    %s156 = sphi 0, %s140
    %s166 = sphi 0, %s168
    %s169 = sphi 0, %s166
    %s170 = sphi 0, %s169
    %s186 = sphi 0, %s170
  $region4: #{anynetx_forward.14} parent=0 // loop_header_branch
    %13 = sbr.rel (%p11) target = $region8
  $region5: #{anynetx_forward.14} parent=0 // loop_body
    %s15 = ssub.s32 %s10, 1
    %s16 = ssub.s32 %s10, 2
    %s29 = sadd.s32 1, %s20
    %p30 = scmp.ge.s32.totalorder %s29, 1
    %s31 = scalar_select %p30, 0, %s29
    %s32 = sadd.s32 1, %s19
    %s33 = scalar_select %p30, %s32, %s19
    %p34 = scmp.ge.s32.totalorder %s33, 1
    %s35 = scalar_select %p34, 0, %s33
    %s36 = sadd.s32 1, %s18
    %s37 = scalar_select %p34, %s36, %s18
    %p38 = scmp.ge.s32.totalorder %s37, 1
    %s39 = scalar_select %p38, 0, %s37
    %s40 = sadd.s32 1, %s17
    %s41 = scalar_select %p38, %s40, %s17
    %p42 = scmp.ge.s32.totalorder %s41, 4
    %s43 = scalar_select %p42, 0, %s41
    %s44 = ssub.s32 %s17, %s43
    %s45 = ssub.s32 %s18, %s39
    %s46 = sor.u32 %s44, %s45
    %s47 = ssub.s32 %s20, %s31
    %s48 = sor.u32 %s46, %s47
    %p49 = scmp.eq.s32.totalorder %s48, 0
    %s51 = sadd.s32 %s50, 1
    %s52 = scalar_select %p49, %s50, %s51
    %p55 = pneg %p49
    %p56 = scmp.eq.s32.totalorder %s10, 3
    %p57 = por %p55, %p56
    %p58 = scmp.ne.s32.totalorder %s50, %s53
    %p59 = scmp.eq.s32.totalorder %s10, 0
    %p60 = por %p58, %p59
    %p61 = scmp.ne.s32.totalorder %s50, %s53
    %p62 = scmp.eq.s32.totalorder %s15, 3
    %p63 = por %p61, %p62
    %p64 = scmp.ne.s32.totalorder %s53, %s54
    %p65 = scmp.eq.s32.totalorder %s15, 0
    %p66 = por %p64, %p65
    %p67 = scmp.ne.s32.totalorder %s53, %s54
    %p68 = scmp.eq.s32.totalorder %s16, 3
    %p69 = por %p67, %p68
    %p71 = scmp.ne.s32.totalorder %s54, %s70
    %p72 = scmp.eq.s32.totalorder %s16, 0
    %p73 = por %p71, %p72
    %s74 = ssub.s32 %s17, %s43
    %s75 = ssub.s32 %s20, %s31
    %s76 = sor.u32 %s74, %s75
    %s77 = ssub.s32 %s19, %s35
    %s78 = sor.u32 %s76, %s77
    %p79 = scmp.eq.s32.totalorder %s78, 0
    %s81 = sadd.s32 %s80, 1
    %s82 = scalar_select %p79, %s80, %s81
    %p85 = pneg %p79
    %p86 = scmp.eq.s32.totalorder %s10, 3
    %p87 = por %p85, %p86
    %p88 = scmp.ne.s32.totalorder %s80, %s83
    %p89 = scmp.eq.s32.totalorder %s10, 0
    %p90 = por %p88, %p89
    %p91 = scmp.ne.s32.totalorder %s80, %s83
    %p92 = scmp.eq.s32.totalorder %s15, 3
    %p93 = por %p91, %p92
    %p94 = scmp.ne.s32.totalorder %s83, %s84
    %p95 = scmp.eq.s32.totalorder %s15, 0
    %p96 = por %p94, %p95
    %p97 = scmp.ne.s32.totalorder %s83, %s84
    %p98 = scmp.eq.s32.totalorder %s16, 3
    %p99 = por %p97, %p98
    %p101 = scmp.ne.s32.totalorder %s84, %s100
    %p102 = scmp.eq.s32.totalorder %s16, 0
    %p103 = por %p101, %p102
    %s104 = ssub.s32 %s17, %s43
    %s105 = ssub.s32 %s19, %s35
    %s106 = sor.u32 %s104, %s105
    %p107 = scmp.eq.s32.totalorder %s106, 0
    %s109 = sadd.s32 %s108, 1
    %s110 = scalar_select %p107, %s108, %s109
    %p113 = pneg %p107
    %p114 = scmp.eq.s32.totalorder %s10, 3
    %p115 = por %p113, %p114
    %p116 = scmp.ne.s32.totalorder %s108, %s111
    %p117 = scmp.eq.s32.totalorder %s10, 0
    %p118 = por %p116, %p117
    %p119 = scmp.ne.s32.totalorder %s108, %s111
    %p120 = scmp.eq.s32.totalorder %s15, 3
    %p121 = por %p119, %p120
    %p122 = scmp.ne.s32.totalorder %s111, %s112
    %p123 = scmp.eq.s32.totalorder %s15, 0
    %p124 = por %p122, %p123
    %p125 = scmp.ne.s32.totalorder %s111, %s112
    %p126 = scmp.eq.s32.totalorder %s16, 3
    %p127 = por %p125, %p126
    %p129 = scmp.ne.s32.totalorder %s112, %s128
    %p130 = scmp.eq.s32.totalorder %s16, 0
    %p131 = por %p129, %p130
    %s132 = ssub.s32 %s17, %s43
    %s133 = ssub.s32 %s19, %s35
    %s134 = sor.u32 %s132, %s133
    %p135 = scmp.eq.s32.totalorder %s134, 0
    %s137 = sadd.s32 %s136, 1
    %s138 = scalar_select %p135, %s136, %s137
    %p141 = pneg %p135
    %p142 = scmp.eq.s32.totalorder %s10, 3
    %p143 = por %p141, %p142
    %p144 = scmp.ne.s32.totalorder %s136, %s139
    %p145 = scmp.eq.s32.totalorder %s10, 0
    %p146 = por %p144, %p145
    %p147 = scmp.ne.s32.totalorder %s136, %s139
    %p148 = scmp.eq.s32.totalorder %s15, 3
    %p149 = por %p147, %p148
    %p150 = scmp.ne.s32.totalorder %s139, %s140
    %p151 = scmp.eq.s32.totalorder %s15, 0
    %p152 = por %p150, %p151
    %p153 = scmp.ne.s32.totalorder %s139, %s140
    %p154 = scmp.eq.s32.totalorder %s16, 3
    %p155 = por %p153, %p154
    %p157 = scmp.ne.s32.totalorder %s140, %s156
    %p158 = scmp.eq.s32.totalorder %s16, 0
    %p159 = por %p157, %p158
    %s160 = ssub.s32 %s17, %s43
    %s161 = ssub.s32 %s18, %s39
    %s162 = sor.u32 %s160, %s161
    %s163 = ssub.s32 %s19, %s35
    %s164 = sor.u32 %s162, %s163
    %p165 = scmp.eq.s32.totalorder %s164, 0
    %s167 = sadd.s32 %s166, 1
    %s168 = scalar_select %p165, %s166, %s167
    %p171 = pneg %p165
    %p172 = scmp.eq.s32.totalorder %s10, 3
    %p173 = por %p171, %p172
    %p174 = scmp.ne.s32.totalorder %s166, %s169
    %p175 = scmp.eq.s32.totalorder %s10, 0
    %p176 = por %p174, %p175
    %p177 = scmp.ne.s32.totalorder %s166, %s169
    %p178 = scmp.eq.s32.totalorder %s15, 3
    %p179 = por %p177, %p178
    %p180 = scmp.ne.s32.totalorder %s169, %s170
    %p181 = scmp.eq.s32.totalorder %s15, 0
    %p182 = por %p180, %p181
    %p183 = scmp.ne.s32.totalorder %s169, %s170
    %p184 = scmp.eq.s32.totalorder %s16, 3
    %p185 = por %p183, %p184
    %p187 = scmp.ne.s32.totalorder %s170, %s186
    %p188 = scmp.eq.s32.totalorder %s16, 0
    %p189 = por %p187, %p188
    %p190 = scmp.le.s32.totalorder 1, %s10
    %p191 = scmp.lt.s32.totalorder %s10, 5
    %p192 = pnand %p190, %p191
    %p193 = pneg %p192
    // Predicated region
    $region9: #{anynetx_forward.14} parent=5 // pred_check
      _
    $region10: #{anynetx_forward.14} parent=5 // pred_check_branch
      %195 = sbr.rel (%p192) target = $region12
    $region11: #{anynetx_forward.14} parent=5 // pred_region
      %s196 = ssub.s32 %s10, 1
    $region12: #{anynetx_forward.14} parent=5 // pred_fallthru
      _
    %p197 = scmp.lt.s32.totalorder %s10, 4
    // Predicated region
    $region13: #{anynetx_forward.14} parent=5 // pred_check
      %p198 = pneg %p197
    $region14: #{anynetx_forward.14} parent=5 // pred_check_branch
      %200 = sbr.rel (%p198) target = $region16
    $region15: #{anynetx_forward.14} parent=5 // pred_region
      // Predicated region
      $region17: #{anynetx_forward.14} parent=15 // pred_check
        %p201 = pneg %p60
      $region18: #{anynetx_forward.14} parent=15 // pred_check_branch
        %203 = sbr.rel (%p201) target = $region20
      $region19: #{anynetx_forward.14} parent=15 // pred_region
        %s204 = smul.u32 16, %s18
        %p205 = scmp.lt.s32.totalorder %s17, 3
        %s206 = scalar_select %p205, %s17, 3
        %p207 = scmp.lt.s32.totalorder %s204, 15
        %s208 = scalar_select %p207, %s204, 15
        %p209 = scmp.lt.s32.totalorder %s20, 0
        %s210 = scalar_select %p209, %s20, 0
        %s211 = sadd.s32 %s210, %s208
        %s212 = smul.addr %s206, 16
        %s213 = sadd.s32 %s211, %s212
        %s214 = smul.addr %s213, 4
        %s215 = scalar_lea.vmem %s0, %s214
        %s216 = smul.u32 16, %s18
      $region20: #{anynetx_forward.14} parent=15 // pred_fallthru
        _
      // Predicated region
      $region21: #{anynetx_forward.14} parent=15 // pred_check
        %p217 = pneg %p90
      $region22: #{anynetx_forward.14} parent=15 // pred_check_branch
        %219 = sbr.rel (%p217) target = $region24
      $region23: #{anynetx_forward.14} parent=15 // pred_region
        %s220 = smul.u32 9, %s20
        %p221 = scmp.lt.s32.totalorder %s17, 3
        %s222 = scalar_select %p221, %s17, 3
        %p223 = scmp.lt.s32.totalorder %s220, 8
        %s224 = scalar_select %p223, %s220, 8
        %p225 = scmp.lt.s32.totalorder %s19, 0
        %s226 = scalar_select %p225, %s19, 0
        %s227 = sadd.s32 %s226, %s224
        %s228 = smul.addr %s222, 9
        %s229 = sadd.s32 %s227, %s228
        %s230 = smul.addr %s229, 4
        %s231 = scalar_lea.vmem %s1, %s230
        %s232 = smul.u32 9, %s20
      $region24: #{anynetx_forward.14} parent=15 // pred_fallthru
        _
      // Predicated region
      $region25: #{anynetx_forward.14} parent=15 // pred_check
        %p233 = pneg %p118
      $region26: #{anynetx_forward.14} parent=15 // pred_check_branch
        %235 = sbr.rel (%p233) target = $region28
      $region27: #{anynetx_forward.14} parent=15 // pred_region
        %p236 = scmp.lt.s32.totalorder %s17, 3
        %s237 = scalar_select %p236, %s17, 3
        %p238 = scmp.lt.s32.totalorder %s19, 0
        %s239 = scalar_select %p238, %s19, 0
        %s240 = sadd.s32 %s239, %s237
        %s241 = scalar_lea.vmem %s2, %s240
      $region28: #{anynetx_forward.14} parent=15 // pred_fallthru
        _
      // Predicated region
      $region29: #{anynetx_forward.14} parent=15 // pred_check
        %p242 = pneg %p146
      $region30: #{anynetx_forward.14} parent=15 // pred_check_branch
        %244 = sbr.rel (%p242) target = $region32
      $region31: #{anynetx_forward.14} parent=15 // pred_region
        %p245 = scmp.lt.s32.totalorder %s17, 3
        %s246 = scalar_select %p245, %s17, 3
        %p247 = scmp.lt.s32.totalorder %s19, 0
        %s248 = scalar_select %p247, %s19, 0
        %s249 = sadd.s32 %s248, %s246
        %s250 = scalar_lea.vmem %s3, %s249
      $region32: #{anynetx_forward.14} parent=15 // pred_fallthru
        _
    $region16: #{anynetx_forward.14} parent=5 // pred_fallthru
      _
    %p251 = scmp.le.s32.totalorder 1, %s10
    %p252 = scmp.lt.s32.totalorder %s10, 5
    %p253 = pnand %p251, %p252
    %p254 = pneg %p253
    // Predicated region
    $region33: #{anynetx_forward.14} parent=5 // pred_check
      _
    $region34: #{anynetx_forward.14} parent=5 // pred_check_branch
      %256 = sbr.rel (%p253) target = $region36
    $region35: #{anynetx_forward.14} parent=5 // pred_region
      %s257 = ssub.s32 %s10, 1
      %s258 = smul.u32 16, %s22
      %p259 = scmp.lt.s32.totalorder %s21, 3
      %s260 = scalar_select %p259, %s21, 3
      %p261 = scmp.lt.s32.totalorder %s258, 15
      %s262 = scalar_select %p261, %s258, 15
      %p263 = scmp.lt.s32.totalorder %s24, 0
      %s264 = scalar_select %p263, %s24, 0
      %s265 = sadd.s32 %s264, %s262
      %s266 = smul.addr %s260, 16
      %s267 = sadd.s32 %s265, %s266
      %s268 = smul.addr %s267, 4
      %s269 = scalar_lea.vmem %s0, %s268
      %p270 = pneg %p66
      %p271 = pneg %p63
      %s272 = smul.u32 9, %s24
      %p273 = scmp.lt.s32.totalorder %s21, 3
      %s274 = scalar_select %p273, %s21, 3
      %p275 = scmp.lt.s32.totalorder %s272, 8
      %s276 = scalar_select %p275, %s272, 8
      %p277 = scmp.lt.s32.totalorder %s23, 0
      %s278 = scalar_select %p277, %s23, 0
      %s279 = sadd.s32 %s278, %s276
      %s280 = smul.addr %s274, 9
      %s281 = sadd.s32 %s279, %s280
      %s282 = smul.addr %s281, 4
      %s283 = scalar_lea.vmem %s1, %s282
      %p284 = pneg %p96
      %p285 = pneg %p93
      %p286 = scmp.lt.s32.totalorder %s21, 3
      %s287 = scalar_select %p286, %s21, 3
      %p288 = scmp.lt.s32.totalorder %s23, 0
      %s289 = scalar_select %p288, %s23, 0
      %s290 = sadd.s32 %s289, %s287
      %s291 = scalar_lea.vmem %s2, %s290
      %p292 = pneg %p124
      %p293 = pneg %p121
      %p294 = scmp.lt.s32.totalorder %s21, 3
      %s295 = scalar_select %p294, %s21, 3
      %p296 = scmp.lt.s32.totalorder %s23, 0
      %s297 = scalar_select %p296, %s23, 0
      %s298 = sadd.s32 %s297, %s295
      %s299 = scalar_lea.vmem %s3, %s298
      %p300 = pneg %p152
      %p301 = pneg %p149
      %p302 = pneg %p182
      %p303 = pneg %p179
      %s304 = smul.u32 16, %s22
      %p305 = scmp.lt.s32.totalorder %s21, 3
      %s306 = scalar_select %p305, %s21, 3
      %p307 = scmp.lt.s32.totalorder %s304, 15
      %s308 = scalar_select %p307, %s304, 15
      %p309 = scmp.lt.s32.totalorder %s23, 0
      %s310 = scalar_select %p309, %s23, 0
      %s311 = sadd.s32 %s310, %s308
      %s312 = smul.addr %s306, 16
      %s313 = sadd.s32 %s311, %s312
      %s314 = smul.addr %s313, 8
      %s315 = scalar_lea.vmem %s4, %s314
      %s316 = smul.u32 16, %s22
      %p317 = scmp.lt.s32.totalorder %s21, 3
      %s318 = scalar_select %p317, %s21, 3
      %p319 = scmp.lt.s32.totalorder %s316, 15
      %s320 = scalar_select %p319, %s316, 15
      %p321 = scmp.lt.s32.totalorder %s24, 0
      %s322 = scalar_select %p321, %s24, 0
      %s323 = sadd.s32 %s322, %s320
      %s324 = smul.addr %s318, 16
      %s325 = sadd.s32 %s323, %s324
      %s326 = smul.addr %s325, 4
      %s327 = scalar_lea.vmem %s0, %s326
      %s328 = smul.u32 16, %s22
      %s329 = smul.u32 9, %s24
      %p330 = scmp.lt.s32.totalorder %s21, 3
      %s331 = scalar_select %p330, %s21, 3
      %p332 = scmp.lt.s32.totalorder %s329, 8
      %s333 = scalar_select %p332, %s329, 8
      %p334 = scmp.lt.s32.totalorder %s23, 0
      %s335 = scalar_select %p334, %s23, 0
      %s336 = sadd.s32 %s335, %s333
      %s337 = smul.addr %s331, 9
      %s338 = sadd.s32 %s336, %s337
      %s339 = smul.addr %s338, 4
      %s340 = scalar_lea.vmem %s1, %s339
      %s341 = smul.u32 9, %s24
      %p342 = scmp.lt.s32.totalorder %s21, 3
      %s343 = scalar_select %p342, %s21, 3
      %p344 = scmp.lt.s32.totalorder %s23, 0
      %s345 = scalar_select %p344, %s23, 0
      %s346 = sadd.s32 %s345, %s343
      %s347 = scalar_lea.vmem %s2, %s346
      %p348 = scmp.lt.s32.totalorder %s21, 3
      %s349 = scalar_select %p348, %s21, 3
      %p350 = scmp.lt.s32.totalorder %s23, 0
      %s351 = scalar_select %p350, %s23, 0
      %s352 = sadd.s32 %s351, %s349
      %s353 = scalar_lea.vmem %s3, %s352
      %s354 = smul.u32 16, %s22
      %p355 = scmp.lt.s32.totalorder %s21, 3
      %s356 = scalar_select %p355, %s21, 3
      %p357 = scmp.lt.s32.totalorder %s354, 15
      %s358 = scalar_select %p357, %s354, 15
      %p359 = scmp.lt.s32.totalorder %s23, 0
      %s360 = scalar_select %p359, %s23, 0
      %s361 = sadd.s32 %s360, %s358
      %s362 = smul.addr %s356, 16
      %s363 = sadd.s32 %s361, %s362
      %s364 = smul.addr %s363, 8
      %s365 = scalar_lea.vmem %s4, %s364
      %s366 = smul.u32 16, %s22
      %p368 = scmp.eq.s32.totalorder %s24, 0
      // Predicated region
      $region37: #{anynetx_forward.14} parent=35 // pred_check
        %p369 = pneg %p368
      $region38: #{anynetx_forward.14} parent=35 // pred_check_branch
        %371 = sbr.rel (%p369) target = $region40
      $region39: #{anynetx_forward.14} parent=35 // pred_region
        %vm372 = vcmask 64512
        %373 = vst.msk [vmem:[#allocation2] sm:$0xff] %vm372, 0.0
        %374 = vst.msk [vmem:[#allocation2 + $0x8] sm:$0xff] %vm372, 0.0
        %375 = vst.msk [vmem:[#allocation2 + $0x10] sm:$0xff] %vm372, 0.0
        %376 = vst.msk [vmem:[#allocation2 + $0x18] sm:$0xff] %vm372, 0.0
        %377 = vst.msk [vmem:[#allocation2 + $0x20] sm:$0xff] %vm372, 0.0
        %378 = vst.msk [vmem:[#allocation2 + $0x28] sm:$0xff] %vm372, 0.0
        %379 = vst.msk [vmem:[#allocation2 + $0x30] sm:$0xff] %vm372, 0.0
        %380 = vst.msk [vmem:[#allocation2 + $0x38] sm:$0xff] %vm372, 0.0
        %381 = vst.msk [vmem:[#allocation2 + $0x40] sm:$0xff] %vm372, 0.0
        %382 = vst.msk [vmem:[#allocation2 + $0x48] sm:$0xff] %vm372, 0.0
        %383 = vst.msk [vmem:[#allocation2 + $0x50] sm:$0xff] %vm372, 0.0
        %384 = vst.msk [vmem:[#allocation2 + $0x58] sm:$0xff] %vm372, 0.0
        %385 = vst.msk [vmem:[#allocation2 + $0x60] sm:$0xff] %vm372, 0.0
        %386 = vst.msk [vmem:[#allocation2 + $0x68] sm:$0xff] %vm372, 0.0
        %387 = vst.msk [vmem:[#allocation2 + $0x70] sm:$0xff] %vm372, 0.0
        %388 = vst.msk [vmem:[#allocation2 + $0x78] sm:$0xff] %vm372, 0.0
      $region40: #{anynetx_forward.14} parent=35 // pred_fallthru
        _
      %v389 = vld [vmem:[%s327] sm:$0xf]
      %v390 = vld [vmem:[%s327 + $0x4] sm:$0xf]
      %v391 = vld [vmem:[%s327 + $0x8] sm:$0xf]
      %v392 = vld [vmem:[%s327 + $0xc] sm:$0xf]
      %v393 = vld [vmem:[%s327 + $0x10] sm:$0xf]
      %v394 = vld [vmem:[%s327 + $0x14] sm:$0xf]
      %v395 = vld [vmem:[%s327 + $0x18] sm:$0xf]
      %v396 = vld [vmem:[%s327 + $0x1c] sm:$0xf]
      %v397 = vld [vmem:[%s327 + $0x20] sm:$0xf]
      %v398 = vld [vmem:[%s327 + $0x24] sm:$0xf]
      %v399 = vld [vmem:[%s327 + $0x28] sm:$0xf]
      %v400 = vld [vmem:[%s327 + $0x2c] sm:$0xf]
      %v401 = vld [vmem:[%s327 + $0x30] sm:$0xf]
      %v402 = vld [vmem:[%s327 + $0x34] sm:$0xf]
      %v403 = vld [vmem:[%s327 + $0x38] sm:$0xf]
      %v404 = vld [vmem:[%s327 + $0x3c] sm:$0xf]
      %v405 = vld [vmem:[#allocation2] sm:$0xff]
      %v406 = vld [vmem:[#allocation2 + $0x8] sm:$0xff]
      %v407 = vld [vmem:[#allocation2 + $0x10] sm:$0xff]
      %v408 = vld [vmem:[#allocation2 + $0x18] sm:$0xff]
      %v409 = vld [vmem:[#allocation2 + $0x20] sm:$0xff]
      %v410 = vld [vmem:[#allocation2 + $0x28] sm:$0xff]
      %v411 = vld [vmem:[#allocation2 + $0x30] sm:$0xff]
      %v412 = vld [vmem:[#allocation2 + $0x38] sm:$0xff]
      %v413 = vld [vmem:[#allocation2 + $0x40] sm:$0xff]
      %v414 = vld [vmem:[#allocation2 + $0x48] sm:$0xff]
      %v415 = vld [vmem:[#allocation2 + $0x50] sm:$0xff]
      %v416 = vld [vmem:[#allocation2 + $0x58] sm:$0xff]
      %v417 = vld [vmem:[#allocation2 + $0x60] sm:$0xff]
      %v418 = vld [vmem:[#allocation2 + $0x68] sm:$0xff]
      %v419 = vld [vmem:[#allocation2 + $0x70] sm:$0xff]
      %v420 = vld [vmem:[#allocation2 + $0x78] sm:$0xff]
      %v421 = vld [vmem:[%s340] sm:$0xf]
      %v422 = vld [vmem:[%s340 + $0x4] sm:$0xf]
      %v423 = vld [vmem:[%s340 + $0x8] sm:$0xf]
      %v424 = vld [vmem:[%s340 + $0xc] sm:$0xf]
      %v425 = vld [vmem:[%s340 + $0x10] sm:$0xf]
      %v426 = vld [vmem:[%s340 + $0x14] sm:$0xf]
      %v427 = vld [vmem:[%s340 + $0x18] sm:$0xf]
      %v428 = vld [vmem:[%s340 + $0x1c] sm:$0xf]
      %v429 = vld [vmem:[%s340 + $0x20] sm:$0xf]
      %v446 = vunpack.c.l.b16 %v389
      %v447 = vunpack.c.l.b16 %v390
      %v448 = vunpack.c.l.b16 %v391
      %v449 = vunpack.c.l.b16 %v392
      %v450 = vunpack.c.l.b16 %v393
      %v451 = vunpack.c.l.b16 %v394
      %v452 = vunpack.c.l.b16 %v395
      %v453 = vunpack.c.l.b16 %v396
      %v454 = vunpack.c.l.b16 %v397
      %v455 = vunpack.c.l.b16 %v398
      %v456 = vunpack.c.l.b16 %v399
      %v457 = vunpack.c.l.b16 %v400
      %v458 = vunpack.c.l.b16 %v401
      %v459 = vunpack.c.l.b16 %v402
      %v460 = vunpack.c.l.b16 %v403
      %v461 = vunpack.c.l.b16 %v404
      %v462 = vpack.c.b16 %v447, %v446
      %v463 = vpack.c.b16 %v449, %v448
      %v464 = vpack.c.b16 %v451, %v450
      %v465 = vpack.c.b16 %v453, %v452
      %v466 = vpack.c.b16 %v455, %v454
      %v467 = vpack.c.b16 %v457, %v456
      %v468 = vpack.c.b16 %v459, %v458
      %v469 = vpack.c.b16 %v461, %v460
      %v479 = vunpack.c.l.b16 %v421
      %v480 = vunpack.c.l.b16 %v422
      %v481 = vunpack.c.l.b16 %v423
      %v482 = vunpack.c.l.b16 %v424
      %v483 = vunpack.c.l.b16 %v425
      %v484 = vunpack.c.l.b16 %v426
      %v485 = vunpack.c.l.b16 %v427
      %v486 = vunpack.c.l.b16 %v428
      %v487 = vunpack.c.l.b16 %v429
      %v488 = vpack.c.b16 %v480, %v479
      %v489 = vpack.c.b16 %v482, %v481
      %v490 = vpack.c.b16 %v484, %v483
      %v491 = vpack.c.b16 %v486, %v485
      %v492 = vpack.c.b16 %v487, %v487
      %vm497 = vcmask 588800
      %v499 = vsel %vm497, %v462, 0
      %v502 = vsel %vm497, %v463, 0
      %v505 = vsel %vm497, %v464, 0
      %v508 = vsel %vm497, %v465, 0
      %v511 = vsel %vm497, %v466, 0
      %v514 = vsel %vm497, %v467, 0
      %v517 = vsel %vm497, %v468, 0
      %v520 = vsel %vm497, %v469, 0
      %vm522 = vcmask 1043456
      %v524 = vsel %vm522, %v492, 0
      %526 = vmatprep.subr.bf16.mxu0 0
      %527 = vmatpush1.bf16.msra.mxu0 %v488
      %528 = vmatprep.subr.bf16.mxu0 0
      %529 = vmatpush1.bf16.msra.mxu0 %v489
      %530 = vmatprep.subr.bf16.mxu0 0
      %531 = vmatpush1.bf16.msra.mxu0 %v490
      %532 = vmatprep.subr.bf16.mxu0 0
      %533 = vmatpush1.bf16.msra.mxu0 %v491
      %534 = vmatprep.subr.bf16.mxu0 0
      %535 = vmatpush1.bf16.msra.mxu0 %v524
      %536 = vmatprep.subr.bf16.mxu0 0
      %537 = vmatpush1.bf16.msra.mxu0 0
      %538 = vmatprep.subr.bf16.mxu0 0
      %539 = vmatpush1.bf16.msra.mxu0 0
      %540 = vmatprep.subr.bf16.mxu0 0
      %541 = vmatpush1.bf16.msra.mxu0 0
      %542 = vmatprep.subr.bf16.mxu0 0
      %543 = vmatpush1.bf16.msra.mxu0 0
      %544 = vmatprep.subr.bf16.mxu0 0
      %545 = vmatpush1.bf16.msra.mxu0 0
      %546 = vmatprep.subr.bf16.mxu0 0
      %547 = vmatpush1.bf16.msra.mxu0 0
      %548 = vmatprep.subr.bf16.mxu0 0
      %549 = vmatpush1.bf16.msra.mxu0 0
      %550 = vmatprep.subr.bf16.mxu0 0
      %551 = vmatpush1.bf16.msra.mxu0 0
      %552 = vmatprep.subr.bf16.mxu0 0
      %553 = vmatpush1.bf16.msra.mxu0 0
      %554 = vmatprep.subr.bf16.mxu0 0
      %555 = vmatpush1.bf16.msra.mxu0 0
      %556 = vmatprep.subr.bf16.mxu0 0
      %557 = vmatpush1.bf16.msra.mxu0 0
      %558 = vmatprep.mubr.bf16.mxu0 0
      %559 = vmatmul.mubr.bf16.gmra.mrb[0].mxu0 %v499
      %v560 = vpop.f32.mrb[0].mxu0
      %v561 = vadd.f32 0.0, %v560
      %v562 = vpop.f32.mrb[0].mxu0
      %v563 = vpop.f32.mrb[0].mxu0
      %v564 = vadd.f32 0.0, %v563
      %v565 = vpop.f32.mrb[0].mxu0
      %566 = vmatprep.mubr.bf16.mxu0 0
      %567 = vmatmul.mubr.bf16.gmra.mrb[0].mxu0 %v502
      %v568 = vpop.f32.mrb[0].mxu0
      %v569 = vadd.f32 0.0, %v568
      %v570 = vpop.f32.mrb[0].mxu0
      %v571 = vpop.f32.mrb[0].mxu0
      %v572 = vadd.f32 0.0, %v571
      %v573 = vpop.f32.mrb[0].mxu0
      %574 = vmatprep.mubr.bf16.mxu0 0
      %575 = vmatmul.mubr.bf16.gmra.mrb[0].mxu0 %v505
      %v576 = vpop.f32.mrb[0].mxu0
      %v577 = vadd.f32 0.0, %v576
      %v578 = vpop.f32.mrb[0].mxu0
      %v579 = vpop.f32.mrb[0].mxu0
      %v580 = vadd.f32 0.0, %v579
      %v581 = vpop.f32.mrb[0].mxu0
      %582 = vmatprep.mubr.bf16.mxu0 0
      %583 = vmatmul.mubr.bf16.gmra.mrb[0].mxu0 %v508
      %v584 = vpop.f32.mrb[0].mxu0
      %v585 = vadd.f32 0.0, %v584
      %v586 = vpop.f32.mrb[0].mxu0
      %v587 = vpop.f32.mrb[0].mxu0
      %v588 = vadd.f32 0.0, %v587
      %v589 = vpop.f32.mrb[0].mxu0
      %590 = vmatprep.mubr.bf16.mxu0 0
      %591 = vmatmul.mubr.bf16.gmra.mrb[0].mxu0 %v511
      %v592 = vpop.f32.mrb[0].mxu0
      %v593 = vadd.f32 0.0, %v592
      %v594 = vpop.f32.mrb[0].mxu0
      %v595 = vpop.f32.mrb[0].mxu0
      %v596 = vadd.f32 0.0, %v595
      %v597 = vpop.f32.mrb[0].mxu0
      %598 = vmatprep.mubr.bf16.mxu0 0
      %599 = vmatmul.mubr.bf16.gmra.mrb[0].mxu0 %v514
      %v600 = vpop.f32.mrb[0].mxu0
      %v601 = vadd.f32 0.0, %v600
      %v602 = vpop.f32.mrb[0].mxu0
      %v603 = vpop.f32.mrb[0].mxu0
      %v604 = vadd.f32 0.0, %v603
      %v605 = vpop.f32.mrb[0].mxu0
      %606 = vmatprep.mubr.bf16.mxu0 0
      %607 = vmatmul.mubr.bf16.gmra.mrb[0].mxu0 %v517
      %v608 = vpop.f32.mrb[0].mxu0
      %v609 = vadd.f32 0.0, %v608
      %v610 = vpop.f32.mrb[0].mxu0
      %v611 = vpop.f32.mrb[0].mxu0
      %v612 = vadd.f32 0.0, %v611
      %v613 = vpop.f32.mrb[0].mxu0
      %614 = vmatprep.mubr.bf16.mxu0 0
      %615 = vmatmul.mubr.bf16.gmra.mrb[0].mxu0 %v520
      %v616 = vpop.f32.mrb[0].mxu0
      %v617 = vadd.f32 0.0, %v616
      %v618 = vpop.f32.mrb[0].mxu0
      %v619 = vpop.f32.mrb[0].mxu0
      %v620 = vadd.f32 0.0, %v619
      %v621 = vpop.f32.mrb[0].mxu0
      %622 = vdwg.mxu0
      %v623 = vadd.f32 %v405, %v561
      %v624 = vadd.f32 %v406, %v564
      %v625 = vadd.f32 %v407, %v569
      %v626 = vadd.f32 %v408, %v572
      %v627 = vadd.f32 %v409, %v577
      %v628 = vadd.f32 %v410, %v580
      %v629 = vadd.f32 %v411, %v585
      %v630 = vadd.f32 %v412, %v588
      %v631 = vadd.f32 %v413, %v593
      %v632 = vadd.f32 %v414, %v596
      %v633 = vadd.f32 %v415, %v601
      %v634 = vadd.f32 %v416, %v604
      %v635 = vadd.f32 %v417, %v609
      %v636 = vadd.f32 %v418, %v612
      %v637 = vadd.f32 %v419, %v617
      %v638 = vadd.f32 %v420, %v620
      %vm639 = vcmask 64512
      %640 = vst.msk [vmem:[#allocation2] sm:$0xff] %vm639, %v623
      %641 = vst.msk [vmem:[#allocation2 + $0x8] sm:$0xff] %vm639, %v624
      %642 = vst.msk [vmem:[#allocation2 + $0x10] sm:$0xff] %vm639, %v625
      %643 = vst.msk [vmem:[#allocation2 + $0x18] sm:$0xff] %vm639, %v626
      %644 = vst.msk [vmem:[#allocation2 + $0x20] sm:$0xff] %vm639, %v627
      %645 = vst.msk [vmem:[#allocation2 + $0x28] sm:$0xff] %vm639, %v628
      %646 = vst.msk [vmem:[#allocation2 + $0x30] sm:$0xff] %vm639, %v629
      %647 = vst.msk [vmem:[#allocation2 + $0x38] sm:$0xff] %vm639, %v630
      %648 = vst.msk [vmem:[#allocation2 + $0x40] sm:$0xff] %vm639, %v631
      %649 = vst.msk [vmem:[#allocation2 + $0x48] sm:$0xff] %vm639, %v632
      %650 = vst.msk [vmem:[#allocation2 + $0x50] sm:$0xff] %vm639, %v633
      %651 = vst.msk [vmem:[#allocation2 + $0x58] sm:$0xff] %vm639, %v634
      %652 = vst.msk [vmem:[#allocation2 + $0x60] sm:$0xff] %vm639, %v635
      %653 = vst.msk [vmem:[#allocation2 + $0x68] sm:$0xff] %vm639, %v636
      %654 = vst.msk [vmem:[#allocation2 + $0x70] sm:$0xff] %vm639, %v637
      %655 = vst.msk [vmem:[#allocation2 + $0x78] sm:$0xff] %vm639, %v638
      // Predicated region
      $region41: #{anynetx_forward.14} parent=35 // pred_check
        %p656 = pneg %p368
      $region42: #{anynetx_forward.14} parent=35 // pred_check_branch
        %658 = sbr.rel (%p656) target = $region44
      $region43: #{anynetx_forward.14} parent=35 // pred_region
        %v659 = vld [vmem:[#allocation2] sm:$0xff]
        %v660 = vld [vmem:[#allocation2 + $0x8] sm:$0xff]
        %v661 = vld [vmem:[#allocation2 + $0x10] sm:$0xff]
        %v662 = vld [vmem:[#allocation2 + $0x18] sm:$0xff]
        %v663 = vld [vmem:[#allocation2 + $0x20] sm:$0xff]
        %v664 = vld [vmem:[#allocation2 + $0x28] sm:$0xff]
        %v665 = vld [vmem:[#allocation2 + $0x30] sm:$0xff]
        %v666 = vld [vmem:[#allocation2 + $0x38] sm:$0xff]
        %v667 = vld [vmem:[#allocation2 + $0x40] sm:$0xff]
        %v668 = vld [vmem:[#allocation2 + $0x48] sm:$0xff]
        %v669 = vld [vmem:[#allocation2 + $0x50] sm:$0xff]
        %v670 = vld [vmem:[#allocation2 + $0x58] sm:$0xff]
        %v671 = vld [vmem:[#allocation2 + $0x60] sm:$0xff]
        %v672 = vld [vmem:[#allocation2 + $0x68] sm:$0xff]
        %v673 = vld [vmem:[#allocation2 + $0x70] sm:$0xff]
        %v674 = vld [vmem:[#allocation2 + $0x78] sm:$0xff]
        %v675 = vld [vmem:[%s347] sm:$0x1]
        %v677 = vlaneseq
        %v678 = vshrl.u32 %v677, 7
        %v679 = vsub.s32 0, %v678
        %v680 = vrot.slane %v675, %v679
        %v682 = vmul.f32 %v659, %v680
        %v683 = vmul.f32 %v660, %v680
        %v684 = vmul.f32 %v661, %v680
        %v685 = vmul.f32 %v662, %v680
        %v686 = vmul.f32 %v663, %v680
        %v687 = vmul.f32 %v664, %v680
        %v688 = vmul.f32 %v665, %v680
        %v689 = vmul.f32 %v666, %v680
        %v690 = vmul.f32 %v667, %v680
        %v691 = vmul.f32 %v668, %v680
        %v692 = vmul.f32 %v669, %v680
        %v693 = vmul.f32 %v670, %v680
        %v694 = vmul.f32 %v671, %v680
        %v695 = vmul.f32 %v672, %v680
        %v696 = vmul.f32 %v673, %v680
        %v697 = vmul.f32 %v674, %v680
        %v698 = vld [vmem:[%s353] sm:$0x1]
        %v700 = vlaneseq
        %v701 = vshrl.u32 %v700, 7
        %v702 = vsub.s32 0, %v701
        %v703 = vrot.slane %v698, %v702
        %v705 = vadd.f32 %v682, %v703
        %v706 = vadd.f32 %v683, %v703
        %v707 = vadd.f32 %v684, %v703
        %v708 = vadd.f32 %v685, %v703
        %v709 = vadd.f32 %v686, %v703
        %v710 = vadd.f32 %v687, %v703
        %v711 = vadd.f32 %v688, %v703
        %v712 = vadd.f32 %v689, %v703
        %v713 = vadd.f32 %v690, %v703
        %v714 = vadd.f32 %v691, %v703
        %v715 = vadd.f32 %v692, %v703
        %v716 = vadd.f32 %v693, %v703
        %v717 = vadd.f32 %v694, %v703
        %v718 = vadd.f32 %v695, %v703
        %v719 = vadd.f32 %v696, %v703
        %v720 = vadd.f32 %v697, %v703
        %v721 = vmax.f32 %v705, 0.0
        %v722 = vmax.f32 %v706, 0.0
        %v723 = vmax.f32 %v707, 0.0
        %v724 = vmax.f32 %v708, 0.0
        %v725 = vmax.f32 %v709, 0.0
        %v726 = vmax.f32 %v710, 0.0
        %v727 = vmax.f32 %v711, 0.0
        %v728 = vmax.f32 %v712, 0.0
        %v729 = vmax.f32 %v713, 0.0
        %v730 = vmax.f32 %v714, 0.0
        %v731 = vmax.f32 %v715, 0.0
        %v732 = vmax.f32 %v716, 0.0
        %v733 = vmax.f32 %v717, 0.0
        %v734 = vmax.f32 %v718, 0.0
        %v735 = vmax.f32 %v719, 0.0
        %v736 = vmax.f32 %v720, 0.0
        %737 = vst.msk [vmem:[%s365] sm:$0xff] %vm639, %v721
        %738 = vst.msk [vmem:[%s365 + $0x8] sm:$0xff] %vm639, %v722
        %739 = vst.msk [vmem:[%s365 + $0x10] sm:$0xff] %vm639, %v723
        %740 = vst.msk [vmem:[%s365 + $0x18] sm:$0xff] %vm639, %v724
        %741 = vst.msk [vmem:[%s365 + $0x20] sm:$0xff] %vm639, %v725
        %742 = vst.msk [vmem:[%s365 + $0x28] sm:$0xff] %vm639, %v726
        %743 = vst.msk [vmem:[%s365 + $0x30] sm:$0xff] %vm639, %v727
        %744 = vst.msk [vmem:[%s365 + $0x38] sm:$0xff] %vm639, %v728
        %745 = vst.msk [vmem:[%s365 + $0x40] sm:$0xff] %vm639, %v729
        %746 = vst.msk [vmem:[%s365 + $0x48] sm:$0xff] %vm639, %v730
        %747 = vst.msk [vmem:[%s365 + $0x50] sm:$0xff] %vm639, %v731
        %748 = vst.msk [vmem:[%s365 + $0x58] sm:$0xff] %vm639, %v732
        %749 = vst.msk [vmem:[%s365 + $0x60] sm:$0xff] %vm639, %v733
        %750 = vst.msk [vmem:[%s365 + $0x68] sm:$0xff] %vm639, %v734
        %751 = vst.msk [vmem:[%s365 + $0x70] sm:$0xff] %vm639, %v735
        %752 = vst.msk [vmem:[%s365 + $0x78] sm:$0xff] %vm639, %v736
      $region44: #{anynetx_forward.14} parent=35 // pred_fallthru
        _
      %s753 = smul.u32 16, %s22
      %p754 = scmp.lt.s32.totalorder %s21, 3
      %s755 = scalar_select %p754, %s21, 3
      %p756 = scmp.lt.s32.totalorder %s753, 15
      %s757 = scalar_select %p756, %s753, 15
      %p758 = scmp.lt.s32.totalorder %s23, 0
      %s759 = scalar_select %p758, %s23, 0
      %s760 = sadd.s32 %s759, %s757
      %s761 = smul.addr %s755, 16
      %s762 = sadd.s32 %s760, %s761
      %s763 = smul.addr %s762, 8
      %s764 = scalar_lea.vmem %s4, %s763
      // Predicated region
      $region45: #{anynetx_forward.14} parent=35 // pred_check
        %p765 = pneg %p179
      $region46: #{anynetx_forward.14} parent=35 // pred_check_branch
        %767 = sbr.rel (%p765) target = $region48
      $region47: #{anynetx_forward.14} parent=35 // pred_region
        %s768 = smul.u32 16, %s22
      $region48: #{anynetx_forward.14} parent=35 // pred_fallthru
        _
    $region36: #{anynetx_forward.14} parent=5 // pred_fallthru
      _
    %p769 = scmp.le.s32.totalorder 2, %s10
    // Predicated region
    $region49: #{anynetx_forward.14} parent=5 // pred_check
      %p770 = pneg %p769
    $region50: #{anynetx_forward.14} parent=5 // pred_check_branch
      %772 = sbr.rel (%p770) target = $region52
    $region51: #{anynetx_forward.14} parent=5 // pred_region
      %s773 = ssub.s32 %s10, 2
      // Predicated region
      $region53: #{anynetx_forward.14} parent=51 // pred_check
        %p774 = pneg %p185
      $region54: #{anynetx_forward.14} parent=51 // pred_check_branch
        %776 = sbr.rel (%p774) target = $region56
      $region55: #{anynetx_forward.14} parent=51 // pred_region
        %s777 = smul.u32 16, %s26
        %p778 = scmp.lt.s32.totalorder %s25, 3
        %s779 = scalar_select %p778, %s25, 3
        %p780 = scmp.lt.s32.totalorder %s777, 15
        %s781 = scalar_select %p780, %s777, 15
        %p782 = scmp.lt.s32.totalorder %s27, 0
        %s783 = scalar_select %p782, %s27, 0
        %s784 = sadd.s32 %s783, %s781
        %s785 = smul.addr %s779, 16
        %s786 = sadd.s32 %s784, %s785
        %s787 = smul.addr %s786, 8
        %s788 = scalar_lea.vmem %s4, %s787
      $region56: #{anynetx_forward.14} parent=51 // pred_fallthru
        _
    $region52: #{anynetx_forward.14} parent=5 // pred_fallthru
      _
  $region6: #{anynetx_forward.14} parent=0 // loop_footer
    %s14 = sadd.s32 1, %s10
  $region7: #{anynetx_forward.14} parent=0 // loop_footer_branch
    %9 = sbr.rel target = $region3
  $region8: #{anynetx_forward.14} parent=0 // loop_exit
    _

// kernel: anynetx_forward.15
$region0: #{anynetx_forward.15}
  #allocation0 [shape = 'u32[]', space=smem, size = 0x4, offset = 0x4, fixed_abs, tag = 'smem constant byte address 0x4 - core index']
  #allocation1 [shape = 'u32[144,128]{1,0:T(1,128)}', space=vmem, size = 0x12000, scoped, tag = 'internal scratch']
  %s0 = inlined_call_operand.vmem [shape: f32[2,64,128], index: 0, kind: input, shape index: {}]
  %s1 = inlined_call_operand.vmem [shape: bf16[128,128], index: 1, kind: input, shape index: {}]
  %s2 = inlined_call_operand.vmem [shape: f32[1,128], index: 2, kind: input, shape index: {}]
  %s3 = inlined_call_operand.vmem [shape: bf16[128,128], index: 3, kind: input, shape index: {}]
  %s4 = inlined_call_operand.vmem [shape: f32[1,128], index: 4, kind: input, shape index: {}]
  %s5 = inlined_call_operand.vmem [shape: f32[2,128], index: 5, kind: output, shape index: {}]
  %s6 = sld [smem:[#allocation0]]
  $region30: #{anynetx_forward.15} parent=0
    _
  %s8 = ssub.s32 1, %s6
  %s9 = scalar_select 0, %s8, %s6
  // Predicated region
  $region2: #{anynetx_forward.15} parent=0 // pred_check
    _
  $region3: #{anynetx_forward.15} parent=0 // pred_check_branch
    %11 = sbr.rel (0) target = $region5
  $region4: #{anynetx_forward.15} parent=0 // pred_region
    _
  $region5: #{anynetx_forward.15} parent=0 // pred_fallthru
    _
  // Predicated region
  $region6: #{anynetx_forward.15} parent=0 // pred_check
    _
  $region7: #{anynetx_forward.15} parent=0 // pred_check_branch
    %13 = sbr.rel (0) target = $region9
  $region8: #{anynetx_forward.15} parent=0 // pred_region
    _
  $region9: #{anynetx_forward.15} parent=0 // pred_fallthru
    _
  // Predicated region
  $region10: #{anynetx_forward.15} parent=0 // pred_check
    _
  $region11: #{anynetx_forward.15} parent=0 // pred_check_branch
    %15 = sbr.rel (0) target = $region13
  $region12: #{anynetx_forward.15} parent=0 // pred_region
    _
  $region13: #{anynetx_forward.15} parent=0 // pred_fallthru
    _
  // Predicated region
  $region14: #{anynetx_forward.15} parent=0 // pred_check
    _
  $region15: #{anynetx_forward.15} parent=0 // pred_check_branch
    %17 = sbr.rel (0) target = $region17
  $region16: #{anynetx_forward.15} parent=0 // pred_region
    _
  $region17: #{anynetx_forward.15} parent=0 // pred_fallthru
    _
  // Predicated region
  $region18: #{anynetx_forward.15} parent=0 // pred_check
    _
  $region19: #{anynetx_forward.15} parent=0 // pred_check_branch
    %19 = sbr.rel (0) target = $region21
  $region20: #{anynetx_forward.15} parent=0 // pred_region
    _
  $region21: #{anynetx_forward.15} parent=0 // pred_fallthru
    _
  %v21 = vld [vmem:[%s0] sm:$0xff]
  %v22 = vld [vmem:[%s0 + $0x8] sm:$0xff]
  %v23 = vld [vmem:[%s0 + $0x10] sm:$0xff]
  %v24 = vld [vmem:[%s0 + $0x18] sm:$0xff]
  %v25 = vld [vmem:[%s0 + $0x20] sm:$0xff]
  %v26 = vld [vmem:[%s0 + $0x28] sm:$0xff]
  %v27 = vld [vmem:[%s0 + $0x30] sm:$0xff]
  %v28 = vld [vmem:[%s0 + $0x38] sm:$0xff]
  %v29 = vld [vmem:[%s0 + $0x40] sm:$0xff]
  %v30 = vld [vmem:[%s0 + $0x48] sm:$0xff]
  %v31 = vld [vmem:[%s0 + $0x50] sm:$0xff]
  %v32 = vld [vmem:[%s0 + $0x58] sm:$0xff]
  %v33 = vld [vmem:[%s0 + $0x60] sm:$0xff]
  %v34 = vld [vmem:[%s0 + $0x68] sm:$0xff]
  %v35 = vld [vmem:[%s0 + $0x70] sm:$0xff]
  %v36 = vld [vmem:[%s0 + $0x78] sm:$0xff]
  %v37 = vadd.f32 %v21, %v22
  %v38 = vadd.f32 %v37, %v23
  %v39 = vadd.f32 %v38, %v24
  %v40 = vadd.f32 %v39, %v25
  %v41 = vadd.f32 %v40, %v26
  %v42 = vadd.f32 %v41, %v27
  %v43 = vadd.f32 %v42, %v28
  %v44 = vrot.slane %v43, 4
  %v45 = vadd.f32 %v43, %v44
  %v46 = vrot.slane %v45, 2
  %v47 = vadd.f32 %v45, %v46
  %v48 = vrot.slane %v47, 1
  %v49 = vadd.f32 %v47, %v48
  %v50 = vadd.f32 %v29, %v30
  %v51 = vadd.f32 %v50, %v31
  %v52 = vadd.f32 %v51, %v32
  %v53 = vadd.f32 %v52, %v33
  %v54 = vadd.f32 %v53, %v34
  %v55 = vadd.f32 %v54, %v35
  %v56 = vadd.f32 %v55, %v36
  %v57 = vrot.slane %v56, 4
  %v58 = vadd.f32 %v56, %v57
  %v59 = vrot.slane %v58, 2
  %v60 = vadd.f32 %v58, %v59
  %v61 = vrot.slane %v60, 1
  %v62 = vadd.f32 %v60, %v61
  %v63 = vrcp.pop 64.0
  %v64 = vmul.f32 %v49, %v63
  %v65 = vmul.f32 %v62, %v63
  %v66 = vpack.c.bf16 %v64, %v64
  %v67 = vpack.c.bf16 %v65, %v65
  %v68 = vld [vmem:[%s1] sm:$0xf]
  %v69 = vld [vmem:[%s1 + $0x4] sm:$0xf]
  %v70 = vld [vmem:[%s1 + $0x8] sm:$0xf]
  %v71 = vld [vmem:[%s1 + $0xc] sm:$0xf]
  %v72 = vld [vmem:[%s1 + $0x10] sm:$0xf]
  %v73 = vld [vmem:[%s1 + $0x14] sm:$0xf]
  %v74 = vld [vmem:[%s1 + $0x18] sm:$0xf]
  %v75 = vld [vmem:[%s1 + $0x1c] sm:$0xf]
  %v76 = vld [vmem:[%s1 + $0x20] sm:$0xf]
  %v77 = vld [vmem:[%s1 + $0x24] sm:$0xf]
  %v78 = vld [vmem:[%s1 + $0x28] sm:$0xf]
  %v79 = vld [vmem:[%s1 + $0x2c] sm:$0xf]
  %v80 = vld [vmem:[%s1 + $0x30] sm:$0xf]
  %v81 = vld [vmem:[%s1 + $0x34] sm:$0xf]
  %v82 = vld [vmem:[%s1 + $0x38] sm:$0xf]
  %v83 = vld [vmem:[%s1 + $0x3c] sm:$0xf]
  %v84 = vld [vmem:[%s2] sm:$0x1]
  %v86 = vlaneseq
  %v87 = vshrl.u32 %v86, 7
  %v88 = vsub.s32 0, %v87
  %v89 = vrot.slane %v84, %v88
  %v93 = vunpack.c.l.b16 %v66
  %v94 = vunpack.c.l.b16 %v67
  %vm95 = vcmask 1041409
  %v96 = vsel %vm95, %v94, %v93
  %v97 = vpack.c.b16 %v96, %v96
  %v115 = vunpack.c.l.b16 %v68
  %v116 = vunpack.c.l.b16 %v69
  %v117 = vunpack.c.l.b16 %v70
  %v118 = vunpack.c.l.b16 %v71
  %v119 = vunpack.c.l.b16 %v72
  %v120 = vunpack.c.l.b16 %v73
  %v121 = vunpack.c.l.b16 %v74
  %v122 = vunpack.c.l.b16 %v75
  %v123 = vunpack.c.l.b16 %v76
  %v124 = vunpack.c.l.b16 %v77
  %v125 = vunpack.c.l.b16 %v78
  %v126 = vunpack.c.l.b16 %v79
  %v127 = vunpack.c.l.b16 %v80
  %v128 = vunpack.c.l.b16 %v81
  %v129 = vunpack.c.l.b16 %v82
  %v130 = vunpack.c.l.b16 %v83
  %v131 = vpack.c.b16 %v116, %v115
  %v132 = vpack.c.b16 %v118, %v117
  %v133 = vpack.c.b16 %v120, %v119
  %v134 = vpack.c.b16 %v122, %v121
  %v135 = vpack.c.b16 %v124, %v123
  %v136 = vpack.c.b16 %v126, %v125
  %v137 = vpack.c.b16 %v128, %v127
  %v138 = vpack.c.b16 %v130, %v129
  %147 = vmatprep.subr.bf16.mxu0 0
  %148 = vmatpush1.bf16.msra.mxu0 %v131
  %149 = vmatprep.subr.bf16.mxu0 0
  %150 = vmatpush1.bf16.msra.mxu0 %v132
  %151 = vmatprep.subr.bf16.mxu0 0
  %152 = vmatpush1.bf16.msra.mxu0 %v133
  %153 = vmatprep.subr.bf16.mxu0 0
  %154 = vmatpush1.bf16.msra.mxu0 %v134
  %155 = vmatprep.subr.bf16.mxu0 0
  %156 = vmatpush1.bf16.msra.mxu0 %v135
  %157 = vmatprep.subr.bf16.mxu0 0
  %158 = vmatpush1.bf16.msra.mxu0 %v136
  %159 = vmatprep.subr.bf16.mxu0 0
  %160 = vmatpush1.bf16.msra.mxu0 %v137
  %161 = vmatprep.subr.bf16.mxu0 0
  %162 = vmatpush1.bf16.msra.mxu0 %v138
  %163 = vmatprep.subr.bf16.mxu0 0
  %164 = vmatpush1.bf16.msra.mxu0 0
  %165 = vmatprep.subr.bf16.mxu0 0
  %166 = vmatpush1.bf16.msra.mxu0 0
  %167 = vmatprep.subr.bf16.mxu0 0
  %168 = vmatpush1.bf16.msra.mxu0 0
  %169 = vmatprep.subr.bf16.mxu0 0
  %170 = vmatpush1.bf16.msra.mxu0 0
  %171 = vmatprep.subr.bf16.mxu0 0
  %172 = vmatpush1.bf16.msra.mxu0 0
  %173 = vmatprep.subr.bf16.mxu0 0
  %174 = vmatpush1.bf16.msra.mxu0 0
  %175 = vmatprep.subr.bf16.mxu0 0
  %176 = vmatpush1.bf16.msra.mxu0 0
  %177 = vmatprep.subr.bf16.mxu0 0
  %178 = vmatpush1.bf16.msra.mxu0 0
  %179 = vmatprep.mubr.bf16.mxu0 0
  %180 = vmatmul.mubr.bf16.gmra.mrb[0].mxu0 %v97
  %v181 = vpop.f32.mrb[0].mxu0
  %v182 = vadd.f32 %v89, %v181
  %v183 = vpop.f32.mrb[0].mxu0
  %v184 = vpop.f32.mrb[0].mxu0
  %v185 = vpop.f32.mrb[0].mxu0
  %186 = vdwg.mxu0
  %v187 = vmax.f32 %v182, 0.0
  %v188 = vpack.c.bf16 %v187, %v187
  %v189 = vld [vmem:[%s3] sm:$0xf]
  %v190 = vld [vmem:[%s3 + $0x4] sm:$0xf]
  %v191 = vld [vmem:[%s3 + $0x8] sm:$0xf]
  %v192 = vld [vmem:[%s3 + $0xc] sm:$0xf]
  %v193 = vld [vmem:[%s3 + $0x10] sm:$0xf]
  %v194 = vld [vmem:[%s3 + $0x14] sm:$0xf]
  %v195 = vld [vmem:[%s3 + $0x18] sm:$0xf]
  %v196 = vld [vmem:[%s3 + $0x1c] sm:$0xf]
  %v197 = vld [vmem:[%s3 + $0x20] sm:$0xf]
  %v198 = vld [vmem:[%s3 + $0x24] sm:$0xf]
  %v199 = vld [vmem:[%s3 + $0x28] sm:$0xf]
  %v200 = vld [vmem:[%s3 + $0x2c] sm:$0xf]
  %v201 = vld [vmem:[%s3 + $0x30] sm:$0xf]
  %v202 = vld [vmem:[%s3 + $0x34] sm:$0xf]
  %v203 = vld [vmem:[%s3 + $0x38] sm:$0xf]
  %v204 = vld [vmem:[%s3 + $0x3c] sm:$0xf]
  %v205 = vld [vmem:[%s4] sm:$0x1]
  %v207 = vlaneseq
  %v208 = vshrl.u32 %v207, 7
  %v209 = vsub.s32 0, %v208
  %v210 = vrot.slane %v205, %v209
  %v228 = vunpack.c.l.b16 %v189
  %v229 = vunpack.c.l.b16 %v190
  %v230 = vunpack.c.l.b16 %v191
  %v231 = vunpack.c.l.b16 %v192
  %v232 = vunpack.c.l.b16 %v193
  %v233 = vunpack.c.l.b16 %v194
  %v234 = vunpack.c.l.b16 %v195
  %v235 = vunpack.c.l.b16 %v196
  %v236 = vunpack.c.l.b16 %v197
  %v237 = vunpack.c.l.b16 %v198
  %v238 = vunpack.c.l.b16 %v199
  %v239 = vunpack.c.l.b16 %v200
  %v240 = vunpack.c.l.b16 %v201
  %v241 = vunpack.c.l.b16 %v202
  %v242 = vunpack.c.l.b16 %v203
  %v243 = vunpack.c.l.b16 %v204
  %v244 = vpack.c.b16 %v229, %v228
  %v245 = vpack.c.b16 %v231, %v230
  %v246 = vpack.c.b16 %v233, %v232
  %v247 = vpack.c.b16 %v235, %v234
  %v248 = vpack.c.b16 %v237, %v236
  %v249 = vpack.c.b16 %v239, %v238
  %v250 = vpack.c.b16 %v241, %v240
  %v251 = vpack.c.b16 %v243, %v242
  %260 = vmatprep.subr.bf16.mxu0 0
  %261 = vmatpush1.bf16.msra.mxu0 %v244
  %262 = vmatprep.subr.bf16.mxu0 0
  %263 = vmatpush1.bf16.msra.mxu0 %v245
  %264 = vmatprep.subr.bf16.mxu0 0
  %265 = vmatpush1.bf16.msra.mxu0 %v246
  %266 = vmatprep.subr.bf16.mxu0 0
  %267 = vmatpush1.bf16.msra.mxu0 %v247
  %268 = vmatprep.subr.bf16.mxu0 0
  %269 = vmatpush1.bf16.msra.mxu0 %v248
  %270 = vmatprep.subr.bf16.mxu0 0
  %271 = vmatpush1.bf16.msra.mxu0 %v249
  %272 = vmatprep.subr.bf16.mxu0 0
  %273 = vmatpush1.bf16.msra.mxu0 %v250
  %274 = vmatprep.subr.bf16.mxu0 0
  %275 = vmatpush1.bf16.msra.mxu0 %v251
  %276 = vmatprep.subr.bf16.mxu0 0
  %277 = vmatpush1.bf16.msra.mxu0 0
  %278 = vmatprep.subr.bf16.mxu0 0
  %279 = vmatpush1.bf16.msra.mxu0 0
  %280 = vmatprep.subr.bf16.mxu0 0
  %281 = vmatpush1.bf16.msra.mxu0 0
  %282 = vmatprep.subr.bf16.mxu0 0
  %283 = vmatpush1.bf16.msra.mxu0 0
  %284 = vmatprep.subr.bf16.mxu0 0
  %285 = vmatpush1.bf16.msra.mxu0 0
  %286 = vmatprep.subr.bf16.mxu0 0
  %287 = vmatpush1.bf16.msra.mxu0 0
  %288 = vmatprep.subr.bf16.mxu0 0
  %289 = vmatpush1.bf16.msra.mxu0 0
  %290 = vmatprep.subr.bf16.mxu0 0
  %291 = vmatpush1.bf16.msra.mxu0 0
  %292 = vmatprep.mubr.bf16.mxu0 0
  %293 = vmatmul.mubr.bf16.gmra.mrb[0].mxu0 %v188
  %v294 = vpop.f32.mrb[0].mxu0
  %v295 = vadd.f32 %v210, %v294
  %v296 = vpop.f32.mrb[0].mxu0
  %v297 = vpop.f32.mrb[0].mxu0
  %v298 = vpop.f32.mrb[0].mxu0
  %299 = vdwg.mxu0
  %v300 = vsub.f32 0.0, %v295
  %v301 = vmul.f32 %v300, 1.442695
  %v302 = vpow.pop %v301
  %v303 = vadd.f32 %v302, 1.0
  %v304 = vrcp.pop %v303
  %305 = vst [vmem:[%s5] sm:$0x3] %v304
  // Predicated region
  $region22: #{anynetx_forward.15} parent=0 // pred_check
    _
  $region23: #{anynetx_forward.15} parent=0 // pred_check_branch
    %307 = sbr.rel (0) target = $region25
  $region24: #{anynetx_forward.15} parent=0 // pred_region
    _
  $region25: #{anynetx_forward.15} parent=0 // pred_fallthru
    _
  // Predicated region
  $region26: #{anynetx_forward.15} parent=0 // pred_check
    _
  $region27: #{anynetx_forward.15} parent=0 // pred_check_branch
    %309 = sbr.rel (0) target = $region29
  $region28: #{anynetx_forward.15} parent=0 // pred_region
    _
  $region29: #{anynetx_forward.15} parent=0 // pred_fallthru
    _

// kernel: anynetx_forward.16
$region0: #{anynetx_forward.16}
  #allocation0 [shape = 'u32[]', space=smem, size = 0x4, offset = 0x4, fixed_abs, tag = 'smem constant byte address 0x4 - core index']
  #allocation1 [shape = 'u32[144,128]{1,0:T(1,128)}', space=vmem, size = 0x12000, scoped, tag = 'internal scratch']
  #allocation2 [shape = 'f32[128,128]{1,0:T(8,128)}', space=vmem, size = 0x10000, scoped, tag = 'scratch operand']
  %s0 = inlined_call_operand.vmem [shape: bf16[1,128,128], index: 0, kind: input, shape index: {}]
  %s1 = inlined_call_operand.vmem [shape: bf16[1,128,128], index: 1, kind: input, shape index: {}]
  %s2 = inlined_call_operand.vmem [shape: f32[1,1,128], index: 2, kind: input, shape index: {}]
  %s3 = inlined_call_operand.vmem [shape: f32[1,1,128], index: 3, kind: input, shape index: {}]
  %s4 = inlined_call_operand.vmem [shape: f32[1,128,128], index: 4, kind: output, shape index: {}]
  %s5 = sld [smem:[#allocation0]]
  $region34: #{anynetx_forward.16} parent=0
    _
  %s7 = ssub.s32 1, %s5
  %s8 = scalar_select 0, %s7, %s5
  // Predicated region
  $region2: #{anynetx_forward.16} parent=0 // pred_check
    _
  $region3: #{anynetx_forward.16} parent=0 // pred_check_branch
    %10 = sbr.rel (0) target = $region5
  $region4: #{anynetx_forward.16} parent=0 // pred_region
    _
  $region5: #{anynetx_forward.16} parent=0 // pred_fallthru
    _
  // Predicated region
  $region6: #{anynetx_forward.16} parent=0 // pred_check
    _
  $region7: #{anynetx_forward.16} parent=0 // pred_check_branch
    %12 = sbr.rel (0) target = $region9
  $region8: #{anynetx_forward.16} parent=0 // pred_region
    _
  $region9: #{anynetx_forward.16} parent=0 // pred_fallthru
    _
  // Predicated region
  $region10: #{anynetx_forward.16} parent=0 // pred_check
    _
  $region11: #{anynetx_forward.16} parent=0 // pred_check_branch
    %14 = sbr.rel (0) target = $region13
  $region12: #{anynetx_forward.16} parent=0 // pred_region
    _
  $region13: #{anynetx_forward.16} parent=0 // pred_fallthru
    _
  // Predicated region
  $region14: #{anynetx_forward.16} parent=0 // pred_check
    _
  $region15: #{anynetx_forward.16} parent=0 // pred_check_branch
    %16 = sbr.rel (0) target = $region17
  $region16: #{anynetx_forward.16} parent=0 // pred_region
    _
  $region17: #{anynetx_forward.16} parent=0 // pred_fallthru
    _
  %p18 = scmp.eq.s32.totalorder 0, 0
  // Predicated region
  $region18: #{anynetx_forward.16} parent=0 // pred_check
    %p19 = pneg %p18
  $region19: #{anynetx_forward.16} parent=0 // pred_check_branch
    %21 = sbr.rel (%p19) target = $region21
  $region20: #{anynetx_forward.16} parent=0 // pred_region
    %22 = vst [vmem:[#allocation2] sm:$0xff] 0.0
    %23 = vst [vmem:[#allocation2 + $0x8] sm:$0xff] 0.0
    %24 = vst [vmem:[#allocation2 + $0x10] sm:$0xff] 0.0
    %25 = vst [vmem:[#allocation2 + $0x18] sm:$0xff] 0.0
    %26 = vst [vmem:[#allocation2 + $0x20] sm:$0xff] 0.0
    %27 = vst [vmem:[#allocation2 + $0x28] sm:$0xff] 0.0
    %28 = vst [vmem:[#allocation2 + $0x30] sm:$0xff] 0.0
    %29 = vst [vmem:[#allocation2 + $0x38] sm:$0xff] 0.0
    %30 = vst [vmem:[#allocation2 + $0x40] sm:$0xff] 0.0
    %31 = vst [vmem:[#allocation2 + $0x48] sm:$0xff] 0.0
    %32 = vst [vmem:[#allocation2 + $0x50] sm:$0xff] 0.0
    %33 = vst [vmem:[#allocation2 + $0x58] sm:$0xff] 0.0
    %34 = vst [vmem:[#allocation2 + $0x60] sm:$0xff] 0.0
    %35 = vst [vmem:[#allocation2 + $0x68] sm:$0xff] 0.0
    %36 = vst [vmem:[#allocation2 + $0x70] sm:$0xff] 0.0
    %37 = vst [vmem:[#allocation2 + $0x78] sm:$0xff] 0.0
  $region21: #{anynetx_forward.16} parent=0 // pred_fallthru
    _
  %v38 = vld [vmem:[%s0] sm:$0xf]
  %v39 = vld [vmem:[%s0 + $0x4] sm:$0xf]
  %v40 = vld [vmem:[%s0 + $0x8] sm:$0xf]
  %v41 = vld [vmem:[%s0 + $0xc] sm:$0xf]
  %v42 = vld [vmem:[%s0 + $0x10] sm:$0xf]
  %v43 = vld [vmem:[%s0 + $0x14] sm:$0xf]
  %v44 = vld [vmem:[%s0 + $0x18] sm:$0xf]
  %v45 = vld [vmem:[%s0 + $0x1c] sm:$0xf]
  %v46 = vld [vmem:[%s0 + $0x20] sm:$0xf]
  %v47 = vld [vmem:[%s0 + $0x24] sm:$0xf]
  %v48 = vld [vmem:[%s0 + $0x28] sm:$0xf]
  %v49 = vld [vmem:[%s0 + $0x2c] sm:$0xf]
  %v50 = vld [vmem:[%s0 + $0x30] sm:$0xf]
  %v51 = vld [vmem:[%s0 + $0x34] sm:$0xf]
  %v52 = vld [vmem:[%s0 + $0x38] sm:$0xf]
  %v53 = vld [vmem:[%s0 + $0x3c] sm:$0xf]
  %v54 = vld [vmem:[#allocation2] sm:$0xff]
  %v55 = vld [vmem:[#allocation2 + $0x8] sm:$0xff]
  %v56 = vld [vmem:[#allocation2 + $0x10] sm:$0xff]
  %v57 = vld [vmem:[#allocation2 + $0x18] sm:$0xff]
  %v58 = vld [vmem:[#allocation2 + $0x20] sm:$0xff]
  %v59 = vld [vmem:[#allocation2 + $0x28] sm:$0xff]
  %v60 = vld [vmem:[#allocation2 + $0x30] sm:$0xff]
  %v61 = vld [vmem:[#allocation2 + $0x38] sm:$0xff]
  %v62 = vld [vmem:[#allocation2 + $0x40] sm:$0xff]
  %v63 = vld [vmem:[#allocation2 + $0x48] sm:$0xff]
  %v64 = vld [vmem:[#allocation2 + $0x50] sm:$0xff]
  %v65 = vld [vmem:[#allocation2 + $0x58] sm:$0xff]
  %v66 = vld [vmem:[#allocation2 + $0x60] sm:$0xff]
  %v67 = vld [vmem:[#allocation2 + $0x68] sm:$0xff]
  %v68 = vld [vmem:[#allocation2 + $0x70] sm:$0xff]
  %v69 = vld [vmem:[#allocation2 + $0x78] sm:$0xff]
  %v70 = vld [vmem:[%s1] sm:$0xf]
  %v71 = vld [vmem:[%s1 + $0x4] sm:$0xf]
  %v72 = vld [vmem:[%s1 + $0x8] sm:$0xf]
  %v73 = vld [vmem:[%s1 + $0xc] sm:$0xf]
  %v74 = vld [vmem:[%s1 + $0x10] sm:$0xf]
  %v75 = vld [vmem:[%s1 + $0x14] sm:$0xf]
  %v76 = vld [vmem:[%s1 + $0x18] sm:$0xf]
  %v77 = vld [vmem:[%s1 + $0x1c] sm:$0xf]
  %v78 = vld [vmem:[%s1 + $0x20] sm:$0xf]
  %v79 = vld [vmem:[%s1 + $0x24] sm:$0xf]
  %v80 = vld [vmem:[%s1 + $0x28] sm:$0xf]
  %v81 = vld [vmem:[%s1 + $0x2c] sm:$0xf]
  %v82 = vld [vmem:[%s1 + $0x30] sm:$0xf]
  %v83 = vld [vmem:[%s1 + $0x34] sm:$0xf]
  %v84 = vld [vmem:[%s1 + $0x38] sm:$0xf]
  %v85 = vld [vmem:[%s1 + $0x3c] sm:$0xf]
  %v102 = vunpack.c.l.b16 %v38
  %v103 = vunpack.c.l.b16 %v39
  %v104 = vunpack.c.l.b16 %v40
  %v105 = vunpack.c.l.b16 %v41
  %v106 = vunpack.c.l.b16 %v42
  %v107 = vunpack.c.l.b16 %v43
  %v108 = vunpack.c.l.b16 %v44
  %v109 = vunpack.c.l.b16 %v45
  %v110 = vunpack.c.l.b16 %v46
  %v111 = vunpack.c.l.b16 %v47
  %v112 = vunpack.c.l.b16 %v48
  %v113 = vunpack.c.l.b16 %v49
  %v114 = vunpack.c.l.b16 %v50
  %v115 = vunpack.c.l.b16 %v51
  %v116 = vunpack.c.l.b16 %v52
  %v117 = vunpack.c.l.b16 %v53
  %v118 = vpack.c.b16 %v103, %v102
  %v119 = vpack.c.b16 %v105, %v104
  %v120 = vpack.c.b16 %v107, %v106
  %v121 = vpack.c.b16 %v109, %v108
  %v122 = vpack.c.b16 %v111, %v110
  %v123 = vpack.c.b16 %v113, %v112
  %v124 = vpack.c.b16 %v115, %v114
  %v125 = vpack.c.b16 %v117, %v116
  %v150 = vunpack.c.l.b16 %v70
  %v151 = vunpack.c.l.b16 %v71
  %v152 = vunpack.c.l.b16 %v72
  %v153 = vunpack.c.l.b16 %v73
  %v154 = vunpack.c.l.b16 %v74
  %v155 = vunpack.c.l.b16 %v75
  %v156 = vunpack.c.l.b16 %v76
  %v157 = vunpack.c.l.b16 %v77
  %v158 = vunpack.c.l.b16 %v78
  %v159 = vunpack.c.l.b16 %v79
  %v160 = vunpack.c.l.b16 %v80
  %v161 = vunpack.c.l.b16 %v81
  %v162 = vunpack.c.l.b16 %v82
  %v163 = vunpack.c.l.b16 %v83
  %v164 = vunpack.c.l.b16 %v84
  %v165 = vunpack.c.l.b16 %v85
  %v166 = vpack.c.b16 %v151, %v150
  %v167 = vpack.c.b16 %v153, %v152
  %v168 = vpack.c.b16 %v155, %v154
  %v169 = vpack.c.b16 %v157, %v156
  %v170 = vpack.c.b16 %v159, %v158
  %v171 = vpack.c.b16 %v161, %v160
  %v172 = vpack.c.b16 %v163, %v162
  %v173 = vpack.c.b16 %v165, %v164
  %182 = vmatprep.subr.bf16.mxu0 0
  %183 = vmatpush1.bf16.msra.mxu0 %v166
  %184 = vmatprep.subr.bf16.mxu0 0
  %185 = vmatpush1.bf16.msra.mxu0 %v167
  %186 = vmatprep.subr.bf16.mxu0 0
  %187 = vmatpush1.bf16.msra.mxu0 %v168
  %188 = vmatprep.subr.bf16.mxu0 0
  %189 = vmatpush1.bf16.msra.mxu0 %v169
  %190 = vmatprep.subr.bf16.mxu0 0
  %191 = vmatpush1.bf16.msra.mxu0 %v170
  %192 = vmatprep.subr.bf16.mxu0 0
  %193 = vmatpush1.bf16.msra.mxu0 %v171
  %194 = vmatprep.subr.bf16.mxu0 0
  %195 = vmatpush1.bf16.msra.mxu0 %v172
  %196 = vmatprep.subr.bf16.mxu0 0
  %197 = vmatpush1.bf16.msra.mxu0 %v173
  %198 = vmatprep.subr.bf16.mxu0 0
  %199 = vmatpush1.bf16.msra.mxu0 0
  %200 = vmatprep.subr.bf16.mxu0 0
  %201 = vmatpush1.bf16.msra.mxu0 0
  %202 = vmatprep.subr.bf16.mxu0 0
  %203 = vmatpush1.bf16.msra.mxu0 0
  %204 = vmatprep.subr.bf16.mxu0 0
  %205 = vmatpush1.bf16.msra.mxu0 0
  %206 = vmatprep.subr.bf16.mxu0 0
  %207 = vmatpush1.bf16.msra.mxu0 0
  %208 = vmatprep.subr.bf16.mxu0 0
  %209 = vmatpush1.bf16.msra.mxu0 0
  %210 = vmatprep.subr.bf16.mxu0 0
  %211 = vmatpush1.bf16.msra.mxu0 0
  %212 = vmatprep.subr.bf16.mxu0 0
  %213 = vmatpush1.bf16.msra.mxu0 0
  %214 = vmatprep.mubr.bf16.mxu0 0
  %215 = vmatmul.mubr.bf16.gmra.mrb[0].mxu0 %v118
  %v216 = vpop.f32.mrb[0].mxu0
  %v217 = vadd.f32 0.0, %v216
  %v218 = vpop.f32.mrb[0].mxu0
  %v219 = vpop.f32.mrb[0].mxu0
  %v220 = vadd.f32 0.0, %v219
  %v221 = vpop.f32.mrb[0].mxu0
  %222 = vmatprep.mubr.bf16.mxu0 0
  %223 = vmatmul.mubr.bf16.gmra.mrb[0].mxu0 %v119
  %v224 = vpop.f32.mrb[0].mxu0
  %v225 = vadd.f32 0.0, %v224
  %v226 = vpop.f32.mrb[0].mxu0
  %v227 = vpop.f32.mrb[0].mxu0
  %v228 = vadd.f32 0.0, %v227
  %v229 = vpop.f32.mrb[0].mxu0
  %230 = vmatprep.mubr.bf16.mxu0 0
  %231 = vmatmul.mubr.bf16.gmra.mrb[0].mxu0 %v120
  %v232 = vpop.f32.mrb[0].mxu0
  %v233 = vadd.f32 0.0, %v232
  %v234 = vpop.f32.mrb[0].mxu0
  %v235 = vpop.f32.mrb[0].mxu0
  %v236 = vadd.f32 0.0, %v235
  %v237 = vpop.f32.mrb[0].mxu0
  %238 = vmatprep.mubr.bf16.mxu0 0
  %239 = vmatmul.mubr.bf16.gmra.mrb[0].mxu0 %v121
  %v240 = vpop.f32.mrb[0].mxu0
  %v241 = vadd.f32 0.0, %v240
  %v242 = vpop.f32.mrb[0].mxu0
  %v243 = vpop.f32.mrb[0].mxu0
  %v244 = vadd.f32 0.0, %v243
  %v245 = vpop.f32.mrb[0].mxu0
  %246 = vmatprep.mubr.bf16.mxu0 0
  %247 = vmatmul.mubr.bf16.gmra.mrb[0].mxu0 %v122
  %v248 = vpop.f32.mrb[0].mxu0
  %v249 = vadd.f32 0.0, %v248
  %v250 = vpop.f32.mrb[0].mxu0
  %v251 = vpop.f32.mrb[0].mxu0
  %v252 = vadd.f32 0.0, %v251
  %v253 = vpop.f32.mrb[0].mxu0
  %254 = vmatprep.mubr.bf16.mxu0 0
  %255 = vmatmul.mubr.bf16.gmra.mrb[0].mxu0 %v123
  %v256 = vpop.f32.mrb[0].mxu0
  %v257 = vadd.f32 0.0, %v256
  %v258 = vpop.f32.mrb[0].mxu0
  %v259 = vpop.f32.mrb[0].mxu0
  %v260 = vadd.f32 0.0, %v259
  %v261 = vpop.f32.mrb[0].mxu0
  %262 = vmatprep.mubr.bf16.mxu0 0
  %263 = vmatmul.mubr.bf16.gmra.mrb[0].mxu0 %v124
  %v264 = vpop.f32.mrb[0].mxu0
  %v265 = vadd.f32 0.0, %v264
  %v266 = vpop.f32.mrb[0].mxu0
  %v267 = vpop.f32.mrb[0].mxu0
  %v268 = vadd.f32 0.0, %v267
  %v269 = vpop.f32.mrb[0].mxu0
  %270 = vmatprep.mubr.bf16.mxu0 0
  %271 = vmatmul.mubr.bf16.gmra.mrb[0].mxu0 %v125
  %v272 = vpop.f32.mrb[0].mxu0
  %v273 = vadd.f32 0.0, %v272
  %v274 = vpop.f32.mrb[0].mxu0
  %v275 = vpop.f32.mrb[0].mxu0
  %v276 = vadd.f32 0.0, %v275
  %v277 = vpop.f32.mrb[0].mxu0
  %278 = vdwg.mxu0
  %v279 = vadd.f32 %v54, %v217
  %v280 = vadd.f32 %v55, %v220
  %v281 = vadd.f32 %v56, %v225
  %v282 = vadd.f32 %v57, %v228
  %v283 = vadd.f32 %v58, %v233
  %v284 = vadd.f32 %v59, %v236
  %v285 = vadd.f32 %v60, %v241
  %v286 = vadd.f32 %v61, %v244
  %v287 = vadd.f32 %v62, %v249
  %v288 = vadd.f32 %v63, %v252
  %v289 = vadd.f32 %v64, %v257
  %v290 = vadd.f32 %v65, %v260
  %v291 = vadd.f32 %v66, %v265
  %v292 = vadd.f32 %v67, %v268
  %v293 = vadd.f32 %v68, %v273
  %v294 = vadd.f32 %v69, %v276
  %295 = vst [vmem:[#allocation2] sm:$0xff] %v279
  %296 = vst [vmem:[#allocation2 + $0x8] sm:$0xff] %v280
  %297 = vst [vmem:[#allocation2 + $0x10] sm:$0xff] %v281
  %298 = vst [vmem:[#allocation2 + $0x18] sm:$0xff] %v282
  %299 = vst [vmem:[#allocation2 + $0x20] sm:$0xff] %v283
  %300 = vst [vmem:[#allocation2 + $0x28] sm:$0xff] %v284
  %301 = vst [vmem:[#allocation2 + $0x30] sm:$0xff] %v285
  %302 = vst [vmem:[#allocation2 + $0x38] sm:$0xff] %v286
  %303 = vst [vmem:[#allocation2 + $0x40] sm:$0xff] %v287
  %304 = vst [vmem:[#allocation2 + $0x48] sm:$0xff] %v288
  %305 = vst [vmem:[#allocation2 + $0x50] sm:$0xff] %v289
  %306 = vst [vmem:[#allocation2 + $0x58] sm:$0xff] %v290
  %307 = vst [vmem:[#allocation2 + $0x60] sm:$0xff] %v291
  %308 = vst [vmem:[#allocation2 + $0x68] sm:$0xff] %v292
  %309 = vst [vmem:[#allocation2 + $0x70] sm:$0xff] %v293
  %310 = vst [vmem:[#allocation2 + $0x78] sm:$0xff] %v294
  // Predicated region
  $region22: #{anynetx_forward.16} parent=0 // pred_check
    %p311 = pneg %p18
  $region23: #{anynetx_forward.16} parent=0 // pred_check_branch
    %313 = sbr.rel (%p311) target = $region25
  $region24: #{anynetx_forward.16} parent=0 // pred_region
    %v314 = vld [vmem:[#allocation2] sm:$0xff]
    %v315 = vld [vmem:[#allocation2 + $0x8] sm:$0xff]
    %v316 = vld [vmem:[#allocation2 + $0x10] sm:$0xff]
    %v317 = vld [vmem:[#allocation2 + $0x18] sm:$0xff]
    %v318 = vld [vmem:[#allocation2 + $0x20] sm:$0xff]
    %v319 = vld [vmem:[#allocation2 + $0x28] sm:$0xff]
    %v320 = vld [vmem:[#allocation2 + $0x30] sm:$0xff]
    %v321 = vld [vmem:[#allocation2 + $0x38] sm:$0xff]
    %v322 = vld [vmem:[#allocation2 + $0x40] sm:$0xff]
    %v323 = vld [vmem:[#allocation2 + $0x48] sm:$0xff]
    %v324 = vld [vmem:[#allocation2 + $0x50] sm:$0xff]
    %v325 = vld [vmem:[#allocation2 + $0x58] sm:$0xff]
    %v326 = vld [vmem:[#allocation2 + $0x60] sm:$0xff]
    %v327 = vld [vmem:[#allocation2 + $0x68] sm:$0xff]
    %v328 = vld [vmem:[#allocation2 + $0x70] sm:$0xff]
    %v329 = vld [vmem:[#allocation2 + $0x78] sm:$0xff]
    %v330 = vld [vmem:[%s2] sm:$0x1]
    %v332 = vlaneseq
    %v333 = vshrl.u32 %v332, 7
    %v334 = vsub.s32 0, %v333
    %v335 = vrot.slane %v330, %v334
    %v337 = vmul.f32 %v314, %v335
    %v338 = vmul.f32 %v315, %v335
    %v339 = vmul.f32 %v316, %v335
    %v340 = vmul.f32 %v317, %v335
    %v341 = vmul.f32 %v318, %v335
    %v342 = vmul.f32 %v319, %v335
    %v343 = vmul.f32 %v320, %v335
    %v344 = vmul.f32 %v321, %v335
    %v345 = vmul.f32 %v322, %v335
    %v346 = vmul.f32 %v323, %v335
    %v347 = vmul.f32 %v324, %v335
    %v348 = vmul.f32 %v325, %v335
    %v349 = vmul.f32 %v326, %v335
    %v350 = vmul.f32 %v327, %v335
    %v351 = vmul.f32 %v328, %v335
    %v352 = vmul.f32 %v329, %v335
    %v353 = vld [vmem:[%s3] sm:$0x1]
    %v355 = vlaneseq
    %v356 = vshrl.u32 %v355, 7
    %v357 = vsub.s32 0, %v356
    %v358 = vrot.slane %v353, %v357
    %v360 = vadd.f32 %v337, %v358
    %v361 = vadd.f32 %v338, %v358
    %v362 = vadd.f32 %v339, %v358
    %v363 = vadd.f32 %v340, %v358
    %v364 = vadd.f32 %v341, %v358
    %v365 = vadd.f32 %v342, %v358
    %v366 = vadd.f32 %v343, %v358
    %v367 = vadd.f32 %v344, %v358
    %v368 = vadd.f32 %v345, %v358
    %v369 = vadd.f32 %v346, %v358
    %v370 = vadd.f32 %v347, %v358
    %v371 = vadd.f32 %v348, %v358
    %v372 = vadd.f32 %v349, %v358
    %v373 = vadd.f32 %v350, %v358
    %v374 = vadd.f32 %v351, %v358
    %v375 = vadd.f32 %v352, %v358
    %376 = vst [vmem:[%s4] sm:$0xff] %v360
    %377 = vst [vmem:[%s4 + $0x8] sm:$0xff] %v361
    %378 = vst [vmem:[%s4 + $0x10] sm:$0xff] %v362
    %379 = vst [vmem:[%s4 + $0x18] sm:$0xff] %v363
    %380 = vst [vmem:[%s4 + $0x20] sm:$0xff] %v364
    %381 = vst [vmem:[%s4 + $0x28] sm:$0xff] %v365
    %382 = vst [vmem:[%s4 + $0x30] sm:$0xff] %v366
    %383 = vst [vmem:[%s4 + $0x38] sm:$0xff] %v367
    %384 = vst [vmem:[%s4 + $0x40] sm:$0xff] %v368
    %385 = vst [vmem:[%s4 + $0x48] sm:$0xff] %v369
    %386 = vst [vmem:[%s4 + $0x50] sm:$0xff] %v370
    %387 = vst [vmem:[%s4 + $0x58] sm:$0xff] %v371
    %388 = vst [vmem:[%s4 + $0x60] sm:$0xff] %v372
    %389 = vst [vmem:[%s4 + $0x68] sm:$0xff] %v373
    %390 = vst [vmem:[%s4 + $0x70] sm:$0xff] %v374
    %391 = vst [vmem:[%s4 + $0x78] sm:$0xff] %v375
  $region25: #{anynetx_forward.16} parent=0 // pred_fallthru
    _
  // Predicated region
  $region26: #{anynetx_forward.16} parent=0 // pred_check
    _
  $region27: #{anynetx_forward.16} parent=0 // pred_check_branch
    %393 = sbr.rel (0) target = $region29
  $region28: #{anynetx_forward.16} parent=0 // pred_region
    _
  $region29: #{anynetx_forward.16} parent=0 // pred_fallthru
    _
  // Predicated region
  $region30: #{anynetx_forward.16} parent=0 // pred_check
    _
  $region31: #{anynetx_forward.16} parent=0 // pred_check_branch
    %395 = sbr.rel (0) target = $region33
  $region32: #{anynetx_forward.16} parent=0 // pred_region
    _
  $region33: #{anynetx_forward.16} parent=0 // pred_fallthru
    _

// kernel: anynetx_forward.17
$region0: #{anynetx_forward.17}
  #allocation0 [shape = 'u32[]', space=smem, size = 0x4, offset = 0x4, fixed_abs, tag = 'smem constant byte address 0x4 - core index']
  #allocation1 [shape = 'u32[144,128]{1,0:T(1,128)}', space=vmem, size = 0x12000, scoped, tag = 'internal scratch']
  #allocation2 [shape = 'f32[64,128]{1,0:T(8,128)}', space=vmem, size = 0x8000, scoped, tag = 'scratch operand']
  %s0 = inlined_call_operand.vmem [shape: bf16[2,64,128], index: 0, kind: input, shape index: {}]
  %s1 = inlined_call_operand.vmem [shape: bf16[1,128,128], index: 1, kind: input, shape index: {}]
  %s2 = inlined_call_operand.vmem [shape: f32[1,1,128], index: 2, kind: input, shape index: {}]
  %s3 = inlined_call_operand.vmem [shape: f32[1,1,128], index: 3, kind: input, shape index: {}]
  %s4 = inlined_call_operand.vmem [shape: f32[2,1,128], index: 4, kind: input, shape index: {}]
  %s5 = inlined_call_operand.vmem [shape: f32[2,64,128], index: 5, kind: input, shape index: {}]
  %s6 = inlined_call_operand.vmem [shape: f32[2,64,128], index: 6, kind: output, shape index: {}]
  %s7 = sld [smem:[#allocation0]]
  $region65: #{anynetx_forward.17} parent=0
    _
  %s9 = ssub.s32 1, %s7
  %s10 = scalar_select 0, %s9, %s7
  loop: start=0, step=1, limit=4
  $region2: #{anynetx_forward.17} parent=0 // loop_pre_header
    _
  $region3: #{anynetx_forward.17} parent=0 // loop_header
    %s12 = sphi 0, %s16
    %p13 = scmp.ge.s32.totalorder %s12, 4
    %s19 = sphi 0, %s45
    %s20 = sphi 0, %s41
    %s21 = sphi 0, %s37
    %s22 = sphi 0, %s33
    %s23 = sphi 0, %s19
    %s24 = sphi 0, %s20
    %s25 = sphi 0, %s21
    %s26 = sphi 0, %s22
    %s27 = sphi 0, %s23
    %s28 = sphi 0, %s24
    %s29 = sphi 0, %s25
    %s30 = sphi 0, %s26
    %s52 = sphi 0, %s54
    %s55 = sphi 0, %s52
    %s56 = sphi 0, %s55
    %s72 = sphi 0, %s56
    %s80 = sphi 0, %s82
    %s83 = sphi 0, %s80
    %s84 = sphi 0, %s83
    %s100 = sphi 0, %s84
    %s106 = sphi 0, %s108
    %s109 = sphi 0, %s106
    %s110 = sphi 0, %s109
    %s126 = sphi 0, %s110
    %s132 = sphi 0, %s134
    %s135 = sphi 0, %s132
    %s136 = sphi 0, %s135
    %s152 = sphi 0, %s136
    %s160 = sphi 0, %s162
    %s163 = sphi 0, %s160
    %s164 = sphi 0, %s163
    %s180 = sphi 0, %s164
    %s190 = sphi 0, %s192
    %s193 = sphi 0, %s190
    %s194 = sphi 0, %s193
    %s210 = sphi 0, %s194
    %s220 = sphi 0, %s222
    %s223 = sphi 0, %s220
    %s224 = sphi 0, %s223
    %s240 = sphi 0, %s224
  $region4: #{anynetx_forward.17} parent=0 // loop_header_branch
    %15 = sbr.rel (%p13) target = $region8
  $region5: #{anynetx_forward.17} parent=0 // loop_body
    %s17 = ssub.s32 %s12, 1
    %s18 = ssub.s32 %s12, 2
    %s31 = sadd.s32 1, %s22
    %p32 = scmp.ge.s32.totalorder %s31, 1
    %s33 = scalar_select %p32, 0, %s31
    %s34 = sadd.s32 1, %s21
    %s35 = scalar_select %p32, %s34, %s21
    %p36 = scmp.ge.s32.totalorder %s35, 1
    %s37 = scalar_select %p36, 0, %s35
    %s38 = sadd.s32 1, %s20
    %s39 = scalar_select %p36, %s38, %s20
    %p40 = scmp.ge.s32.totalorder %s39, 1
    %s41 = scalar_select %p40, 0, %s39
    %s42 = sadd.s32 1, %s19
    %s43 = scalar_select %p40, %s42, %s19
    %p44 = scmp.ge.s32.totalorder %s43, 2
    %s45 = scalar_select %p44, 0, %s43
    %s46 = ssub.s32 %s19, %s45
    %s47 = ssub.s32 %s20, %s41
    %s48 = sor.u32 %s46, %s47
    %s49 = ssub.s32 %s22, %s33
    %s50 = sor.u32 %s48, %s49
    %p51 = scmp.eq.s32.totalorder %s50, 0
    %s53 = sadd.s32 %s52, 1
    %s54 = scalar_select %p51, %s52, %s53
    %p57 = pneg %p51
    %p58 = scmp.eq.s32.totalorder %s12, 1
    %p59 = por %p57, %p58
    %p60 = scmp.ne.s32.totalorder %s52, %s55
    %p61 = scmp.eq.s32.totalorder %s12, 0
    %p62 = por %p60, %p61
    %p63 = scmp.ne.s32.totalorder %s52, %s55
    %p64 = scmp.eq.s32.totalorder %s17, 1
    %p65 = por %p63, %p64
    %p66 = scmp.ne.s32.totalorder %s55, %s56
    %p67 = scmp.eq.s32.totalorder %s17, 0
    %p68 = por %p66, %p67
    %p69 = scmp.ne.s32.totalorder %s55, %s56
    %p70 = scmp.eq.s32.totalorder %s18, 1
    %p71 = por %p69, %p70
    %p73 = scmp.ne.s32.totalorder %s56, %s72
    %p74 = scmp.eq.s32.totalorder %s18, 0
    %p75 = por %p73, %p74
    %s76 = ssub.s32 %s22, %s33
    %s77 = ssub.s32 %s21, %s37
    %s78 = sor.u32 %s76, %s77
    %p79 = scmp.eq.s32.totalorder %s78, 0
    %s81 = sadd.s32 %s80, 1
    %s82 = scalar_select %p79, %s80, %s81
    %p85 = pneg %p79
    %p86 = scmp.eq.s32.totalorder %s12, 1
    %p87 = por %p85, %p86
    %p88 = scmp.ne.s32.totalorder %s80, %s83
    %p89 = scmp.eq.s32.totalorder %s12, 0
    %p90 = por %p88, %p89
    %p91 = scmp.ne.s32.totalorder %s80, %s83
    %p92 = scmp.eq.s32.totalorder %s17, 1
    %p93 = por %p91, %p92
    %p94 = scmp.ne.s32.totalorder %s83, %s84
    %p95 = scmp.eq.s32.totalorder %s17, 0
    %p96 = por %p94, %p95
    %p97 = scmp.ne.s32.totalorder %s83, %s84
    %p98 = scmp.eq.s32.totalorder %s18, 1
    %p99 = por %p97, %p98
    %p101 = scmp.ne.s32.totalorder %s84, %s100
    %p102 = scmp.eq.s32.totalorder %s18, 0
    %p103 = por %p101, %p102
    %s104 = ssub.s32 %s21, %s37
    %p105 = scmp.eq.s32.totalorder %s104, 0
    %s107 = sadd.s32 %s106, 1
    %s108 = scalar_select %p105, %s106, %s107
    %p111 = pneg %p105
    %p112 = scmp.eq.s32.totalorder %s12, 1
    %p113 = por %p111, %p112
    %p114 = scmp.ne.s32.totalorder %s106, %s109
    %p115 = scmp.eq.s32.totalorder %s12, 0
    %p116 = por %p114, %p115
    %p117 = scmp.ne.s32.totalorder %s106, %s109
    %p118 = scmp.eq.s32.totalorder %s17, 1
    %p119 = por %p117, %p118
    %p120 = scmp.ne.s32.totalorder %s109, %s110
    %p121 = scmp.eq.s32.totalorder %s17, 0
    %p122 = por %p120, %p121
    %p123 = scmp.ne.s32.totalorder %s109, %s110
    %p124 = scmp.eq.s32.totalorder %s18, 1
    %p125 = por %p123, %p124
    %p127 = scmp.ne.s32.totalorder %s110, %s126
    %p128 = scmp.eq.s32.totalorder %s18, 0
    %p129 = por %p127, %p128
    %s130 = ssub.s32 %s21, %s37
    %p131 = scmp.eq.s32.totalorder %s130, 0
    %s133 = sadd.s32 %s132, 1
    %s134 = scalar_select %p131, %s132, %s133
    %p137 = pneg %p131
    %p138 = scmp.eq.s32.totalorder %s12, 1
    %p139 = por %p137, %p138
    %p140 = scmp.ne.s32.totalorder %s132, %s135
    %p141 = scmp.eq.s32.totalorder %s12, 0
    %p142 = por %p140, %p141
    %p143 = scmp.ne.s32.totalorder %s132, %s135
    %p144 = scmp.eq.s32.totalorder %s17, 1
    %p145 = por %p143, %p144
    %p146 = scmp.ne.s32.totalorder %s135, %s136
    %p147 = scmp.eq.s32.totalorder %s17, 0
    %p148 = por %p146, %p147
    %p149 = scmp.ne.s32.totalorder %s135, %s136
    %p150 = scmp.eq.s32.totalorder %s18, 1
    %p151 = por %p149, %p150
    %p153 = scmp.ne.s32.totalorder %s136, %s152
    %p154 = scmp.eq.s32.totalorder %s18, 0
    %p155 = por %p153, %p154
    %s156 = ssub.s32 %s19, %s45
    %s157 = ssub.s32 %s22, %s33
    %s158 = sor.u32 %s156, %s157
    %p159 = scmp.eq.s32.totalorder %s158, 0
    %s161 = sadd.s32 %s160, 1
    %s162 = scalar_select %p159, %s160, %s161
    %p165 = pneg %p159
    %p166 = scmp.eq.s32.totalorder %s12, 1
    %p167 = por %p165, %p166
    %p168 = scmp.ne.s32.totalorder %s160, %s163
    %p169 = scmp.eq.s32.totalorder %s12, 0
    %p170 = por %p168, %p169
    %p171 = scmp.ne.s32.totalorder %s160, %s163
    %p172 = scmp.eq.s32.totalorder %s17, 1
    %p173 = por %p171, %p172
    %p174 = scmp.ne.s32.totalorder %s163, %s164
    %p175 = scmp.eq.s32.totalorder %s17, 0
    %p176 = por %p174, %p175
    %p177 = scmp.ne.s32.totalorder %s163, %s164
    %p178 = scmp.eq.s32.totalorder %s18, 1
    %p179 = por %p177, %p178
    %p181 = scmp.ne.s32.totalorder %s164, %s180
    %p182 = scmp.eq.s32.totalorder %s18, 0
    %p183 = por %p181, %p182
    %s184 = ssub.s32 %s19, %s45
    %s185 = ssub.s32 %s20, %s41
    %s186 = sor.u32 %s184, %s185
    %s187 = ssub.s32 %s21, %s37
    %s188 = sor.u32 %s186, %s187
    %p189 = scmp.eq.s32.totalorder %s188, 0
    %s191 = sadd.s32 %s190, 1
    %s192 = scalar_select %p189, %s190, %s191
    %p195 = pneg %p189
    %p196 = scmp.eq.s32.totalorder %s12, 1
    %p197 = por %p195, %p196
    %p198 = scmp.ne.s32.totalorder %s190, %s193
    %p199 = scmp.eq.s32.totalorder %s12, 0
    %p200 = por %p198, %p199
    %p201 = scmp.ne.s32.totalorder %s190, %s193
    %p202 = scmp.eq.s32.totalorder %s17, 1
    %p203 = por %p201, %p202
    %p204 = scmp.ne.s32.totalorder %s193, %s194
    %p205 = scmp.eq.s32.totalorder %s17, 0
    %p206 = por %p204, %p205
    %p207 = scmp.ne.s32.totalorder %s193, %s194
    %p208 = scmp.eq.s32.totalorder %s18, 1
    %p209 = por %p207, %p208
    %p211 = scmp.ne.s32.totalorder %s194, %s210
    %p212 = scmp.eq.s32.totalorder %s18, 0
    %p213 = por %p211, %p212
    %s214 = ssub.s32 %s19, %s45
    %s215 = ssub.s32 %s20, %s41
    %s216 = sor.u32 %s214, %s215
    %s217 = ssub.s32 %s21, %s37
    %s218 = sor.u32 %s216, %s217
    %p219 = scmp.eq.s32.totalorder %s218, 0
    %s221 = sadd.s32 %s220, 1
    %s222 = scalar_select %p219, %s220, %s221
    %p225 = pneg %p219
    %p226 = scmp.eq.s32.totalorder %s12, 1
    %p227 = por %p225, %p226
    %p228 = scmp.ne.s32.totalorder %s220, %s223
    %p229 = scmp.eq.s32.totalorder %s12, 0
    %p230 = por %p228, %p229
    %p231 = scmp.ne.s32.totalorder %s220, %s223
    %p232 = scmp.eq.s32.totalorder %s17, 1
    %p233 = por %p231, %p232
    %p234 = scmp.ne.s32.totalorder %s223, %s224
    %p235 = scmp.eq.s32.totalorder %s17, 0
    %p236 = por %p234, %p235
    %p237 = scmp.ne.s32.totalorder %s223, %s224
    %p238 = scmp.eq.s32.totalorder %s18, 1
    %p239 = por %p237, %p238
    %p241 = scmp.ne.s32.totalorder %s224, %s240
    %p242 = scmp.eq.s32.totalorder %s18, 0
    %p243 = por %p241, %p242
    %p244 = scmp.le.s32.totalorder 1, %s12
    %p245 = scmp.lt.s32.totalorder %s12, 3
    %p246 = pnand %p244, %p245
    %p247 = pneg %p246
    // Predicated region
    $region9: #{anynetx_forward.17} parent=5 // pred_check
      _
    $region10: #{anynetx_forward.17} parent=5 // pred_check_branch
      %249 = sbr.rel (%p246) target = $region12
    $region11: #{anynetx_forward.17} parent=5 // pred_region
      %s250 = ssub.s32 %s12, 1
      // Predicated region
      $region13: #{anynetx_forward.17} parent=11 // pred_check
        %p251 = pneg %p96
      $region14: #{anynetx_forward.17} parent=11 // pred_check_branch
        %253 = sbr.rel (%p251) target = $region16
      $region15: #{anynetx_forward.17} parent=11 // pred_region
        %s254 = smul.u32 16, %s26
        %p255 = scmp.lt.s32.totalorder %s254, 15
        %s256 = scalar_select %p255, %s254, 15
        %p257 = scmp.lt.s32.totalorder %s25, 0
        %s258 = scalar_select %p257, %s25, 0
        %s259 = sadd.s32 %s258, %s256
        %s260 = smul.addr %s259, 4
        %s261 = scalar_lea.vmem %s1, %s260
        %s262 = smul.u32 16, %s26
      $region16: #{anynetx_forward.17} parent=11 // pred_fallthru
        _
      // Predicated region
      $region17: #{anynetx_forward.17} parent=11 // pred_check
        %p263 = pneg %p122
      $region18: #{anynetx_forward.17} parent=11 // pred_check_branch
        %265 = sbr.rel (%p263) target = $region20
      $region19: #{anynetx_forward.17} parent=11 // pred_region
        %p266 = scmp.lt.s32.totalorder %s25, 0
        %s267 = scalar_select %p266, %s25, 0
        %s268 = scalar_lea.vmem %s2, %s267
      $region20: #{anynetx_forward.17} parent=11 // pred_fallthru
        _
      // Predicated region
      $region21: #{anynetx_forward.17} parent=11 // pred_check
        %p269 = pneg %p148
      $region22: #{anynetx_forward.17} parent=11 // pred_check_branch
        %271 = sbr.rel (%p269) target = $region24
      $region23: #{anynetx_forward.17} parent=11 // pred_region
        %p272 = scmp.lt.s32.totalorder %s25, 0
        %s273 = scalar_select %p272, %s25, 0
        %s274 = scalar_lea.vmem %s3, %s273
      $region24: #{anynetx_forward.17} parent=11 // pred_fallthru
        _
    $region12: #{anynetx_forward.17} parent=5 // pred_fallthru
      _
    %p275 = scmp.lt.s32.totalorder %s12, 2
    // Predicated region
    $region25: #{anynetx_forward.17} parent=5 // pred_check
      %p276 = pneg %p275
    $region26: #{anynetx_forward.17} parent=5 // pred_check_branch
      %278 = sbr.rel (%p276) target = $region28
    $region27: #{anynetx_forward.17} parent=5 // pred_region
      // Predicated region
      $region29: #{anynetx_forward.17} parent=27 // pred_check
        %p279 = pneg %p62
      $region30: #{anynetx_forward.17} parent=27 // pred_check_branch
        %281 = sbr.rel (%p279) target = $region32
      $region31: #{anynetx_forward.17} parent=27 // pred_region
        %s282 = smul.u32 8, %s20
        %p283 = scmp.lt.s32.totalorder %s19, 1
        %s284 = scalar_select %p283, %s19, 1
        %p285 = scmp.lt.s32.totalorder %s282, 7
        %s286 = scalar_select %p285, %s282, 7
        %p287 = scmp.lt.s32.totalorder %s22, 0
        %s288 = scalar_select %p287, %s22, 0
        %s289 = sadd.s32 %s288, %s286
        %s290 = smul.addr %s284, 8
        %s291 = sadd.s32 %s289, %s290
        %s292 = smul.addr %s291, 4
        %s293 = scalar_lea.vmem %s0, %s292
        %s294 = smul.u32 8, %s20
      $region32: #{anynetx_forward.17} parent=27 // pred_fallthru
        _
      // Predicated region
      $region33: #{anynetx_forward.17} parent=27 // pred_check
        %p295 = pneg %p170
      $region34: #{anynetx_forward.17} parent=27 // pred_check_branch
        %297 = sbr.rel (%p295) target = $region36
      $region35: #{anynetx_forward.17} parent=27 // pred_region
        %p298 = scmp.lt.s32.totalorder %s19, 1
        %s299 = scalar_select %p298, %s19, 1
        %p300 = scmp.lt.s32.totalorder %s22, 0
        %s301 = scalar_select %p300, %s22, 0
        %s302 = sadd.s32 %s301, %s299
        %s303 = scalar_lea.vmem %s4, %s302
      $region36: #{anynetx_forward.17} parent=27 // pred_fallthru
        _
      // Predicated region
      $region37: #{anynetx_forward.17} parent=27 // pred_check
        %p304 = pneg %p200
      $region38: #{anynetx_forward.17} parent=27 // pred_check_branch
        %306 = sbr.rel (%p304) target = $region40
      $region39: #{anynetx_forward.17} parent=27 // pred_region
        %s307 = smul.u32 8, %s20
        %p308 = scmp.lt.s32.totalorder %s19, 1
        %s309 = scalar_select %p308, %s19, 1
        %p310 = scmp.lt.s32.totalorder %s307, 7
        %s311 = scalar_select %p310, %s307, 7
        %p312 = scmp.lt.s32.totalorder %s21, 0
        %s313 = scalar_select %p312, %s21, 0
        %s314 = sadd.s32 %s313, %s311
        %s315 = smul.addr %s309, 8
        %s316 = sadd.s32 %s314, %s315
        %s317 = smul.addr %s316, 8
        %s318 = scalar_lea.vmem %s5, %s317
        %s319 = smul.u32 8, %s20
      $region40: #{anynetx_forward.17} parent=27 // pred_fallthru
        _
    $region28: #{anynetx_forward.17} parent=5 // pred_fallthru
      _
    %p320 = scmp.le.s32.totalorder 1, %s12
    %p321 = scmp.lt.s32.totalorder %s12, 3
    %p322 = pnand %p320, %p321
    %p323 = pneg %p322
    // Predicated region
    $region41: #{anynetx_forward.17} parent=5 // pred_check
      _
    $region42: #{anynetx_forward.17} parent=5 // pred_check_branch
      %325 = sbr.rel (%p322) target = $region44
    $region43: #{anynetx_forward.17} parent=5 // pred_region
      %s326 = ssub.s32 %s12, 1
      %s327 = smul.u32 8, %s24
      %p328 = scmp.lt.s32.totalorder %s23, 1
      %s329 = scalar_select %p328, %s23, 1
      %p330 = scmp.lt.s32.totalorder %s327, 7
      %s331 = scalar_select %p330, %s327, 7
      %p332 = scmp.lt.s32.totalorder %s26, 0
      %s333 = scalar_select %p332, %s26, 0
      %s334 = sadd.s32 %s333, %s331
      %s335 = smul.addr %s329, 8
      %s336 = sadd.s32 %s334, %s335
      %s337 = smul.addr %s336, 4
      %s338 = scalar_lea.vmem %s0, %s337
      %p339 = pneg %p68
      %p340 = pneg %p65
      %s341 = smul.u32 16, %s26
      %p342 = scmp.lt.s32.totalorder %s341, 15
      %s343 = scalar_select %p342, %s341, 15
      %p344 = scmp.lt.s32.totalorder %s25, 0
      %s345 = scalar_select %p344, %s25, 0
      %s346 = sadd.s32 %s345, %s343
      %s347 = smul.addr %s346, 4
      %s348 = scalar_lea.vmem %s1, %s347
      %p349 = pneg %p96
      %p350 = pneg %p93
      %p351 = scmp.lt.s32.totalorder %s25, 0
      %s352 = scalar_select %p351, %s25, 0
      %s353 = scalar_lea.vmem %s2, %s352
      %p354 = pneg %p122
      %p355 = pneg %p119
      %p356 = scmp.lt.s32.totalorder %s25, 0
      %s357 = scalar_select %p356, %s25, 0
      %s358 = scalar_lea.vmem %s3, %s357
      %p359 = pneg %p148
      %p360 = pneg %p145
      %p361 = scmp.lt.s32.totalorder %s23, 1
      %s362 = scalar_select %p361, %s23, 1
      %p363 = scmp.lt.s32.totalorder %s26, 0
      %s364 = scalar_select %p363, %s26, 0
      %s365 = sadd.s32 %s364, %s362
      %s366 = scalar_lea.vmem %s4, %s365
      %p367 = pneg %p176
      %p368 = pneg %p173
      %s369 = smul.u32 8, %s24
      %p370 = scmp.lt.s32.totalorder %s23, 1
      %s371 = scalar_select %p370, %s23, 1
      %p372 = scmp.lt.s32.totalorder %s369, 7
      %s373 = scalar_select %p372, %s369, 7
      %p374 = scmp.lt.s32.totalorder %s25, 0
      %s375 = scalar_select %p374, %s25, 0
      %s376 = sadd.s32 %s375, %s373
      %s377 = smul.addr %s371, 8
      %s378 = sadd.s32 %s376, %s377
      %s379 = smul.addr %s378, 8
      %s380 = scalar_lea.vmem %s5, %s379
      %p381 = pneg %p206
      %p382 = pneg %p203
      %p383 = pneg %p236
      %p384 = pneg %p233
      %s385 = smul.u32 8, %s24
      %p386 = scmp.lt.s32.totalorder %s23, 1
      %s387 = scalar_select %p386, %s23, 1
      %p388 = scmp.lt.s32.totalorder %s385, 7
      %s389 = scalar_select %p388, %s385, 7
      %p390 = scmp.lt.s32.totalorder %s25, 0
      %s391 = scalar_select %p390, %s25, 0
      %s392 = sadd.s32 %s391, %s389
      %s393 = smul.addr %s387, 8
      %s394 = sadd.s32 %s392, %s393
      %s395 = smul.addr %s394, 8
      %s396 = scalar_lea.vmem %s6, %s395
      %s397 = smul.u32 8, %s24
      %p398 = scmp.lt.s32.totalorder %s23, 1
      %s399 = scalar_select %p398, %s23, 1
      %p400 = scmp.lt.s32.totalorder %s397, 7
      %s401 = scalar_select %p400, %s397, 7
      %p402 = scmp.lt.s32.totalorder %s26, 0
      %s403 = scalar_select %p402, %s26, 0
      %s404 = sadd.s32 %s403, %s401
      %s405 = smul.addr %s399, 8
      %s406 = sadd.s32 %s404, %s405
      %s407 = smul.addr %s406, 4
      %s408 = scalar_lea.vmem %s0, %s407
      %s409 = smul.u32 8, %s24
      %s410 = smul.u32 16, %s26
      %p411 = scmp.lt.s32.totalorder %s410, 15
      %s412 = scalar_select %p411, %s410, 15
      %p413 = scmp.lt.s32.totalorder %s25, 0
      %s414 = scalar_select %p413, %s25, 0
      %s415 = sadd.s32 %s414, %s412
      %s416 = smul.addr %s415, 4
      %s417 = scalar_lea.vmem %s1, %s416
      %s418 = smul.u32 16, %s26
      %p419 = scmp.lt.s32.totalorder %s25, 0
      %s420 = scalar_select %p419, %s25, 0
      %s421 = scalar_lea.vmem %s2, %s420
      %p422 = scmp.lt.s32.totalorder %s25, 0
      %s423 = scalar_select %p422, %s25, 0
      %s424 = scalar_lea.vmem %s3, %s423
      %p425 = scmp.lt.s32.totalorder %s23, 1
      %s426 = scalar_select %p425, %s23, 1
      %p427 = scmp.lt.s32.totalorder %s26, 0
      %s428 = scalar_select %p427, %s26, 0
      %s429 = sadd.s32 %s428, %s426
      %s430 = scalar_lea.vmem %s4, %s429
      %s431 = smul.u32 8, %s24
      %p432 = scmp.lt.s32.totalorder %s23, 1
      %s433 = scalar_select %p432, %s23, 1
      %p434 = scmp.lt.s32.totalorder %s431, 7
      %s435 = scalar_select %p434, %s431, 7
      %p436 = scmp.lt.s32.totalorder %s25, 0
      %s437 = scalar_select %p436, %s25, 0
      %s438 = sadd.s32 %s437, %s435
      %s439 = smul.addr %s433, 8
      %s440 = sadd.s32 %s438, %s439
      %s441 = smul.addr %s440, 8
      %s442 = scalar_lea.vmem %s5, %s441
      %s443 = smul.u32 8, %s24
      %s444 = smul.u32 8, %s24
      %p445 = scmp.lt.s32.totalorder %s23, 1
      %s446 = scalar_select %p445, %s23, 1
      %p447 = scmp.lt.s32.totalorder %s444, 7
      %s448 = scalar_select %p447, %s444, 7
      %p449 = scmp.lt.s32.totalorder %s25, 0
      %s450 = scalar_select %p449, %s25, 0
      %s451 = sadd.s32 %s450, %s448
      %s452 = smul.addr %s446, 8
      %s453 = sadd.s32 %s451, %s452
      %s454 = smul.addr %s453, 8
      %s455 = scalar_lea.vmem %s6, %s454
      %s456 = smul.u32 8, %s24
      %p458 = scmp.eq.s32.totalorder %s26, 0
      // Predicated region
      $region45: #{anynetx_forward.17} parent=43 // pred_check
        %p459 = pneg %p458
      $region46: #{anynetx_forward.17} parent=43 // pred_check_branch
        %461 = sbr.rel (%p459) target = $region48
      $region47: #{anynetx_forward.17} parent=43 // pred_region
        %462 = vst [vmem:[#allocation2] sm:$0xff] 0.0
        %463 = vst [vmem:[#allocation2 + $0x8] sm:$0xff] 0.0
        %464 = vst [vmem:[#allocation2 + $0x10] sm:$0xff] 0.0
        %465 = vst [vmem:[#allocation2 + $0x18] sm:$0xff] 0.0
        %466 = vst [vmem:[#allocation2 + $0x20] sm:$0xff] 0.0
        %467 = vst [vmem:[#allocation2 + $0x28] sm:$0xff] 0.0
        %468 = vst [vmem:[#allocation2 + $0x30] sm:$0xff] 0.0
        %469 = vst [vmem:[#allocation2 + $0x38] sm:$0xff] 0.0
      $region48: #{anynetx_forward.17} parent=43 // pred_fallthru
        _
      %v470 = vld [vmem:[%s408] sm:$0xf]
      %v471 = vld [vmem:[%s408 + $0x4] sm:$0xf]
      %v472 = vld [vmem:[%s408 + $0x8] sm:$0xf]
      %v473 = vld [vmem:[%s408 + $0xc] sm:$0xf]
      %v474 = vld [vmem:[%s408 + $0x10] sm:$0xf]
      %v475 = vld [vmem:[%s408 + $0x14] sm:$0xf]
      %v476 = vld [vmem:[%s408 + $0x18] sm:$0xf]
      %v477 = vld [vmem:[%s408 + $0x1c] sm:$0xf]
      %v478 = vunpack.c.l.bf16 %v470
      %v479 = vunpack.c.l.bf16 %v471
      %v480 = vunpack.c.l.bf16 %v472
      %v481 = vunpack.c.l.bf16 %v473
      %v482 = vunpack.c.l.bf16 %v474
      %v483 = vunpack.c.l.bf16 %v475
      %v484 = vunpack.c.l.bf16 %v476
      %v485 = vunpack.c.l.bf16 %v477
      %v486 = vld [vmem:[%s430] sm:$0x1]
      %v488 = vlaneseq
      %v489 = vshrl.u32 %v488, 7
      %v490 = vsub.s32 0, %v489
      %v491 = vrot.slane %v486, %v490
      %v493 = vmul.f32 %v478, %v491
      %v494 = vmul.f32 %v479, %v491
      %v495 = vmul.f32 %v480, %v491
      %v496 = vmul.f32 %v481, %v491
      %v497 = vmul.f32 %v482, %v491
      %v498 = vmul.f32 %v483, %v491
      %v499 = vmul.f32 %v484, %v491
      %v500 = vmul.f32 %v485, %v491
      %v501 = vpack.c.bf16 %v494, %v493
      %v502 = vpack.c.bf16 %v496, %v495
      %v503 = vpack.c.bf16 %v498, %v497
      %v504 = vpack.c.bf16 %v500, %v499
      %v505 = vld [vmem:[#allocation2] sm:$0xff]
      %v506 = vld [vmem:[#allocation2 + $0x8] sm:$0xff]
      %v507 = vld [vmem:[#allocation2 + $0x10] sm:$0xff]
      %v508 = vld [vmem:[#allocation2 + $0x18] sm:$0xff]
      %v509 = vld [vmem:[#allocation2 + $0x20] sm:$0xff]
      %v510 = vld [vmem:[#allocation2 + $0x28] sm:$0xff]
      %v511 = vld [vmem:[#allocation2 + $0x30] sm:$0xff]
      %v512 = vld [vmem:[#allocation2 + $0x38] sm:$0xff]
      %v513 = vld [vmem:[%s417] sm:$0xf]
      %v514 = vld [vmem:[%s417 + $0x4] sm:$0xf]
      %v515 = vld [vmem:[%s417 + $0x8] sm:$0xf]
      %v516 = vld [vmem:[%s417 + $0xc] sm:$0xf]
      %v517 = vld [vmem:[%s417 + $0x10] sm:$0xf]
      %v518 = vld [vmem:[%s417 + $0x14] sm:$0xf]
      %v519 = vld [vmem:[%s417 + $0x18] sm:$0xf]
      %v520 = vld [vmem:[%s417 + $0x1c] sm:$0xf]
      %v521 = vld [vmem:[%s417 + $0x20] sm:$0xf]
      %v522 = vld [vmem:[%s417 + $0x24] sm:$0xf]
      %v523 = vld [vmem:[%s417 + $0x28] sm:$0xf]
      %v524 = vld [vmem:[%s417 + $0x2c] sm:$0xf]
      %v525 = vld [vmem:[%s417 + $0x30] sm:$0xf]
      %v526 = vld [vmem:[%s417 + $0x34] sm:$0xf]
      %v527 = vld [vmem:[%s417 + $0x38] sm:$0xf]
      %v528 = vld [vmem:[%s417 + $0x3c] sm:$0xf]
      %v545 = vunpack.c.l.b16 %v513
      %v546 = vunpack.c.l.b16 %v514
      %v547 = vunpack.c.l.b16 %v515
      %v548 = vunpack.c.l.b16 %v516
      %v549 = vunpack.c.l.b16 %v517
      %v550 = vunpack.c.l.b16 %v518
      %v551 = vunpack.c.l.b16 %v519
      %v552 = vunpack.c.l.b16 %v520
      %v553 = vunpack.c.l.b16 %v521
      %v554 = vunpack.c.l.b16 %v522
      %v555 = vunpack.c.l.b16 %v523
      %v556 = vunpack.c.l.b16 %v524
      %v557 = vunpack.c.l.b16 %v525
      %v558 = vunpack.c.l.b16 %v526
      %v559 = vunpack.c.l.b16 %v527
      %v560 = vunpack.c.l.b16 %v528
      %v561 = vpack.c.b16 %v546, %v545
      %v562 = vpack.c.b16 %v548, %v547
      %v563 = vpack.c.b16 %v550, %v549
      %v564 = vpack.c.b16 %v552, %v551
      %v565 = vpack.c.b16 %v554, %v553
      %v566 = vpack.c.b16 %v556, %v555
      %v567 = vpack.c.b16 %v558, %v557
      %v568 = vpack.c.b16 %v560, %v559
      %577 = vmatprep.subr.bf16.mxu0 0
      %578 = vmatpush1.bf16.msra.mxu0 %v561
      %579 = vmatprep.subr.bf16.mxu0 0
      %580 = vmatpush1.bf16.msra.mxu0 %v562
      %581 = vmatprep.subr.bf16.mxu0 0
      %582 = vmatpush1.bf16.msra.mxu0 %v563
      %583 = vmatprep.subr.bf16.mxu0 0
      %584 = vmatpush1.bf16.msra.mxu0 %v564
      %585 = vmatprep.subr.bf16.mxu0 0
      %586 = vmatpush1.bf16.msra.mxu0 %v565
      %587 = vmatprep.subr.bf16.mxu0 0
      %588 = vmatpush1.bf16.msra.mxu0 %v566
      %589 = vmatprep.subr.bf16.mxu0 0
      %590 = vmatpush1.bf16.msra.mxu0 %v567
      %591 = vmatprep.subr.bf16.mxu0 0
      %592 = vmatpush1.bf16.msra.mxu0 %v568
      %593 = vmatprep.subr.bf16.mxu0 0
      %594 = vmatpush1.bf16.msra.mxu0 0
      %595 = vmatprep.subr.bf16.mxu0 0
      %596 = vmatpush1.bf16.msra.mxu0 0
      %597 = vmatprep.subr.bf16.mxu0 0
      %598 = vmatpush1.bf16.msra.mxu0 0
      %599 = vmatprep.subr.bf16.mxu0 0
      %600 = vmatpush1.bf16.msra.mxu0 0
      %601 = vmatprep.subr.bf16.mxu0 0
      %602 = vmatpush1.bf16.msra.mxu0 0
      %603 = vmatprep.subr.bf16.mxu0 0
      %604 = vmatpush1.bf16.msra.mxu0 0
      %605 = vmatprep.subr.bf16.mxu0 0
      %606 = vmatpush1.bf16.msra.mxu0 0
      %607 = vmatprep.subr.bf16.mxu0 0
      %608 = vmatpush1.bf16.msra.mxu0 0
      %609 = vmatprep.mubr.bf16.mxu0 0
      %610 = vmatmul.mubr.bf16.gmra.mrb[0].mxu0 %v501
      %v611 = vpop.f32.mrb[0].mxu0
      %v612 = vadd.f32 0.0, %v611
      %v613 = vpop.f32.mrb[0].mxu0
      %v614 = vpop.f32.mrb[0].mxu0
      %v615 = vadd.f32 0.0, %v614
      %v616 = vpop.f32.mrb[0].mxu0
      %617 = vmatprep.mubr.bf16.mxu0 0
      %618 = vmatmul.mubr.bf16.gmra.mrb[0].mxu0 %v502
      %v619 = vpop.f32.mrb[0].mxu0
      %v620 = vadd.f32 0.0, %v619
      %v621 = vpop.f32.mrb[0].mxu0
      %v622 = vpop.f32.mrb[0].mxu0
      %v623 = vadd.f32 0.0, %v622
      %v624 = vpop.f32.mrb[0].mxu0
      %625 = vmatprep.mubr.bf16.mxu0 0
      %626 = vmatmul.mubr.bf16.gmra.mrb[0].mxu0 %v503
      %v627 = vpop.f32.mrb[0].mxu0
      %v628 = vadd.f32 0.0, %v627
      %v629 = vpop.f32.mrb[0].mxu0
      %v630 = vpop.f32.mrb[0].mxu0
      %v631 = vadd.f32 0.0, %v630
      %v632 = vpop.f32.mrb[0].mxu0
      %633 = vmatprep.mubr.bf16.mxu0 0
      %634 = vmatmul.mubr.bf16.gmra.mrb[0].mxu0 %v504
      %v635 = vpop.f32.mrb[0].mxu0
      %v636 = vadd.f32 0.0, %v635
      %v637 = vpop.f32.mrb[0].mxu0
      %v638 = vpop.f32.mrb[0].mxu0
      %v639 = vadd.f32 0.0, %v638
      %v640 = vpop.f32.mrb[0].mxu0
      %641 = vdwg.mxu0
      %v642 = vadd.f32 %v505, %v612
      %v643 = vadd.f32 %v506, %v615
      %v644 = vadd.f32 %v507, %v620
      %v645 = vadd.f32 %v508, %v623
      %v646 = vadd.f32 %v509, %v628
      %v647 = vadd.f32 %v510, %v631
      %v648 = vadd.f32 %v511, %v636
      %v649 = vadd.f32 %v512, %v639
      %650 = vst [vmem:[#allocation2] sm:$0xff] %v642
      %651 = vst [vmem:[#allocation2 + $0x8] sm:$0xff] %v643
      %652 = vst [vmem:[#allocation2 + $0x10] sm:$0xff] %v644
      %653 = vst [vmem:[#allocation2 + $0x18] sm:$0xff] %v645
      %654 = vst [vmem:[#allocation2 + $0x20] sm:$0xff] %v646
      %655 = vst [vmem:[#allocation2 + $0x28] sm:$0xff] %v647
      %656 = vst [vmem:[#allocation2 + $0x30] sm:$0xff] %v648
      %657 = vst [vmem:[#allocation2 + $0x38] sm:$0xff] %v649
      // Predicated region
      $region49: #{anynetx_forward.17} parent=43 // pred_check
        %p658 = pneg %p458
      $region50: #{anynetx_forward.17} parent=43 // pred_check_branch
        %660 = sbr.rel (%p658) target = $region52
      $region51: #{anynetx_forward.17} parent=43 // pred_region
        %v661 = vld [vmem:[#allocation2] sm:$0xff]
        %v662 = vld [vmem:[#allocation2 + $0x8] sm:$0xff]
        %v663 = vld [vmem:[#allocation2 + $0x10] sm:$0xff]
        %v664 = vld [vmem:[#allocation2 + $0x18] sm:$0xff]
        %v665 = vld [vmem:[#allocation2 + $0x20] sm:$0xff]
        %v666 = vld [vmem:[#allocation2 + $0x28] sm:$0xff]
        %v667 = vld [vmem:[#allocation2 + $0x30] sm:$0xff]
        %v668 = vld [vmem:[#allocation2 + $0x38] sm:$0xff]
        %v669 = vld [vmem:[%s421] sm:$0x1]
        %v671 = vlaneseq
        %v672 = vshrl.u32 %v671, 7
        %v673 = vsub.s32 0, %v672
        %v674 = vrot.slane %v669, %v673
        %v676 = vmul.f32 %v661, %v674
        %v677 = vmul.f32 %v662, %v674
        %v678 = vmul.f32 %v663, %v674
        %v679 = vmul.f32 %v664, %v674
        %v680 = vmul.f32 %v665, %v674
        %v681 = vmul.f32 %v666, %v674
        %v682 = vmul.f32 %v667, %v674
        %v683 = vmul.f32 %v668, %v674
        %v684 = vld [vmem:[%s424] sm:$0x1]
        %v686 = vlaneseq
        %v687 = vshrl.u32 %v686, 7
        %v688 = vsub.s32 0, %v687
        %v689 = vrot.slane %v684, %v688
        %v691 = vadd.f32 %v676, %v689
        %v692 = vadd.f32 %v677, %v689
        %v693 = vadd.f32 %v678, %v689
        %v694 = vadd.f32 %v679, %v689
        %v695 = vadd.f32 %v680, %v689
        %v696 = vadd.f32 %v681, %v689
        %v697 = vadd.f32 %v682, %v689
        %v698 = vadd.f32 %v683, %v689
        %v699 = vld [vmem:[%s442] sm:$0xff]
        %v700 = vld [vmem:[%s442 + $0x8] sm:$0xff]
        %v701 = vld [vmem:[%s442 + $0x10] sm:$0xff]
        %v702 = vld [vmem:[%s442 + $0x18] sm:$0xff]
        %v703 = vld [vmem:[%s442 + $0x20] sm:$0xff]
        %v704 = vld [vmem:[%s442 + $0x28] sm:$0xff]
        %v705 = vld [vmem:[%s442 + $0x30] sm:$0xff]
        %v706 = vld [vmem:[%s442 + $0x38] sm:$0xff]
        %v707 = vadd.f32 %v691, %v699
        %v708 = vadd.f32 %v692, %v700
        %v709 = vadd.f32 %v693, %v701
        %v710 = vadd.f32 %v694, %v702
        %v711 = vadd.f32 %v695, %v703
        %v712 = vadd.f32 %v696, %v704
        %v713 = vadd.f32 %v697, %v705
        %v714 = vadd.f32 %v698, %v706
        %v715 = vmax.f32 %v707, 0.0
        %v716 = vmax.f32 %v708, 0.0
        %v717 = vmax.f32 %v709, 0.0
        %v718 = vmax.f32 %v710, 0.0
        %v719 = vmax.f32 %v711, 0.0
        %v720 = vmax.f32 %v712, 0.0
        %v721 = vmax.f32 %v713, 0.0
        %v722 = vmax.f32 %v714, 0.0
        %723 = vst [vmem:[%s455] sm:$0xff] %v715
        %724 = vst [vmem:[%s455 + $0x8] sm:$0xff] %v716
        %725 = vst [vmem:[%s455 + $0x10] sm:$0xff] %v717
        %726 = vst [vmem:[%s455 + $0x18] sm:$0xff] %v718
        %727 = vst [vmem:[%s455 + $0x20] sm:$0xff] %v719
        %728 = vst [vmem:[%s455 + $0x28] sm:$0xff] %v720
        %729 = vst [vmem:[%s455 + $0x30] sm:$0xff] %v721
        %730 = vst [vmem:[%s455 + $0x38] sm:$0xff] %v722
      $region52: #{anynetx_forward.17} parent=43 // pred_fallthru
        _
      %s731 = smul.u32 8, %s24
      %p732 = scmp.lt.s32.totalorder %s23, 1
      %s733 = scalar_select %p732, %s23, 1
      %p734 = scmp.lt.s32.totalorder %s731, 7
      %s735 = scalar_select %p734, %s731, 7
      %p736 = scmp.lt.s32.totalorder %s25, 0
      %s737 = scalar_select %p736, %s25, 0
      %s738 = sadd.s32 %s737, %s735
      %s739 = smul.addr %s733, 8
      %s740 = sadd.s32 %s738, %s739
      %s741 = smul.addr %s740, 8
      %s742 = scalar_lea.vmem %s6, %s741
      // Predicated region
      $region53: #{anynetx_forward.17} parent=43 // pred_check
        %p743 = pneg %p233
      $region54: #{anynetx_forward.17} parent=43 // pred_check_branch
        %745 = sbr.rel (%p743) target = $region56
      $region55: #{anynetx_forward.17} parent=43 // pred_region
        %s746 = smul.u32 8, %s24
      $region56: #{anynetx_forward.17} parent=43 // pred_fallthru
        _
    $region44: #{anynetx_forward.17} parent=5 // pred_fallthru
      _
    %p747 = scmp.le.s32.totalorder 2, %s12
    // Predicated region
    $region57: #{anynetx_forward.17} parent=5 // pred_check
      %p748 = pneg %p747
    $region58: #{anynetx_forward.17} parent=5 // pred_check_branch
      %750 = sbr.rel (%p748) target = $region60
    $region59: #{anynetx_forward.17} parent=5 // pred_region
      %s751 = ssub.s32 %s12, 2
      // Predicated region
      $region61: #{anynetx_forward.17} parent=59 // pred_check
        %p752 = pneg %p239
      $region62: #{anynetx_forward.17} parent=59 // pred_check_branch
        %754 = sbr.rel (%p752) target = $region64
      $region63: #{anynetx_forward.17} parent=59 // pred_region
        %s755 = smul.u32 8, %s28
        %p756 = scmp.lt.s32.totalorder %s27, 1
        %s757 = scalar_select %p756, %s27, 1
        %p758 = scmp.lt.s32.totalorder %s755, 7
        %s759 = scalar_select %p758, %s755, 7
        %p760 = scmp.lt.s32.totalorder %s29, 0
        %s761 = scalar_select %p760, %s29, 0
        %s762 = sadd.s32 %s761, %s759
        %s763 = smul.addr %s757, 8
        %s764 = sadd.s32 %s762, %s763
        %s765 = smul.addr %s764, 8
        %s766 = scalar_lea.vmem %s6, %s765
      $region64: #{anynetx_forward.17} parent=59 // pred_fallthru
        _
    $region60: #{anynetx_forward.17} parent=5 // pred_fallthru
      _
  $region6: #{anynetx_forward.17} parent=0 // loop_footer
    %s16 = sadd.s32 1, %s12
  $region7: #{anynetx_forward.17} parent=0 // loop_footer_branch
    %11 = sbr.rel target = $region3
  $region8: #{anynetx_forward.17} parent=0 // loop_exit
    _

// kernel: anynetx_forward.18
$region0: #{anynetx_forward.18}
  #allocation0 [shape = 'u32[]', space=smem, size = 0x4, offset = 0x4, fixed_abs, tag = 'smem constant byte address 0x4 - core index']
  #allocation1 [shape = 'u32[144,128]{1,0:T(1,128)}', space=vmem, size = 0x12000, scoped, tag = 'internal scratch']
  #allocation2 [shape = 'f32[128,128]{1,0:T(8,128)}', space=vmem, size = 0x10000, scoped, tag = 'scratch operand']
  %s0 = inlined_call_operand.vmem [shape: bf16[1,128,128], index: 0, kind: input, shape index: {}]
  %s1 = inlined_call_operand.vmem [shape: bf16[1,128,128], index: 1, kind: input, shape index: {}]
  %s2 = inlined_call_operand.vmem [shape: f32[1,1,128], index: 2, kind: input, shape index: {}]
  %s3 = inlined_call_operand.vmem [shape: f32[1,1,128], index: 3, kind: input, shape index: {}]
  %s4 = inlined_call_operand.vmem [shape: f32[1,128,128], index: 4, kind: output, shape index: {}]
  %s5 = sld [smem:[#allocation0]]
  $region34: #{anynetx_forward.18} parent=0
    _
  %s7 = ssub.s32 1, %s5
  %s8 = scalar_select 0, %s7, %s5
  // Predicated region
  $region2: #{anynetx_forward.18} parent=0 // pred_check
    _
  $region3: #{anynetx_forward.18} parent=0 // pred_check_branch
    %10 = sbr.rel (0) target = $region5
  $region4: #{anynetx_forward.18} parent=0 // pred_region
    _
  $region5: #{anynetx_forward.18} parent=0 // pred_fallthru
    _
  // Predicated region
  $region6: #{anynetx_forward.18} parent=0 // pred_check
    _
  $region7: #{anynetx_forward.18} parent=0 // pred_check_branch
    %12 = sbr.rel (0) target = $region9
  $region8: #{anynetx_forward.18} parent=0 // pred_region
    _
  $region9: #{anynetx_forward.18} parent=0 // pred_fallthru
    _
  // Predicated region
  $region10: #{anynetx_forward.18} parent=0 // pred_check
    _
  $region11: #{anynetx_forward.18} parent=0 // pred_check_branch
    %14 = sbr.rel (0) target = $region13
  $region12: #{anynetx_forward.18} parent=0 // pred_region
    _
  $region13: #{anynetx_forward.18} parent=0 // pred_fallthru
    _
  // Predicated region
  $region14: #{anynetx_forward.18} parent=0 // pred_check
    _
  $region15: #{anynetx_forward.18} parent=0 // pred_check_branch
    %16 = sbr.rel (0) target = $region17
  $region16: #{anynetx_forward.18} parent=0 // pred_region
    _
  $region17: #{anynetx_forward.18} parent=0 // pred_fallthru
    _
  %p18 = scmp.eq.s32.totalorder 0, 0
  // Predicated region
  $region18: #{anynetx_forward.18} parent=0 // pred_check
    %p19 = pneg %p18
  $region19: #{anynetx_forward.18} parent=0 // pred_check_branch
    %21 = sbr.rel (%p19) target = $region21
  $region20: #{anynetx_forward.18} parent=0 // pred_region
    %22 = vst [vmem:[#allocation2] sm:$0xff] 0.0
    %23 = vst [vmem:[#allocation2 + $0x8] sm:$0xff] 0.0
    %24 = vst [vmem:[#allocation2 + $0x10] sm:$0xff] 0.0
    %25 = vst [vmem:[#allocation2 + $0x18] sm:$0xff] 0.0
    %26 = vst [vmem:[#allocation2 + $0x20] sm:$0xff] 0.0
    %27 = vst [vmem:[#allocation2 + $0x28] sm:$0xff] 0.0
    %28 = vst [vmem:[#allocation2 + $0x30] sm:$0xff] 0.0
    %29 = vst [vmem:[#allocation2 + $0x38] sm:$0xff] 0.0
    %30 = vst [vmem:[#allocation2 + $0x40] sm:$0xff] 0.0
    %31 = vst [vmem:[#allocation2 + $0x48] sm:$0xff] 0.0
    %32 = vst [vmem:[#allocation2 + $0x50] sm:$0xff] 0.0
    %33 = vst [vmem:[#allocation2 + $0x58] sm:$0xff] 0.0
    %34 = vst [vmem:[#allocation2 + $0x60] sm:$0xff] 0.0
    %35 = vst [vmem:[#allocation2 + $0x68] sm:$0xff] 0.0
    %36 = vst [vmem:[#allocation2 + $0x70] sm:$0xff] 0.0
    %37 = vst [vmem:[#allocation2 + $0x78] sm:$0xff] 0.0
  $region21: #{anynetx_forward.18} parent=0 // pred_fallthru
    _
  %v38 = vld [vmem:[%s0] sm:$0xf]
  %v39 = vld [vmem:[%s0 + $0x4] sm:$0xf]
  %v40 = vld [vmem:[%s0 + $0x8] sm:$0xf]
  %v41 = vld [vmem:[%s0 + $0xc] sm:$0xf]
  %v42 = vld [vmem:[%s0 + $0x10] sm:$0xf]
  %v43 = vld [vmem:[%s0 + $0x14] sm:$0xf]
  %v44 = vld [vmem:[%s0 + $0x18] sm:$0xf]
  %v45 = vld [vmem:[%s0 + $0x1c] sm:$0xf]
  %v46 = vld [vmem:[%s0 + $0x20] sm:$0xf]
  %v47 = vld [vmem:[%s0 + $0x24] sm:$0xf]
  %v48 = vld [vmem:[%s0 + $0x28] sm:$0xf]
  %v49 = vld [vmem:[%s0 + $0x2c] sm:$0xf]
  %v50 = vld [vmem:[%s0 + $0x30] sm:$0xf]
  %v51 = vld [vmem:[%s0 + $0x34] sm:$0xf]
  %v52 = vld [vmem:[%s0 + $0x38] sm:$0xf]
  %v53 = vld [vmem:[%s0 + $0x3c] sm:$0xf]
  %v54 = vld [vmem:[#allocation2] sm:$0xff]
  %v55 = vld [vmem:[#allocation2 + $0x8] sm:$0xff]
  %v56 = vld [vmem:[#allocation2 + $0x10] sm:$0xff]
  %v57 = vld [vmem:[#allocation2 + $0x18] sm:$0xff]
  %v58 = vld [vmem:[#allocation2 + $0x20] sm:$0xff]
  %v59 = vld [vmem:[#allocation2 + $0x28] sm:$0xff]
  %v60 = vld [vmem:[#allocation2 + $0x30] sm:$0xff]
  %v61 = vld [vmem:[#allocation2 + $0x38] sm:$0xff]
  %v62 = vld [vmem:[#allocation2 + $0x40] sm:$0xff]
  %v63 = vld [vmem:[#allocation2 + $0x48] sm:$0xff]
  %v64 = vld [vmem:[#allocation2 + $0x50] sm:$0xff]
  %v65 = vld [vmem:[#allocation2 + $0x58] sm:$0xff]
  %v66 = vld [vmem:[#allocation2 + $0x60] sm:$0xff]
  %v67 = vld [vmem:[#allocation2 + $0x68] sm:$0xff]
  %v68 = vld [vmem:[#allocation2 + $0x70] sm:$0xff]
  %v69 = vld [vmem:[#allocation2 + $0x78] sm:$0xff]
  %v70 = vld [vmem:[%s1] sm:$0xf]
  %v71 = vld [vmem:[%s1 + $0x4] sm:$0xf]
  %v72 = vld [vmem:[%s1 + $0x8] sm:$0xf]
  %v73 = vld [vmem:[%s1 + $0xc] sm:$0xf]
  %v74 = vld [vmem:[%s1 + $0x10] sm:$0xf]
  %v75 = vld [vmem:[%s1 + $0x14] sm:$0xf]
  %v76 = vld [vmem:[%s1 + $0x18] sm:$0xf]
  %v77 = vld [vmem:[%s1 + $0x1c] sm:$0xf]
  %v78 = vld [vmem:[%s1 + $0x20] sm:$0xf]
  %v79 = vld [vmem:[%s1 + $0x24] sm:$0xf]
  %v80 = vld [vmem:[%s1 + $0x28] sm:$0xf]
  %v81 = vld [vmem:[%s1 + $0x2c] sm:$0xf]
  %v82 = vld [vmem:[%s1 + $0x30] sm:$0xf]
  %v83 = vld [vmem:[%s1 + $0x34] sm:$0xf]
  %v84 = vld [vmem:[%s1 + $0x38] sm:$0xf]
  %v85 = vld [vmem:[%s1 + $0x3c] sm:$0xf]
  %v102 = vunpack.c.l.b16 %v38
  %v103 = vunpack.c.l.b16 %v39
  %v104 = vunpack.c.l.b16 %v40
  %v105 = vunpack.c.l.b16 %v41
  %v106 = vunpack.c.l.b16 %v42
  %v107 = vunpack.c.l.b16 %v43
  %v108 = vunpack.c.l.b16 %v44
  %v109 = vunpack.c.l.b16 %v45
  %v110 = vunpack.c.l.b16 %v46
  %v111 = vunpack.c.l.b16 %v47
  %v112 = vunpack.c.l.b16 %v48
  %v113 = vunpack.c.l.b16 %v49
  %v114 = vunpack.c.l.b16 %v50
  %v115 = vunpack.c.l.b16 %v51
  %v116 = vunpack.c.l.b16 %v52
  %v117 = vunpack.c.l.b16 %v53
  %v118 = vpack.c.b16 %v103, %v102
  %v119 = vpack.c.b16 %v105, %v104
  %v120 = vpack.c.b16 %v107, %v106
  %v121 = vpack.c.b16 %v109, %v108
  %v122 = vpack.c.b16 %v111, %v110
  %v123 = vpack.c.b16 %v113, %v112
  %v124 = vpack.c.b16 %v115, %v114
  %v125 = vpack.c.b16 %v117, %v116
  %v150 = vunpack.c.l.b16 %v70
  %v151 = vunpack.c.l.b16 %v71
  %v152 = vunpack.c.l.b16 %v72
  %v153 = vunpack.c.l.b16 %v73
  %v154 = vunpack.c.l.b16 %v74
  %v155 = vunpack.c.l.b16 %v75
  %v156 = vunpack.c.l.b16 %v76
  %v157 = vunpack.c.l.b16 %v77
  %v158 = vunpack.c.l.b16 %v78
  %v159 = vunpack.c.l.b16 %v79
  %v160 = vunpack.c.l.b16 %v80
  %v161 = vunpack.c.l.b16 %v81
  %v162 = vunpack.c.l.b16 %v82
  %v163 = vunpack.c.l.b16 %v83
  %v164 = vunpack.c.l.b16 %v84
  %v165 = vunpack.c.l.b16 %v85
  %v166 = vpack.c.b16 %v151, %v150
  %v167 = vpack.c.b16 %v153, %v152
  %v168 = vpack.c.b16 %v155, %v154
  %v169 = vpack.c.b16 %v157, %v156
  %v170 = vpack.c.b16 %v159, %v158
  %v171 = vpack.c.b16 %v161, %v160
  %v172 = vpack.c.b16 %v163, %v162
  %v173 = vpack.c.b16 %v165, %v164
  %182 = vmatprep.subr.bf16.mxu0 0
  %183 = vmatpush1.bf16.msra.mxu0 %v166
  %184 = vmatprep.subr.bf16.mxu0 0
  %185 = vmatpush1.bf16.msra.mxu0 %v167
  %186 = vmatprep.subr.bf16.mxu0 0
  %187 = vmatpush1.bf16.msra.mxu0 %v168
  %188 = vmatprep.subr.bf16.mxu0 0
  %189 = vmatpush1.bf16.msra.mxu0 %v169
  %190 = vmatprep.subr.bf16.mxu0 0
  %191 = vmatpush1.bf16.msra.mxu0 %v170
  %192 = vmatprep.subr.bf16.mxu0 0
  %193 = vmatpush1.bf16.msra.mxu0 %v171
  %194 = vmatprep.subr.bf16.mxu0 0
  %195 = vmatpush1.bf16.msra.mxu0 %v172
  %196 = vmatprep.subr.bf16.mxu0 0
  %197 = vmatpush1.bf16.msra.mxu0 %v173
  %198 = vmatprep.subr.bf16.mxu0 0
  %199 = vmatpush1.bf16.msra.mxu0 0
  %200 = vmatprep.subr.bf16.mxu0 0
  %201 = vmatpush1.bf16.msra.mxu0 0
  %202 = vmatprep.subr.bf16.mxu0 0
  %203 = vmatpush1.bf16.msra.mxu0 0
  %204 = vmatprep.subr.bf16.mxu0 0
  %205 = vmatpush1.bf16.msra.mxu0 0
  %206 = vmatprep.subr.bf16.mxu0 0
  %207 = vmatpush1.bf16.msra.mxu0 0
  %208 = vmatprep.subr.bf16.mxu0 0
  %209 = vmatpush1.bf16.msra.mxu0 0
  %210 = vmatprep.subr.bf16.mxu0 0
  %211 = vmatpush1.bf16.msra.mxu0 0
  %212 = vmatprep.subr.bf16.mxu0 0
  %213 = vmatpush1.bf16.msra.mxu0 0
  %214 = vmatprep.mubr.bf16.mxu0 0
  %215 = vmatmul.mubr.bf16.gmra.mrb[0].mxu0 %v118
  %v216 = vpop.f32.mrb[0].mxu0
  %v217 = vadd.f32 0.0, %v216
  %v218 = vpop.f32.mrb[0].mxu0
  %v219 = vpop.f32.mrb[0].mxu0
  %v220 = vadd.f32 0.0, %v219
  %v221 = vpop.f32.mrb[0].mxu0
  %222 = vmatprep.mubr.bf16.mxu0 0
  %223 = vmatmul.mubr.bf16.gmra.mrb[0].mxu0 %v119
  %v224 = vpop.f32.mrb[0].mxu0
  %v225 = vadd.f32 0.0, %v224
  %v226 = vpop.f32.mrb[0].mxu0
  %v227 = vpop.f32.mrb[0].mxu0
  %v228 = vadd.f32 0.0, %v227
  %v229 = vpop.f32.mrb[0].mxu0
  %230 = vmatprep.mubr.bf16.mxu0 0
  %231 = vmatmul.mubr.bf16.gmra.mrb[0].mxu0 %v120
  %v232 = vpop.f32.mrb[0].mxu0
  %v233 = vadd.f32 0.0, %v232
  %v234 = vpop.f32.mrb[0].mxu0
  %v235 = vpop.f32.mrb[0].mxu0
  %v236 = vadd.f32 0.0, %v235
  %v237 = vpop.f32.mrb[0].mxu0
  %238 = vmatprep.mubr.bf16.mxu0 0
  %239 = vmatmul.mubr.bf16.gmra.mrb[0].mxu0 %v121
  %v240 = vpop.f32.mrb[0].mxu0
  %v241 = vadd.f32 0.0, %v240
  %v242 = vpop.f32.mrb[0].mxu0
  %v243 = vpop.f32.mrb[0].mxu0
  %v244 = vadd.f32 0.0, %v243
  %v245 = vpop.f32.mrb[0].mxu0
  %246 = vmatprep.mubr.bf16.mxu0 0
  %247 = vmatmul.mubr.bf16.gmra.mrb[0].mxu0 %v122
  %v248 = vpop.f32.mrb[0].mxu0
  %v249 = vadd.f32 0.0, %v248
  %v250 = vpop.f32.mrb[0].mxu0
  %v251 = vpop.f32.mrb[0].mxu0
  %v252 = vadd.f32 0.0, %v251
  %v253 = vpop.f32.mrb[0].mxu0
  %254 = vmatprep.mubr.bf16.mxu0 0
  %255 = vmatmul.mubr.bf16.gmra.mrb[0].mxu0 %v123
  %v256 = vpop.f32.mrb[0].mxu0
  %v257 = vadd.f32 0.0, %v256
  %v258 = vpop.f32.mrb[0].mxu0
  %v259 = vpop.f32.mrb[0].mxu0
  %v260 = vadd.f32 0.0, %v259
  %v261 = vpop.f32.mrb[0].mxu0
  %262 = vmatprep.mubr.bf16.mxu0 0
  %263 = vmatmul.mubr.bf16.gmra.mrb[0].mxu0 %v124
  %v264 = vpop.f32.mrb[0].mxu0
  %v265 = vadd.f32 0.0, %v264
  %v266 = vpop.f32.mrb[0].mxu0
  %v267 = vpop.f32.mrb[0].mxu0
  %v268 = vadd.f32 0.0, %v267
  %v269 = vpop.f32.mrb[0].mxu0
  %270 = vmatprep.mubr.bf16.mxu0 0
  %271 = vmatmul.mubr.bf16.gmra.mrb[0].mxu0 %v125
  %v272 = vpop.f32.mrb[0].mxu0
  %v273 = vadd.f32 0.0, %v272
  %v274 = vpop.f32.mrb[0].mxu0
  %v275 = vpop.f32.mrb[0].mxu0
  %v276 = vadd.f32 0.0, %v275
  %v277 = vpop.f32.mrb[0].mxu0
  %278 = vdwg.mxu0
  %v279 = vadd.f32 %v54, %v217
  %v280 = vadd.f32 %v55, %v220
  %v281 = vadd.f32 %v56, %v225
  %v282 = vadd.f32 %v57, %v228
  %v283 = vadd.f32 %v58, %v233
  %v284 = vadd.f32 %v59, %v236
  %v285 = vadd.f32 %v60, %v241
  %v286 = vadd.f32 %v61, %v244
  %v287 = vadd.f32 %v62, %v249
  %v288 = vadd.f32 %v63, %v252
  %v289 = vadd.f32 %v64, %v257
  %v290 = vadd.f32 %v65, %v260
  %v291 = vadd.f32 %v66, %v265
  %v292 = vadd.f32 %v67, %v268
  %v293 = vadd.f32 %v68, %v273
  %v294 = vadd.f32 %v69, %v276
  %295 = vst [vmem:[#allocation2] sm:$0xff] %v279
  %296 = vst [vmem:[#allocation2 + $0x8] sm:$0xff] %v280
  %297 = vst [vmem:[#allocation2 + $0x10] sm:$0xff] %v281
  %298 = vst [vmem:[#allocation2 + $0x18] sm:$0xff] %v282
  %299 = vst [vmem:[#allocation2 + $0x20] sm:$0xff] %v283
  %300 = vst [vmem:[#allocation2 + $0x28] sm:$0xff] %v284
  %301 = vst [vmem:[#allocation2 + $0x30] sm:$0xff] %v285
  %302 = vst [vmem:[#allocation2 + $0x38] sm:$0xff] %v286
  %303 = vst [vmem:[#allocation2 + $0x40] sm:$0xff] %v287
  %304 = vst [vmem:[#allocation2 + $0x48] sm:$0xff] %v288
  %305 = vst [vmem:[#allocation2 + $0x50] sm:$0xff] %v289
  %306 = vst [vmem:[#allocation2 + $0x58] sm:$0xff] %v290
  %307 = vst [vmem:[#allocation2 + $0x60] sm:$0xff] %v291
  %308 = vst [vmem:[#allocation2 + $0x68] sm:$0xff] %v292
  %309 = vst [vmem:[#allocation2 + $0x70] sm:$0xff] %v293
  %310 = vst [vmem:[#allocation2 + $0x78] sm:$0xff] %v294
  // Predicated region
  $region22: #{anynetx_forward.18} parent=0 // pred_check
    %p311 = pneg %p18
  $region23: #{anynetx_forward.18} parent=0 // pred_check_branch
    %313 = sbr.rel (%p311) target = $region25
  $region24: #{anynetx_forward.18} parent=0 // pred_region
    %v314 = vld [vmem:[#allocation2] sm:$0xff]
    %v315 = vld [vmem:[#allocation2 + $0x8] sm:$0xff]
    %v316 = vld [vmem:[#allocation2 + $0x10] sm:$0xff]
    %v317 = vld [vmem:[#allocation2 + $0x18] sm:$0xff]
    %v318 = vld [vmem:[#allocation2 + $0x20] sm:$0xff]
    %v319 = vld [vmem:[#allocation2 + $0x28] sm:$0xff]
    %v320 = vld [vmem:[#allocation2 + $0x30] sm:$0xff]
    %v321 = vld [vmem:[#allocation2 + $0x38] sm:$0xff]
    %v322 = vld [vmem:[#allocation2 + $0x40] sm:$0xff]
    %v323 = vld [vmem:[#allocation2 + $0x48] sm:$0xff]
    %v324 = vld [vmem:[#allocation2 + $0x50] sm:$0xff]
    %v325 = vld [vmem:[#allocation2 + $0x58] sm:$0xff]
    %v326 = vld [vmem:[#allocation2 + $0x60] sm:$0xff]
    %v327 = vld [vmem:[#allocation2 + $0x68] sm:$0xff]
    %v328 = vld [vmem:[#allocation2 + $0x70] sm:$0xff]
    %v329 = vld [vmem:[#allocation2 + $0x78] sm:$0xff]
    %v330 = vld [vmem:[%s2] sm:$0x1]
    %v332 = vlaneseq
    %v333 = vshrl.u32 %v332, 7
    %v334 = vsub.s32 0, %v333
    %v335 = vrot.slane %v330, %v334
    %v337 = vmul.f32 %v314, %v335
    %v338 = vmul.f32 %v315, %v335
    %v339 = vmul.f32 %v316, %v335
    %v340 = vmul.f32 %v317, %v335
    %v341 = vmul.f32 %v318, %v335
    %v342 = vmul.f32 %v319, %v335
    %v343 = vmul.f32 %v320, %v335
    %v344 = vmul.f32 %v321, %v335
    %v345 = vmul.f32 %v322, %v335
    %v346 = vmul.f32 %v323, %v335
    %v347 = vmul.f32 %v324, %v335
    %v348 = vmul.f32 %v325, %v335
    %v349 = vmul.f32 %v326, %v335
    %v350 = vmul.f32 %v327, %v335
    %v351 = vmul.f32 %v328, %v335
    %v352 = vmul.f32 %v329, %v335
    %v353 = vld [vmem:[%s3] sm:$0x1]
    %v355 = vlaneseq
    %v356 = vshrl.u32 %v355, 7
    %v357 = vsub.s32 0, %v356
    %v358 = vrot.slane %v353, %v357
    %v360 = vadd.f32 %v337, %v358
    %v361 = vadd.f32 %v338, %v358
    %v362 = vadd.f32 %v339, %v358
    %v363 = vadd.f32 %v340, %v358
    %v364 = vadd.f32 %v341, %v358
    %v365 = vadd.f32 %v342, %v358
    %v366 = vadd.f32 %v343, %v358
    %v367 = vadd.f32 %v344, %v358
    %v368 = vadd.f32 %v345, %v358
    %v369 = vadd.f32 %v346, %v358
    %v370 = vadd.f32 %v347, %v358
    %v371 = vadd.f32 %v348, %v358
    %v372 = vadd.f32 %v349, %v358
    %v373 = vadd.f32 %v350, %v358
    %v374 = vadd.f32 %v351, %v358
    %v375 = vadd.f32 %v352, %v358
    %v376 = vmax.f32 %v360, 0.0
    %v377 = vmax.f32 %v361, 0.0
    %v378 = vmax.f32 %v362, 0.0
    %v379 = vmax.f32 %v363, 0.0
    %v380 = vmax.f32 %v364, 0.0
    %v381 = vmax.f32 %v365, 0.0
    %v382 = vmax.f32 %v366, 0.0
    %v383 = vmax.f32 %v367, 0.0
    %v384 = vmax.f32 %v368, 0.0
    %v385 = vmax.f32 %v369, 0.0
    %v386 = vmax.f32 %v370, 0.0
    %v387 = vmax.f32 %v371, 0.0
    %v388 = vmax.f32 %v372, 0.0
    %v389 = vmax.f32 %v373, 0.0
    %v390 = vmax.f32 %v374, 0.0
    %v391 = vmax.f32 %v375, 0.0
    %392 = vst [vmem:[%s4] sm:$0xff] %v376
    %393 = vst [vmem:[%s4 + $0x8] sm:$0xff] %v377
    %394 = vst [vmem:[%s4 + $0x10] sm:$0xff] %v378
    %395 = vst [vmem:[%s4 + $0x18] sm:$0xff] %v379
    %396 = vst [vmem:[%s4 + $0x20] sm:$0xff] %v380
    %397 = vst [vmem:[%s4 + $0x28] sm:$0xff] %v381
    %398 = vst [vmem:[%s4 + $0x30] sm:$0xff] %v382
    %399 = vst [vmem:[%s4 + $0x38] sm:$0xff] %v383
    %400 = vst [vmem:[%s4 + $0x40] sm:$0xff] %v384
    %401 = vst [vmem:[%s4 + $0x48] sm:$0xff] %v385
    %402 = vst [vmem:[%s4 + $0x50] sm:$0xff] %v386
    %403 = vst [vmem:[%s4 + $0x58] sm:$0xff] %v387
    %404 = vst [vmem:[%s4 + $0x60] sm:$0xff] %v388
    %405 = vst [vmem:[%s4 + $0x68] sm:$0xff] %v389
    %406 = vst [vmem:[%s4 + $0x70] sm:$0xff] %v390
    %407 = vst [vmem:[%s4 + $0x78] sm:$0xff] %v391
  $region25: #{anynetx_forward.18} parent=0 // pred_fallthru
    _
  // Predicated region
  $region26: #{anynetx_forward.18} parent=0 // pred_check
    _
  $region27: #{anynetx_forward.18} parent=0 // pred_check_branch
    %409 = sbr.rel (0) target = $region29
  $region28: #{anynetx_forward.18} parent=0 // pred_region
    _
  $region29: #{anynetx_forward.18} parent=0 // pred_fallthru
    _
  // Predicated region
  $region30: #{anynetx_forward.18} parent=0 // pred_check
    _
  $region31: #{anynetx_forward.18} parent=0 // pred_check_branch
    %411 = sbr.rel (0) target = $region33
  $region32: #{anynetx_forward.18} parent=0 // pred_region
    _
  $region33: #{anynetx_forward.18} parent=0 // pred_fallthru
    _

// kernel: anynetx_forward.19
$region0: #{anynetx_forward.19}
  #allocation0 [shape = 'u32[]', space=smem, size = 0x4, offset = 0x4, fixed_abs, tag = 'smem constant byte address 0x4 - core index']
  #allocation1 [shape = 'u32[144,128]{1,0:T(1,128)}', space=vmem, size = 0x12000, scoped, tag = 'internal scratch']
  #allocation2 [shape = 'f32[32,8]{1,0:T(8,128)}', space=vmem, size = 0x4000, scoped, tag = 'scratch operand']
  %s0 = inlined_call_operand.vmem [shape: bf16[8,32,72], index: 0, kind: input, shape index: {}]
  %s1 = inlined_call_operand.vmem [shape: bf16[8,72,8], index: 1, kind: input, shape index: {}]
  %s2 = inlined_call_operand.vmem [shape: f32[8,1,8], index: 2, kind: input, shape index: {}]
  %s3 = inlined_call_operand.vmem [shape: f32[8,1,8], index: 3, kind: input, shape index: {}]
  %s4 = inlined_call_operand.vmem [shape: f32[8,32,8], index: 4, kind: output, shape index: {}]
  %s5 = sld [smem:[#allocation0]]
  $region57: #{anynetx_forward.19} parent=0
    _
  %s7 = ssub.s32 1, %s5
  %s8 = scalar_select 0, %s7, %s5
  loop: start=0, step=1, limit=10
  $region2: #{anynetx_forward.19} parent=0 // loop_pre_header
    _
  $region3: #{anynetx_forward.19} parent=0 // loop_header
    %s10 = sphi 0, %s14
    %p11 = scmp.ge.s32.totalorder %s10, 10
    %s17 = sphi 0, %s43
    %s18 = sphi 0, %s39
    %s19 = sphi 0, %s35
    %s20 = sphi 0, %s31
    %s21 = sphi 0, %s17
    %s22 = sphi 0, %s18
    %s23 = sphi 0, %s19
    %s24 = sphi 0, %s20
    %s25 = sphi 0, %s21
    %s26 = sphi 0, %s22
    %s27 = sphi 0, %s23
    %s28 = sphi 0, %s24
    %s50 = sphi 0, %s52
    %s53 = sphi 0, %s50
    %s54 = sphi 0, %s53
    %s70 = sphi 0, %s54
    %s80 = sphi 0, %s82
    %s83 = sphi 0, %s80
    %s84 = sphi 0, %s83
    %s100 = sphi 0, %s84
    %s108 = sphi 0, %s110
    %s111 = sphi 0, %s108
    %s112 = sphi 0, %s111
    %s128 = sphi 0, %s112
    %s136 = sphi 0, %s138
    %s139 = sphi 0, %s136
    %s140 = sphi 0, %s139
    %s156 = sphi 0, %s140
    %s166 = sphi 0, %s168
    %s169 = sphi 0, %s166
    %s170 = sphi 0, %s169
    %s186 = sphi 0, %s170
  $region4: #{anynetx_forward.19} parent=0 // loop_header_branch
    %13 = sbr.rel (%p11) target = $region8
  $region5: #{anynetx_forward.19} parent=0 // loop_body
    %s15 = ssub.s32 %s10, 1
    %s16 = ssub.s32 %s10, 2
    %s29 = sadd.s32 1, %s20
    %p30 = scmp.ge.s32.totalorder %s29, 1
    %s31 = scalar_select %p30, 0, %s29
    %s32 = sadd.s32 1, %s19
    %s33 = scalar_select %p30, %s32, %s19
    %p34 = scmp.ge.s32.totalorder %s33, 1
    %s35 = scalar_select %p34, 0, %s33
    %s36 = sadd.s32 1, %s18
    %s37 = scalar_select %p34, %s36, %s18
    %p38 = scmp.ge.s32.totalorder %s37, 1
    %s39 = scalar_select %p38, 0, %s37
    %s40 = sadd.s32 1, %s17
    %s41 = scalar_select %p38, %s40, %s17
    %p42 = scmp.ge.s32.totalorder %s41, 8
    %s43 = scalar_select %p42, 0, %s41
    %s44 = ssub.s32 %s17, %s43
    %s45 = ssub.s32 %s18, %s39
    %s46 = sor.u32 %s44, %s45
    %s47 = ssub.s32 %s20, %s31
    %s48 = sor.u32 %s46, %s47
    %p49 = scmp.eq.s32.totalorder %s48, 0
    %s51 = sadd.s32 %s50, 1
    %s52 = scalar_select %p49, %s50, %s51
    %p55 = pneg %p49
    %p56 = scmp.eq.s32.totalorder %s10, 7
    %p57 = por %p55, %p56
    %p58 = scmp.ne.s32.totalorder %s50, %s53
    %p59 = scmp.eq.s32.totalorder %s10, 0
    %p60 = por %p58, %p59
    %p61 = scmp.ne.s32.totalorder %s50, %s53
    %p62 = scmp.eq.s32.totalorder %s15, 7
    %p63 = por %p61, %p62
    %p64 = scmp.ne.s32.totalorder %s53, %s54
    %p65 = scmp.eq.s32.totalorder %s15, 0
    %p66 = por %p64, %p65
    %p67 = scmp.ne.s32.totalorder %s53, %s54
    %p68 = scmp.eq.s32.totalorder %s16, 7
    %p69 = por %p67, %p68
    %p71 = scmp.ne.s32.totalorder %s54, %s70
    %p72 = scmp.eq.s32.totalorder %s16, 0
    %p73 = por %p71, %p72
    %s74 = ssub.s32 %s17, %s43
    %s75 = ssub.s32 %s20, %s31
    %s76 = sor.u32 %s74, %s75
    %s77 = ssub.s32 %s19, %s35
    %s78 = sor.u32 %s76, %s77
    %p79 = scmp.eq.s32.totalorder %s78, 0
    %s81 = sadd.s32 %s80, 1
    %s82 = scalar_select %p79, %s80, %s81
    %p85 = pneg %p79
    %p86 = scmp.eq.s32.totalorder %s10, 7
    %p87 = por %p85, %p86
    %p88 = scmp.ne.s32.totalorder %s80, %s83
    %p89 = scmp.eq.s32.totalorder %s10, 0
    %p90 = por %p88, %p89
    %p91 = scmp.ne.s32.totalorder %s80, %s83
    %p92 = scmp.eq.s32.totalorder %s15, 7
    %p93 = por %p91, %p92
    %p94 = scmp.ne.s32.totalorder %s83, %s84
    %p95 = scmp.eq.s32.totalorder %s15, 0
    %p96 = por %p94, %p95
    %p97 = scmp.ne.s32.totalorder %s83, %s84
    %p98 = scmp.eq.s32.totalorder %s16, 7
    %p99 = por %p97, %p98
    %p101 = scmp.ne.s32.totalorder %s84, %s100
    %p102 = scmp.eq.s32.totalorder %s16, 0
    %p103 = por %p101, %p102
    %s104 = ssub.s32 %s17, %s43
    %s105 = ssub.s32 %s19, %s35
    %s106 = sor.u32 %s104, %s105
    %p107 = scmp.eq.s32.totalorder %s106, 0
    %s109 = sadd.s32 %s108, 1
    %s110 = scalar_select %p107, %s108, %s109
    %p113 = pneg %p107
    %p114 = scmp.eq.s32.totalorder %s10, 7
    %p115 = por %p113, %p114
    %p116 = scmp.ne.s32.totalorder %s108, %s111
    %p117 = scmp.eq.s32.totalorder %s10, 0
    %p118 = por %p116, %p117
    %p119 = scmp.ne.s32.totalorder %s108, %s111
    %p120 = scmp.eq.s32.totalorder %s15, 7
    %p121 = por %p119, %p120
    %p122 = scmp.ne.s32.totalorder %s111, %s112
    %p123 = scmp.eq.s32.totalorder %s15, 0
    %p124 = por %p122, %p123
    %p125 = scmp.ne.s32.totalorder %s111, %s112
    %p126 = scmp.eq.s32.totalorder %s16, 7
    %p127 = por %p125, %p126
    %p129 = scmp.ne.s32.totalorder %s112, %s128
    %p130 = scmp.eq.s32.totalorder %s16, 0
    %p131 = por %p129, %p130
    %s132 = ssub.s32 %s17, %s43
    %s133 = ssub.s32 %s19, %s35
    %s134 = sor.u32 %s132, %s133
    %p135 = scmp.eq.s32.totalorder %s134, 0
    %s137 = sadd.s32 %s136, 1
    %s138 = scalar_select %p135, %s136, %s137
    %p141 = pneg %p135
    %p142 = scmp.eq.s32.totalorder %s10, 7
    %p143 = por %p141, %p142
    %p144 = scmp.ne.s32.totalorder %s136, %s139
    %p145 = scmp.eq.s32.totalorder %s10, 0
    %p146 = por %p144, %p145
    %p147 = scmp.ne.s32.totalorder %s136, %s139
    %p148 = scmp.eq.s32.totalorder %s15, 7
    %p149 = por %p147, %p148
    %p150 = scmp.ne.s32.totalorder %s139, %s140
    %p151 = scmp.eq.s32.totalorder %s15, 0
    %p152 = por %p150, %p151
    %p153 = scmp.ne.s32.totalorder %s139, %s140
    %p154 = scmp.eq.s32.totalorder %s16, 7
    %p155 = por %p153, %p154
    %p157 = scmp.ne.s32.totalorder %s140, %s156
    %p158 = scmp.eq.s32.totalorder %s16, 0
    %p159 = por %p157, %p158
    %s160 = ssub.s32 %s17, %s43
    %s161 = ssub.s32 %s18, %s39
    %s162 = sor.u32 %s160, %s161
    %s163 = ssub.s32 %s19, %s35
    %s164 = sor.u32 %s162, %s163
    %p165 = scmp.eq.s32.totalorder %s164, 0
    %s167 = sadd.s32 %s166, 1
    %s168 = scalar_select %p165, %s166, %s167
    %p171 = pneg %p165
    %p172 = scmp.eq.s32.totalorder %s10, 7
    %p173 = por %p171, %p172
    %p174 = scmp.ne.s32.totalorder %s166, %s169
    %p175 = scmp.eq.s32.totalorder %s10, 0
    %p176 = por %p174, %p175
    %p177 = scmp.ne.s32.totalorder %s166, %s169
    %p178 = scmp.eq.s32.totalorder %s15, 7
    %p179 = por %p177, %p178
    %p180 = scmp.ne.s32.totalorder %s169, %s170
    %p181 = scmp.eq.s32.totalorder %s15, 0
    %p182 = por %p180, %p181
    %p183 = scmp.ne.s32.totalorder %s169, %s170
    %p184 = scmp.eq.s32.totalorder %s16, 7
    %p185 = por %p183, %p184
    %p187 = scmp.ne.s32.totalorder %s170, %s186
    %p188 = scmp.eq.s32.totalorder %s16, 0
    %p189 = por %p187, %p188
    %p190 = scmp.le.s32.totalorder 1, %s10
    %p191 = scmp.lt.s32.totalorder %s10, 9
    %p192 = pnand %p190, %p191
    %p193 = pneg %p192
    // Predicated region
    $region9: #{anynetx_forward.19} parent=5 // pred_check
      _
    $region10: #{anynetx_forward.19} parent=5 // pred_check_branch
      %195 = sbr.rel (%p192) target = $region12
    $region11: #{anynetx_forward.19} parent=5 // pred_region
      %s196 = ssub.s32 %s10, 1
    $region12: #{anynetx_forward.19} parent=5 // pred_fallthru
      _
    %p197 = scmp.lt.s32.totalorder %s10, 8
    // Predicated region
    $region13: #{anynetx_forward.19} parent=5 // pred_check
      %p198 = pneg %p197
    $region14: #{anynetx_forward.19} parent=5 // pred_check_branch
      %200 = sbr.rel (%p198) target = $region16
    $region15: #{anynetx_forward.19} parent=5 // pred_region
      // Predicated region
      $region17: #{anynetx_forward.19} parent=15 // pred_check
        %p201 = pneg %p60
      $region18: #{anynetx_forward.19} parent=15 // pred_check_branch
        %203 = sbr.rel (%p201) target = $region20
      $region19: #{anynetx_forward.19} parent=15 // pred_region
        %s204 = smul.u32 4, %s18
        %p205 = scmp.lt.s32.totalorder %s17, 7
        %s206 = scalar_select %p205, %s17, 7
        %p207 = scmp.lt.s32.totalorder %s204, 3
        %s208 = scalar_select %p207, %s204, 3
        %p209 = scmp.lt.s32.totalorder %s20, 0
        %s210 = scalar_select %p209, %s20, 0
        %s211 = sadd.s32 %s210, %s208
        %s212 = smul.addr %s206, 4
        %s213 = sadd.s32 %s211, %s212
        %s214 = smul.addr %s213, 4
        %s215 = scalar_lea.vmem %s0, %s214
        %s216 = smul.u32 4, %s18
      $region20: #{anynetx_forward.19} parent=15 // pred_fallthru
        _
      // Predicated region
      $region21: #{anynetx_forward.19} parent=15 // pred_check
        %p217 = pneg %p90
      $region22: #{anynetx_forward.19} parent=15 // pred_check_branch
        %219 = sbr.rel (%p217) target = $region24
      $region23: #{anynetx_forward.19} parent=15 // pred_region
        %s220 = smul.u32 9, %s20
        %p221 = scmp.lt.s32.totalorder %s17, 7
        %s222 = scalar_select %p221, %s17, 7
        %p223 = scmp.lt.s32.totalorder %s220, 8
        %s224 = scalar_select %p223, %s220, 8
        %p225 = scmp.lt.s32.totalorder %s19, 0
        %s226 = scalar_select %p225, %s19, 0
        %s227 = sadd.s32 %s226, %s224
        %s228 = smul.addr %s222, 9
        %s229 = sadd.s32 %s227, %s228
        %s230 = smul.addr %s229, 4
        %s231 = scalar_lea.vmem %s1, %s230
        %s232 = smul.u32 9, %s20
      $region24: #{anynetx_forward.19} parent=15 // pred_fallthru
        _
      // Predicated region
      $region25: #{anynetx_forward.19} parent=15 // pred_check
        %p233 = pneg %p118
      $region26: #{anynetx_forward.19} parent=15 // pred_check_branch
        %235 = sbr.rel (%p233) target = $region28
      $region27: #{anynetx_forward.19} parent=15 // pred_region
        %p236 = scmp.lt.s32.totalorder %s17, 7
        %s237 = scalar_select %p236, %s17, 7
        %p238 = scmp.lt.s32.totalorder %s19, 0
        %s239 = scalar_select %p238, %s19, 0
        %s240 = sadd.s32 %s239, %s237
        %s241 = scalar_lea.vmem %s2, %s240
      $region28: #{anynetx_forward.19} parent=15 // pred_fallthru
        _
      // Predicated region
      $region29: #{anynetx_forward.19} parent=15 // pred_check
        %p242 = pneg %p146
      $region30: #{anynetx_forward.19} parent=15 // pred_check_branch
        %244 = sbr.rel (%p242) target = $region32
      $region31: #{anynetx_forward.19} parent=15 // pred_region
        %p245 = scmp.lt.s32.totalorder %s17, 7
        %s246 = scalar_select %p245, %s17, 7
        %p247 = scmp.lt.s32.totalorder %s19, 0
        %s248 = scalar_select %p247, %s19, 0
        %s249 = sadd.s32 %s248, %s246
        %s250 = scalar_lea.vmem %s3, %s249
      $region32: #{anynetx_forward.19} parent=15 // pred_fallthru
        _
    $region16: #{anynetx_forward.19} parent=5 // pred_fallthru
      _
    %p251 = scmp.le.s32.totalorder 1, %s10
    %p252 = scmp.lt.s32.totalorder %s10, 9
    %p253 = pnand %p251, %p252
    %p254 = pneg %p253
    // Predicated region
    $region33: #{anynetx_forward.19} parent=5 // pred_check
      _
    $region34: #{anynetx_forward.19} parent=5 // pred_check_branch
      %256 = sbr.rel (%p253) target = $region36
    $region35: #{anynetx_forward.19} parent=5 // pred_region
      %s257 = ssub.s32 %s10, 1
      %s258 = smul.u32 4, %s22
      %p259 = scmp.lt.s32.totalorder %s21, 7
      %s260 = scalar_select %p259, %s21, 7
      %p261 = scmp.lt.s32.totalorder %s258, 3
      %s262 = scalar_select %p261, %s258, 3
      %p263 = scmp.lt.s32.totalorder %s24, 0
      %s264 = scalar_select %p263, %s24, 0
      %s265 = sadd.s32 %s264, %s262
      %s266 = smul.addr %s260, 4
      %s267 = sadd.s32 %s265, %s266
      %s268 = smul.addr %s267, 4
      %s269 = scalar_lea.vmem %s0, %s268
      %p270 = pneg %p66
      %p271 = pneg %p63
      %s272 = smul.u32 9, %s24
      %p273 = scmp.lt.s32.totalorder %s21, 7
      %s274 = scalar_select %p273, %s21, 7
      %p275 = scmp.lt.s32.totalorder %s272, 8
      %s276 = scalar_select %p275, %s272, 8
      %p277 = scmp.lt.s32.totalorder %s23, 0
      %s278 = scalar_select %p277, %s23, 0
      %s279 = sadd.s32 %s278, %s276
      %s280 = smul.addr %s274, 9
      %s281 = sadd.s32 %s279, %s280
      %s282 = smul.addr %s281, 4
      %s283 = scalar_lea.vmem %s1, %s282
      %p284 = pneg %p96
      %p285 = pneg %p93
      %p286 = scmp.lt.s32.totalorder %s21, 7
      %s287 = scalar_select %p286, %s21, 7
      %p288 = scmp.lt.s32.totalorder %s23, 0
      %s289 = scalar_select %p288, %s23, 0
      %s290 = sadd.s32 %s289, %s287
      %s291 = scalar_lea.vmem %s2, %s290
      %p292 = pneg %p124
      %p293 = pneg %p121
      %p294 = scmp.lt.s32.totalorder %s21, 7
      %s295 = scalar_select %p294, %s21, 7
      %p296 = scmp.lt.s32.totalorder %s23, 0
      %s297 = scalar_select %p296, %s23, 0
      %s298 = sadd.s32 %s297, %s295
      %s299 = scalar_lea.vmem %s3, %s298
      %p300 = pneg %p152
      %p301 = pneg %p149
      %p302 = pneg %p182
      %p303 = pneg %p179
      %s304 = smul.u32 4, %s22
      %p305 = scmp.lt.s32.totalorder %s21, 7
      %s306 = scalar_select %p305, %s21, 7
      %p307 = scmp.lt.s32.totalorder %s304, 3
      %s308 = scalar_select %p307, %s304, 3
      %p309 = scmp.lt.s32.totalorder %s23, 0
      %s310 = scalar_select %p309, %s23, 0
      %s311 = sadd.s32 %s310, %s308
      %s312 = smul.addr %s306, 4
      %s313 = sadd.s32 %s311, %s312
      %s314 = smul.addr %s313, 8
      %s315 = scalar_lea.vmem %s4, %s314
      %s316 = smul.u32 4, %s22
      %p317 = scmp.lt.s32.totalorder %s21, 7
      %s318 = scalar_select %p317, %s21, 7
      %p319 = scmp.lt.s32.totalorder %s316, 3
      %s320 = scalar_select %p319, %s316, 3
      %p321 = scmp.lt.s32.totalorder %s24, 0
      %s322 = scalar_select %p321, %s24, 0
      %s323 = sadd.s32 %s322, %s320
      %s324 = smul.addr %s318, 4
      %s325 = sadd.s32 %s323, %s324
      %s326 = smul.addr %s325, 4
      %s327 = scalar_lea.vmem %s0, %s326
      %s328 = smul.u32 4, %s22
      %s329 = smul.u32 9, %s24
      %p330 = scmp.lt.s32.totalorder %s21, 7
      %s331 = scalar_select %p330, %s21, 7
      %p332 = scmp.lt.s32.totalorder %s329, 8
      %s333 = scalar_select %p332, %s329, 8
      %p334 = scmp.lt.s32.totalorder %s23, 0
      %s335 = scalar_select %p334, %s23, 0
      %s336 = sadd.s32 %s335, %s333
      %s337 = smul.addr %s331, 9
      %s338 = sadd.s32 %s336, %s337
      %s339 = smul.addr %s338, 4
      %s340 = scalar_lea.vmem %s1, %s339
      %s341 = smul.u32 9, %s24
      %p342 = scmp.lt.s32.totalorder %s21, 7
      %s343 = scalar_select %p342, %s21, 7
      %p344 = scmp.lt.s32.totalorder %s23, 0
      %s345 = scalar_select %p344, %s23, 0
      %s346 = sadd.s32 %s345, %s343
      %s347 = scalar_lea.vmem %s2, %s346
      %p348 = scmp.lt.s32.totalorder %s21, 7
      %s349 = scalar_select %p348, %s21, 7
      %p350 = scmp.lt.s32.totalorder %s23, 0
      %s351 = scalar_select %p350, %s23, 0
      %s352 = sadd.s32 %s351, %s349
      %s353 = scalar_lea.vmem %s3, %s352
      %s354 = smul.u32 4, %s22
      %p355 = scmp.lt.s32.totalorder %s21, 7
      %s356 = scalar_select %p355, %s21, 7
      %p357 = scmp.lt.s32.totalorder %s354, 3
      %s358 = scalar_select %p357, %s354, 3
      %p359 = scmp.lt.s32.totalorder %s23, 0
      %s360 = scalar_select %p359, %s23, 0
      %s361 = sadd.s32 %s360, %s358
      %s362 = smul.addr %s356, 4
      %s363 = sadd.s32 %s361, %s362
      %s364 = smul.addr %s363, 8
      %s365 = scalar_lea.vmem %s4, %s364
      %s366 = smul.u32 4, %s22
      %p368 = scmp.eq.s32.totalorder %s24, 0
      // Predicated region
      $region37: #{anynetx_forward.19} parent=35 // pred_check
        %p369 = pneg %p368
      $region38: #{anynetx_forward.19} parent=35 // pred_check_branch
        %371 = sbr.rel (%p369) target = $region40
      $region39: #{anynetx_forward.19} parent=35 // pred_region
        %vm372 = vcmask 64512
        %373 = vst.msk [vmem:[#allocation2] sm:$0xff] %vm372, 0.0
        %374 = vst.msk [vmem:[#allocation2 + $0x8] sm:$0xff] %vm372, 0.0
        %375 = vst.msk [vmem:[#allocation2 + $0x10] sm:$0xff] %vm372, 0.0
        %376 = vst.msk [vmem:[#allocation2 + $0x18] sm:$0xff] %vm372, 0.0
      $region40: #{anynetx_forward.19} parent=35 // pred_fallthru
        _
      %v377 = vld [vmem:[%s327] sm:$0xf]
      %v378 = vld [vmem:[%s327 + $0x4] sm:$0xf]
      %v379 = vld [vmem:[%s327 + $0x8] sm:$0xf]
      %v380 = vld [vmem:[%s327 + $0xc] sm:$0xf]
      %v381 = vld [vmem:[#allocation2] sm:$0xff]
      %v382 = vld [vmem:[#allocation2 + $0x8] sm:$0xff]
      %v383 = vld [vmem:[#allocation2 + $0x10] sm:$0xff]
      %v384 = vld [vmem:[#allocation2 + $0x18] sm:$0xff]
      %v385 = vld [vmem:[%s340] sm:$0xf]
      %v386 = vld [vmem:[%s340 + $0x4] sm:$0xf]
      %v387 = vld [vmem:[%s340 + $0x8] sm:$0xf]
      %v388 = vld [vmem:[%s340 + $0xc] sm:$0xf]
      %v389 = vld [vmem:[%s340 + $0x10] sm:$0xf]
      %v390 = vld [vmem:[%s340 + $0x14] sm:$0xf]
      %v391 = vld [vmem:[%s340 + $0x18] sm:$0xf]
      %v392 = vld [vmem:[%s340 + $0x1c] sm:$0xf]
      %v393 = vld [vmem:[%s340 + $0x20] sm:$0xf]
      %v398 = vunpack.c.l.b16 %v377
      %v399 = vunpack.c.l.b16 %v378
      %v400 = vunpack.c.l.b16 %v379
      %v401 = vunpack.c.l.b16 %v380
      %v402 = vpack.c.b16 %v399, %v398
      %v403 = vpack.c.b16 %v401, %v400
      %v413 = vunpack.c.l.b16 %v385
      %v414 = vunpack.c.l.b16 %v386
      %v415 = vunpack.c.l.b16 %v387
      %v416 = vunpack.c.l.b16 %v388
      %v417 = vunpack.c.l.b16 %v389
      %v418 = vunpack.c.l.b16 %v390
      %v419 = vunpack.c.l.b16 %v391
      %v420 = vunpack.c.l.b16 %v392
      %v421 = vunpack.c.l.b16 %v393
      %v422 = vpack.c.b16 %v414, %v413
      %v423 = vpack.c.b16 %v416, %v415
      %v424 = vpack.c.b16 %v418, %v417
      %v425 = vpack.c.b16 %v420, %v419
      %v426 = vpack.c.b16 %v421, %v421
      %vm431 = vcmask 588800
      %v433 = vsel %vm431, %v402, 0
      %v436 = vsel %vm431, %v403, 0
      %vm438 = vcmask 1043456
      %v440 = vsel %vm438, %v426, 0
      %442 = vmatprep.subr.bf16.mxu0 0
      %443 = vmatpush1.bf16.msra.mxu0 %v422
      %444 = vmatprep.subr.bf16.mxu0 0
      %445 = vmatpush1.bf16.msra.mxu0 %v423
      %446 = vmatprep.subr.bf16.mxu0 0
      %447 = vmatpush1.bf16.msra.mxu0 %v424
      %448 = vmatprep.subr.bf16.mxu0 0
      %449 = vmatpush1.bf16.msra.mxu0 %v425
      %450 = vmatprep.subr.bf16.mxu0 0
      %451 = vmatpush1.bf16.msra.mxu0 %v440
      %452 = vmatprep.subr.bf16.mxu0 0
      %453 = vmatpush1.bf16.msra.mxu0 0
      %454 = vmatprep.subr.bf16.mxu0 0
      %455 = vmatpush1.bf16.msra.mxu0 0
      %456 = vmatprep.subr.bf16.mxu0 0
      %457 = vmatpush1.bf16.msra.mxu0 0
      %458 = vmatprep.subr.bf16.mxu0 0
      %459 = vmatpush1.bf16.msra.mxu0 0
      %460 = vmatprep.subr.bf16.mxu0 0
      %461 = vmatpush1.bf16.msra.mxu0 0
      %462 = vmatprep.subr.bf16.mxu0 0
      %463 = vmatpush1.bf16.msra.mxu0 0
      %464 = vmatprep.subr.bf16.mxu0 0
      %465 = vmatpush1.bf16.msra.mxu0 0
      %466 = vmatprep.subr.bf16.mxu0 0
      %467 = vmatpush1.bf16.msra.mxu0 0
      %468 = vmatprep.subr.bf16.mxu0 0
      %469 = vmatpush1.bf16.msra.mxu0 0
      %470 = vmatprep.subr.bf16.mxu0 0
      %471 = vmatpush1.bf16.msra.mxu0 0
      %472 = vmatprep.subr.bf16.mxu0 0
      %473 = vmatpush1.bf16.msra.mxu0 0
      %474 = vmatprep.mubr.bf16.mxu0 0
      %475 = vmatmul.mubr.bf16.gmra.mrb[0].mxu0 %v433
      %v476 = vpop.f32.mrb[0].mxu0
      %v477 = vadd.f32 0.0, %v476
      %v478 = vpop.f32.mrb[0].mxu0
      %v479 = vpop.f32.mrb[0].mxu0
      %v480 = vadd.f32 0.0, %v479
      %v481 = vpop.f32.mrb[0].mxu0
      %482 = vmatprep.mubr.bf16.mxu0 0
      %483 = vmatmul.mubr.bf16.gmra.mrb[0].mxu0 %v436
      %v484 = vpop.f32.mrb[0].mxu0
      %v485 = vadd.f32 0.0, %v484
      %v486 = vpop.f32.mrb[0].mxu0
      %v487 = vpop.f32.mrb[0].mxu0
      %v488 = vadd.f32 0.0, %v487
      %v489 = vpop.f32.mrb[0].mxu0
      %490 = vdwg.mxu0
      %v491 = vadd.f32 %v381, %v477
      %v492 = vadd.f32 %v382, %v480
      %v493 = vadd.f32 %v383, %v485
      %v494 = vadd.f32 %v384, %v488
      %vm495 = vcmask 64512
      %496 = vst.msk [vmem:[#allocation2] sm:$0xff] %vm495, %v491
      %497 = vst.msk [vmem:[#allocation2 + $0x8] sm:$0xff] %vm495, %v492
      %498 = vst.msk [vmem:[#allocation2 + $0x10] sm:$0xff] %vm495, %v493
      %499 = vst.msk [vmem:[#allocation2 + $0x18] sm:$0xff] %vm495, %v494
      // Predicated region
      $region41: #{anynetx_forward.19} parent=35 // pred_check
        %p500 = pneg %p368
      $region42: #{anynetx_forward.19} parent=35 // pred_check_branch
        %502 = sbr.rel (%p500) target = $region44
      $region43: #{anynetx_forward.19} parent=35 // pred_region
        %v503 = vld [vmem:[#allocation2] sm:$0xff]
        %v504 = vld [vmem:[#allocation2 + $0x8] sm:$0xff]
        %v505 = vld [vmem:[#allocation2 + $0x10] sm:$0xff]
        %v506 = vld [vmem:[#allocation2 + $0x18] sm:$0xff]
        %v507 = vld [vmem:[%s347] sm:$0x1]
        %v509 = vlaneseq
        %v510 = vshrl.u32 %v509, 7
        %v511 = vsub.s32 0, %v510
        %v512 = vrot.slane %v507, %v511
        %v514 = vmul.f32 %v503, %v512
        %v515 = vmul.f32 %v504, %v512
        %v516 = vmul.f32 %v505, %v512
        %v517 = vmul.f32 %v506, %v512
        %v518 = vld [vmem:[%s353] sm:$0x1]
        %v520 = vlaneseq
        %v521 = vshrl.u32 %v520, 7
        %v522 = vsub.s32 0, %v521
        %v523 = vrot.slane %v518, %v522
        %v525 = vadd.f32 %v514, %v523
        %v526 = vadd.f32 %v515, %v523
        %v527 = vadd.f32 %v516, %v523
        %v528 = vadd.f32 %v517, %v523
        %v529 = vmax.f32 %v525, 0.0
        %v530 = vmax.f32 %v526, 0.0
        %v531 = vmax.f32 %v527, 0.0
        %v532 = vmax.f32 %v528, 0.0
        %533 = vst.msk [vmem:[%s365] sm:$0xff] %vm495, %v529
        %534 = vst.msk [vmem:[%s365 + $0x8] sm:$0xff] %vm495, %v530
        %535 = vst.msk [vmem:[%s365 + $0x10] sm:$0xff] %vm495, %v531
        %536 = vst.msk [vmem:[%s365 + $0x18] sm:$0xff] %vm495, %v532
      $region44: #{anynetx_forward.19} parent=35 // pred_fallthru
        _
      %s537 = smul.u32 4, %s22
      %p538 = scmp.lt.s32.totalorder %s21, 7
      %s539 = scalar_select %p538, %s21, 7
      %p540 = scmp.lt.s32.totalorder %s537, 3
      %s541 = scalar_select %p540, %s537, 3
      %p542 = scmp.lt.s32.totalorder %s23, 0
      %s543 = scalar_select %p542, %s23, 0
      %s544 = sadd.s32 %s543, %s541
      %s545 = smul.addr %s539, 4
      %s546 = sadd.s32 %s544, %s545
      %s547 = smul.addr %s546, 8
      %s548 = scalar_lea.vmem %s4, %s547
      // Predicated region
      $region45: #{anynetx_forward.19} parent=35 // pred_check
        %p549 = pneg %p179
      $region46: #{anynetx_forward.19} parent=35 // pred_check_branch
        %551 = sbr.rel (%p549) target = $region48
      $region47: #{anynetx_forward.19} parent=35 // pred_region
        %s552 = smul.u32 4, %s22
      $region48: #{anynetx_forward.19} parent=35 // pred_fallthru
        _
    $region36: #{anynetx_forward.19} parent=5 // pred_fallthru
      _
    %p553 = scmp.le.s32.totalorder 2, %s10
    // Predicated region
    $region49: #{anynetx_forward.19} parent=5 // pred_check
      %p554 = pneg %p553
    $region50: #{anynetx_forward.19} parent=5 // pred_check_branch
      %556 = sbr.rel (%p554) target = $region52
    $region51: #{anynetx_forward.19} parent=5 // pred_region
      %s557 = ssub.s32 %s10, 2
      // Predicated region
      $region53: #{anynetx_forward.19} parent=51 // pred_check
        %p558 = pneg %p185
      $region54: #{anynetx_forward.19} parent=51 // pred_check_branch
        %560 = sbr.rel (%p558) target = $region56
      $region55: #{anynetx_forward.19} parent=51 // pred_region
        %s561 = smul.u32 4, %s26
        %p562 = scmp.lt.s32.totalorder %s25, 7
        %s563 = scalar_select %p562, %s25, 7
        %p564 = scmp.lt.s32.totalorder %s561, 3
        %s565 = scalar_select %p564, %s561, 3
        %p566 = scmp.lt.s32.totalorder %s27, 0
        %s567 = scalar_select %p566, %s27, 0
        %s568 = sadd.s32 %s567, %s565
        %s569 = smul.addr %s563, 4
        %s570 = sadd.s32 %s568, %s569
        %s571 = smul.addr %s570, 8
        %s572 = scalar_lea.vmem %s4, %s571
      $region56: #{anynetx_forward.19} parent=51 // pred_fallthru
        _
    $region52: #{anynetx_forward.19} parent=5 // pred_fallthru
      _
  $region6: #{anynetx_forward.19} parent=0 // loop_footer
    %s14 = sadd.s32 1, %s10
  $region7: #{anynetx_forward.19} parent=0 // loop_footer_branch
    %9 = sbr.rel target = $region3
  $region8: #{anynetx_forward.19} parent=0 // loop_exit
    _

// kernel: anynetx_forward.20
$region0: #{anynetx_forward.20}
  #allocation0 [shape = 'u32[]', space=smem, size = 0x4, offset = 0x4, fixed_abs, tag = 'smem constant byte address 0x4 - core index']
  #allocation1 [shape = 'u32[144,128]{1,0:T(1,128)}', space=vmem, size = 0x12000, scoped, tag = 'internal scratch']
  %s0 = inlined_call_operand.vmem [shape: f32[2,16,128], index: 0, kind: input, shape index: {}]
  %s1 = inlined_call_operand.vmem [shape: bf16[128,128], index: 1, kind: input, shape index: {}]
  %s2 = inlined_call_operand.vmem [shape: f32[1,128], index: 2, kind: input, shape index: {}]
  %s3 = inlined_call_operand.vmem [shape: bf16[128,128], index: 3, kind: input, shape index: {}]
  %s4 = inlined_call_operand.vmem [shape: f32[1,128], index: 4, kind: input, shape index: {}]
  %s5 = inlined_call_operand.vmem [shape: f32[2,128], index: 5, kind: output, shape index: {}]
  %s6 = sld [smem:[#allocation0]]
  $region30: #{anynetx_forward.20} parent=0
    _
  %s8 = ssub.s32 1, %s6
  %s9 = scalar_select 0, %s8, %s6
  // Predicated region
  $region2: #{anynetx_forward.20} parent=0 // pred_check
    _
  $region3: #{anynetx_forward.20} parent=0 // pred_check_branch
    %11 = sbr.rel (0) target = $region5
  $region4: #{anynetx_forward.20} parent=0 // pred_region
    _
  $region5: #{anynetx_forward.20} parent=0 // pred_fallthru
    _
  // Predicated region
  $region6: #{anynetx_forward.20} parent=0 // pred_check
    _
  $region7: #{anynetx_forward.20} parent=0 // pred_check_branch
    %13 = sbr.rel (0) target = $region9
  $region8: #{anynetx_forward.20} parent=0 // pred_region
    _
  $region9: #{anynetx_forward.20} parent=0 // pred_fallthru
    _
  // Predicated region
  $region10: #{anynetx_forward.20} parent=0 // pred_check
    _
  $region11: #{anynetx_forward.20} parent=0 // pred_check_branch
    %15 = sbr.rel (0) target = $region13
  $region12: #{anynetx_forward.20} parent=0 // pred_region
    _
  $region13: #{anynetx_forward.20} parent=0 // pred_fallthru
    _
  // Predicated region
  $region14: #{anynetx_forward.20} parent=0 // pred_check
    _
  $region15: #{anynetx_forward.20} parent=0 // pred_check_branch
    %17 = sbr.rel (0) target = $region17
  $region16: #{anynetx_forward.20} parent=0 // pred_region
    _
  $region17: #{anynetx_forward.20} parent=0 // pred_fallthru
    _
  // Predicated region
  $region18: #{anynetx_forward.20} parent=0 // pred_check
    _
  $region19: #{anynetx_forward.20} parent=0 // pred_check_branch
    %19 = sbr.rel (0) target = $region21
  $region20: #{anynetx_forward.20} parent=0 // pred_region
    _
  $region21: #{anynetx_forward.20} parent=0 // pred_fallthru
    _
  %v21 = vld [vmem:[%s0] sm:$0xff]
  %v22 = vld [vmem:[%s0 + $0x8] sm:$0xff]
  %v23 = vld [vmem:[%s0 + $0x10] sm:$0xff]
  %v24 = vld [vmem:[%s0 + $0x18] sm:$0xff]
  %v25 = vadd.f32 %v21, %v22
  %v26 = vrot.slane %v25, 4
  %v27 = vadd.f32 %v25, %v26
  %v28 = vrot.slane %v27, 2
  %v29 = vadd.f32 %v27, %v28
  %v30 = vrot.slane %v29, 1
  %v31 = vadd.f32 %v29, %v30
  %v32 = vadd.f32 %v23, %v24
  %v33 = vrot.slane %v32, 4
  %v34 = vadd.f32 %v32, %v33
  %v35 = vrot.slane %v34, 2
  %v36 = vadd.f32 %v34, %v35
  %v37 = vrot.slane %v36, 1
  %v38 = vadd.f32 %v36, %v37
  %v39 = vrcp.pop 16.0
  %v40 = vmul.f32 %v31, %v39
  %v41 = vmul.f32 %v38, %v39
  %v42 = vpack.c.bf16 %v40, %v40
  %v43 = vpack.c.bf16 %v41, %v41
  %v44 = vld [vmem:[%s1] sm:$0xf]
  %v45 = vld [vmem:[%s1 + $0x4] sm:$0xf]
  %v46 = vld [vmem:[%s1 + $0x8] sm:$0xf]
  %v47 = vld [vmem:[%s1 + $0xc] sm:$0xf]
  %v48 = vld [vmem:[%s1 + $0x10] sm:$0xf]
  %v49 = vld [vmem:[%s1 + $0x14] sm:$0xf]
  %v50 = vld [vmem:[%s1 + $0x18] sm:$0xf]
  %v51 = vld [vmem:[%s1 + $0x1c] sm:$0xf]
  %v52 = vld [vmem:[%s1 + $0x20] sm:$0xf]
  %v53 = vld [vmem:[%s1 + $0x24] sm:$0xf]
  %v54 = vld [vmem:[%s1 + $0x28] sm:$0xf]
  %v55 = vld [vmem:[%s1 + $0x2c] sm:$0xf]
  %v56 = vld [vmem:[%s1 + $0x30] sm:$0xf]
  %v57 = vld [vmem:[%s1 + $0x34] sm:$0xf]
  %v58 = vld [vmem:[%s1 + $0x38] sm:$0xf]
  %v59 = vld [vmem:[%s1 + $0x3c] sm:$0xf]
  %v60 = vld [vmem:[%s2] sm:$0x1]
  %v62 = vlaneseq
  %v63 = vshrl.u32 %v62, 7
  %v64 = vsub.s32 0, %v63
  %v65 = vrot.slane %v60, %v64
  %v69 = vunpack.c.l.b16 %v42
  %v70 = vunpack.c.l.b16 %v43
  %vm71 = vcmask 1041409
  %v72 = vsel %vm71, %v70, %v69
  %v73 = vpack.c.b16 %v72, %v72
  %v91 = vunpack.c.l.b16 %v44
  %v92 = vunpack.c.l.b16 %v45
  %v93 = vunpack.c.l.b16 %v46
  %v94 = vunpack.c.l.b16 %v47
  %v95 = vunpack.c.l.b16 %v48
  %v96 = vunpack.c.l.b16 %v49
  %v97 = vunpack.c.l.b16 %v50
  %v98 = vunpack.c.l.b16 %v51
  %v99 = vunpack.c.l.b16 %v52
  %v100 = vunpack.c.l.b16 %v53
  %v101 = vunpack.c.l.b16 %v54
  %v102 = vunpack.c.l.b16 %v55
  %v103 = vunpack.c.l.b16 %v56
  %v104 = vunpack.c.l.b16 %v57
  %v105 = vunpack.c.l.b16 %v58
  %v106 = vunpack.c.l.b16 %v59
  %v107 = vpack.c.b16 %v92, %v91
  %v108 = vpack.c.b16 %v94, %v93
  %v109 = vpack.c.b16 %v96, %v95
  %v110 = vpack.c.b16 %v98, %v97
  %v111 = vpack.c.b16 %v100, %v99
  %v112 = vpack.c.b16 %v102, %v101
  %v113 = vpack.c.b16 %v104, %v103
  %v114 = vpack.c.b16 %v106, %v105
  %123 = vmatprep.subr.bf16.mxu0 0
  %124 = vmatpush1.bf16.msra.mxu0 %v107
  %125 = vmatprep.subr.bf16.mxu0 0
  %126 = vmatpush1.bf16.msra.mxu0 %v108
  %127 = vmatprep.subr.bf16.mxu0 0
  %128 = vmatpush1.bf16.msra.mxu0 %v109
  %129 = vmatprep.subr.bf16.mxu0 0
  %130 = vmatpush1.bf16.msra.mxu0 %v110
  %131 = vmatprep.subr.bf16.mxu0 0
  %132 = vmatpush1.bf16.msra.mxu0 %v111
  %133 = vmatprep.subr.bf16.mxu0 0
  %134 = vmatpush1.bf16.msra.mxu0 %v112
  %135 = vmatprep.subr.bf16.mxu0 0
  %136 = vmatpush1.bf16.msra.mxu0 %v113
  %137 = vmatprep.subr.bf16.mxu0 0
  %138 = vmatpush1.bf16.msra.mxu0 %v114
  %139 = vmatprep.subr.bf16.mxu0 0
  %140 = vmatpush1.bf16.msra.mxu0 0
  %141 = vmatprep.subr.bf16.mxu0 0
  %142 = vmatpush1.bf16.msra.mxu0 0
  %143 = vmatprep.subr.bf16.mxu0 0
  %144 = vmatpush1.bf16.msra.mxu0 0
  %145 = vmatprep.subr.bf16.mxu0 0
  %146 = vmatpush1.bf16.msra.mxu0 0
  %147 = vmatprep.subr.bf16.mxu0 0
  %148 = vmatpush1.bf16.msra.mxu0 0
  %149 = vmatprep.subr.bf16.mxu0 0
  %150 = vmatpush1.bf16.msra.mxu0 0
  %151 = vmatprep.subr.bf16.mxu0 0
  %152 = vmatpush1.bf16.msra.mxu0 0
  %153 = vmatprep.subr.bf16.mxu0 0
  %154 = vmatpush1.bf16.msra.mxu0 0
  %155 = vmatprep.mubr.bf16.mxu0 0
  %156 = vmatmul.mubr.bf16.gmra.mrb[0].mxu0 %v73
  %v157 = vpop.f32.mrb[0].mxu0
  %v158 = vadd.f32 %v65, %v157
  %v159 = vpop.f32.mrb[0].mxu0
  %v160 = vpop.f32.mrb[0].mxu0
  %v161 = vpop.f32.mrb[0].mxu0
  %162 = vdwg.mxu0
  %v163 = vmax.f32 %v158, 0.0
  %v164 = vpack.c.bf16 %v163, %v163
  %v165 = vld [vmem:[%s3] sm:$0xf]
  %v166 = vld [vmem:[%s3 + $0x4] sm:$0xf]
  %v167 = vld [vmem:[%s3 + $0x8] sm:$0xf]
  %v168 = vld [vmem:[%s3 + $0xc] sm:$0xf]
  %v169 = vld [vmem:[%s3 + $0x10] sm:$0xf]
  %v170 = vld [vmem:[%s3 + $0x14] sm:$0xf]
  %v171 = vld [vmem:[%s3 + $0x18] sm:$0xf]
  %v172 = vld [vmem:[%s3 + $0x1c] sm:$0xf]
  %v173 = vld [vmem:[%s3 + $0x20] sm:$0xf]
  %v174 = vld [vmem:[%s3 + $0x24] sm:$0xf]
  %v175 = vld [vmem:[%s3 + $0x28] sm:$0xf]
  %v176 = vld [vmem:[%s3 + $0x2c] sm:$0xf]
  %v177 = vld [vmem:[%s3 + $0x30] sm:$0xf]
  %v178 = vld [vmem:[%s3 + $0x34] sm:$0xf]
  %v179 = vld [vmem:[%s3 + $0x38] sm:$0xf]
  %v180 = vld [vmem:[%s3 + $0x3c] sm:$0xf]
  %v181 = vld [vmem:[%s4] sm:$0x1]
  %v183 = vlaneseq
  %v184 = vshrl.u32 %v183, 7
  %v185 = vsub.s32 0, %v184
  %v186 = vrot.slane %v181, %v185
  %v204 = vunpack.c.l.b16 %v165
  %v205 = vunpack.c.l.b16 %v166
  %v206 = vunpack.c.l.b16 %v167
  %v207 = vunpack.c.l.b16 %v168
  %v208 = vunpack.c.l.b16 %v169
  %v209 = vunpack.c.l.b16 %v170
  %v210 = vunpack.c.l.b16 %v171
  %v211 = vunpack.c.l.b16 %v172
  %v212 = vunpack.c.l.b16 %v173
  %v213 = vunpack.c.l.b16 %v174
  %v214 = vunpack.c.l.b16 %v175
  %v215 = vunpack.c.l.b16 %v176
  %v216 = vunpack.c.l.b16 %v177
  %v217 = vunpack.c.l.b16 %v178
  %v218 = vunpack.c.l.b16 %v179
  %v219 = vunpack.c.l.b16 %v180
  %v220 = vpack.c.b16 %v205, %v204
  %v221 = vpack.c.b16 %v207, %v206
  %v222 = vpack.c.b16 %v209, %v208
  %v223 = vpack.c.b16 %v211, %v210
  %v224 = vpack.c.b16 %v213, %v212
  %v225 = vpack.c.b16 %v215, %v214
  %v226 = vpack.c.b16 %v217, %v216
  %v227 = vpack.c.b16 %v219, %v218
  %236 = vmatprep.subr.bf16.mxu0 0
  %237 = vmatpush1.bf16.msra.mxu0 %v220
  %238 = vmatprep.subr.bf16.mxu0 0
  %239 = vmatpush1.bf16.msra.mxu0 %v221
  %240 = vmatprep.subr.bf16.mxu0 0
  %241 = vmatpush1.bf16.msra.mxu0 %v222
  %242 = vmatprep.subr.bf16.mxu0 0
  %243 = vmatpush1.bf16.msra.mxu0 %v223
  %244 = vmatprep.subr.bf16.mxu0 0
  %245 = vmatpush1.bf16.msra.mxu0 %v224
  %246 = vmatprep.subr.bf16.mxu0 0
  %247 = vmatpush1.bf16.msra.mxu0 %v225
  %248 = vmatprep.subr.bf16.mxu0 0
  %249 = vmatpush1.bf16.msra.mxu0 %v226
  %250 = vmatprep.subr.bf16.mxu0 0
  %251 = vmatpush1.bf16.msra.mxu0 %v227
  %252 = vmatprep.subr.bf16.mxu0 0
  %253 = vmatpush1.bf16.msra.mxu0 0
  %254 = vmatprep.subr.bf16.mxu0 0
  %255 = vmatpush1.bf16.msra.mxu0 0
  %256 = vmatprep.subr.bf16.mxu0 0
  %257 = vmatpush1.bf16.msra.mxu0 0
  %258 = vmatprep.subr.bf16.mxu0 0
  %259 = vmatpush1.bf16.msra.mxu0 0
  %260 = vmatprep.subr.bf16.mxu0 0
  %261 = vmatpush1.bf16.msra.mxu0 0
  %262 = vmatprep.subr.bf16.mxu0 0
  %263 = vmatpush1.bf16.msra.mxu0 0
  %264 = vmatprep.subr.bf16.mxu0 0
  %265 = vmatpush1.bf16.msra.mxu0 0
  %266 = vmatprep.subr.bf16.mxu0 0
  %267 = vmatpush1.bf16.msra.mxu0 0
  %268 = vmatprep.mubr.bf16.mxu0 0
  %269 = vmatmul.mubr.bf16.gmra.mrb[0].mxu0 %v164
  %v270 = vpop.f32.mrb[0].mxu0
  %v271 = vadd.f32 %v186, %v270
  %v272 = vpop.f32.mrb[0].mxu0
  %v273 = vpop.f32.mrb[0].mxu0
  %v274 = vpop.f32.mrb[0].mxu0
  %275 = vdwg.mxu0
  %v276 = vsub.f32 0.0, %v271
  %v277 = vmul.f32 %v276, 1.442695
  %v278 = vpow.pop %v277
  %v279 = vadd.f32 %v278, 1.0
  %v280 = vrcp.pop %v279
  %281 = vst [vmem:[%s5] sm:$0x3] %v280
  // Predicated region
  $region22: #{anynetx_forward.20} parent=0 // pred_check
    _
  $region23: #{anynetx_forward.20} parent=0 // pred_check_branch
    %283 = sbr.rel (0) target = $region25
  $region24: #{anynetx_forward.20} parent=0 // pred_region
    _
  $region25: #{anynetx_forward.20} parent=0 // pred_fallthru
    _
  // Predicated region
  $region26: #{anynetx_forward.20} parent=0 // pred_check
    _
  $region27: #{anynetx_forward.20} parent=0 // pred_check_branch
    %285 = sbr.rel (0) target = $region29
  $region28: #{anynetx_forward.20} parent=0 // pred_region
    _
  $region29: #{anynetx_forward.20} parent=0 // pred_fallthru
    _

// kernel: anynetx_forward.21
$region0: #{anynetx_forward.21}
  #allocation0 [shape = 'u32[]', space=smem, size = 0x4, offset = 0x4, fixed_abs, tag = 'smem constant byte address 0x4 - core index']
  #allocation1 [shape = 'u32[144,128]{1,0:T(1,128)}', space=vmem, size = 0x12000, scoped, tag = 'internal scratch']
  #allocation2 [shape = 'f32[32,128]{1,0:T(8,128)}', space=vmem, size = 0x4000, scoped, tag = 'scratch operand']
  %s0 = inlined_call_operand.vmem [shape: bf16[1,32,128], index: 0, kind: input, shape index: {}]
  %s1 = inlined_call_operand.vmem [shape: bf16[1,128,128], index: 1, kind: input, shape index: {}]
  %s2 = inlined_call_operand.vmem [shape: f32[1,1,128], index: 2, kind: input, shape index: {}]
  %s3 = inlined_call_operand.vmem [shape: f32[1,1,128], index: 3, kind: input, shape index: {}]
  %s4 = inlined_call_operand.vmem [shape: f32[1,32,128], index: 4, kind: output, shape index: {}]
  %s5 = sld [smem:[#allocation0]]
  $region34: #{anynetx_forward.21} parent=0
    _
  %s7 = ssub.s32 1, %s5
  %s8 = scalar_select 0, %s7, %s5
  // Predicated region
  $region2: #{anynetx_forward.21} parent=0 // pred_check
    _
  $region3: #{anynetx_forward.21} parent=0 // pred_check_branch
    %10 = sbr.rel (0) target = $region5
  $region4: #{anynetx_forward.21} parent=0 // pred_region
    _
  $region5: #{anynetx_forward.21} parent=0 // pred_fallthru
    _
  // Predicated region
  $region6: #{anynetx_forward.21} parent=0 // pred_check
    _
  $region7: #{anynetx_forward.21} parent=0 // pred_check_branch
    %12 = sbr.rel (0) target = $region9
  $region8: #{anynetx_forward.21} parent=0 // pred_region
    _
  $region9: #{anynetx_forward.21} parent=0 // pred_fallthru
    _
  // Predicated region
  $region10: #{anynetx_forward.21} parent=0 // pred_check
    _
  $region11: #{anynetx_forward.21} parent=0 // pred_check_branch
    %14 = sbr.rel (0) target = $region13
  $region12: #{anynetx_forward.21} parent=0 // pred_region
    _
  $region13: #{anynetx_forward.21} parent=0 // pred_fallthru
    _
  // Predicated region
  $region14: #{anynetx_forward.21} parent=0 // pred_check
    _
  $region15: #{anynetx_forward.21} parent=0 // pred_check_branch
    %16 = sbr.rel (0) target = $region17
  $region16: #{anynetx_forward.21} parent=0 // pred_region
    _
  $region17: #{anynetx_forward.21} parent=0 // pred_fallthru
    _
  %p18 = scmp.eq.s32.totalorder 0, 0
  // Predicated region
  $region18: #{anynetx_forward.21} parent=0 // pred_check
    %p19 = pneg %p18
  $region19: #{anynetx_forward.21} parent=0 // pred_check_branch
    %21 = sbr.rel (%p19) target = $region21
  $region20: #{anynetx_forward.21} parent=0 // pred_region
    %22 = vst [vmem:[#allocation2] sm:$0xff] 0.0
    %23 = vst [vmem:[#allocation2 + $0x8] sm:$0xff] 0.0
    %24 = vst [vmem:[#allocation2 + $0x10] sm:$0xff] 0.0
    %25 = vst [vmem:[#allocation2 + $0x18] sm:$0xff] 0.0
  $region21: #{anynetx_forward.21} parent=0 // pred_fallthru
    _
  %v26 = vld [vmem:[%s0] sm:$0xf]
  %v27 = vld [vmem:[%s0 + $0x4] sm:$0xf]
  %v28 = vld [vmem:[%s0 + $0x8] sm:$0xf]
  %v29 = vld [vmem:[%s0 + $0xc] sm:$0xf]
  %v30 = vld [vmem:[#allocation2] sm:$0xff]
  %v31 = vld [vmem:[#allocation2 + $0x8] sm:$0xff]
  %v32 = vld [vmem:[#allocation2 + $0x10] sm:$0xff]
  %v33 = vld [vmem:[#allocation2 + $0x18] sm:$0xff]
  %v34 = vld [vmem:[%s1] sm:$0xf]
  %v35 = vld [vmem:[%s1 + $0x4] sm:$0xf]
  %v36 = vld [vmem:[%s1 + $0x8] sm:$0xf]
  %v37 = vld [vmem:[%s1 + $0xc] sm:$0xf]
  %v38 = vld [vmem:[%s1 + $0x10] sm:$0xf]
  %v39 = vld [vmem:[%s1 + $0x14] sm:$0xf]
  %v40 = vld [vmem:[%s1 + $0x18] sm:$0xf]
  %v41 = vld [vmem:[%s1 + $0x1c] sm:$0xf]
  %v42 = vld [vmem:[%s1 + $0x20] sm:$0xf]
  %v43 = vld [vmem:[%s1 + $0x24] sm:$0xf]
  %v44 = vld [vmem:[%s1 + $0x28] sm:$0xf]
  %v45 = vld [vmem:[%s1 + $0x2c] sm:$0xf]
  %v46 = vld [vmem:[%s1 + $0x30] sm:$0xf]
  %v47 = vld [vmem:[%s1 + $0x34] sm:$0xf]
  %v48 = vld [vmem:[%s1 + $0x38] sm:$0xf]
  %v49 = vld [vmem:[%s1 + $0x3c] sm:$0xf]
  %v54 = vunpack.c.l.b16 %v26
  %v55 = vunpack.c.l.b16 %v27
  %v56 = vunpack.c.l.b16 %v28
  %v57 = vunpack.c.l.b16 %v29
  %v58 = vpack.c.b16 %v55, %v54
  %v59 = vpack.c.b16 %v57, %v56
  %v78 = vunpack.c.l.b16 %v34
  %v79 = vunpack.c.l.b16 %v35
  %v80 = vunpack.c.l.b16 %v36
  %v81 = vunpack.c.l.b16 %v37
  %v82 = vunpack.c.l.b16 %v38
  %v83 = vunpack.c.l.b16 %v39
  %v84 = vunpack.c.l.b16 %v40
  %v85 = vunpack.c.l.b16 %v41
  %v86 = vunpack.c.l.b16 %v42
  %v87 = vunpack.c.l.b16 %v43
  %v88 = vunpack.c.l.b16 %v44
  %v89 = vunpack.c.l.b16 %v45
  %v90 = vunpack.c.l.b16 %v46
  %v91 = vunpack.c.l.b16 %v47
  %v92 = vunpack.c.l.b16 %v48
  %v93 = vunpack.c.l.b16 %v49
  %v94 = vpack.c.b16 %v79, %v78
  %v95 = vpack.c.b16 %v81, %v80
  %v96 = vpack.c.b16 %v83, %v82
  %v97 = vpack.c.b16 %v85, %v84
  %v98 = vpack.c.b16 %v87, %v86
  %v99 = vpack.c.b16 %v89, %v88
  %v100 = vpack.c.b16 %v91, %v90
  %v101 = vpack.c.b16 %v93, %v92
  %110 = vmatprep.subr.bf16.mxu0 0
  %111 = vmatpush1.bf16.msra.mxu0 %v94
  %112 = vmatprep.subr.bf16.mxu0 0
  %113 = vmatpush1.bf16.msra.mxu0 %v95
  %114 = vmatprep.subr.bf16.mxu0 0
  %115 = vmatpush1.bf16.msra.mxu0 %v96
  %116 = vmatprep.subr.bf16.mxu0 0
  %117 = vmatpush1.bf16.msra.mxu0 %v97
  %118 = vmatprep.subr.bf16.mxu0 0
  %119 = vmatpush1.bf16.msra.mxu0 %v98
  %120 = vmatprep.subr.bf16.mxu0 0
  %121 = vmatpush1.bf16.msra.mxu0 %v99
  %122 = vmatprep.subr.bf16.mxu0 0
  %123 = vmatpush1.bf16.msra.mxu0 %v100
  %124 = vmatprep.subr.bf16.mxu0 0
  %125 = vmatpush1.bf16.msra.mxu0 %v101
  %126 = vmatprep.subr.bf16.mxu0 0
  %127 = vmatpush1.bf16.msra.mxu0 0
  %128 = vmatprep.subr.bf16.mxu0 0
  %129 = vmatpush1.bf16.msra.mxu0 0
  %130 = vmatprep.subr.bf16.mxu0 0
  %131 = vmatpush1.bf16.msra.mxu0 0
  %132 = vmatprep.subr.bf16.mxu0 0
  %133 = vmatpush1.bf16.msra.mxu0 0
  %134 = vmatprep.subr.bf16.mxu0 0
  %135 = vmatpush1.bf16.msra.mxu0 0
  %136 = vmatprep.subr.bf16.mxu0 0
  %137 = vmatpush1.bf16.msra.mxu0 0
  %138 = vmatprep.subr.bf16.mxu0 0
  %139 = vmatpush1.bf16.msra.mxu0 0
  %140 = vmatprep.subr.bf16.mxu0 0
  %141 = vmatpush1.bf16.msra.mxu0 0
  %142 = vmatprep.mubr.bf16.mxu0 0
  %143 = vmatmul.mubr.bf16.gmra.mrb[0].mxu0 %v58
  %v144 = vpop.f32.mrb[0].mxu0
  %v145 = vadd.f32 0.0, %v144
  %v146 = vpop.f32.mrb[0].mxu0
  %v147 = vpop.f32.mrb[0].mxu0
  %v148 = vadd.f32 0.0, %v147
  %v149 = vpop.f32.mrb[0].mxu0
  %150 = vmatprep.mubr.bf16.mxu0 0
  %151 = vmatmul.mubr.bf16.gmra.mrb[0].mxu0 %v59
  %v152 = vpop.f32.mrb[0].mxu0
  %v153 = vadd.f32 0.0, %v152
  %v154 = vpop.f32.mrb[0].mxu0
  %v155 = vpop.f32.mrb[0].mxu0
  %v156 = vadd.f32 0.0, %v155
  %v157 = vpop.f32.mrb[0].mxu0
  %158 = vdwg.mxu0
  %v159 = vadd.f32 %v30, %v145
  %v160 = vadd.f32 %v31, %v148
  %v161 = vadd.f32 %v32, %v153
  %v162 = vadd.f32 %v33, %v156
  %163 = vst [vmem:[#allocation2] sm:$0xff] %v159
  %164 = vst [vmem:[#allocation2 + $0x8] sm:$0xff] %v160
  %165 = vst [vmem:[#allocation2 + $0x10] sm:$0xff] %v161
  %166 = vst [vmem:[#allocation2 + $0x18] sm:$0xff] %v162
  // Predicated region
  $region22: #{anynetx_forward.21} parent=0 // pred_check
    %p167 = pneg %p18
  $region23: #{anynetx_forward.21} parent=0 // pred_check_branch
    %169 = sbr.rel (%p167) target = $region25
  $region24: #{anynetx_forward.21} parent=0 // pred_region
    %v170 = vld [vmem:[#allocation2] sm:$0xff]
    %v171 = vld [vmem:[#allocation2 + $0x8] sm:$0xff]
    %v172 = vld [vmem:[#allocation2 + $0x10] sm:$0xff]
    %v173 = vld [vmem:[#allocation2 + $0x18] sm:$0xff]
    %v174 = vld [vmem:[%s2] sm:$0x1]
    %v176 = vlaneseq
    %v177 = vshrl.u32 %v176, 7
    %v178 = vsub.s32 0, %v177
    %v179 = vrot.slane %v174, %v178
    %v181 = vmul.f32 %v170, %v179
    %v182 = vmul.f32 %v171, %v179
    %v183 = vmul.f32 %v172, %v179
    %v184 = vmul.f32 %v173, %v179
    %v185 = vld [vmem:[%s3] sm:$0x1]
    %v187 = vlaneseq
    %v188 = vshrl.u32 %v187, 7
    %v189 = vsub.s32 0, %v188
    %v190 = vrot.slane %v185, %v189
    %v192 = vadd.f32 %v181, %v190
    %v193 = vadd.f32 %v182, %v190
    %v194 = vadd.f32 %v183, %v190
    %v195 = vadd.f32 %v184, %v190
    %196 = vst [vmem:[%s4] sm:$0xff] %v192
    %197 = vst [vmem:[%s4 + $0x8] sm:$0xff] %v193
    %198 = vst [vmem:[%s4 + $0x10] sm:$0xff] %v194
    %199 = vst [vmem:[%s4 + $0x18] sm:$0xff] %v195
  $region25: #{anynetx_forward.21} parent=0 // pred_fallthru
    _
  // Predicated region
  $region26: #{anynetx_forward.21} parent=0 // pred_check
    _
  $region27: #{anynetx_forward.21} parent=0 // pred_check_branch
    %201 = sbr.rel (0) target = $region29
  $region28: #{anynetx_forward.21} parent=0 // pred_region
    _
  $region29: #{anynetx_forward.21} parent=0 // pred_fallthru
    _
  // Predicated region
  $region30: #{anynetx_forward.21} parent=0 // pred_check
    _
  $region31: #{anynetx_forward.21} parent=0 // pred_check_branch
    %203 = sbr.rel (0) target = $region33
  $region32: #{anynetx_forward.21} parent=0 // pred_region
    _
  $region33: #{anynetx_forward.21} parent=0 // pred_fallthru
    _

// kernel: anynetx_forward.22
$region0: #{anynetx_forward.22}
  #allocation0 [shape = 'u32[]', space=smem, size = 0x4, offset = 0x4, fixed_abs, tag = 'smem constant byte address 0x4 - core index']
  #allocation1 [shape = 'u32[144,128]{1,0:T(1,128)}', space=vmem, size = 0x12000, scoped, tag = 'internal scratch']
  #allocation2 [shape = 'f32[16,128]{1,0:T(8,128)}', space=vmem, size = 0x2000, scoped, tag = 'scratch operand']
  %s0 = inlined_call_operand.vmem [shape: bf16[2,16,128], index: 0, kind: input, shape index: {}]
  %s1 = inlined_call_operand.vmem [shape: bf16[1,128,128], index: 1, kind: input, shape index: {}]
  %s2 = inlined_call_operand.vmem [shape: f32[1,1,128], index: 2, kind: input, shape index: {}]
  %s3 = inlined_call_operand.vmem [shape: f32[1,1,128], index: 3, kind: input, shape index: {}]
  %s4 = inlined_call_operand.vmem [shape: f32[2,1,128], index: 4, kind: input, shape index: {}]
  %s5 = inlined_call_operand.vmem [shape: f32[2,16,128], index: 5, kind: input, shape index: {}]
  %s6 = inlined_call_operand.vmem [shape: f32[2,16,128], index: 6, kind: output, shape index: {}]
  %s7 = sld [smem:[#allocation0]]
  $region65: #{anynetx_forward.22} parent=0
    _
  %s9 = ssub.s32 1, %s7
  %s10 = scalar_select 0, %s9, %s7
  loop: start=0, step=1, limit=4
  $region2: #{anynetx_forward.22} parent=0 // loop_pre_header
    _
  $region3: #{anynetx_forward.22} parent=0 // loop_header
    %s12 = sphi 0, %s16
    %p13 = scmp.ge.s32.totalorder %s12, 4
    %s19 = sphi 0, %s45
    %s20 = sphi 0, %s41
    %s21 = sphi 0, %s37
    %s22 = sphi 0, %s33
    %s23 = sphi 0, %s19
    %s24 = sphi 0, %s20
    %s25 = sphi 0, %s21
    %s26 = sphi 0, %s22
    %s27 = sphi 0, %s23
    %s28 = sphi 0, %s24
    %s29 = sphi 0, %s25
    %s30 = sphi 0, %s26
    %s52 = sphi 0, %s54
    %s55 = sphi 0, %s52
    %s56 = sphi 0, %s55
    %s72 = sphi 0, %s56
    %s80 = sphi 0, %s82
    %s83 = sphi 0, %s80
    %s84 = sphi 0, %s83
    %s100 = sphi 0, %s84
    %s106 = sphi 0, %s108
    %s109 = sphi 0, %s106
    %s110 = sphi 0, %s109
    %s126 = sphi 0, %s110
    %s132 = sphi 0, %s134
    %s135 = sphi 0, %s132
    %s136 = sphi 0, %s135
    %s152 = sphi 0, %s136
    %s160 = sphi 0, %s162
    %s163 = sphi 0, %s160
    %s164 = sphi 0, %s163
    %s180 = sphi 0, %s164
    %s190 = sphi 0, %s192
    %s193 = sphi 0, %s190
    %s194 = sphi 0, %s193
    %s210 = sphi 0, %s194
    %s220 = sphi 0, %s222
    %s223 = sphi 0, %s220
    %s224 = sphi 0, %s223
    %s240 = sphi 0, %s224
  $region4: #{anynetx_forward.22} parent=0 // loop_header_branch
    %15 = sbr.rel (%p13) target = $region8
  $region5: #{anynetx_forward.22} parent=0 // loop_body
    %s17 = ssub.s32 %s12, 1
    %s18 = ssub.s32 %s12, 2
    %s31 = sadd.s32 1, %s22
    %p32 = scmp.ge.s32.totalorder %s31, 1
    %s33 = scalar_select %p32, 0, %s31
    %s34 = sadd.s32 1, %s21
    %s35 = scalar_select %p32, %s34, %s21
    %p36 = scmp.ge.s32.totalorder %s35, 1
    %s37 = scalar_select %p36, 0, %s35
    %s38 = sadd.s32 1, %s20
    %s39 = scalar_select %p36, %s38, %s20
    %p40 = scmp.ge.s32.totalorder %s39, 1
    %s41 = scalar_select %p40, 0, %s39
    %s42 = sadd.s32 1, %s19
    %s43 = scalar_select %p40, %s42, %s19
    %p44 = scmp.ge.s32.totalorder %s43, 2
    %s45 = scalar_select %p44, 0, %s43
    %s46 = ssub.s32 %s19, %s45
    %s47 = ssub.s32 %s20, %s41
    %s48 = sor.u32 %s46, %s47
    %s49 = ssub.s32 %s22, %s33
    %s50 = sor.u32 %s48, %s49
    %p51 = scmp.eq.s32.totalorder %s50, 0
    %s53 = sadd.s32 %s52, 1
    %s54 = scalar_select %p51, %s52, %s53
    %p57 = pneg %p51
    %p58 = scmp.eq.s32.totalorder %s12, 1
    %p59 = por %p57, %p58
    %p60 = scmp.ne.s32.totalorder %s52, %s55
    %p61 = scmp.eq.s32.totalorder %s12, 0
    %p62 = por %p60, %p61
    %p63 = scmp.ne.s32.totalorder %s52, %s55
    %p64 = scmp.eq.s32.totalorder %s17, 1
    %p65 = por %p63, %p64
    %p66 = scmp.ne.s32.totalorder %s55, %s56
    %p67 = scmp.eq.s32.totalorder %s17, 0
    %p68 = por %p66, %p67
    %p69 = scmp.ne.s32.totalorder %s55, %s56
    %p70 = scmp.eq.s32.totalorder %s18, 1
    %p71 = por %p69, %p70
    %p73 = scmp.ne.s32.totalorder %s56, %s72
    %p74 = scmp.eq.s32.totalorder %s18, 0
    %p75 = por %p73, %p74
    %s76 = ssub.s32 %s22, %s33
    %s77 = ssub.s32 %s21, %s37
    %s78 = sor.u32 %s76, %s77
    %p79 = scmp.eq.s32.totalorder %s78, 0
    %s81 = sadd.s32 %s80, 1
    %s82 = scalar_select %p79, %s80, %s81
    %p85 = pneg %p79
    %p86 = scmp.eq.s32.totalorder %s12, 1
    %p87 = por %p85, %p86
    %p88 = scmp.ne.s32.totalorder %s80, %s83
    %p89 = scmp.eq.s32.totalorder %s12, 0
    %p90 = por %p88, %p89
    %p91 = scmp.ne.s32.totalorder %s80, %s83
    %p92 = scmp.eq.s32.totalorder %s17, 1
    %p93 = por %p91, %p92
    %p94 = scmp.ne.s32.totalorder %s83, %s84
    %p95 = scmp.eq.s32.totalorder %s17, 0
    %p96 = por %p94, %p95
    %p97 = scmp.ne.s32.totalorder %s83, %s84
    %p98 = scmp.eq.s32.totalorder %s18, 1
    %p99 = por %p97, %p98
    %p101 = scmp.ne.s32.totalorder %s84, %s100
    %p102 = scmp.eq.s32.totalorder %s18, 0
    %p103 = por %p101, %p102
    %s104 = ssub.s32 %s21, %s37
    %p105 = scmp.eq.s32.totalorder %s104, 0
    %s107 = sadd.s32 %s106, 1
    %s108 = scalar_select %p105, %s106, %s107
    %p111 = pneg %p105
    %p112 = scmp.eq.s32.totalorder %s12, 1
    %p113 = por %p111, %p112
    %p114 = scmp.ne.s32.totalorder %s106, %s109
    %p115 = scmp.eq.s32.totalorder %s12, 0
    %p116 = por %p114, %p115
    %p117 = scmp.ne.s32.totalorder %s106, %s109
    %p118 = scmp.eq.s32.totalorder %s17, 1
    %p119 = por %p117, %p118
    %p120 = scmp.ne.s32.totalorder %s109, %s110
    %p121 = scmp.eq.s32.totalorder %s17, 0
    %p122 = por %p120, %p121
    %p123 = scmp.ne.s32.totalorder %s109, %s110
    %p124 = scmp.eq.s32.totalorder %s18, 1
    %p125 = por %p123, %p124
    %p127 = scmp.ne.s32.totalorder %s110, %s126
    %p128 = scmp.eq.s32.totalorder %s18, 0
    %p129 = por %p127, %p128
    %s130 = ssub.s32 %s21, %s37
    %p131 = scmp.eq.s32.totalorder %s130, 0
    %s133 = sadd.s32 %s132, 1
    %s134 = scalar_select %p131, %s132, %s133
    %p137 = pneg %p131
    %p138 = scmp.eq.s32.totalorder %s12, 1
    %p139 = por %p137, %p138
    %p140 = scmp.ne.s32.totalorder %s132, %s135
    %p141 = scmp.eq.s32.totalorder %s12, 0
    %p142 = por %p140, %p141
    %p143 = scmp.ne.s32.totalorder %s132, %s135
    %p144 = scmp.eq.s32.totalorder %s17, 1
    %p145 = por %p143, %p144
    %p146 = scmp.ne.s32.totalorder %s135, %s136
    %p147 = scmp.eq.s32.totalorder %s17, 0
    %p148 = por %p146, %p147
    %p149 = scmp.ne.s32.totalorder %s135, %s136
    %p150 = scmp.eq.s32.totalorder %s18, 1
    %p151 = por %p149, %p150
    %p153 = scmp.ne.s32.totalorder %s136, %s152
    %p154 = scmp.eq.s32.totalorder %s18, 0
    %p155 = por %p153, %p154
    %s156 = ssub.s32 %s19, %s45
    %s157 = ssub.s32 %s22, %s33
    %s158 = sor.u32 %s156, %s157
    %p159 = scmp.eq.s32.totalorder %s158, 0
    %s161 = sadd.s32 %s160, 1
    %s162 = scalar_select %p159, %s160, %s161
    %p165 = pneg %p159
    %p166 = scmp.eq.s32.totalorder %s12, 1
    %p167 = por %p165, %p166
    %p168 = scmp.ne.s32.totalorder %s160, %s163
    %p169 = scmp.eq.s32.totalorder %s12, 0
    %p170 = por %p168, %p169
    %p171 = scmp.ne.s32.totalorder %s160, %s163
    %p172 = scmp.eq.s32.totalorder %s17, 1
    %p173 = por %p171, %p172
    %p174 = scmp.ne.s32.totalorder %s163, %s164
    %p175 = scmp.eq.s32.totalorder %s17, 0
    %p176 = por %p174, %p175
    %p177 = scmp.ne.s32.totalorder %s163, %s164
    %p178 = scmp.eq.s32.totalorder %s18, 1
    %p179 = por %p177, %p178
    %p181 = scmp.ne.s32.totalorder %s164, %s180
    %p182 = scmp.eq.s32.totalorder %s18, 0
    %p183 = por %p181, %p182
    %s184 = ssub.s32 %s19, %s45
    %s185 = ssub.s32 %s20, %s41
    %s186 = sor.u32 %s184, %s185
    %s187 = ssub.s32 %s21, %s37
    %s188 = sor.u32 %s186, %s187
    %p189 = scmp.eq.s32.totalorder %s188, 0
    %s191 = sadd.s32 %s190, 1
    %s192 = scalar_select %p189, %s190, %s191
    %p195 = pneg %p189
    %p196 = scmp.eq.s32.totalorder %s12, 1
    %p197 = por %p195, %p196
    %p198 = scmp.ne.s32.totalorder %s190, %s193
    %p199 = scmp.eq.s32.totalorder %s12, 0
    %p200 = por %p198, %p199
    %p201 = scmp.ne.s32.totalorder %s190, %s193
    %p202 = scmp.eq.s32.totalorder %s17, 1
    %p203 = por %p201, %p202
    %p204 = scmp.ne.s32.totalorder %s193, %s194
    %p205 = scmp.eq.s32.totalorder %s17, 0
    %p206 = por %p204, %p205
    %p207 = scmp.ne.s32.totalorder %s193, %s194
    %p208 = scmp.eq.s32.totalorder %s18, 1
    %p209 = por %p207, %p208
    %p211 = scmp.ne.s32.totalorder %s194, %s210
    %p212 = scmp.eq.s32.totalorder %s18, 0
    %p213 = por %p211, %p212
    %s214 = ssub.s32 %s19, %s45
    %s215 = ssub.s32 %s20, %s41
    %s216 = sor.u32 %s214, %s215
    %s217 = ssub.s32 %s21, %s37
    %s218 = sor.u32 %s216, %s217
    %p219 = scmp.eq.s32.totalorder %s218, 0
    %s221 = sadd.s32 %s220, 1
    %s222 = scalar_select %p219, %s220, %s221
    %p225 = pneg %p219
    %p226 = scmp.eq.s32.totalorder %s12, 1
    %p227 = por %p225, %p226
    %p228 = scmp.ne.s32.totalorder %s220, %s223
    %p229 = scmp.eq.s32.totalorder %s12, 0
    %p230 = por %p228, %p229
    %p231 = scmp.ne.s32.totalorder %s220, %s223
    %p232 = scmp.eq.s32.totalorder %s17, 1
    %p233 = por %p231, %p232
    %p234 = scmp.ne.s32.totalorder %s223, %s224
    %p235 = scmp.eq.s32.totalorder %s17, 0
    %p236 = por %p234, %p235
    %p237 = scmp.ne.s32.totalorder %s223, %s224
    %p238 = scmp.eq.s32.totalorder %s18, 1
    %p239 = por %p237, %p238
    %p241 = scmp.ne.s32.totalorder %s224, %s240
    %p242 = scmp.eq.s32.totalorder %s18, 0
    %p243 = por %p241, %p242
    %p244 = scmp.le.s32.totalorder 1, %s12
    %p245 = scmp.lt.s32.totalorder %s12, 3
    %p246 = pnand %p244, %p245
    %p247 = pneg %p246
    // Predicated region
    $region9: #{anynetx_forward.22} parent=5 // pred_check
      _
    $region10: #{anynetx_forward.22} parent=5 // pred_check_branch
      %249 = sbr.rel (%p246) target = $region12
    $region11: #{anynetx_forward.22} parent=5 // pred_region
      %s250 = ssub.s32 %s12, 1
      // Predicated region
      $region13: #{anynetx_forward.22} parent=11 // pred_check
        %p251 = pneg %p96
      $region14: #{anynetx_forward.22} parent=11 // pred_check_branch
        %253 = sbr.rel (%p251) target = $region16
      $region15: #{anynetx_forward.22} parent=11 // pred_region
        %s254 = smul.u32 16, %s26
        %p255 = scmp.lt.s32.totalorder %s254, 15
        %s256 = scalar_select %p255, %s254, 15
        %p257 = scmp.lt.s32.totalorder %s25, 0
        %s258 = scalar_select %p257, %s25, 0
        %s259 = sadd.s32 %s258, %s256
        %s260 = smul.addr %s259, 4
        %s261 = scalar_lea.vmem %s1, %s260
        %s262 = smul.u32 16, %s26
      $region16: #{anynetx_forward.22} parent=11 // pred_fallthru
        _
      // Predicated region
      $region17: #{anynetx_forward.22} parent=11 // pred_check
        %p263 = pneg %p122
      $region18: #{anynetx_forward.22} parent=11 // pred_check_branch
        %265 = sbr.rel (%p263) target = $region20
      $region19: #{anynetx_forward.22} parent=11 // pred_region
        %p266 = scmp.lt.s32.totalorder %s25, 0
        %s267 = scalar_select %p266, %s25, 0
        %s268 = scalar_lea.vmem %s2, %s267
      $region20: #{anynetx_forward.22} parent=11 // pred_fallthru
        _
      // Predicated region
      $region21: #{anynetx_forward.22} parent=11 // pred_check
        %p269 = pneg %p148
      $region22: #{anynetx_forward.22} parent=11 // pred_check_branch
        %271 = sbr.rel (%p269) target = $region24
      $region23: #{anynetx_forward.22} parent=11 // pred_region
        %p272 = scmp.lt.s32.totalorder %s25, 0
        %s273 = scalar_select %p272, %s25, 0
        %s274 = scalar_lea.vmem %s3, %s273
      $region24: #{anynetx_forward.22} parent=11 // pred_fallthru
        _
    $region12: #{anynetx_forward.22} parent=5 // pred_fallthru
      _
    %p275 = scmp.lt.s32.totalorder %s12, 2
    // Predicated region
    $region25: #{anynetx_forward.22} parent=5 // pred_check
      %p276 = pneg %p275
    $region26: #{anynetx_forward.22} parent=5 // pred_check_branch
      %278 = sbr.rel (%p276) target = $region28
    $region27: #{anynetx_forward.22} parent=5 // pred_region
      // Predicated region
      $region29: #{anynetx_forward.22} parent=27 // pred_check
        %p279 = pneg %p62
      $region30: #{anynetx_forward.22} parent=27 // pred_check_branch
        %281 = sbr.rel (%p279) target = $region32
      $region31: #{anynetx_forward.22} parent=27 // pred_region
        %s282 = smul.u32 2, %s20
        %p283 = scmp.lt.s32.totalorder %s19, 1
        %s284 = scalar_select %p283, %s19, 1
        %p285 = scmp.lt.s32.totalorder %s282, 1
        %s286 = scalar_select %p285, %s282, 1
        %p287 = scmp.lt.s32.totalorder %s22, 0
        %s288 = scalar_select %p287, %s22, 0
        %s289 = sadd.s32 %s288, %s286
        %s290 = smul.addr %s284, 2
        %s291 = sadd.s32 %s289, %s290
        %s292 = smul.addr %s291, 4
        %s293 = scalar_lea.vmem %s0, %s292
        %s294 = smul.u32 2, %s20
      $region32: #{anynetx_forward.22} parent=27 // pred_fallthru
        _
      // Predicated region
      $region33: #{anynetx_forward.22} parent=27 // pred_check
        %p295 = pneg %p170
      $region34: #{anynetx_forward.22} parent=27 // pred_check_branch
        %297 = sbr.rel (%p295) target = $region36
      $region35: #{anynetx_forward.22} parent=27 // pred_region
        %p298 = scmp.lt.s32.totalorder %s19, 1
        %s299 = scalar_select %p298, %s19, 1
        %p300 = scmp.lt.s32.totalorder %s22, 0
        %s301 = scalar_select %p300, %s22, 0
        %s302 = sadd.s32 %s301, %s299
        %s303 = scalar_lea.vmem %s4, %s302
      $region36: #{anynetx_forward.22} parent=27 // pred_fallthru
        _
      // Predicated region
      $region37: #{anynetx_forward.22} parent=27 // pred_check
        %p304 = pneg %p200
      $region38: #{anynetx_forward.22} parent=27 // pred_check_branch
        %306 = sbr.rel (%p304) target = $region40
      $region39: #{anynetx_forward.22} parent=27 // pred_region
        %s307 = smul.u32 2, %s20
        %p308 = scmp.lt.s32.totalorder %s19, 1
        %s309 = scalar_select %p308, %s19, 1
        %p310 = scmp.lt.s32.totalorder %s307, 1
        %s311 = scalar_select %p310, %s307, 1
        %p312 = scmp.lt.s32.totalorder %s21, 0
        %s313 = scalar_select %p312, %s21, 0
        %s314 = sadd.s32 %s313, %s311
        %s315 = smul.addr %s309, 2
        %s316 = sadd.s32 %s314, %s315
        %s317 = smul.addr %s316, 8
        %s318 = scalar_lea.vmem %s5, %s317
        %s319 = smul.u32 2, %s20
      $region40: #{anynetx_forward.22} parent=27 // pred_fallthru
        _
    $region28: #{anynetx_forward.22} parent=5 // pred_fallthru
      _
    %p320 = scmp.le.s32.totalorder 1, %s12
    %p321 = scmp.lt.s32.totalorder %s12, 3
    %p322 = pnand %p320, %p321
    %p323 = pneg %p322
    // Predicated region
    $region41: #{anynetx_forward.22} parent=5 // pred_check
      _
    $region42: #{anynetx_forward.22} parent=5 // pred_check_branch
      %325 = sbr.rel (%p322) target = $region44
    $region43: #{anynetx_forward.22} parent=5 // pred_region
      %s326 = ssub.s32 %s12, 1
      %s327 = smul.u32 2, %s24
      %p328 = scmp.lt.s32.totalorder %s23, 1
      %s329 = scalar_select %p328, %s23, 1
      %p330 = scmp.lt.s32.totalorder %s327, 1
      %s331 = scalar_select %p330, %s327, 1
      %p332 = scmp.lt.s32.totalorder %s26, 0
      %s333 = scalar_select %p332, %s26, 0
      %s334 = sadd.s32 %s333, %s331
      %s335 = smul.addr %s329, 2
      %s336 = sadd.s32 %s334, %s335
      %s337 = smul.addr %s336, 4
      %s338 = scalar_lea.vmem %s0, %s337
      %p339 = pneg %p68
      %p340 = pneg %p65
      %s341 = smul.u32 16, %s26
      %p342 = scmp.lt.s32.totalorder %s341, 15
      %s343 = scalar_select %p342, %s341, 15
      %p344 = scmp.lt.s32.totalorder %s25, 0
      %s345 = scalar_select %p344, %s25, 0
      %s346 = sadd.s32 %s345, %s343
      %s347 = smul.addr %s346, 4
      %s348 = scalar_lea.vmem %s1, %s347
      %p349 = pneg %p96
      %p350 = pneg %p93
      %p351 = scmp.lt.s32.totalorder %s25, 0
      %s352 = scalar_select %p351, %s25, 0
      %s353 = scalar_lea.vmem %s2, %s352
      %p354 = pneg %p122
      %p355 = pneg %p119
      %p356 = scmp.lt.s32.totalorder %s25, 0
      %s357 = scalar_select %p356, %s25, 0
      %s358 = scalar_lea.vmem %s3, %s357
      %p359 = pneg %p148
      %p360 = pneg %p145
      %p361 = scmp.lt.s32.totalorder %s23, 1
      %s362 = scalar_select %p361, %s23, 1
      %p363 = scmp.lt.s32.totalorder %s26, 0
      %s364 = scalar_select %p363, %s26, 0
      %s365 = sadd.s32 %s364, %s362
      %s366 = scalar_lea.vmem %s4, %s365
      %p367 = pneg %p176
      %p368 = pneg %p173
      %s369 = smul.u32 2, %s24
      %p370 = scmp.lt.s32.totalorder %s23, 1
      %s371 = scalar_select %p370, %s23, 1
      %p372 = scmp.lt.s32.totalorder %s369, 1
      %s373 = scalar_select %p372, %s369, 1
      %p374 = scmp.lt.s32.totalorder %s25, 0
      %s375 = scalar_select %p374, %s25, 0
      %s376 = sadd.s32 %s375, %s373
      %s377 = smul.addr %s371, 2
      %s378 = sadd.s32 %s376, %s377
      %s379 = smul.addr %s378, 8
      %s380 = scalar_lea.vmem %s5, %s379
      %p381 = pneg %p206
      %p382 = pneg %p203
      %p383 = pneg %p236
      %p384 = pneg %p233
      %s385 = smul.u32 2, %s24
      %p386 = scmp.lt.s32.totalorder %s23, 1
      %s387 = scalar_select %p386, %s23, 1
      %p388 = scmp.lt.s32.totalorder %s385, 1
      %s389 = scalar_select %p388, %s385, 1
      %p390 = scmp.lt.s32.totalorder %s25, 0
      %s391 = scalar_select %p390, %s25, 0
      %s392 = sadd.s32 %s391, %s389
      %s393 = smul.addr %s387, 2
      %s394 = sadd.s32 %s392, %s393
      %s395 = smul.addr %s394, 8
      %s396 = scalar_lea.vmem %s6, %s395
      %s397 = smul.u32 2, %s24
      %p398 = scmp.lt.s32.totalorder %s23, 1
      %s399 = scalar_select %p398, %s23, 1
      %p400 = scmp.lt.s32.totalorder %s397, 1
      %s401 = scalar_select %p400, %s397, 1
      %p402 = scmp.lt.s32.totalorder %s26, 0
      %s403 = scalar_select %p402, %s26, 0
      %s404 = sadd.s32 %s403, %s401
      %s405 = smul.addr %s399, 2
      %s406 = sadd.s32 %s404, %s405
      %s407 = smul.addr %s406, 4
      %s408 = scalar_lea.vmem %s0, %s407
      %s409 = smul.u32 2, %s24
      %s410 = smul.u32 16, %s26
      %p411 = scmp.lt.s32.totalorder %s410, 15
      %s412 = scalar_select %p411, %s410, 15
      %p413 = scmp.lt.s32.totalorder %s25, 0
      %s414 = scalar_select %p413, %s25, 0
      %s415 = sadd.s32 %s414, %s412
      %s416 = smul.addr %s415, 4
      %s417 = scalar_lea.vmem %s1, %s416
      %s418 = smul.u32 16, %s26
      %p419 = scmp.lt.s32.totalorder %s25, 0
      %s420 = scalar_select %p419, %s25, 0
      %s421 = scalar_lea.vmem %s2, %s420
      %p422 = scmp.lt.s32.totalorder %s25, 0
      %s423 = scalar_select %p422, %s25, 0
      %s424 = scalar_lea.vmem %s3, %s423
      %p425 = scmp.lt.s32.totalorder %s23, 1
      %s426 = scalar_select %p425, %s23, 1
      %p427 = scmp.lt.s32.totalorder %s26, 0
      %s428 = scalar_select %p427, %s26, 0
      %s429 = sadd.s32 %s428, %s426
      %s430 = scalar_lea.vmem %s4, %s429
      %s431 = smul.u32 2, %s24
      %p432 = scmp.lt.s32.totalorder %s23, 1
      %s433 = scalar_select %p432, %s23, 1
      %p434 = scmp.lt.s32.totalorder %s431, 1
      %s435 = scalar_select %p434, %s431, 1
      %p436 = scmp.lt.s32.totalorder %s25, 0
      %s437 = scalar_select %p436, %s25, 0
      %s438 = sadd.s32 %s437, %s435
      %s439 = smul.addr %s433, 2
      %s440 = sadd.s32 %s438, %s439
      %s441 = smul.addr %s440, 8
      %s442 = scalar_lea.vmem %s5, %s441
      %s443 = smul.u32 2, %s24
      %s444 = smul.u32 2, %s24
      %p445 = scmp.lt.s32.totalorder %s23, 1
      %s446 = scalar_select %p445, %s23, 1
      %p447 = scmp.lt.s32.totalorder %s444, 1
      %s448 = scalar_select %p447, %s444, 1
      %p449 = scmp.lt.s32.totalorder %s25, 0
      %s450 = scalar_select %p449, %s25, 0
      %s451 = sadd.s32 %s450, %s448
      %s452 = smul.addr %s446, 2
      %s453 = sadd.s32 %s451, %s452
      %s454 = smul.addr %s453, 8
      %s455 = scalar_lea.vmem %s6, %s454
      %s456 = smul.u32 2, %s24
      %p458 = scmp.eq.s32.totalorder %s26, 0
      // Predicated region
      $region45: #{anynetx_forward.22} parent=43 // pred_check
        %p459 = pneg %p458
      $region46: #{anynetx_forward.22} parent=43 // pred_check_branch
        %461 = sbr.rel (%p459) target = $region48
      $region47: #{anynetx_forward.22} parent=43 // pred_region
        %462 = vst [vmem:[#allocation2] sm:$0xff] 0.0
        %463 = vst [vmem:[#allocation2 + $0x8] sm:$0xff] 0.0
      $region48: #{anynetx_forward.22} parent=43 // pred_fallthru
        _
      %v464 = vld [vmem:[%s408] sm:$0xf]
      %v465 = vld [vmem:[%s408 + $0x4] sm:$0xf]
      %v466 = vunpack.c.l.bf16 %v464
      %v467 = vunpack.c.l.bf16 %v465
      %v468 = vld [vmem:[%s430] sm:$0x1]
      %v470 = vlaneseq
      %v471 = vshrl.u32 %v470, 7
      %v472 = vsub.s32 0, %v471
      %v473 = vrot.slane %v468, %v472
      %v475 = vmul.f32 %v466, %v473
      %v476 = vmul.f32 %v467, %v473
      %v477 = vpack.c.bf16 %v476, %v475
      %v478 = vld [vmem:[#allocation2] sm:$0xff]
      %v479 = vld [vmem:[#allocation2 + $0x8] sm:$0xff]
      %v480 = vld [vmem:[%s417] sm:$0xf]
      %v481 = vld [vmem:[%s417 + $0x4] sm:$0xf]
      %v482 = vld [vmem:[%s417 + $0x8] sm:$0xf]
      %v483 = vld [vmem:[%s417 + $0xc] sm:$0xf]
      %v484 = vld [vmem:[%s417 + $0x10] sm:$0xf]
      %v485 = vld [vmem:[%s417 + $0x14] sm:$0xf]
      %v486 = vld [vmem:[%s417 + $0x18] sm:$0xf]
      %v487 = vld [vmem:[%s417 + $0x1c] sm:$0xf]
      %v488 = vld [vmem:[%s417 + $0x20] sm:$0xf]
      %v489 = vld [vmem:[%s417 + $0x24] sm:$0xf]
      %v490 = vld [vmem:[%s417 + $0x28] sm:$0xf]
      %v491 = vld [vmem:[%s417 + $0x2c] sm:$0xf]
      %v492 = vld [vmem:[%s417 + $0x30] sm:$0xf]
      %v493 = vld [vmem:[%s417 + $0x34] sm:$0xf]
      %v494 = vld [vmem:[%s417 + $0x38] sm:$0xf]
      %v495 = vld [vmem:[%s417 + $0x3c] sm:$0xf]
      %v512 = vunpack.c.l.b16 %v480
      %v513 = vunpack.c.l.b16 %v481
      %v514 = vunpack.c.l.b16 %v482
      %v515 = vunpack.c.l.b16 %v483
      %v516 = vunpack.c.l.b16 %v484
      %v517 = vunpack.c.l.b16 %v485
      %v518 = vunpack.c.l.b16 %v486
      %v519 = vunpack.c.l.b16 %v487
      %v520 = vunpack.c.l.b16 %v488
      %v521 = vunpack.c.l.b16 %v489
      %v522 = vunpack.c.l.b16 %v490
      %v523 = vunpack.c.l.b16 %v491
      %v524 = vunpack.c.l.b16 %v492
      %v525 = vunpack.c.l.b16 %v493
      %v526 = vunpack.c.l.b16 %v494
      %v527 = vunpack.c.l.b16 %v495
      %v528 = vpack.c.b16 %v513, %v512
      %v529 = vpack.c.b16 %v515, %v514
      %v530 = vpack.c.b16 %v517, %v516
      %v531 = vpack.c.b16 %v519, %v518
      %v532 = vpack.c.b16 %v521, %v520
      %v533 = vpack.c.b16 %v523, %v522
      %v534 = vpack.c.b16 %v525, %v524
      %v535 = vpack.c.b16 %v527, %v526
      %544 = vmatprep.subr.bf16.mxu0 0
      %545 = vmatpush1.bf16.msra.mxu0 %v528
      %546 = vmatprep.subr.bf16.mxu0 0
      %547 = vmatpush1.bf16.msra.mxu0 %v529
      %548 = vmatprep.subr.bf16.mxu0 0
      %549 = vmatpush1.bf16.msra.mxu0 %v530
      %550 = vmatprep.subr.bf16.mxu0 0
      %551 = vmatpush1.bf16.msra.mxu0 %v531
      %552 = vmatprep.subr.bf16.mxu0 0
      %553 = vmatpush1.bf16.msra.mxu0 %v532
      %554 = vmatprep.subr.bf16.mxu0 0
      %555 = vmatpush1.bf16.msra.mxu0 %v533
      %556 = vmatprep.subr.bf16.mxu0 0
      %557 = vmatpush1.bf16.msra.mxu0 %v534
      %558 = vmatprep.subr.bf16.mxu0 0
      %559 = vmatpush1.bf16.msra.mxu0 %v535
      %560 = vmatprep.subr.bf16.mxu0 0
      %561 = vmatpush1.bf16.msra.mxu0 0
      %562 = vmatprep.subr.bf16.mxu0 0
      %563 = vmatpush1.bf16.msra.mxu0 0
      %564 = vmatprep.subr.bf16.mxu0 0
      %565 = vmatpush1.bf16.msra.mxu0 0
      %566 = vmatprep.subr.bf16.mxu0 0
      %567 = vmatpush1.bf16.msra.mxu0 0
      %568 = vmatprep.subr.bf16.mxu0 0
      %569 = vmatpush1.bf16.msra.mxu0 0
      %570 = vmatprep.subr.bf16.mxu0 0
      %571 = vmatpush1.bf16.msra.mxu0 0
      %572 = vmatprep.subr.bf16.mxu0 0
      %573 = vmatpush1.bf16.msra.mxu0 0
      %574 = vmatprep.subr.bf16.mxu0 0
      %575 = vmatpush1.bf16.msra.mxu0 0
      %576 = vmatprep.mubr.bf16.mxu0 0
      %577 = vmatmul.mubr.bf16.gmra.mrb[0].mxu0 %v477
      %v578 = vpop.f32.mrb[0].mxu0
      %v579 = vadd.f32 0.0, %v578
      %v580 = vpop.f32.mrb[0].mxu0
      %v581 = vpop.f32.mrb[0].mxu0
      %v582 = vadd.f32 0.0, %v581
      %v583 = vpop.f32.mrb[0].mxu0
      %584 = vdwg.mxu0
      %v585 = vadd.f32 %v478, %v579
      %v586 = vadd.f32 %v479, %v582
      %587 = vst [vmem:[#allocation2] sm:$0xff] %v585
      %588 = vst [vmem:[#allocation2 + $0x8] sm:$0xff] %v586
      // Predicated region
      $region49: #{anynetx_forward.22} parent=43 // pred_check
        %p589 = pneg %p458
      $region50: #{anynetx_forward.22} parent=43 // pred_check_branch
        %591 = sbr.rel (%p589) target = $region52
      $region51: #{anynetx_forward.22} parent=43 // pred_region
        %v592 = vld [vmem:[#allocation2] sm:$0xff]
        %v593 = vld [vmem:[#allocation2 + $0x8] sm:$0xff]
        %v594 = vld [vmem:[%s421] sm:$0x1]
        %v596 = vlaneseq
        %v597 = vshrl.u32 %v596, 7
        %v598 = vsub.s32 0, %v597
        %v599 = vrot.slane %v594, %v598
        %v601 = vmul.f32 %v592, %v599
        %v602 = vmul.f32 %v593, %v599
        %v603 = vld [vmem:[%s424] sm:$0x1]
        %v605 = vlaneseq
        %v606 = vshrl.u32 %v605, 7
        %v607 = vsub.s32 0, %v606
        %v608 = vrot.slane %v603, %v607
        %v610 = vadd.f32 %v601, %v608
        %v611 = vadd.f32 %v602, %v608
        %v612 = vld [vmem:[%s442] sm:$0xff]
        %v613 = vld [vmem:[%s442 + $0x8] sm:$0xff]
        %v614 = vadd.f32 %v610, %v612
        %v615 = vadd.f32 %v611, %v613
        %v616 = vmax.f32 %v614, 0.0
        %v617 = vmax.f32 %v615, 0.0
        %618 = vst [vmem:[%s455] sm:$0xff] %v616
        %619 = vst [vmem:[%s455 + $0x8] sm:$0xff] %v617
      $region52: #{anynetx_forward.22} parent=43 // pred_fallthru
        _
      %s620 = smul.u32 2, %s24
      %p621 = scmp.lt.s32.totalorder %s23, 1
      %s622 = scalar_select %p621, %s23, 1
      %p623 = scmp.lt.s32.totalorder %s620, 1
      %s624 = scalar_select %p623, %s620, 1
      %p625 = scmp.lt.s32.totalorder %s25, 0
      %s626 = scalar_select %p625, %s25, 0
      %s627 = sadd.s32 %s626, %s624
      %s628 = smul.addr %s622, 2
      %s629 = sadd.s32 %s627, %s628
      %s630 = smul.addr %s629, 8
      %s631 = scalar_lea.vmem %s6, %s630
      // Predicated region
      $region53: #{anynetx_forward.22} parent=43 // pred_check
        %p632 = pneg %p233
      $region54: #{anynetx_forward.22} parent=43 // pred_check_branch
        %634 = sbr.rel (%p632) target = $region56
      $region55: #{anynetx_forward.22} parent=43 // pred_region
        %s635 = smul.u32 2, %s24
      $region56: #{anynetx_forward.22} parent=43 // pred_fallthru
        _
    $region44: #{anynetx_forward.22} parent=5 // pred_fallthru
      _
    %p636 = scmp.le.s32.totalorder 2, %s12
    // Predicated region
    $region57: #{anynetx_forward.22} parent=5 // pred_check
      %p637 = pneg %p636
    $region58: #{anynetx_forward.22} parent=5 // pred_check_branch
      %639 = sbr.rel (%p637) target = $region60
    $region59: #{anynetx_forward.22} parent=5 // pred_region
      %s640 = ssub.s32 %s12, 2
      // Predicated region
      $region61: #{anynetx_forward.22} parent=59 // pred_check
        %p641 = pneg %p239
      $region62: #{anynetx_forward.22} parent=59 // pred_check_branch
        %643 = sbr.rel (%p641) target = $region64
      $region63: #{anynetx_forward.22} parent=59 // pred_region
        %s644 = smul.u32 2, %s28
        %p645 = scmp.lt.s32.totalorder %s27, 1
        %s646 = scalar_select %p645, %s27, 1
        %p647 = scmp.lt.s32.totalorder %s644, 1
        %s648 = scalar_select %p647, %s644, 1
        %p649 = scmp.lt.s32.totalorder %s29, 0
        %s650 = scalar_select %p649, %s29, 0
        %s651 = sadd.s32 %s650, %s648
        %s652 = smul.addr %s646, 2
        %s653 = sadd.s32 %s651, %s652
        %s654 = smul.addr %s653, 8
        %s655 = scalar_lea.vmem %s6, %s654
      $region64: #{anynetx_forward.22} parent=59 // pred_fallthru
        _
    $region60: #{anynetx_forward.22} parent=5 // pred_fallthru
      _
  $region6: #{anynetx_forward.22} parent=0 // loop_footer
    %s16 = sadd.s32 1, %s12
  $region7: #{anynetx_forward.22} parent=0 // loop_footer_branch
    %11 = sbr.rel target = $region3
  $region8: #{anynetx_forward.22} parent=0 // loop_exit
    _

// kernel: anynetx_forward.23
$region0: #{anynetx_forward.23}
  #allocation0 [shape = 'u32[]', space=smem, size = 0x4, offset = 0x4, fixed_abs, tag = 'smem constant byte address 0x4 - core index']
  #allocation1 [shape = 'u32[144,128]{1,0:T(1,128)}', space=vmem, size = 0x12000, scoped, tag = 'internal scratch']
  %s0 = inlined_call_operand.vmem [shape: f32[2,16,128], index: 0, kind: input, shape index: {}]
  %s1 = inlined_call_operand.vmem [shape: bf16[128,128], index: 1, kind: input, shape index: {}]
  %s2 = inlined_call_operand.vmem [shape: f32[1,128], index: 2, kind: input, shape index: {}]
  %s3 = inlined_call_operand.hbm [shape: f32[2,128], index: 3, kind: output, shape index: {}]
  %s4 = sld [smem:[#allocation0]]
  $region22: #{anynetx_forward.23} parent=0
    _
  %s6 = ssub.s32 1, %s4
  %s7 = scalar_select 0, %s6, %s4
  $region1: #{anynetx_forward.23} parent=0
    #allocation2 [shape = 'u8[1024]{0}', space=vmem, size = 0x400, scoped, tag = 'output window, operand 0, single buffered']
    #allocation3 [shape = 's32[1]{0}', space=sflag, size = 0x4, scoped, tag = 'scoped memory for anynetx_forward.23']
    %8 = vsyncpa [#allocation3], 0
    // Predicated region
    $region2: #{anynetx_forward.23} parent=1 // pred_check
      _
    $region3: #{anynetx_forward.23} parent=1 // pred_check_branch
      %10 = sbr.rel (0) target = $region5
    $region4: #{anynetx_forward.23} parent=1 // pred_region
      _
    $region5: #{anynetx_forward.23} parent=1 // pred_fallthru
      _
    // Predicated region
    $region6: #{anynetx_forward.23} parent=1 // pred_check
      _
    $region7: #{anynetx_forward.23} parent=1 // pred_check_branch
      %12 = sbr.rel (0) target = $region9
    $region8: #{anynetx_forward.23} parent=1 // pred_region
      _
    $region9: #{anynetx_forward.23} parent=1 // pred_fallthru
      _
    // Predicated region
    $region10: #{anynetx_forward.23} parent=1 // pred_check
      _
    $region11: #{anynetx_forward.23} parent=1 // pred_check_branch
      %14 = sbr.rel (0) target = $region13
    $region12: #{anynetx_forward.23} parent=1 // pred_region
      _
    $region13: #{anynetx_forward.23} parent=1 // pred_fallthru
      _
    %v16 = vld [vmem:[%s0] sm:$0xff]
    %v17 = vld [vmem:[%s0 + $0x8] sm:$0xff]
    %v18 = vld [vmem:[%s0 + $0x10] sm:$0xff]
    %v19 = vld [vmem:[%s0 + $0x18] sm:$0xff]
    %v20 = vadd.f32 %v16, %v17
    %v21 = vrot.slane %v20, 4
    %v22 = vadd.f32 %v20, %v21
    %v23 = vrot.slane %v22, 2
    %v24 = vadd.f32 %v22, %v23
    %v25 = vrot.slane %v24, 1
    %v26 = vadd.f32 %v24, %v25
    %v27 = vadd.f32 %v18, %v19
    %v28 = vrot.slane %v27, 4
    %v29 = vadd.f32 %v27, %v28
    %v30 = vrot.slane %v29, 2
    %v31 = vadd.f32 %v29, %v30
    %v32 = vrot.slane %v31, 1
    %v33 = vadd.f32 %v31, %v32
    %v34 = vrcp.pop 16.0
    %v35 = vmul.f32 %v26, %v34
    %v36 = vmul.f32 %v33, %v34
    %v37 = vpack.c.bf16 %v35, %v35
    %v38 = vpack.c.bf16 %v36, %v36
    %v39 = vld [vmem:[%s1] sm:$0xf]
    %v40 = vld [vmem:[%s1 + $0x4] sm:$0xf]
    %v41 = vld [vmem:[%s1 + $0x8] sm:$0xf]
    %v42 = vld [vmem:[%s1 + $0xc] sm:$0xf]
    %v43 = vld [vmem:[%s1 + $0x10] sm:$0xf]
    %v44 = vld [vmem:[%s1 + $0x14] sm:$0xf]
    %v45 = vld [vmem:[%s1 + $0x18] sm:$0xf]
    %v46 = vld [vmem:[%s1 + $0x1c] sm:$0xf]
    %v47 = vld [vmem:[%s1 + $0x20] sm:$0xf]
    %v48 = vld [vmem:[%s1 + $0x24] sm:$0xf]
    %v49 = vld [vmem:[%s1 + $0x28] sm:$0xf]
    %v50 = vld [vmem:[%s1 + $0x2c] sm:$0xf]
    %v51 = vld [vmem:[%s1 + $0x30] sm:$0xf]
    %v52 = vld [vmem:[%s1 + $0x34] sm:$0xf]
    %v53 = vld [vmem:[%s1 + $0x38] sm:$0xf]
    %v54 = vld [vmem:[%s1 + $0x3c] sm:$0xf]
    %v55 = vld [vmem:[%s2] sm:$0x1]
    %v57 = vlaneseq
    %v58 = vshrl.u32 %v57, 7
    %v59 = vsub.s32 0, %v58
    %v60 = vrot.slane %v55, %v59
    %v64 = vunpack.c.l.b16 %v37
    %v65 = vunpack.c.l.b16 %v38
    %vm66 = vcmask 1041409
    %v67 = vsel %vm66, %v65, %v64
    %v68 = vpack.c.b16 %v67, %v67
    %v86 = vunpack.c.l.b16 %v39
    %v87 = vunpack.c.l.b16 %v40
    %v88 = vunpack.c.l.b16 %v41
    %v89 = vunpack.c.l.b16 %v42
    %v90 = vunpack.c.l.b16 %v43
    %v91 = vunpack.c.l.b16 %v44
    %v92 = vunpack.c.l.b16 %v45
    %v93 = vunpack.c.l.b16 %v46
    %v94 = vunpack.c.l.b16 %v47
    %v95 = vunpack.c.l.b16 %v48
    %v96 = vunpack.c.l.b16 %v49
    %v97 = vunpack.c.l.b16 %v50
    %v98 = vunpack.c.l.b16 %v51
    %v99 = vunpack.c.l.b16 %v52
    %v100 = vunpack.c.l.b16 %v53
    %v101 = vunpack.c.l.b16 %v54
    %v102 = vpack.c.b16 %v87, %v86
    %v103 = vpack.c.b16 %v89, %v88
    %v104 = vpack.c.b16 %v91, %v90
    %v105 = vpack.c.b16 %v93, %v92
    %v106 = vpack.c.b16 %v95, %v94
    %v107 = vpack.c.b16 %v97, %v96
    %v108 = vpack.c.b16 %v99, %v98
    %v109 = vpack.c.b16 %v101, %v100
    %118 = vmatprep.subr.bf16.mxu0 0
    %119 = vmatpush1.bf16.msra.mxu0 %v102
    %120 = vmatprep.subr.bf16.mxu0 0
    %121 = vmatpush1.bf16.msra.mxu0 %v103
    %122 = vmatprep.subr.bf16.mxu0 0
    %123 = vmatpush1.bf16.msra.mxu0 %v104
    %124 = vmatprep.subr.bf16.mxu0 0
    %125 = vmatpush1.bf16.msra.mxu0 %v105
    %126 = vmatprep.subr.bf16.mxu0 0
    %127 = vmatpush1.bf16.msra.mxu0 %v106
    %128 = vmatprep.subr.bf16.mxu0 0
    %129 = vmatpush1.bf16.msra.mxu0 %v107
    %130 = vmatprep.subr.bf16.mxu0 0
    %131 = vmatpush1.bf16.msra.mxu0 %v108
    %132 = vmatprep.subr.bf16.mxu0 0
    %133 = vmatpush1.bf16.msra.mxu0 %v109
    %134 = vmatprep.subr.bf16.mxu0 0
    %135 = vmatpush1.bf16.msra.mxu0 0
    %136 = vmatprep.subr.bf16.mxu0 0
    %137 = vmatpush1.bf16.msra.mxu0 0
    %138 = vmatprep.subr.bf16.mxu0 0
    %139 = vmatpush1.bf16.msra.mxu0 0
    %140 = vmatprep.subr.bf16.mxu0 0
    %141 = vmatpush1.bf16.msra.mxu0 0
    %142 = vmatprep.subr.bf16.mxu0 0
    %143 = vmatpush1.bf16.msra.mxu0 0
    %144 = vmatprep.subr.bf16.mxu0 0
    %145 = vmatpush1.bf16.msra.mxu0 0
    %146 = vmatprep.subr.bf16.mxu0 0
    %147 = vmatpush1.bf16.msra.mxu0 0
    %148 = vmatprep.subr.bf16.mxu0 0
    %149 = vmatpush1.bf16.msra.mxu0 0
    %150 = vmatprep.mubr.bf16.mxu0 0
    %151 = vmatmul.mubr.bf16.gmra.mrb[0].mxu0 %v68
    %v152 = vpop.f32.mrb[0].mxu0
    %v153 = vadd.f32 %v60, %v152
    %v154 = vpop.f32.mrb[0].mxu0
    %v155 = vpop.f32.mrb[0].mxu0
    %v156 = vpop.f32.mrb[0].mxu0
    %157 = vdwg.mxu0
    %158 = vst [vmem:[#allocation2] sm:$0x3] %v153
    // Predicated region
    $region14: #{anynetx_forward.23} parent=1 // pred_check
      _
    $region15: #{anynetx_forward.23} parent=1 // pred_check_branch
      %160 = sbr.rel (0) target = $region17
    $region16: #{anynetx_forward.23} parent=1 // pred_region
      %s162 = ssub.s32 32, 32
      %163 = vsyncadd [#allocation3], %s162
      %s165 = sshll.u32 [#allocation2], 4
      %s166 = int_to_ptr.vmem [resolvable:$true] %s165
      %168 = dma.vmem_to_hbm [thread:$0]  %s166, 32, %s3, [#allocation3]
    $region17: #{anynetx_forward.23} parent=1 // pred_fallthru
      _
    // Predicated region
    $region18: #{anynetx_forward.23} parent=1 // pred_check
      _
    $region19: #{anynetx_forward.23} parent=1 // pred_check_branch
      %170 = sbr.rel (0) target = $region21
    $region20: #{anynetx_forward.23} parent=1 // pred_region
      %171 = dma.done [#allocation3], 32
    $region21: #{anynetx_forward.23} parent=1 // pred_fallthru
      _
    %172 = vsyncpa [#allocation3], 1

</llo_original>
